<compile_context>
chip_gen: v7x
topology: tpu7x:2x2x1
jax: 0.10.0
libtpu: 0.0.40
codegen_flags: <defaults>
</compile_context>

<pallas_src>
import functools

import jax
import jax.numpy as jnp
from jax.experimental import pallas as pl
from jax.experimental.pallas import tpu as pltpu


def _fused_conv3_kernel(x_ref, w1_ref, b1_ref, w2_ref, b2_ref, w3_ref, b3_ref,
                        o_ref, act1_ref, act2_ref, *, H, W, R):
    """One (batch, row-tile) step of the fused 3-layer conv+ReLU stack.

    x_ref   : (1, H+6, W+2, Cin) bf16   zero-padded input plane (3 rows / 1 col pad)
    w1_ref  : (9, Cin, C1) bf16         b1_ref: (1, C1) f32
    w2_ref  : (9, C1,  C2) bf16         b2_ref: (1, C2) f32
    w3_ref  : (9, C2)      bf16         b3_ref: (1, 1)  f32
    o_ref   : (1, R, W) f32             output tile (lane dim = image width)
    act1_ref: (R+4, W+2, C1) f32 VMEM   layer-1 activations (+row halo, +col pad)
    act2_ref: (R+2, W+2, C2) f32 VMEM   layer-2 activations (+row halo, +col pad)
    """
    cin = x_ref.shape[3]
    c1 = w1_ref.shape[2]
    c2 = w2_ref.shape[2]
    r0 = pl.program_id(1) * R            # first output image row of this tile

    # ---- layer 1: Conv3x3(cin->c1) + ReLU over image rows [r0-2, r0+R+2) ----------
    n1 = R + 4
    acc1 = jnp.zeros((n1 * W, c1), jnp.float32)
    for k in range(9):
        dy, dx = divmod(k, 3)
        tap = x_ref[0, pl.ds(r0 + dy, n1), dx:dx + W, :]          # (n1, W, cin) bf16
        acc1 = acc1 + jnp.dot(tap.reshape(n1 * W, cin), w1_ref[k],
                              preferred_element_type=jnp.float32)
    acc1 = jnp.maximum(acc1 + b1_ref[...], 0.0).reshape(n1, W, c1)
    # Halo rows outside the image must be zero: they act as layer-2's SAME padding.
    row1 = jax.lax.broadcasted_iota(jnp.int32, (n1, 1, 1), 0) + (r0 - 2)
    acc1 = jnp.where((row1 >= 0) & (row1 < H), acc1, 0.0)
    act1_ref[:, 0:1, :] = jnp.zeros((n1, 1, c1), act1_ref.dtype)          # left col pad
    act1_ref[:, W + 1:W + 2, :] = jnp.zeros((n1, 1, c1), act1_ref.dtype)  # right col pad
    act1_ref[:, 1:W + 1, :] = acc1

    # ---- layer 2: Conv3x3(c1->c2) + ReLU over image rows [r0-1, r0+R+1) -----------
    n2 = R + 2
    acc2 = jnp.zeros((n2 * W, c2), jnp.float32)
    for k in range(9):
        dy, dx = divmod(k, 3)
        tap = act1_ref[dy:dy + n2, dx:dx + W, :]                  # (n2, W, c1) f32
        acc2 = acc2 + jnp.dot(tap.reshape(n2 * W, c1).astype(jnp.bfloat16),
                              w2_ref[k], preferred_element_type=jnp.float32)
    acc2 = jnp.maximum(acc2 + b2_ref[...], 0.0).reshape(n2, W, c2)
    row2 = jax.lax.broadcasted_iota(jnp.int32, (n2, 1, 1), 0) + (r0 - 1)
    acc2 = jnp.where((row2 >= 0) & (row2 < H), acc2, 0.0)
    act2_ref[:, 0:1, :] = jnp.zeros((n2, 1, c2), act2_ref.dtype)
    act2_ref[:, W + 1:W + 2, :] = jnp.zeros((n2, 1, c2), act2_ref.dtype)
    act2_ref[:, 1:W + 1, :] = acc2

    # ---- layer 3: Conv3x3(c2->1) + ReLU over image rows [r0, r0+R) ----------------
    # Cout == 1: do the 9*c2 -> 1 reduction on the VPU so the stored tile is (R, W)
    # with the image width on the lane axis (no (S, 1) masked store).
    acc3 = jnp.zeros((R, W), jnp.float32)
    for k in range(9):
        dy, dx = divmod(k, 3)
        tap = act2_ref[dy:dy + R, dx:dx + W, :]                   # (R, W, c2) f32
        acc3 = acc3 + jnp.sum(tap * w3_ref[k:k + 1, :].astype(jnp.float32), axis=-1)
    o_ref[0] = jnp.maximum(acc3 + b3_ref[0, 0], 0.0).astype(o_ref.dtype)


def _pick_row_tile(H, W, c1=32, c2=64):
    """Output rows per grid step: multiple of 8 (or full H), divides H, and keeps the
    f32 activation scratch to a few MiB (v7x only has 64 MiB of VMEM)."""
    if H % 8 != 0:
        return H
    budget = 6 * 1024 * 1024
    fits = []
    for cand in range(8, H + 1, 8):
        if H % cand:
            continue
        scratch = ((cand + 4) * c1 + (cand + 2) * c2) * (W + 2) * 4
        if scratch <= budget:
            fits.append(cand)
    if not fits:
        return 8
    multi = [c for c in fits if H // c >= 2]   # prefer >=2 tiles for the parallel axis
    return max(multi) if multi else max(fits)


def stereo_depth_net(x_nchw, params):
    """Fused forward pass. Input NCHW f32, output NCHW (N, 1, H, W) f32."""
    (w1, b1), (w2, b2), (w3, b3) = params
    N, cin, H, W = x_nchw.shape
    c1, c2 = w1.shape[-1], w2.shape[-1]
    R = _pick_row_tile(H, W, c1, c2)
    T = H // R

    # NCHW -> NHWC, bf16 operands, zero pad: 3 rows (three stacked 3x3 convs), 1 col.
    x = jnp.transpose(x_nchw, (0, 2, 3, 1)).astype(jnp.bfloat16)
    xp = jnp.pad(x, ((0, 0), (3, 3), (1, 1), (0, 0)))

    w1k = w1.reshape(9, cin, c1).astype(jnp.bfloat16)
    w2k = w2.reshape(9, c1, c2).astype(jnp.bfloat16)
    w3k = w3.reshape(9, c2).astype(jnp.bfloat16)
    b1k = b1.reshape(1, c1).astype(jnp.float32)
    b2k = b2.reshape(1, c2).astype(jnp.float32)
    b3k = b3.reshape(1, 1).astype(jnp.float32)

    kernel = functools.partial(_fused_conv3_kernel, H=H, W=W, R=R)
    out = pl.pallas_call(
        kernel,
        out_shape=jax.ShapeDtypeStruct((N, H, W), jnp.float32),
        grid=(N, T),
        in_specs=[
            pl.BlockSpec((1, H + 6, W + 2, cin), lambda n, t: (n, 0, 0, 0)),
            pl.BlockSpec((9, cin, c1), lambda n, t: (0, 0, 0)),
            pl.BlockSpec((1, c1), lambda n, t: (0, 0)),
            pl.BlockSpec((9, c1, c2), lambda n, t: (0, 0, 0)),
            pl.BlockSpec((1, c2), lambda n, t: (0, 0)),
            pl.BlockSpec((9, c2), lambda n, t: (0, 0)),
            pl.BlockSpec((1, 1), lambda n, t: (0, 0)),
        ],
        out_specs=pl.BlockSpec((1, R, W), lambda n, t: (n, t, 0)),
        scratch_shapes=[
            pltpu.VMEM((R + 4, W + 2, c1), jnp.float32),
            pltpu.VMEM((R + 2, W + 2, c2), jnp.float32),
        ],
        compiler_params=pltpu.CompilerParams(
            dimension_semantics=("parallel", "parallel"),
            vmem_limit_bytes=32 * 1024 * 1024,   # raise v5e's 16 MiB scoped default
        ),
    )(xp, w1k, b1k, w2k, b2k, w3k, b3k)
    return out[:, None, :, :]                    # (N, 1, H, W)


def init_params(key):
    """Deterministic init matching the PyTorch module's layer shapes
    (nn.Conv2d default: U(-1/sqrt(fan_in), 1/sqrt(fan_in)))."""
    params = []
    for i, (cin, cout) in enumerate([(3, 32), (32, 64), (64, 1)]):
        kw, kb = jax.random.split(jax.random.fold_in(key, i))
        bound = 1.0 / float(jnp.sqrt(cin * 9.0))
        w = jax.random.uniform(kw, (3, 3, cin, cout), jnp.float32, -bound, bound)
        b = jax.random.uniform(kb, (cout,), jnp.float32, -bound, bound)
        params.append((w, b))
    return params


def _reference(x_nchw, params):
    """Pure-JAX reference (lax conv) for a sanity check."""
    x = x_nchw
    for w, b in params:
        y = jax.lax.conv_general_dilated(
            x, w, window_strides=(1, 1), padding="SAME",
            dimension_numbers=("NCHW", "HWIO", "NCHW"))
        x = jnp.maximum(y + b.reshape(1, -1, 1, 1), 0.0)
    return x


if __name__ == "__main__":
    key = jax.random.PRNGKey(0)
    k_x, k_p = jax.random.split(key)

    # Small stereo-ish RGB input: batch=2, 3 channels, 16x16 spatial.
    x = jax.random.normal(k_x, (2, 3, 16, 16), dtype=jnp.float32)
    params = init_params(k_p)

    fwd = jax.jit(stereo_depth_net)
    out = jax.block_until_ready(fwd(x, params))
    assert out.shape == (2, 1, 16, 16), out.shape

    ref = jax.block_until_ready(_reference(x, params))
    max_err = float(jnp.max(jnp.abs(out - ref)))
    assert jnp.allclose(out, ref, rtol=2e-2, atol=2e-2), (
        f"mismatch vs JAX reference, max abs err = {max_err}")

    print("KERNEL_OK")
</pallas_src>

<mosaic_0001>
module attributes {stable_mosaic.version = 11 : i64} {
  func.func @_fused_conv3_kernel(%arg0: i32, %arg1: i32, %arg2: memref<1x22x18x3xbf16, #tpu.memory_space<vmem>>, %arg3: memref<9x3x32xbf16, #tpu.memory_space<vmem>>, %arg4: memref<1x32xf32, #tpu.memory_space<vmem>>, %arg5: memref<9x32x64xbf16, #tpu.memory_space<vmem>>, %arg6: memref<1x64xf32, #tpu.memory_space<vmem>>, %arg7: memref<9x64xbf16, #tpu.memory_space<vmem>>, %arg8: memref<1x1xf32, #tpu.memory_space<vmem>>, %arg9: memref<1x8x16xf32, #tpu.memory_space<vmem>>, %arg10: memref<12x18x32xf32, #tpu.memory_space<vmem>>, %arg11: memref<10x18x64xf32, #tpu.memory_space<vmem>>) attributes {dimension_semantics = [#tpu.dimension_semantics<parallel>, #tpu.dimension_semantics<parallel>], iteration_bounds = array<i64: 2, 2>, scalar_prefetch = 0 : i64, scratch_operands = 2 : i64, tpu.core_type = #tpu.core_type<tc>, window_params = [{transform_indices = @transform_0, window_bounds = array<i64: 1, 22, 18, 3>}, {pipeline_mode = #tpu.pipeline_mode<synchronous>, transform_indices = @transform_1, window_bounds = array<i64: 9, 3, 32>}, {pipeline_mode = #tpu.pipeline_mode<synchronous>, transform_indices = @transform_2, window_bounds = array<i64: 1, 32>}, {pipeline_mode = #tpu.pipeline_mode<synchronous>, transform_indices = @transform_3, window_bounds = array<i64: 9, 32, 64>}, {pipeline_mode = #tpu.pipeline_mode<synchronous>, transform_indices = @transform_4, window_bounds = array<i64: 1, 64>}, {pipeline_mode = #tpu.pipeline_mode<synchronous>, transform_indices = @transform_5, window_bounds = array<i64: 9, 64>}, {pipeline_mode = #tpu.pipeline_mode<synchronous>, transform_indices = @transform_6, window_bounds = array<i64: 1, 1>}, {transform_indices = @transform_7, window_bounds = array<i64: 1, 8, 16>}]} {
    %c8_i32 = arith.constant 8 : i32
    %0 = arith.muli %arg1, %c8_i32 : i32
    %cst = arith.constant 0.000000e+00 : f32
    %1 = vector.broadcast %cst : f32 to vector<192x32xf32>
    %c0_i32 = arith.constant 0 : i32
    %2 = arith.addi %0, %c0_i32 : i32
    %c0 = arith.constant 0 : index
    %3 = arith.index_cast %2 : i32 to index
    %c0_0 = arith.constant 0 : index
    %c0_1 = arith.constant 0 : index
    %4 = vector.load %arg2[%c0, %3, %c0_0, %c0_1] : memref<1x22x18x3xbf16, #tpu.memory_space<vmem>>, vector<1x12x16x3xbf16>
    %5 = vector.shape_cast %4 : vector<1x12x16x3xbf16> to vector<12x16x3xbf16>
    %6 = vector.shape_cast %5 : vector<12x16x3xbf16> to vector<192x3xbf16>
    %c0_2 = arith.constant 0 : index
    %c0_3 = arith.constant 0 : index
    %c0_4 = arith.constant 0 : index
    %7 = vector.load %arg3[%c0_2, %c0_3, %c0_4] : memref<9x3x32xbf16, #tpu.memory_space<vmem>>, vector<1x3x32xbf16>
    %8 = vector.shape_cast %7 : vector<1x3x32xbf16> to vector<3x32xbf16>
    %cst_5 = arith.constant dense<0.000000e+00> : vector<192x32xf32>
    %9 = tpu.matmul %6, %8, %cst_5 {dimension_numbers = #tpu.dot_dimension_numbers<[1], [0], [0], [1], [0, 0, 1, 1], [], []>} : vector<192x3xbf16>, vector<3x32xbf16>, vector<192x32xf32> -> vector<192x32xf32>
    %10 = arith.addf %1, %9 : vector<192x32xf32>
    %c0_i32_6 = arith.constant 0 : i32
    %11 = arith.addi %0, %c0_i32_6 : i32
    %c0_7 = arith.constant 0 : index
    %12 = arith.index_cast %11 : i32 to index
    %c1 = arith.constant 1 : index
    %c0_8 = arith.constant 0 : index
    %13 = vector.load %arg2[%c0_7, %12, %c1, %c0_8] : memref<1x22x18x3xbf16, #tpu.memory_space<vmem>>, vector<1x12x16x3xbf16>
    %14 = vector.shape_cast %13 : vector<1x12x16x3xbf16> to vector<12x16x3xbf16>
    %15 = vector.shape_cast %14 : vector<12x16x3xbf16> to vector<192x3xbf16>
    %c1_9 = arith.constant 1 : index
    %c0_10 = arith.constant 0 : index
    %c0_11 = arith.constant 0 : index
    %16 = vector.load %arg3[%c1_9, %c0_10, %c0_11] : memref<9x3x32xbf16, #tpu.memory_space<vmem>>, vector<1x3x32xbf16>
    %17 = vector.shape_cast %16 : vector<1x3x32xbf16> to vector<3x32xbf16>
    %cst_12 = arith.constant dense<0.000000e+00> : vector<192x32xf32>
    %18 = tpu.matmul %15, %17, %cst_12 {dimension_numbers = #tpu.dot_dimension_numbers<[1], [0], [0], [1], [0, 0, 1, 1], [], []>} : vector<192x3xbf16>, vector<3x32xbf16>, vector<192x32xf32> -> vector<192x32xf32>
    %19 = arith.addf %10, %18 : vector<192x32xf32>
    %c0_i32_13 = arith.constant 0 : i32
    %20 = arith.addi %0, %c0_i32_13 : i32
    %c0_14 = arith.constant 0 : index
    %21 = arith.index_cast %20 : i32 to index
    %c2 = arith.constant 2 : index
    %c0_15 = arith.constant 0 : index
    %22 = vector.load %arg2[%c0_14, %21, %c2, %c0_15] : memref<1x22x18x3xbf16, #tpu.memory_space<vmem>>, vector<1x12x16x3xbf16>
    %23 = vector.shape_cast %22 : vector<1x12x16x3xbf16> to vector<12x16x3xbf16>
    %24 = vector.shape_cast %23 : vector<12x16x3xbf16> to vector<192x3xbf16>
    %c2_16 = arith.constant 2 : index
    %c0_17 = arith.constant 0 : index
    %c0_18 = arith.constant 0 : index
    %25 = vector.load %arg3[%c2_16, %c0_17, %c0_18] : memref<9x3x32xbf16, #tpu.memory_space<vmem>>, vector<1x3x32xbf16>
    %26 = vector.shape_cast %25 : vector<1x3x32xbf16> to vector<3x32xbf16>
    %cst_19 = arith.constant dense<0.000000e+00> : vector<192x32xf32>
    %27 = tpu.matmul %24, %26, %cst_19 {dimension_numbers = #tpu.dot_dimension_numbers<[1], [0], [0], [1], [0, 0, 1, 1], [], []>} : vector<192x3xbf16>, vector<3x32xbf16>, vector<192x32xf32> -> vector<192x32xf32>
    %28 = arith.addf %19, %27 : vector<192x32xf32>
    %c1_i32 = arith.constant 1 : i32
    %29 = arith.addi %0, %c1_i32 : i32
    %c0_20 = arith.constant 0 : index
    %30 = arith.index_cast %29 : i32 to index
    %c0_21 = arith.constant 0 : index
    %c0_22 = arith.constant 0 : index
    %31 = vector.load %arg2[%c0_20, %30, %c0_21, %c0_22] : memref<1x22x18x3xbf16, #tpu.memory_space<vmem>>, vector<1x12x16x3xbf16>
    %32 = vector.shape_cast %31 : vector<1x12x16x3xbf16> to vector<12x16x3xbf16>
    %33 = vector.shape_cast %32 : vector<12x16x3xbf16> to vector<192x3xbf16>
    %c3 = arith.constant 3 : index
    %c0_23 = arith.constant 0 : index
    %c0_24 = arith.constant 0 : index
    %34 = vector.load %arg3[%c3, %c0_23, %c0_24] : memref<9x3x32xbf16, #tpu.memory_space<vmem>>, vector<1x3x32xbf16>
    %35 = vector.shape_cast %34 : vector<1x3x32xbf16> to vector<3x32xbf16>
    %cst_25 = arith.constant dense<0.000000e+00> : vector<192x32xf32>
    %36 = tpu.matmul %33, %35, %cst_25 {dimension_numbers = #tpu.dot_dimension_numbers<[1], [0], [0], [1], [0, 0, 1, 1], [], []>} : vector<192x3xbf16>, vector<3x32xbf16>, vector<192x32xf32> -> vector<192x32xf32>
    %37 = arith.addf %28, %36 : vector<192x32xf32>
    %c1_i32_26 = arith.constant 1 : i32
    %38 = arith.addi %0, %c1_i32_26 : i32
    %c0_27 = arith.constant 0 : index
    %39 = arith.index_cast %38 : i32 to index
    %c1_28 = arith.constant 1 : index
    %c0_29 = arith.constant 0 : index
    %40 = vector.load %arg2[%c0_27, %39, %c1_28, %c0_29] : memref<1x22x18x3xbf16, #tpu.memory_space<vmem>>, vector<1x12x16x3xbf16>
    %41 = vector.shape_cast %40 : vector<1x12x16x3xbf16> to vector<12x16x3xbf16>
    %42 = vector.shape_cast %41 : vector<12x16x3xbf16> to vector<192x3xbf16>
    %c4 = arith.constant 4 : index
    %c0_30 = arith.constant 0 : index
    %c0_31 = arith.constant 0 : index
    %43 = vector.load %arg3[%c4, %c0_30, %c0_31] : memref<9x3x32xbf16, #tpu.memory_space<vmem>>, vector<1x3x32xbf16>
    %44 = vector.shape_cast %43 : vector<1x3x32xbf16> to vector<3x32xbf16>
    %cst_32 = arith.constant dense<0.000000e+00> : vector<192x32xf32>
    %45 = tpu.matmul %42, %44, %cst_32 {dimension_numbers = #tpu.dot_dimension_numbers<[1], [0], [0], [1], [0, 0, 1, 1], [], []>} : vector<192x3xbf16>, vector<3x32xbf16>, vector<192x32xf32> -> vector<192x32xf32>
    %46 = arith.addf %37, %45 : vector<192x32xf32>
    %c1_i32_33 = arith.constant 1 : i32
    %47 = arith.addi %0, %c1_i32_33 : i32
    %c0_34 = arith.constant 0 : index
    %48 = arith.index_cast %47 : i32 to index
    %c2_35 = arith.constant 2 : index
    %c0_36 = arith.constant 0 : index
    %49 = vector.load %arg2[%c0_34, %48, %c2_35, %c0_36] : memref<1x22x18x3xbf16, #tpu.memory_space<vmem>>, vector<1x12x16x3xbf16>
    %50 = vector.shape_cast %49 : vector<1x12x16x3xbf16> to vector<12x16x3xbf16>
    %51 = vector.shape_cast %50 : vector<12x16x3xbf16> to vector<192x3xbf16>
    %c5 = arith.constant 5 : index
    %c0_37 = arith.constant 0 : index
    %c0_38 = arith.constant 0 : index
    %52 = vector.load %arg3[%c5, %c0_37, %c0_38] : memref<9x3x32xbf16, #tpu.memory_space<vmem>>, vector<1x3x32xbf16>
    %53 = vector.shape_cast %52 : vector<1x3x32xbf16> to vector<3x32xbf16>
    %cst_39 = arith.constant dense<0.000000e+00> : vector<192x32xf32>
    %54 = tpu.matmul %51, %53, %cst_39 {dimension_numbers = #tpu.dot_dimension_numbers<[1], [0], [0], [1], [0, 0, 1, 1], [], []>} : vector<192x3xbf16>, vector<3x32xbf16>, vector<192x32xf32> -> vector<192x32xf32>
    %55 = arith.addf %46, %54 : vector<192x32xf32>
    %c2_i32 = arith.constant 2 : i32
    %56 = arith.addi %0, %c2_i32 : i32
    %c0_40 = arith.constant 0 : index
    %57 = arith.index_cast %56 : i32 to index
    %c0_41 = arith.constant 0 : index
    %c0_42 = arith.constant 0 : index
    %58 = vector.load %arg2[%c0_40, %57, %c0_41, %c0_42] : memref<1x22x18x3xbf16, #tpu.memory_space<vmem>>, vector<1x12x16x3xbf16>
    %59 = vector.shape_cast %58 : vector<1x12x16x3xbf16> to vector<12x16x3xbf16>
    %60 = vector.shape_cast %59 : vector<12x16x3xbf16> to vector<192x3xbf16>
    %c6 = arith.constant 6 : index
    %c0_43 = arith.constant 0 : index
    %c0_44 = arith.constant 0 : index
    %61 = vector.load %arg3[%c6, %c0_43, %c0_44] : memref<9x3x32xbf16, #tpu.memory_space<vmem>>, vector<1x3x32xbf16>
    %62 = vector.shape_cast %61 : vector<1x3x32xbf16> to vector<3x32xbf16>
    %cst_45 = arith.constant dense<0.000000e+00> : vector<192x32xf32>
    %63 = tpu.matmul %60, %62, %cst_45 {dimension_numbers = #tpu.dot_dimension_numbers<[1], [0], [0], [1], [0, 0, 1, 1], [], []>} : vector<192x3xbf16>, vector<3x32xbf16>, vector<192x32xf32> -> vector<192x32xf32>
    %64 = arith.addf %55, %63 : vector<192x32xf32>
    %c2_i32_46 = arith.constant 2 : i32
    %65 = arith.addi %0, %c2_i32_46 : i32
    %c0_47 = arith.constant 0 : index
    %66 = arith.index_cast %65 : i32 to index
    %c1_48 = arith.constant 1 : index
    %c0_49 = arith.constant 0 : index
    %67 = vector.load %arg2[%c0_47, %66, %c1_48, %c0_49] : memref<1x22x18x3xbf16, #tpu.memory_space<vmem>>, vector<1x12x16x3xbf16>
    %68 = vector.shape_cast %67 : vector<1x12x16x3xbf16> to vector<12x16x3xbf16>
    %69 = vector.shape_cast %68 : vector<12x16x3xbf16> to vector<192x3xbf16>
    %c7 = arith.constant 7 : index
    %c0_50 = arith.constant 0 : index
    %c0_51 = arith.constant 0 : index
    %70 = vector.load %arg3[%c7, %c0_50, %c0_51] : memref<9x3x32xbf16, #tpu.memory_space<vmem>>, vector<1x3x32xbf16>
    %71 = vector.shape_cast %70 : vector<1x3x32xbf16> to vector<3x32xbf16>
    %cst_52 = arith.constant dense<0.000000e+00> : vector<192x32xf32>
    %72 = tpu.matmul %69, %71, %cst_52 {dimension_numbers = #tpu.dot_dimension_numbers<[1], [0], [0], [1], [0, 0, 1, 1], [], []>} : vector<192x3xbf16>, vector<3x32xbf16>, vector<192x32xf32> -> vector<192x32xf32>
    %73 = arith.addf %64, %72 : vector<192x32xf32>
    %c2_i32_53 = arith.constant 2 : i32
    %74 = arith.addi %0, %c2_i32_53 : i32
    %c0_54 = arith.constant 0 : index
    %75 = arith.index_cast %74 : i32 to index
    %c2_55 = arith.constant 2 : index
    %c0_56 = arith.constant 0 : index
    %76 = vector.load %arg2[%c0_54, %75, %c2_55, %c0_56] : memref<1x22x18x3xbf16, #tpu.memory_space<vmem>>, vector<1x12x16x3xbf16>
    %77 = vector.shape_cast %76 : vector<1x12x16x3xbf16> to vector<12x16x3xbf16>
    %78 = vector.shape_cast %77 : vector<12x16x3xbf16> to vector<192x3xbf16>
    %c8 = arith.constant 8 : index
    %c0_57 = arith.constant 0 : index
    %c0_58 = arith.constant 0 : index
    %79 = vector.load %arg3[%c8, %c0_57, %c0_58] : memref<9x3x32xbf16, #tpu.memory_space<vmem>>, vector<1x3x32xbf16>
    %80 = vector.shape_cast %79 : vector<1x3x32xbf16> to vector<3x32xbf16>
    %cst_59 = arith.constant dense<0.000000e+00> : vector<192x32xf32>
    %81 = tpu.matmul %78, %80, %cst_59 {dimension_numbers = #tpu.dot_dimension_numbers<[1], [0], [0], [1], [0, 0, 1, 1], [], []>} : vector<192x3xbf16>, vector<3x32xbf16>, vector<192x32xf32> -> vector<192x32xf32>
    %82 = arith.addf %73, %81 : vector<192x32xf32>
    %c0_60 = arith.constant 0 : index
    %c0_61 = arith.constant 0 : index
    %83 = vector.load %arg4[%c0_60, %c0_61] : memref<1x32xf32, #tpu.memory_space<vmem>>, vector<1x32xf32>
    %84 = vector.broadcast %83 : vector<1x32xf32> to vector<192x32xf32>
    %85 = arith.addf %82, %84 : vector<192x32xf32>
    %cst_62 = arith.constant 0.000000e+00 : f32
    %86 = vector.broadcast %cst_62 : f32 to vector<192x32xf32>
    %87 = arith.maximumf %85, %86 : vector<192x32xf32>
    %88 = vector.shape_cast %87 : vector<192x32xf32> to vector<12x16x32xf32>
    %89 = tpu.iota {dimensions = array<i32: 0>} : vector<12x1x1xi32>
    %c2_i32_63 = arith.constant 2 : i32
    %90 = arith.subi %0, %c2_i32_63 : i32
    %91 = vector.broadcast %90 : i32 to vector<12x1x1xi32>
    %92 = arith.addi %89, %91 : vector<12x1x1xi32>
    %c0_i32_64 = arith.constant 0 : i32
    %93 = vector.broadcast %c0_i32_64 : i32 to vector<12x1x1xi32>
    %94 = arith.cmpi sge, %92, %93 : vector<12x1x1xi32>
    %c16_i32 = arith.constant 16 : i32
    %95 = vector.broadcast %c16_i32 : i32 to vector<12x1x1xi32>
    %96 = arith.cmpi slt, %92, %95 : vector<12x1x1xi32>
    %97 = arith.andi %94, %96 : vector<12x1x1xi1>
    %cst_65 = arith.constant 0.000000e+00 : f32
    %98 = vector.shape_cast %97 : vector<12x1x1xi1> to vector<12x1x1xi1>
    %99 = vector.broadcast %98 : vector<12x1x1xi1> to vector<12x16x32xi1>
    %100 = vector.broadcast %cst_65 : f32 to vector<12x16x32xf32>
    %101 = arith.select %99, %88, %100 : vector<12x16x32xi1>, vector<12x16x32xf32>
    %cst_66 = arith.constant 0.000000e+00 : f32
    %102 = vector.broadcast %cst_66 : f32 to vector<12x1x32xf32>
    %c0_67 = arith.constant 0 : index
    %c0_68 = arith.constant 0 : index
    %c0_69 = arith.constant 0 : index
    %103 = vector.load %arg10[%c0_67, %c0_68, %c0_69] : memref<12x18x32xf32, #tpu.memory_space<vmem>>, vector<12x1x32xf32>
    tpu.vector_store %arg10[%c0_67, %c0_68, %c0_69], %102 {strides = array<i32>} : memref<12x18x32xf32, #tpu.memory_space<vmem>>, vector<12x1x32xf32>,
    %cst_70 = arith.constant 0.000000e+00 : f32
    %104 = vector.broadcast %cst_70 : f32 to vector<12x1x32xf32>
    %c0_71 = arith.constant 0 : index
    %c17 = arith.constant 17 : index
    %c0_72 = arith.constant 0 : index
    %105 = vector.load %arg10[%c0_71, %c17, %c0_72] : memref<12x18x32xf32, #tpu.memory_space<vmem>>, vector<12x1x32xf32>
    tpu.vector_store %arg10[%c0_71, %c17, %c0_72], %104 {strides = array<i32>} : memref<12x18x32xf32, #tpu.memory_space<vmem>>, vector<12x1x32xf32>,
    %c0_73 = arith.constant 0 : index
    %c1_74 = arith.constant 1 : index
    %c0_75 = arith.constant 0 : index
    %106 = vector.load %arg10[%c0_73, %c1_74, %c0_75] : memref<12x18x32xf32, #tpu.memory_space<vmem>>, vector<12x16x32xf32>
    tpu.vector_store %arg10[%c0_73, %c1_74, %c0_75], %101 {strides = array<i32>} : memref<12x18x32xf32, #tpu.memory_space<vmem>>, vector<12x16x32xf32>,
    %cst_76 = arith.constant 0.000000e+00 : f32
    %107 = vector.broadcast %cst_76 : f32 to vector<160x64xf32>
    %c0_77 = arith.constant 0 : index
    %c0_78 = arith.constant 0 : index
    %c0_79 = arith.constant 0 : index
    %108 = vector.load %arg10[%c0_77, %c0_78, %c0_79] : memref<12x18x32xf32, #tpu.memory_space<vmem>>, vector<10x16x32xf32>
    %109 = vector.shape_cast %108 : vector<10x16x32xf32> to vector<160x32xf32>
    %110 = arith.truncf %109 : vector<160x32xf32> to vector<160x32xbf16>
    %c0_80 = arith.constant 0 : index
    %c0_81 = arith.constant 0 : index
    %c0_82 = arith.constant 0 : index
    %111 = vector.load %arg5[%c0_80, %c0_81, %c0_82] : memref<9x32x64xbf16, #tpu.memory_space<vmem>>, vector<1x32x64xbf16>
    %112 = vector.shape_cast %111 : vector<1x32x64xbf16> to vector<32x64xbf16>
    %cst_83 = arith.constant dense<0.000000e+00> : vector<160x64xf32>
    %113 = tpu.matmul %110, %112, %cst_83 {dimension_numbers = #tpu.dot_dimension_numbers<[1], [0], [0], [1], [0, 0, 1, 1], [], []>} : vector<160x32xbf16>, vector<32x64xbf16>, vector<160x64xf32> -> vector<160x64xf32>
    %114 = arith.addf %107, %113 : vector<160x64xf32>
    %c0_84 = arith.constant 0 : index
    %c1_85 = arith.constant 1 : index
    %c0_86 = arith.constant 0 : index
    %115 = vector.load %arg10[%c0_84, %c1_85, %c0_86] : memref<12x18x32xf32, #tpu.memory_space<vmem>>, vector<10x16x32xf32>
    %116 = vector.shape_cast %115 : vector<10x16x32xf32> to vector<160x32xf32>
    %117 = arith.truncf %116 : vector<160x32xf32> to vector<160x32xbf16>
    %c1_87 = arith.constant 1 : index
    %c0_88 = arith.constant 0 : index
    %c0_89 = arith.constant 0 : index
    %118 = vector.load %arg5[%c1_87, %c0_88, %c0_89] : memref<9x32x64xbf16, #tpu.memory_space<vmem>>, vector<1x32x64xbf16>
    %119 = vector.shape_cast %118 : vector<1x32x64xbf16> to vector<32x64xbf16>
    %cst_90 = arith.constant dense<0.000000e+00> : vector<160x64xf32>
    %120 = tpu.matmul %117, %119, %cst_90 {dimension_numbers = #tpu.dot_dimension_numbers<[1], [0], [0], [1], [0, 0, 1, 1], [], []>} : vector<160x32xbf16>, vector<32x64xbf16>, vector<160x64xf32> -> vector<160x64xf32>
    %121 = arith.addf %114, %120 : vector<160x64xf32>
    %c0_91 = arith.constant 0 : index
    %c2_92 = arith.constant 2 : index
    %c0_93 = arith.constant 0 : index
    %122 = vector.load %arg10[%c0_91, %c2_92, %c0_93] : memref<12x18x32xf32, #tpu.memory_space<vmem>>, vector<10x16x32xf32>
    %123 = vector.shape_cast %122 : vector<10x16x32xf32> to vector<160x32xf32>
    %124 = arith.truncf %123 : vector<160x32xf32> to vector<160x32xbf16>
    %c2_94 = arith.constant 2 : index
    %c0_95 = arith.constant 0 : index
    %c0_96 = arith.constant 0 : index
    %125 = vector.load %arg5[%c2_94, %c0_95, %c0_96] : memref<9x32x64xbf16, #tpu.memory_space<vmem>>, vector<1x32x64xbf16>
    %126 = vector.shape_cast %125 : vector<1x32x64xbf16> to vector<32x64xbf16>
    %cst_97 = arith.constant dense<0.000000e+00> : vector<160x64xf32>
    %127 = tpu.matmul %124, %126, %cst_97 {dimension_numbers = #tpu.dot_dimension_numbers<[1], [0], [0], [1], [0, 0, 1, 1], [], []>} : vector<160x32xbf16>, vector<32x64xbf16>, vector<160x64xf32> -> vector<160x64xf32>
    %128 = arith.addf %121, %127 : vector<160x64xf32>
    %c1_98 = arith.constant 1 : index
    %c0_99 = arith.constant 0 : index
    %c0_100 = arith.constant 0 : index
    %129 = vector.load %arg10[%c1_98, %c0_99, %c0_100] : memref<12x18x32xf32, #tpu.memory_space<vmem>>, vector<10x16x32xf32>
    %130 = vector.shape_cast %129 : vector<10x16x32xf32> to vector<160x32xf32>
    %131 = arith.truncf %130 : vector<160x32xf32> to vector<160x32xbf16>
    %c3_101 = arith.constant 3 : index
    %c0_102 = arith.constant 0 : index
    %c0_103 = arith.constant 0 : index
    %132 = vector.load %arg5[%c3_101, %c0_102, %c0_103] : memref<9x32x64xbf16, #tpu.memory_space<vmem>>, vector<1x32x64xbf16>
    %133 = vector.shape_cast %132 : vector<1x32x64xbf16> to vector<32x64xbf16>
    %cst_104 = arith.constant dense<0.000000e+00> : vector<160x64xf32>
    %134 = tpu.matmul %131, %133, %cst_104 {dimension_numbers = #tpu.dot_dimension_numbers<[1], [0], [0], [1], [0, 0, 1, 1], [], []>} : vector<160x32xbf16>, vector<32x64xbf16>, vector<160x64xf32> -> vector<160x64xf32>
    %135 = arith.addf %128, %134 : vector<160x64xf32>
    %c1_105 = arith.constant 1 : index
    %c1_106 = arith.constant 1 : index
    %c0_107 = arith.constant 0 : index
    %136 = vector.load %arg10[%c1_105, %c1_106, %c0_107] : memref<12x18x32xf32, #tpu.memory_space<vmem>>, vector<10x16x32xf32>
    %137 = vector.shape_cast %136 : vector<10x16x32xf32> to vector<160x32xf32>
    %138 = arith.truncf %137 : vector<160x32xf32> to vector<160x32xbf16>
    %c4_108 = arith.constant 4 : index
    %c0_109 = arith.constant 0 : index
    %c0_110 = arith.constant 0 : index
    %139 = vector.load %arg5[%c4_108, %c0_109, %c0_110] : memref<9x32x64xbf16, #tpu.memory_space<vmem>>, vector<1x32x64xbf16>
    %140 = vector.shape_cast %139 : vector<1x32x64xbf16> to vector<32x64xbf16>
    %cst_111 = arith.constant dense<0.000000e+00> : vector<160x64xf32>
    %141 = tpu.matmul %138, %140, %cst_111 {dimension_numbers = #tpu.dot_dimension_numbers<[1], [0], [0], [1], [0, 0, 1, 1], [], []>} : vector<160x32xbf16>, vector<32x64xbf16>, vector<160x64xf32> -> vector<160x64xf32>
    %142 = arith.addf %135, %141 : vector<160x64xf32>
    %c1_112 = arith.constant 1 : index
    %c2_113 = arith.constant 2 : index
    %c0_114 = arith.constant 0 : index
    %143 = vector.load %arg10[%c1_112, %c2_113, %c0_114] : memref<12x18x32xf32, #tpu.memory_space<vmem>>, vector<10x16x32xf32>
    %144 = vector.shape_cast %143 : vector<10x16x32xf32> to vector<160x32xf32>
    %145 = arith.truncf %144 : vector<160x32xf32> to vector<160x32xbf16>
    %c5_115 = arith.constant 5 : index
    %c0_116 = arith.constant 0 : index
    %c0_117 = arith.constant 0 : index
    %146 = vector.load %arg5[%c5_115, %c0_116, %c0_117] : memref<9x32x64xbf16, #tpu.memory_space<vmem>>, vector<1x32x64xbf16>
    %147 = vector.shape_cast %146 : vector<1x32x64xbf16> to vector<32x64xbf16>
    %cst_118 = arith.constant dense<0.000000e+00> : vector<160x64xf32>
    %148 = tpu.matmul %145, %147, %cst_118 {dimension_numbers = #tpu.dot_dimension_numbers<[1], [0], [0], [1], [0, 0, 1, 1], [], []>} : vector<160x32xbf16>, vector<32x64xbf16>, vector<160x64xf32> -> vector<160x64xf32>
    %149 = arith.addf %142, %148 : vector<160x64xf32>
    %c2_119 = arith.constant 2 : index
    %c0_120 = arith.constant 0 : index
    %c0_121 = arith.constant 0 : index
    %150 = vector.load %arg10[%c2_119, %c0_120, %c0_121] : memref<12x18x32xf32, #tpu.memory_space<vmem>>, vector<10x16x32xf32>
    %151 = vector.shape_cast %150 : vector<10x16x32xf32> to vector<160x32xf32>
    %152 = arith.truncf %151 : vector<160x32xf32> to vector<160x32xbf16>
    %c6_122 = arith.constant 6 : index
    %c0_123 = arith.constant 0 : index
    %c0_124 = arith.constant 0 : index
    %153 = vector.load %arg5[%c6_122, %c0_123, %c0_124] : memref<9x32x64xbf16, #tpu.memory_space<vmem>>, vector<1x32x64xbf16>
    %154 = vector.shape_cast %153 : vector<1x32x64xbf16> to vector<32x64xbf16>
    %cst_125 = arith.constant dense<0.000000e+00> : vector<160x64xf32>
    %155 = tpu.matmul %152, %154, %cst_125 {dimension_numbers = #tpu.dot_dimension_numbers<[1], [0], [0], [1], [0, 0, 1, 1], [], []>} : vector<160x32xbf16>, vector<32x64xbf16>, vector<160x64xf32> -> vector<160x64xf32>
    %156 = arith.addf %149, %155 : vector<160x64xf32>
    %c2_126 = arith.constant 2 : index
    %c1_127 = arith.constant 1 : index
    %c0_128 = arith.constant 0 : index
    %157 = vector.load %arg10[%c2_126, %c1_127, %c0_128] : memref<12x18x32xf32, #tpu.memory_space<vmem>>, vector<10x16x32xf32>
    %158 = vector.shape_cast %157 : vector<10x16x32xf32> to vector<160x32xf32>
    %159 = arith.truncf %158 : vector<160x32xf32> to vector<160x32xbf16>
    %c7_129 = arith.constant 7 : index
    %c0_130 = arith.constant 0 : index
    %c0_131 = arith.constant 0 : index
    %160 = vector.load %arg5[%c7_129, %c0_130, %c0_131] : memref<9x32x64xbf16, #tpu.memory_space<vmem>>, vector<1x32x64xbf16>
    %161 = vector.shape_cast %160 : vector<1x32x64xbf16> to vector<32x64xbf16>
    %cst_132 = arith.constant dense<0.000000e+00> : vector<160x64xf32>
    %162 = tpu.matmul %159, %161, %cst_132 {dimension_numbers = #tpu.dot_dimension_numbers<[1], [0], [0], [1], [0, 0, 1, 1], [], []>} : vector<160x32xbf16>, vector<32x64xbf16>, vector<160x64xf32> -> vector<160x64xf32>
    %163 = arith.addf %156, %162 : vector<160x64xf32>
    %c2_133 = arith.constant 2 : index
    %c2_134 = arith.constant 2 : index
    %c0_135 = arith.constant 0 : index
    %164 = vector.load %arg10[%c2_133, %c2_134, %c0_135] : memref<12x18x32xf32, #tpu.memory_space<vmem>>, vector<10x16x32xf32>
    %165 = vector.shape_cast %164 : vector<10x16x32xf32> to vector<160x32xf32>
    %166 = arith.truncf %165 : vector<160x32xf32> to vector<160x32xbf16>
    %c8_136 = arith.constant 8 : index
    %c0_137 = arith.constant 0 : index
    %c0_138 = arith.constant 0 : index
    %167 = vector.load %arg5[%c8_136, %c0_137, %c0_138] : memref<9x32x64xbf16, #tpu.memory_space<vmem>>, vector<1x32x64xbf16>
    %168 = vector.shape_cast %167 : vector<1x32x64xbf16> to vector<32x64xbf16>
    %cst_139 = arith.constant dense<0.000000e+00> : vector<160x64xf32>
    %169 = tpu.matmul %166, %168, %cst_139 {dimension_numbers = #tpu.dot_dimension_numbers<[1], [0], [0], [1], [0, 0, 1, 1], [], []>} : vector<160x32xbf16>, vector<32x64xbf16>, vector<160x64xf32> -> vector<160x64xf32>
    %170 = arith.addf %163, %169 : vector<160x64xf32>
    %c0_140 = arith.constant 0 : index
    %c0_141 = arith.constant 0 : index
    %171 = vector.load %arg6[%c0_140, %c0_141] : memref<1x64xf32, #tpu.memory_space<vmem>>, vector<1x64xf32>
    %172 = vector.broadcast %171 : vector<1x64xf32> to vector<160x64xf32>
    %173 = arith.addf %170, %172 : vector<160x64xf32>
    %cst_142 = arith.constant 0.000000e+00 : f32
    %174 = vector.broadcast %cst_142 : f32 to vector<160x64xf32>
    %175 = arith.maximumf %173, %174 : vector<160x64xf32>
    %176 = vector.shape_cast %175 : vector<160x64xf32> to vector<10x16x64xf32>
    %177 = tpu.iota {dimensions = array<i32: 0>} : vector<10x1x1xi32>
    %c1_i32_143 = arith.constant 1 : i32
    %178 = arith.subi %0, %c1_i32_143 : i32
    %179 = vector.broadcast %178 : i32 to vector<10x1x1xi32>
    %180 = arith.addi %177, %179 : vector<10x1x1xi32>
    %c0_i32_144 = arith.constant 0 : i32
    %181 = vector.broadcast %c0_i32_144 : i32 to vector<10x1x1xi32>
    %182 = arith.cmpi sge, %180, %181 : vector<10x1x1xi32>
    %c16_i32_145 = arith.constant 16 : i32
    %183 = vector.broadcast %c16_i32_145 : i32 to vector<10x1x1xi32>
    %184 = arith.cmpi slt, %180, %183 : vector<10x1x1xi32>
    %185 = arith.andi %182, %184 : vector<10x1x1xi1>
    %cst_146 = arith.constant 0.000000e+00 : f32
    %186 = vector.shape_cast %185 : vector<10x1x1xi1> to vector<10x1x1xi1>
    %187 = vector.broadcast %186 : vector<10x1x1xi1> to vector<10x16x64xi1>
    %188 = vector.broadcast %cst_146 : f32 to vector<10x16x64xf32>
    %189 = arith.select %187, %176, %188 : vector<10x16x64xi1>, vector<10x16x64xf32>
    %cst_147 = arith.constant 0.000000e+00 : f32
    %190 = vector.broadcast %cst_147 : f32 to vector<10x1x64xf32>
    %c0_148 = arith.constant 0 : index
    %c0_149 = arith.constant 0 : index
    %c0_150 = arith.constant 0 : index
    %191 = vector.load %arg11[%c0_148, %c0_149, %c0_150] : memref<10x18x64xf32, #tpu.memory_space<vmem>>, vector<10x1x64xf32>
    tpu.vector_store %arg11[%c0_148, %c0_149, %c0_150], %190 {strides = array<i32>} : memref<10x18x64xf32, #tpu.memory_space<vmem>>, vector<10x1x64xf32>,
    %cst_151 = arith.constant 0.000000e+00 : f32
    %192 = vector.broadcast %cst_151 : f32 to vector<10x1x64xf32>
    %c0_152 = arith.constant 0 : index
    %c17_153 = arith.constant 17 : index
    %c0_154 = arith.constant 0 : index
    %193 = vector.load %arg11[%c0_152, %c17_153, %c0_154] : memref<10x18x64xf32, #tpu.memory_space<vmem>>, vector<10x1x64xf32>
    tpu.vector_store %arg11[%c0_152, %c17_153, %c0_154], %192 {strides = array<i32>} : memref<10x18x64xf32, #tpu.memory_space<vmem>>, vector<10x1x64xf32>,
    %c0_155 = arith.constant 0 : index
    %c1_156 = arith.constant 1 : index
    %c0_157 = arith.constant 0 : index
    %194 = vector.load %arg11[%c0_155, %c1_156, %c0_157] : memref<10x18x64xf32, #tpu.memory_space<vmem>>, vector<10x16x64xf32>
    tpu.vector_store %arg11[%c0_155, %c1_156, %c0_157], %189 {strides = array<i32>} : memref<10x18x64xf32, #tpu.memory_space<vmem>>, vector<10x16x64xf32>,
    %cst_158 = arith.constant 0.000000e+00 : f32
    %195 = vector.broadcast %cst_158 : f32 to vector<8x16xf32>
    %c0_159 = arith.constant 0 : index
    %c0_160 = arith.constant 0 : index
    %c0_161 = arith.constant 0 : index
    %196 = vector.load %arg11[%c0_159, %c0_160, %c0_161] : memref<10x18x64xf32, #tpu.memory_space<vmem>>, vector<8x16x64xf32>
    %c0_162 = arith.constant 0 : index
    %c0_163 = arith.constant 0 : index
    %197 = vector.load %arg7[%c0_162, %c0_163] : memref<9x64xbf16, #tpu.memory_space<vmem>>, vector<1x64xbf16>
    %198 = arith.extf %197 : vector<1x64xbf16> to vector<1x64xf32>
    %199 = vector.shape_cast %198 : vector<1x64xf32> to vector<1x1x64xf32>
    %200 = vector.broadcast %199 : vector<1x1x64xf32> to vector<8x16x64xf32>
    %201 = arith.mulf %196, %200 : vector<8x16x64xf32>
    %cst_164 = arith.constant dense<0.000000e+00> : vector<8x16xf32>
    %202 = vector.multi_reduction <add>, %201, %cst_164 [2] : vector<8x16x64xf32> to vector<8x16xf32>
    %203 = arith.addf %195, %202 : vector<8x16xf32>
    %c0_165 = arith.constant 0 : index
    %c1_166 = arith.constant 1 : index
    %c0_167 = arith.constant 0 : index
    %204 = vector.load %arg11[%c0_165, %c1_166, %c0_167] : memref<10x18x64xf32, #tpu.memory_space<vmem>>, vector<8x16x64xf32>
    %c1_168 = arith.constant 1 : index
    %c0_169 = arith.constant 0 : index
    %205 = vector.load %arg7[%c1_168, %c0_169] : memref<9x64xbf16, #tpu.memory_space<vmem>>, vector<1x64xbf16>
    %206 = arith.extf %205 : vector<1x64xbf16> to vector<1x64xf32>
    %207 = vector.shape_cast %206 : vector<1x64xf32> to vector<1x1x64xf32>
    %208 = vector.broadcast %207 : vector<1x1x64xf32> to vector<8x16x64xf32>
    %209 = arith.mulf %204, %208 : vector<8x16x64xf32>
    %cst_170 = arith.constant dense<0.000000e+00> : vector<8x16xf32>
    %210 = vector.multi_reduction <add>, %209, %cst_170 [2] : vector<8x16x64xf32> to vector<8x16xf32>
    %211 = arith.addf %203, %210 : vector<8x16xf32>
    %c0_171 = arith.constant 0 : index
    %c2_172 = arith.constant 2 : index
    %c0_173 = arith.constant 0 : index
    %212 = vector.load %arg11[%c0_171, %c2_172, %c0_173] : memref<10x18x64xf32, #tpu.memory_space<vmem>>, vector<8x16x64xf32>
    %c2_174 = arith.constant 2 : index
    %c0_175 = arith.constant 0 : index
    %213 = vector.load %arg7[%c2_174, %c0_175] : memref<9x64xbf16, #tpu.memory_space<vmem>>, vector<1x64xbf16>
    %214 = arith.extf %213 : vector<1x64xbf16> to vector<1x64xf32>
    %215 = vector.shape_cast %214 : vector<1x64xf32> to vector<1x1x64xf32>
    %216 = vector.broadcast %215 : vector<1x1x64xf32> to vector<8x16x64xf32>
    %217 = arith.mulf %212, %216 : vector<8x16x64xf32>
    %cst_176 = arith.constant dense<0.000000e+00> : vector<8x16xf32>
    %218 = vector.multi_reduction <add>, %217, %cst_176 [2] : vector<8x16x64xf32> to vector<8x16xf32>
    %219 = arith.addf %211, %218 : vector<8x16xf32>
    %c1_177 = arith.constant 1 : index
    %c0_178 = arith.constant 0 : index
    %c0_179 = arith.constant 0 : index
    %220 = vector.load %arg11[%c1_177, %c0_178, %c0_179] : memref<10x18x64xf32, #tpu.memory_space<vmem>>, vector<8x16x64xf32>
    %c3_180 = arith.constant 3 : index
    %c0_181 = arith.constant 0 : index
    %221 = vector.load %arg7[%c3_180, %c0_181] : memref<9x64xbf16, #tpu.memory_space<vmem>>, vector<1x64xbf16>
    %222 = arith.extf %221 : vector<1x64xbf16> to vector<1x64xf32>
    %223 = vector.shape_cast %222 : vector<1x64xf32> to vector<1x1x64xf32>
    %224 = vector.broadcast %223 : vector<1x1x64xf32> to vector<8x16x64xf32>
    %225 = arith.mulf %220, %224 : vector<8x16x64xf32>
    %cst_182 = arith.constant dense<0.000000e+00> : vector<8x16xf32>
    %226 = vector.multi_reduction <add>, %225, %cst_182 [2] : vector<8x16x64xf32> to vector<8x16xf32>
    %227 = arith.addf %219, %226 : vector<8x16xf32>
    %c1_183 = arith.constant 1 : index
    %c1_184 = arith.constant 1 : index
    %c0_185 = arith.constant 0 : index
    %228 = vector.load %arg11[%c1_183, %c1_184, %c0_185] : memref<10x18x64xf32, #tpu.memory_space<vmem>>, vector<8x16x64xf32>
    %c4_186 = arith.constant 4 : index
    %c0_187 = arith.constant 0 : index
    %229 = vector.load %arg7[%c4_186, %c0_187] : memref<9x64xbf16, #tpu.memory_space<vmem>>, vector<1x64xbf16>
    %230 = arith.extf %229 : vector<1x64xbf16> to vector<1x64xf32>
    %231 = vector.shape_cast %230 : vector<1x64xf32> to vector<1x1x64xf32>
    %232 = vector.broadcast %231 : vector<1x1x64xf32> to vector<8x16x64xf32>
    %233 = arith.mulf %228, %232 : vector<8x16x64xf32>
    %cst_188 = arith.constant dense<0.000000e+00> : vector<8x16xf32>
    %234 = vector.multi_reduction <add>, %233, %cst_188 [2] : vector<8x16x64xf32> to vector<8x16xf32>
    %235 = arith.addf %227, %234 : vector<8x16xf32>
    %c1_189 = arith.constant 1 : index
    %c2_190 = arith.constant 2 : index
    %c0_191 = arith.constant 0 : index
    %236 = vector.load %arg11[%c1_189, %c2_190, %c0_191] : memref<10x18x64xf32, #tpu.memory_space<vmem>>, vector<8x16x64xf32>
    %c5_192 = arith.constant 5 : index
    %c0_193 = arith.constant 0 : index
    %237 = vector.load %arg7[%c5_192, %c0_193] : memref<9x64xbf16, #tpu.memory_space<vmem>>, vector<1x64xbf16>
    %238 = arith.extf %237 : vector<1x64xbf16> to vector<1x64xf32>
    %239 = vector.shape_cast %238 : vector<1x64xf32> to vector<1x1x64xf32>
    %240 = vector.broadcast %239 : vector<1x1x64xf32> to vector<8x16x64xf32>
    %241 = arith.mulf %236, %240 : vector<8x16x64xf32>
    %cst_194 = arith.constant dense<0.000000e+00> : vector<8x16xf32>
    %242 = vector.multi_reduction <add>, %241, %cst_194 [2] : vector<8x16x64xf32> to vector<8x16xf32>
    %243 = arith.addf %235, %242 : vector<8x16xf32>
    %c2_195 = arith.constant 2 : index
    %c0_196 = arith.constant 0 : index
    %c0_197 = arith.constant 0 : index
    %244 = vector.load %arg11[%c2_195, %c0_196, %c0_197] : memref<10x18x64xf32, #tpu.memory_space<vmem>>, vector<8x16x64xf32>
    %c6_198 = arith.constant 6 : index
    %c0_199 = arith.constant 0 : index
    %245 = vector.load %arg7[%c6_198, %c0_199] : memref<9x64xbf16, #tpu.memory_space<vmem>>, vector<1x64xbf16>
    %246 = arith.extf %245 : vector<1x64xbf16> to vector<1x64xf32>
    %247 = vector.shape_cast %246 : vector<1x64xf32> to vector<1x1x64xf32>
    %248 = vector.broadcast %247 : vector<1x1x64xf32> to vector<8x16x64xf32>
    %249 = arith.mulf %244, %248 : vector<8x16x64xf32>
    %cst_200 = arith.constant dense<0.000000e+00> : vector<8x16xf32>
    %250 = vector.multi_reduction <add>, %249, %cst_200 [2] : vector<8x16x64xf32> to vector<8x16xf32>
    %251 = arith.addf %243, %250 : vector<8x16xf32>
    %c2_201 = arith.constant 2 : index
    %c1_202 = arith.constant 1 : index
    %c0_203 = arith.constant 0 : index
    %252 = vector.load %arg11[%c2_201, %c1_202, %c0_203] : memref<10x18x64xf32, #tpu.memory_space<vmem>>, vector<8x16x64xf32>
    %c7_204 = arith.constant 7 : index
    %c0_205 = arith.constant 0 : index
    %253 = vector.load %arg7[%c7_204, %c0_205] : memref<9x64xbf16, #tpu.memory_space<vmem>>, vector<1x64xbf16>
    %254 = arith.extf %253 : vector<1x64xbf16> to vector<1x64xf32>
    %255 = vector.shape_cast %254 : vector<1x64xf32> to vector<1x1x64xf32>
    %256 = vector.broadcast %255 : vector<1x1x64xf32> to vector<8x16x64xf32>
    %257 = arith.mulf %252, %256 : vector<8x16x64xf32>
    %cst_206 = arith.constant dense<0.000000e+00> : vector<8x16xf32>
    %258 = vector.multi_reduction <add>, %257, %cst_206 [2] : vector<8x16x64xf32> to vector<8x16xf32>
    %259 = arith.addf %251, %258 : vector<8x16xf32>
    %c2_207 = arith.constant 2 : index
    %c2_208 = arith.constant 2 : index
    %c0_209 = arith.constant 0 : index
    %260 = vector.load %arg11[%c2_207, %c2_208, %c0_209] : memref<10x18x64xf32, #tpu.memory_space<vmem>>, vector<8x16x64xf32>
    %c8_210 = arith.constant 8 : index
    %c0_211 = arith.constant 0 : index
    %261 = vector.load %arg7[%c8_210, %c0_211] : memref<9x64xbf16, #tpu.memory_space<vmem>>, vector<1x64xbf16>
    %262 = arith.extf %261 : vector<1x64xbf16> to vector<1x64xf32>
    %263 = vector.shape_cast %262 : vector<1x64xf32> to vector<1x1x64xf32>
    %264 = vector.broadcast %263 : vector<1x1x64xf32> to vector<8x16x64xf32>
    %265 = arith.mulf %260, %264 : vector<8x16x64xf32>
    %cst_212 = arith.constant dense<0.000000e+00> : vector<8x16xf32>
    %266 = vector.multi_reduction <add>, %265, %cst_212 [2] : vector<8x16x64xf32> to vector<8x16xf32>
    %267 = arith.addf %259, %266 : vector<8x16xf32>
    %c0_213 = arith.constant 0 : index
    %c0_214 = arith.constant 0 : index
    %268 = vector.load %arg8[%c0_213, %c0_214] : memref<1x1xf32, #tpu.memory_space<vmem>>, vector<1x1xf32>
    %269 = vector.extract %268[0, 0] : f32 from vector<1x1xf32>
    %270 = vector.broadcast %269 : f32 to vector<8x16xf32>
    %271 = arith.addf %267, %270 : vector<8x16xf32>
    %cst_215 = arith.constant 0.000000e+00 : f32
    %272 = vector.broadcast %cst_215 : f32 to vector<8x16xf32>
    %273 = arith.maximumf %271, %272 : vector<8x16xf32>
    %c0_216 = arith.constant 0 : index
    %c0_217 = arith.constant 0 : index
    %c0_218 = arith.constant 0 : index
    %274 = vector.load %arg9[%c0_216, %c0_217, %c0_218] : memref<1x8x16xf32, #tpu.memory_space<vmem>>, vector<1x8x16xf32>
    %275 = vector.shape_cast %274 : vector<1x8x16xf32> to vector<8x16xf32>
    %276 = vector.shape_cast %273 : vector<8x16xf32> to vector<1x8x16xf32>
    tpu.vector_store %arg9[%c0_216, %c0_217, %c0_218], %276 {strides = array<i32>} : memref<1x8x16xf32, #tpu.memory_space<vmem>>, vector<1x8x16xf32>,
    return
  }
  func.func @transform_0(%arg0: i32, %arg1: i32) -> (i32, i32, i32, i32) {
    %c0_i32 = arith.constant 0 : i32
    %c0_i32_0 = arith.constant 0 : i32
    %c0_i32_1 = arith.constant 0 : i32
    %c0_i32_2 = arith.constant 0 : i32
    return %arg0, %c0_i32, %c0_i32_0, %c0_i32_1 : i32, i32, i32, i32
  }
  func.func @transform_1(%arg0: i32, %arg1: i32) -> (i32, i32, i32) {
    %c0_i32 = arith.constant 0 : i32
    %c0_i32_0 = arith.constant 0 : i32
    %c0_i32_1 = arith.constant 0 : i32
    %c0_i32_2 = arith.constant 0 : i32
    return %c0_i32, %c0_i32_0, %c0_i32_1 : i32, i32, i32
  }
  func.func @transform_2(%arg0: i32, %arg1: i32) -> (i32, i32) {
    %c0_i32 = arith.constant 0 : i32
    %c0_i32_0 = arith.constant 0 : i32
    %c0_i32_1 = arith.constant 0 : i32
    return %c0_i32, %c0_i32_0 : i32, i32
  }
  func.func @transform_3(%arg0: i32, %arg1: i32) -> (i32, i32, i32) {
    %c0_i32 = arith.constant 0 : i32
    %c0_i32_0 = arith.constant 0 : i32
    %c0_i32_1 = arith.constant 0 : i32
    %c0_i32_2 = arith.constant 0 : i32
    return %c0_i32, %c0_i32_0, %c0_i32_1 : i32, i32, i32
  }
  func.func @transform_4(%arg0: i32, %arg1: i32) -> (i32, i32) {
    %c0_i32 = arith.constant 0 : i32
    %c0_i32_0 = arith.constant 0 : i32
    %c0_i32_1 = arith.constant 0 : i32
    return %c0_i32, %c0_i32_0 : i32, i32
  }
  func.func @transform_5(%arg0: i32, %arg1: i32) -> (i32, i32) {
    %c0_i32 = arith.constant 0 : i32
    %c0_i32_0 = arith.constant 0 : i32
    %c0_i32_1 = arith.constant 0 : i32
    return %c0_i32, %c0_i32_0 : i32, i32
  }
  func.func @transform_6(%arg0: i32, %arg1: i32) -> (i32, i32) {
    %c0_i32 = arith.constant 0 : i32
    %c0_i32_0 = arith.constant 0 : i32
    %c0_i32_1 = arith.constant 0 : i32
    return %c0_i32, %c0_i32_0 : i32, i32
  }
  func.func @transform_7(%arg0: i32, %arg1: i32) -> (i32, i32, i32) {
    %c0_i32 = arith.constant 0 : i32
    %c0_i32_0 = arith.constant 0 : i32
    return %arg0, %arg1, %c0_i32 : i32, i32, i32
  }
}

</mosaic_0001>

<llo_original>
// kernel: stereo_depth_net.1
$region0: #{stereo_depth_net.1}
  #allocation0 [shape = 'u32[]', space=smem, size = 0x4, offset = 0x4, fixed_abs, tag = 'smem constant byte address 0x4 - core index']
  #allocation1 [shape = 'u32[144,128]{1,0:T(1,128)}', space=vmem, size = 0x12000, scoped, tag = 'internal scratch']
  #allocation2 [shape = 'f32[12,18,32]{2,1,0:T(8,128)}', space=vmem, size = 0x24000, scoped, tag = 'scratch operand']
  #allocation3 [shape = 'f32[10,18,64]{2,1,0:T(8,128)}', space=vmem, size = 0x1e000, scoped, tag = 'scratch operand']
  #allocation4 [shape = 'f32[1,1]{1,0:T(1,128)S(1)}', space=vmem, size = 0x200, scoped, tag = 'scoped memory for stereo_depth_net.1']
  %s0 = inlined_call_operand.vmem [shape: bf16[2,22,18,3], index: 0, kind: input, shape index: {}]
  %s1 = inlined_call_operand.vmem [shape: bf16[9,3,32], index: 1, kind: input, shape index: {}]
  %s2 = inlined_call_operand.vmem [shape: f32[1,32], index: 2, kind: input, shape index: {}]
  %s3 = inlined_call_operand.vmem [shape: bf16[9,32,64], index: 3, kind: input, shape index: {}]
  %s4 = inlined_call_operand.vmem [shape: f32[1,64], index: 4, kind: input, shape index: {}]
  %s5 = inlined_call_operand.vmem [shape: bf16[9,64], index: 5, kind: input, shape index: {}]
  %s6 = inlined_call_operand.<no memory space> [shape: f32[1,1], index: 6, kind: input, shape index: {}]
  %s7 = inlined_call_operand.hbm [shape: f32[2,16,16], index: 7, kind: output, shape index: {}]
  %s8 = sld [smem:[#allocation0]]
  $region61: #{stereo_depth_net.1} parent=0
    _
  %s10 = ssub.s32 1, %s8
  %s11 = scalar_select 0, %s10, %s8
  %v12 = vstv %s6
  %13 = vst [vmem:[#allocation4] sm:$0x1] %v12
  $region1: #{stereo_depth_net.1} parent=0
    #allocation5 [shape = 'u8[8192]{0}', space=vmem, size = 0x2000, scoped, tag = 'output window, operand 0']
    #allocation6 [shape = 's32[2]{0}', space=sflag, size = 0x8, scoped, tag = 'scoped memory for stereo_depth_net.1']
    %14 = vsyncpa [#allocation6], 0
    %s15 = scalar_lea.sflag [#allocation6], 1
    %16 = vsyncpa %s15, 0
    loop: start=0, step=1, limit=6
    $region2: #{stereo_depth_net.1} parent=1 // loop_pre_header
      _
    $region3: #{stereo_depth_net.1} parent=1 // loop_header
      %s18 = sphi 0, %s22
      %p19 = scmp.ge.s32.totalorder %s18, 6
      %s25 = sphi 0, %s37
      %s26 = sphi 0, %s33
      %s27 = sphi 0, %s25
      %s28 = sphi 0, %s26
      %s29 = sphi 0, %s27
      %s30 = sphi 0, %s28
      %s40 = sphi 0, %s42
      %s43 = sphi 0, %s40
      %s44 = sphi 0, %s43
      %s60 = sphi 0, %s44
      %s64 = sphi 0, %s64
      %s66 = sphi 0, %s64
      %s67 = sphi 0, %s66
      %s81 = sphi 0, %s67
      %s85 = sphi 0, %s85
      %s87 = sphi 0, %s85
      %s88 = sphi 0, %s87
      %s102 = sphi 0, %s88
      %s106 = sphi 0, %s106
      %s108 = sphi 0, %s106
      %s109 = sphi 0, %s108
      %s123 = sphi 0, %s109
      %s127 = sphi 0, %s127
      %s129 = sphi 0, %s127
      %s130 = sphi 0, %s129
      %s144 = sphi 0, %s130
      %s148 = sphi 0, %s148
      %s150 = sphi 0, %s148
      %s151 = sphi 0, %s150
      %s165 = sphi 0, %s151
      %s169 = sphi 0, %s169
      %s171 = sphi 0, %s169
      %s172 = sphi 0, %s171
      %s186 = sphi 0, %s172
      %s194 = sphi 0, %s196
      %s197 = sphi 0, %s194
      %s198 = sphi 0, %s197
      %s214 = sphi 0, %s198
    $region4: #{stereo_depth_net.1} parent=1 // loop_header_branch
      %21 = sbr.rel (%p19) target = $region8
    $region5: #{stereo_depth_net.1} parent=1 // loop_body
      %s23 = ssub.s32 %s18, 1
      %s24 = ssub.s32 %s18, 2
      %s31 = sadd.s32 1, %s26
      %p32 = scmp.ge.s32.totalorder %s31, 2
      %s33 = scalar_select %p32, 0, %s31
      %s34 = sadd.s32 1, %s25
      %s35 = scalar_select %p32, %s34, %s25
      %p36 = scmp.ge.s32.totalorder %s35, 2
      %s37 = scalar_select %p36, 0, %s35
      %s38 = ssub.s32 %s25, %s37
      %p39 = scmp.eq.s32.totalorder %s38, 0
      %s41 = sadd.s32 %s40, 1
      %s42 = scalar_select %p39, %s40, %s41
      %p45 = pneg %p39
      %p46 = scmp.eq.s32.totalorder %s18, 3
      %p47 = por %p45, %p46
      %p48 = scmp.ne.s32.totalorder %s40, %s43
      %p49 = scmp.eq.s32.totalorder %s18, 0
      %p50 = por %p48, %p49
      %p51 = scmp.ne.s32.totalorder %s40, %s43
      %p52 = scmp.eq.s32.totalorder %s23, 3
      %p53 = por %p51, %p52
      %p54 = scmp.ne.s32.totalorder %s43, %s44
      %p55 = scmp.eq.s32.totalorder %s23, 0
      %p56 = por %p54, %p55
      %p57 = scmp.ne.s32.totalorder %s43, %s44
      %p58 = scmp.eq.s32.totalorder %s24, 3
      %p59 = por %p57, %p58
      %p61 = scmp.ne.s32.totalorder %s44, %s60
      %p62 = scmp.eq.s32.totalorder %s24, 0
      %p63 = por %p61, %p62
      %s65 = sadd.s32 %s64, 1
      %p68 = scmp.eq.s32.totalorder %s18, 3
      %p69 = scmp.ne.s32.totalorder %s64, %s66
      %p70 = scmp.eq.s32.totalorder %s18, 0
      %p71 = por %p69, %p70
      %p72 = scmp.ne.s32.totalorder %s64, %s66
      %p73 = scmp.eq.s32.totalorder %s23, 3
      %p74 = por %p72, %p73
      %p75 = scmp.ne.s32.totalorder %s66, %s67
      %p76 = scmp.eq.s32.totalorder %s23, 0
      %p77 = por %p75, %p76
      %p78 = scmp.ne.s32.totalorder %s66, %s67
      %p79 = scmp.eq.s32.totalorder %s24, 3
      %p80 = por %p78, %p79
      %p82 = scmp.ne.s32.totalorder %s67, %s81
      %p83 = scmp.eq.s32.totalorder %s24, 0
      %p84 = por %p82, %p83
      %s86 = sadd.s32 %s85, 1
      %p89 = scmp.eq.s32.totalorder %s18, 3
      %p90 = scmp.ne.s32.totalorder %s85, %s87
      %p91 = scmp.eq.s32.totalorder %s18, 0
      %p92 = por %p90, %p91
      %p93 = scmp.ne.s32.totalorder %s85, %s87
      %p94 = scmp.eq.s32.totalorder %s23, 3
      %p95 = por %p93, %p94
      %p96 = scmp.ne.s32.totalorder %s87, %s88
      %p97 = scmp.eq.s32.totalorder %s23, 0
      %p98 = por %p96, %p97
      %p99 = scmp.ne.s32.totalorder %s87, %s88
      %p100 = scmp.eq.s32.totalorder %s24, 3
      %p101 = por %p99, %p100
      %p103 = scmp.ne.s32.totalorder %s88, %s102
      %p104 = scmp.eq.s32.totalorder %s24, 0
      %p105 = por %p103, %p104
      %s107 = sadd.s32 %s106, 1
      %p110 = scmp.eq.s32.totalorder %s18, 3
      %p111 = scmp.ne.s32.totalorder %s106, %s108
      %p112 = scmp.eq.s32.totalorder %s18, 0
      %p113 = por %p111, %p112
      %p114 = scmp.ne.s32.totalorder %s106, %s108
      %p115 = scmp.eq.s32.totalorder %s23, 3
      %p116 = por %p114, %p115
      %p117 = scmp.ne.s32.totalorder %s108, %s109
      %p118 = scmp.eq.s32.totalorder %s23, 0
      %p119 = por %p117, %p118
      %p120 = scmp.ne.s32.totalorder %s108, %s109
      %p121 = scmp.eq.s32.totalorder %s24, 3
      %p122 = por %p120, %p121
      %p124 = scmp.ne.s32.totalorder %s109, %s123
      %p125 = scmp.eq.s32.totalorder %s24, 0
      %p126 = por %p124, %p125
      %s128 = sadd.s32 %s127, 1
      %p131 = scmp.eq.s32.totalorder %s18, 3
      %p132 = scmp.ne.s32.totalorder %s127, %s129
      %p133 = scmp.eq.s32.totalorder %s18, 0
      %p134 = por %p132, %p133
      %p135 = scmp.ne.s32.totalorder %s127, %s129
      %p136 = scmp.eq.s32.totalorder %s23, 3
      %p137 = por %p135, %p136
      %p138 = scmp.ne.s32.totalorder %s129, %s130
      %p139 = scmp.eq.s32.totalorder %s23, 0
      %p140 = por %p138, %p139
      %p141 = scmp.ne.s32.totalorder %s129, %s130
      %p142 = scmp.eq.s32.totalorder %s24, 3
      %p143 = por %p141, %p142
      %p145 = scmp.ne.s32.totalorder %s130, %s144
      %p146 = scmp.eq.s32.totalorder %s24, 0
      %p147 = por %p145, %p146
      %s149 = sadd.s32 %s148, 1
      %p152 = scmp.eq.s32.totalorder %s18, 3
      %p153 = scmp.ne.s32.totalorder %s148, %s150
      %p154 = scmp.eq.s32.totalorder %s18, 0
      %p155 = por %p153, %p154
      %p156 = scmp.ne.s32.totalorder %s148, %s150
      %p157 = scmp.eq.s32.totalorder %s23, 3
      %p158 = por %p156, %p157
      %p159 = scmp.ne.s32.totalorder %s150, %s151
      %p160 = scmp.eq.s32.totalorder %s23, 0
      %p161 = por %p159, %p160
      %p162 = scmp.ne.s32.totalorder %s150, %s151
      %p163 = scmp.eq.s32.totalorder %s24, 3
      %p164 = por %p162, %p163
      %p166 = scmp.ne.s32.totalorder %s151, %s165
      %p167 = scmp.eq.s32.totalorder %s24, 0
      %p168 = por %p166, %p167
      %s170 = sadd.s32 %s169, 1
      %p173 = scmp.eq.s32.totalorder %s18, 3
      %p174 = scmp.ne.s32.totalorder %s169, %s171
      %p175 = scmp.eq.s32.totalorder %s18, 0
      %p176 = por %p174, %p175
      %p177 = scmp.ne.s32.totalorder %s169, %s171
      %p178 = scmp.eq.s32.totalorder %s23, 3
      %p179 = por %p177, %p178
      %p180 = scmp.ne.s32.totalorder %s171, %s172
      %p181 = scmp.eq.s32.totalorder %s23, 0
      %p182 = por %p180, %p181
      %p183 = scmp.ne.s32.totalorder %s171, %s172
      %p184 = scmp.eq.s32.totalorder %s24, 3
      %p185 = por %p183, %p184
      %p187 = scmp.ne.s32.totalorder %s172, %s186
      %p188 = scmp.eq.s32.totalorder %s24, 0
      %p189 = por %p187, %p188
      %s190 = ssub.s32 %s25, %s37
      %s191 = ssub.s32 %s26, %s33
      %s192 = sor.u32 %s190, %s191
      %p193 = scmp.eq.s32.totalorder %s192, 0
      %s195 = sadd.s32 %s194, 1
      %s196 = scalar_select %p193, %s194, %s195
      %p199 = pneg %p193
      %p200 = scmp.eq.s32.totalorder %s18, 3
      %p201 = por %p199, %p200
      %p202 = scmp.ne.s32.totalorder %s194, %s197
      %p203 = scmp.eq.s32.totalorder %s18, 0
      %p204 = por %p202, %p203
      %p205 = scmp.ne.s32.totalorder %s194, %s197
      %p206 = scmp.eq.s32.totalorder %s23, 3
      %p207 = por %p205, %p206
      %p208 = scmp.ne.s32.totalorder %s197, %s198
      %p209 = scmp.eq.s32.totalorder %s23, 0
      %p210 = por %p208, %p209
      %p211 = scmp.ne.s32.totalorder %s197, %s198
      %p212 = scmp.eq.s32.totalorder %s24, 3
      %p213 = por %p211, %p212
      %p215 = scmp.ne.s32.totalorder %s198, %s214
      %p216 = scmp.eq.s32.totalorder %s24, 0
      %p217 = por %p215, %p216
      %p218 = scmp.le.s32.totalorder 1, %s18
      %p219 = scmp.lt.s32.totalorder %s18, 5
      %p220 = pnand %p218, %p219
      %p221 = pneg %p220
      // Predicated region
      $region9: #{stereo_depth_net.1} parent=5 // pred_check
        _
      $region10: #{stereo_depth_net.1} parent=5 // pred_check_branch
        %223 = sbr.rel (%p220) target = $region12
      $region11: #{stereo_depth_net.1} parent=5 // pred_region
        %s224 = ssub.s32 %s18, 1
        // Predicated region
        $region13: #{stereo_depth_net.1} parent=11 // pred_check
          %p225 = pneg %p77
        $region14: #{stereo_depth_net.1} parent=11 // pred_check_branch
          %227 = sbr.rel (%p225) target = $region16
        $region15: #{stereo_depth_net.1} parent=11 // pred_region
          _
        $region16: #{stereo_depth_net.1} parent=11 // pred_fallthru
          _
        // Predicated region
        $region17: #{stereo_depth_net.1} parent=11 // pred_check
          %p228 = pneg %p98
        $region18: #{stereo_depth_net.1} parent=11 // pred_check_branch
          %230 = sbr.rel (%p228) target = $region20
        $region19: #{stereo_depth_net.1} parent=11 // pred_region
          _
        $region20: #{stereo_depth_net.1} parent=11 // pred_fallthru
          _
        // Predicated region
        $region21: #{stereo_depth_net.1} parent=11 // pred_check
          %p231 = pneg %p119
        $region22: #{stereo_depth_net.1} parent=11 // pred_check_branch
          %233 = sbr.rel (%p231) target = $region24
        $region23: #{stereo_depth_net.1} parent=11 // pred_region
          _
        $region24: #{stereo_depth_net.1} parent=11 // pred_fallthru
          _
        // Predicated region
        $region25: #{stereo_depth_net.1} parent=11 // pred_check
          %p234 = pneg %p140
        $region26: #{stereo_depth_net.1} parent=11 // pred_check_branch
          %236 = sbr.rel (%p234) target = $region28
        $region27: #{stereo_depth_net.1} parent=11 // pred_region
          _
        $region28: #{stereo_depth_net.1} parent=11 // pred_fallthru
          _
        // Predicated region
        $region29: #{stereo_depth_net.1} parent=11 // pred_check
          %p237 = pneg %p161
        $region30: #{stereo_depth_net.1} parent=11 // pred_check_branch
          %239 = sbr.rel (%p237) target = $region32
        $region31: #{stereo_depth_net.1} parent=11 // pred_region
          _
        $region32: #{stereo_depth_net.1} parent=11 // pred_fallthru
          _
        // Predicated region
        $region33: #{stereo_depth_net.1} parent=11 // pred_check
          %p240 = pneg %p182
        $region34: #{stereo_depth_net.1} parent=11 // pred_check_branch
          %242 = sbr.rel (%p240) target = $region36
        $region35: #{stereo_depth_net.1} parent=11 // pred_region
          _
        $region36: #{stereo_depth_net.1} parent=11 // pred_fallthru
          _
      $region12: #{stereo_depth_net.1} parent=5 // pred_fallthru
        _
      %p243 = scmp.lt.s32.totalorder %s18, 4
      // Predicated region
      $region37: #{stereo_depth_net.1} parent=5 // pred_check
        %p244 = pneg %p243
      $region38: #{stereo_depth_net.1} parent=5 // pred_check_branch
        %246 = sbr.rel (%p244) target = $region40
      $region39: #{stereo_depth_net.1} parent=5 // pred_region
        // Predicated region
        $region41: #{stereo_depth_net.1} parent=39 // pred_check
          %p247 = pneg %p50
        $region42: #{stereo_depth_net.1} parent=39 // pred_check_branch
          %249 = sbr.rel (%p247) target = $region44
        $region43: #{stereo_depth_net.1} parent=39 // pred_region
          %p250 = scmp.lt.s32.totalorder %s25, 1
          %s251 = scalar_select %p250, %s25, 1
          %s252 = smul.addr %s251, 66
          %s253 = smul.addr %s252, 4
          %s254 = scalar_lea.vmem %s0, %s253
        $region44: #{stereo_depth_net.1} parent=39 // pred_fallthru
          _
      $region40: #{stereo_depth_net.1} parent=5 // pred_fallthru
        _
      %p255 = scmp.le.s32.totalorder 1, %s18
      %p256 = scmp.lt.s32.totalorder %s18, 5
      %p257 = pnand %p255, %p256
      %p258 = pneg %p257
      // Predicated region
      $region45: #{stereo_depth_net.1} parent=5 // pred_check
        _
      $region46: #{stereo_depth_net.1} parent=5 // pred_check_branch
        %260 = sbr.rel (%p257) target = $region48
      $region47: #{stereo_depth_net.1} parent=5 // pred_region
        %s261 = ssub.s32 %s18, 1
        %p262 = scmp.lt.s32.totalorder %s27, 1
        %s263 = scalar_select %p262, %s27, 1
        %s264 = smul.addr %s263, 66
        %s265 = smul.addr %s264, 4
        %s266 = scalar_lea.vmem %s0, %s265
        %p267 = pneg %p56
        %p268 = pneg %p53
        %p269 = pneg %p77
        %p270 = pneg %p74
        %p271 = pneg %p98
        %p272 = pneg %p95
        %p273 = pneg %p119
        %p274 = pneg %p116
        %p275 = pneg %p140
        %p276 = pneg %p137
        %p277 = pneg %p161
        %p278 = pneg %p158
        %p279 = pneg %p182
        %p280 = pneg %p179
        %p281 = pneg %p210
        %p282 = pneg %p207
        %s283 = sand.u32 %s197, 1
        %s284 = scalar_lea.sflag [#allocation6], %s283
        %s285 = sand.u32 %s197, 1
        %s286 = smul.addr %s285, 8
        %s287 = scalar_lea.vmem [#allocation5], %s286
        %p288 = scmp.lt.s32.totalorder %s27, 1
        %s289 = scalar_select %p288, %s27, 1
        %s290 = smul.addr %s289, 66
        %s291 = smul.addr %s290, 4
        %s292 = scalar_lea.vmem %s0, %s291
        %s294 = smul.u32 %s28, 8
        %s295 = smul.u32 %s294, 3
        %s296 = smul.addr %s295, 4
        %s297 = scalar_lea.vmem %s292, %s296
        %v298 = vld [vmem:[%s297] sm:$0xf]
        %v299 = vld [vmem:[%s297 + $0x4] sm:$0xf]
        %v300 = vld [vmem:[%s297 + $0xc] sm:$0xf]
        %v301 = vld [vmem:[%s297 + $0x10] sm:$0xf]
        %v302 = vld [vmem:[%s297 + $0x18] sm:$0xf]
        %v303 = vld [vmem:[%s297 + $0x1c] sm:$0xf]
        %v304 = vld [vmem:[%s297 + $0x24] sm:$0xf]
        %v305 = vld [vmem:[%s297 + $0x28] sm:$0xf]
        %v306 = vld [vmem:[%s297 + $0x30] sm:$0xf]
        %v307 = vld [vmem:[%s297 + $0x34] sm:$0xf]
        %v308 = vld [vmem:[%s297 + $0x3c] sm:$0xf]
        %v309 = vld [vmem:[%s297 + $0x40] sm:$0xf]
        %v310 = vld [vmem:[%s297 + $0x48] sm:$0xf]
        %v311 = vld [vmem:[%s297 + $0x4c] sm:$0xf]
        %v312 = vld [vmem:[%s297 + $0x54] sm:$0xf]
        %v313 = vld [vmem:[%s297 + $0x58] sm:$0xf]
        %v314 = vld [vmem:[%s297 + $0x60] sm:$0xf]
        %v315 = vld [vmem:[%s297 + $0x64] sm:$0xf]
        %v316 = vld [vmem:[%s297 + $0x6c] sm:$0xf]
        %v317 = vld [vmem:[%s297 + $0x70] sm:$0xf]
        %v318 = vld [vmem:[%s297 + $0x78] sm:$0xf]
        %v319 = vld [vmem:[%s297 + $0x7c] sm:$0xf]
        %v320 = vld [vmem:[%s297 + $0x84] sm:$0xf]
        %v321 = vld [vmem:[%s297 + $0x88] sm:$0xf]
        %v322 = vld [vmem:[%s1] sm:$0x3]
        %v323 = vld [vmem:[%s297 + $0x8] sm:$0x1]
        %v324 = vld [vmem:[%s297 + $0x14] sm:$0x1]
        %v325 = vld [vmem:[%s297 + $0x20] sm:$0x1]
        %v326 = vld [vmem:[%s297 + $0x2c] sm:$0x1]
        %v327 = vld [vmem:[%s297 + $0x38] sm:$0x1]
        %v328 = vld [vmem:[%s297 + $0x44] sm:$0x1]
        %v329 = vld [vmem:[%s297 + $0x50] sm:$0x1]
        %v330 = vld [vmem:[%s297 + $0x5c] sm:$0x1]
        %v331 = vld [vmem:[%s297 + $0x68] sm:$0x1]
        %v332 = vld [vmem:[%s297 + $0x74] sm:$0x1]
        %v333 = vld [vmem:[%s297 + $0x80] sm:$0x1]
        %v334 = vld [vmem:[%s297 + $0x8c] sm:$0x1]
        %vm335 = vsmask.f32 3328
        %vm336 = vsmask.f32 7440
        %vm337 = vmor %vm335, %vm336
        %v339 = vshrl.u32 %v298, 16
        %v341 = vrot.slane %v339, 4
        %v342 = vshll.u32 %v298, 16
        %v344 = vrot.slane %v342, 5
        %v345 = vor.u32 %v341, %v344
        %v346 = vrot.slane %v345, 4
        %v348 = vshll.u32 %v299, 16
        %v350 = vrot.slane %v348, 5
        %v351 = vsel %vm337, %v346, %v350
        %v352 = vshrl.u32 %v299, 16
        %v354 = vrot.slane %v352, 4
        %v355 = vor.u32 %v354, %v350
        %v356 = vrot.slane %v355, 4
        %v358 = vshll.u32 %v323, 16
        %v360 = vrot.slane %v358, 5
        %v361 = vsel %vm337, %v356, %v360
        %v363 = vshrl.u32 %v300, 16
        %v365 = vrot.slane %v363, 4
        %v366 = vshll.u32 %v300, 16
        %v368 = vrot.slane %v366, 5
        %v369 = vor.u32 %v365, %v368
        %v370 = vrot.slane %v369, 4
        %v372 = vshll.u32 %v301, 16
        %v374 = vrot.slane %v372, 5
        %v375 = vsel %vm337, %v370, %v374
        %v376 = vshrl.u32 %v301, 16
        %v378 = vrot.slane %v376, 4
        %v379 = vor.u32 %v378, %v374
        %v380 = vrot.slane %v379, 4
        %v382 = vshll.u32 %v324, 16
        %v384 = vrot.slane %v382, 5
        %v385 = vsel %vm337, %v380, %v384
        %v387 = vshrl.u32 %v302, 16
        %v389 = vrot.slane %v387, 4
        %v390 = vshll.u32 %v302, 16
        %v392 = vrot.slane %v390, 5
        %v393 = vor.u32 %v389, %v392
        %v394 = vrot.slane %v393, 4
        %v396 = vshll.u32 %v303, 16
        %v398 = vrot.slane %v396, 5
        %v399 = vsel %vm337, %v394, %v398
        %v400 = vshrl.u32 %v303, 16
        %v402 = vrot.slane %v400, 4
        %v403 = vor.u32 %v402, %v398
        %v404 = vrot.slane %v403, 4
        %v406 = vshll.u32 %v325, 16
        %v408 = vrot.slane %v406, 5
        %v409 = vsel %vm337, %v404, %v408
        %v411 = vshrl.u32 %v304, 16
        %v413 = vrot.slane %v411, 4
        %v414 = vshll.u32 %v304, 16
        %v416 = vrot.slane %v414, 5
        %v417 = vor.u32 %v413, %v416
        %v418 = vrot.slane %v417, 4
        %v420 = vshll.u32 %v305, 16
        %v422 = vrot.slane %v420, 5
        %v423 = vsel %vm337, %v418, %v422
        %v424 = vshrl.u32 %v305, 16
        %v426 = vrot.slane %v424, 4
        %v427 = vor.u32 %v426, %v422
        %v428 = vrot.slane %v427, 4
        %v430 = vshll.u32 %v326, 16
        %v432 = vrot.slane %v430, 5
        %v433 = vsel %vm337, %v428, %v432
        %v435 = vshrl.u32 %v306, 16
        %v437 = vrot.slane %v435, 4
        %v438 = vshll.u32 %v306, 16
        %v440 = vrot.slane %v438, 5
        %v441 = vor.u32 %v437, %v440
        %v442 = vrot.slane %v441, 4
        %v444 = vshll.u32 %v307, 16
        %v446 = vrot.slane %v444, 5
        %v447 = vsel %vm337, %v442, %v446
        %v448 = vshrl.u32 %v307, 16
        %v450 = vrot.slane %v448, 4
        %v451 = vor.u32 %v450, %v446
        %v452 = vrot.slane %v451, 4
        %v454 = vshll.u32 %v327, 16
        %v456 = vrot.slane %v454, 5
        %v457 = vsel %vm337, %v452, %v456
        %v459 = vshrl.u32 %v308, 16
        %v461 = vrot.slane %v459, 4
        %v462 = vshll.u32 %v308, 16
        %v464 = vrot.slane %v462, 5
        %v465 = vor.u32 %v461, %v464
        %v466 = vrot.slane %v465, 4
        %v468 = vshll.u32 %v309, 16
        %v470 = vrot.slane %v468, 5
        %v471 = vsel %vm337, %v466, %v470
        %v472 = vshrl.u32 %v309, 16
        %v474 = vrot.slane %v472, 4
        %v475 = vor.u32 %v474, %v470
        %v476 = vrot.slane %v475, 4
        %v478 = vshll.u32 %v328, 16
        %v480 = vrot.slane %v478, 5
        %v481 = vsel %vm337, %v476, %v480
        %v483 = vshrl.u32 %v310, 16
        %v485 = vrot.slane %v483, 4
        %v486 = vshll.u32 %v310, 16
        %v488 = vrot.slane %v486, 5
        %v489 = vor.u32 %v485, %v488
        %v490 = vrot.slane %v489, 4
        %v492 = vshll.u32 %v311, 16
        %v494 = vrot.slane %v492, 5
        %v495 = vsel %vm337, %v490, %v494
        %v496 = vshrl.u32 %v311, 16
        %v498 = vrot.slane %v496, 4
        %v499 = vor.u32 %v498, %v494
        %v500 = vrot.slane %v499, 4
        %v502 = vshll.u32 %v329, 16
        %v504 = vrot.slane %v502, 5
        %v505 = vsel %vm337, %v500, %v504
        %v507 = vshrl.u32 %v312, 16
        %v509 = vrot.slane %v507, 4
        %v510 = vshll.u32 %v312, 16
        %v512 = vrot.slane %v510, 5
        %v513 = vor.u32 %v509, %v512
        %v514 = vrot.slane %v513, 4
        %v516 = vshll.u32 %v313, 16
        %v518 = vrot.slane %v516, 5
        %v519 = vsel %vm337, %v514, %v518
        %v520 = vshrl.u32 %v313, 16
        %v522 = vrot.slane %v520, 4
        %v523 = vor.u32 %v522, %v518
        %v524 = vrot.slane %v523, 4
        %v526 = vshll.u32 %v330, 16
        %v528 = vrot.slane %v526, 5
        %v529 = vsel %vm337, %v524, %v528
        %v531 = vshrl.u32 %v314, 16
        %v533 = vrot.slane %v531, 4
        %v534 = vshll.u32 %v314, 16
        %v536 = vrot.slane %v534, 5
        %v537 = vor.u32 %v533, %v536
        %v538 = vrot.slane %v537, 4
        %v540 = vshll.u32 %v315, 16
        %v542 = vrot.slane %v540, 5
        %v543 = vsel %vm337, %v538, %v542
        %v544 = vshrl.u32 %v315, 16
        %v546 = vrot.slane %v544, 4
        %v547 = vor.u32 %v546, %v542
        %v548 = vrot.slane %v547, 4
        %v550 = vshll.u32 %v331, 16
        %v552 = vrot.slane %v550, 5
        %v553 = vsel %vm337, %v548, %v552
        %v555 = vshrl.u32 %v316, 16
        %v557 = vrot.slane %v555, 4
        %v558 = vshll.u32 %v316, 16
        %v560 = vrot.slane %v558, 5
        %v561 = vor.u32 %v557, %v560
        %v562 = vrot.slane %v561, 4
        %v564 = vshll.u32 %v317, 16
        %v566 = vrot.slane %v564, 5
        %v567 = vsel %vm337, %v562, %v566
        %v568 = vshrl.u32 %v317, 16
        %v570 = vrot.slane %v568, 4
        %v571 = vor.u32 %v570, %v566
        %v572 = vrot.slane %v571, 4
        %v574 = vshll.u32 %v332, 16
        %v576 = vrot.slane %v574, 5
        %v577 = vsel %vm337, %v572, %v576
        %v579 = vshrl.u32 %v318, 16
        %v581 = vrot.slane %v579, 4
        %v582 = vshll.u32 %v318, 16
        %v584 = vrot.slane %v582, 5
        %v585 = vor.u32 %v581, %v584
        %v586 = vrot.slane %v585, 4
        %v588 = vshll.u32 %v319, 16
        %v590 = vrot.slane %v588, 5
        %v591 = vsel %vm337, %v586, %v590
        %v592 = vshrl.u32 %v319, 16
        %v594 = vrot.slane %v592, 4
        %v595 = vor.u32 %v594, %v590
        %v596 = vrot.slane %v595, 4
        %v598 = vshll.u32 %v333, 16
        %v600 = vrot.slane %v598, 5
        %v601 = vsel %vm337, %v596, %v600
        %v603 = vshrl.u32 %v320, 16
        %v605 = vrot.slane %v603, 4
        %v606 = vshll.u32 %v320, 16
        %v608 = vrot.slane %v606, 5
        %v609 = vor.u32 %v605, %v608
        %v610 = vrot.slane %v609, 4
        %v612 = vshll.u32 %v321, 16
        %v614 = vrot.slane %v612, 5
        %v615 = vsel %vm337, %v610, %v614
        %v616 = vshrl.u32 %v321, 16
        %v618 = vrot.slane %v616, 4
        %v619 = vor.u32 %v618, %v614
        %v620 = vrot.slane %v619, 4
        %v622 = vshll.u32 %v334, 16
        %v624 = vrot.slane %v622, 5
        %v625 = vsel %vm337, %v620, %v624
        %s626 = scalar_lea.vmem %s1, 2
        %v627 = vld [vmem:[%s626] sm:$0x3]
        %v628 = vunpack.c.l.b16 %v351
        %v629 = vunpack.c.l.b16 %v361
        %v630 = vunpack.c.l.b16 %v375
        %v631 = vunpack.c.l.b16 %v385
        %v632 = vunpack.c.l.b16 %v399
        %v633 = vunpack.c.l.b16 %v409
        %v634 = vunpack.c.l.b16 %v423
        %v635 = vunpack.c.l.b16 %v433
        %v636 = vunpack.c.l.b16 %v447
        %v637 = vunpack.c.l.b16 %v457
        %v638 = vunpack.c.l.b16 %v471
        %v639 = vunpack.c.l.b16 %v481
        %v640 = vunpack.c.l.b16 %v495
        %v641 = vunpack.c.l.b16 %v505
        %v642 = vunpack.c.l.b16 %v519
        %v643 = vunpack.c.l.b16 %v529
        %v644 = vunpack.c.l.b16 %v543
        %v645 = vunpack.c.l.b16 %v553
        %v646 = vunpack.c.l.b16 %v567
        %v647 = vunpack.c.l.b16 %v577
        %v648 = vunpack.c.l.b16 %v591
        %v649 = vunpack.c.l.b16 %v601
        %v650 = vunpack.c.l.b16 %v615
        %v651 = vunpack.c.l.b16 %v625
        %v652 = vpack.c.b16 %v629, %v628
        %v653 = vpack.c.b16 %v631, %v630
        %v654 = vpack.c.b16 %v633, %v632
        %v655 = vpack.c.b16 %v635, %v634
        %v656 = vpack.c.b16 %v637, %v636
        %v657 = vpack.c.b16 %v639, %v638
        %v658 = vpack.c.b16 %v641, %v640
        %v659 = vpack.c.b16 %v643, %v642
        %v660 = vpack.c.b16 %v645, %v644
        %v661 = vpack.c.b16 %v647, %v646
        %v662 = vpack.c.b16 %v649, %v648
        %v663 = vpack.c.b16 %v651, %v650
        %vm664 = vcmask 23552
        %v666 = vsel %vm664, %v652, 0
        %v669 = vsel %vm664, %v653, 0
        %v672 = vsel %vm664, %v654, 0
        %v675 = vsel %vm664, %v655, 0
        %v678 = vsel %vm664, %v656, 0
        %v681 = vsel %vm664, %v657, 0
        %v684 = vsel %vm664, %v658, 0
        %v687 = vsel %vm664, %v659, 0
        %v690 = vsel %vm664, %v660, 0
        %v693 = vsel %vm664, %v661, 0
        %v696 = vsel %vm664, %v662, 0
        %v699 = vsel %vm664, %v663, 0
        %vm701 = vcmask 1040384
        %vm702 = vcmask 1041408
        %v703 = vsel %vm701, 4294967295, 65535
        %v704 = vsel %vm702, %v703, 0
        %v706 = vand.u32 %v627, %v704
        %708 = vmatprep.subr.bf16.mxu0 0
        %709 = vmatpush1.bf16.msra.mxu0 %v706
        %710 = vmatprep.subr.bf16.mxu0 0
        %711 = vmatpush1.bf16.msra.mxu0 0
        %712 = vmatprep.subr.bf16.mxu0 0
        %713 = vmatpush1.bf16.msra.mxu0 0
        %714 = vmatprep.subr.bf16.mxu0 0
        %715 = vmatpush1.bf16.msra.mxu0 0
        %716 = vmatprep.subr.bf16.mxu0 0
        %717 = vmatpush1.bf16.msra.mxu0 0
        %718 = vmatprep.subr.bf16.mxu0 0
        %719 = vmatpush1.bf16.msra.mxu0 0
        %720 = vmatprep.subr.bf16.mxu0 0
        %721 = vmatpush1.bf16.msra.mxu0 0
        %722 = vmatprep.subr.bf16.mxu0 0
        %723 = vmatpush1.bf16.msra.mxu0 0
        %724 = vmatprep.subr.bf16.mxu0 0
        %725 = vmatpush1.bf16.msra.mxu0 0
        %726 = vmatprep.subr.bf16.mxu0 0
        %727 = vmatpush1.bf16.msra.mxu0 0
        %728 = vmatprep.subr.bf16.mxu0 0
        %729 = vmatpush1.bf16.msra.mxu0 0
        %730 = vmatprep.subr.bf16.mxu0 0
        %731 = vmatpush1.bf16.msra.mxu0 0
        %732 = vmatprep.subr.bf16.mxu0 0
        %733 = vmatpush1.bf16.msra.mxu0 0
        %734 = vmatprep.subr.bf16.mxu0 0
        %735 = vmatpush1.bf16.msra.mxu0 0
        %736 = vmatprep.subr.bf16.mxu0 0
        %737 = vmatpush1.bf16.msra.mxu0 0
        %738 = vmatprep.subr.bf16.mxu0 0
        %739 = vmatpush1.bf16.msra.mxu0 0
        %740 = vmatprep.mubr.bf16.mxu0 0
        %741 = vmatmul.mubr.bf16.gmra.mrb[0].mxu0 %v666
        %v742 = vpop.f32.mrb[0].mxu0
        %v743 = vadd.f32 0.0, %v742
        %v744 = vpop.f32.mrb[0].mxu0
        %v745 = vpop.f32.mrb[0].mxu0
        %v746 = vadd.f32 0.0, %v745
        %v747 = vpop.f32.mrb[0].mxu0
        %748 = vmatprep.mubr.bf16.mxu0 0
        %749 = vmatmul.mubr.bf16.gmra.mrb[0].mxu0 %v669
        %v750 = vpop.f32.mrb[0].mxu0
        %v751 = vadd.f32 0.0, %v750
        %v752 = vpop.f32.mrb[0].mxu0
        %v753 = vpop.f32.mrb[0].mxu0
        %v754 = vadd.f32 0.0, %v753
        %v755 = vpop.f32.mrb[0].mxu0
        %756 = vmatprep.mubr.bf16.mxu0 0
        %757 = vmatmul.mubr.bf16.gmra.mrb[0].mxu0 %v672
        %v758 = vpop.f32.mrb[0].mxu0
        %v759 = vadd.f32 0.0, %v758
        %v760 = vpop.f32.mrb[0].mxu0
        %v761 = vpop.f32.mrb[0].mxu0
        %v762 = vadd.f32 0.0, %v761
        %v763 = vpop.f32.mrb[0].mxu0
        %764 = vmatprep.mubr.bf16.mxu0 0
        %765 = vmatmul.mubr.bf16.gmra.mrb[0].mxu0 %v675
        %v766 = vpop.f32.mrb[0].mxu0
        %v767 = vadd.f32 0.0, %v766
        %v768 = vpop.f32.mrb[0].mxu0
        %v769 = vpop.f32.mrb[0].mxu0
        %v770 = vadd.f32 0.0, %v769
        %v771 = vpop.f32.mrb[0].mxu0
        %772 = vmatprep.mubr.bf16.mxu0 0
        %773 = vmatmul.mubr.bf16.gmra.mrb[0].mxu0 %v678
        %v774 = vpop.f32.mrb[0].mxu0
        %v775 = vadd.f32 0.0, %v774
        %v776 = vpop.f32.mrb[0].mxu0
        %v777 = vpop.f32.mrb[0].mxu0
        %v778 = vadd.f32 0.0, %v777
        %v779 = vpop.f32.mrb[0].mxu0
        %780 = vmatprep.mubr.bf16.mxu0 0
        %781 = vmatmul.mubr.bf16.gmra.mrb[0].mxu0 %v681
        %v782 = vpop.f32.mrb[0].mxu0
        %v783 = vadd.f32 0.0, %v782
        %v784 = vpop.f32.mrb[0].mxu0
        %v785 = vpop.f32.mrb[0].mxu0
        %v786 = vadd.f32 0.0, %v785
        %v787 = vpop.f32.mrb[0].mxu0
        %788 = vmatprep.mubr.bf16.mxu0 0
        %789 = vmatmul.mubr.bf16.gmra.mrb[0].mxu0 %v684
        %v790 = vpop.f32.mrb[0].mxu0
        %v791 = vadd.f32 0.0, %v790
        %v792 = vpop.f32.mrb[0].mxu0
        %v793 = vpop.f32.mrb[0].mxu0
        %v794 = vadd.f32 0.0, %v793
        %v795 = vpop.f32.mrb[0].mxu0
        %796 = vmatprep.mubr.bf16.mxu0 0
        %797 = vmatmul.mubr.bf16.gmra.mrb[0].mxu0 %v687
        %v798 = vpop.f32.mrb[0].mxu0
        %v799 = vadd.f32 0.0, %v798
        %v800 = vpop.f32.mrb[0].mxu0
        %v801 = vpop.f32.mrb[0].mxu0
        %v802 = vadd.f32 0.0, %v801
        %v803 = vpop.f32.mrb[0].mxu0
        %804 = vmatprep.mubr.bf16.mxu0 0
        %805 = vmatmul.mubr.bf16.gmra.mrb[0].mxu0 %v690
        %v806 = vpop.f32.mrb[0].mxu0
        %v807 = vadd.f32 0.0, %v806
        %v808 = vpop.f32.mrb[0].mxu0
        %v809 = vpop.f32.mrb[0].mxu0
        %v810 = vadd.f32 0.0, %v809
        %v811 = vpop.f32.mrb[0].mxu0
        %812 = vmatprep.mubr.bf16.mxu0 0
        %813 = vmatmul.mubr.bf16.gmra.mrb[0].mxu0 %v693
        %v814 = vpop.f32.mrb[0].mxu0
        %v815 = vadd.f32 0.0, %v814
        %v816 = vpop.f32.mrb[0].mxu0
        %v817 = vpop.f32.mrb[0].mxu0
        %v818 = vadd.f32 0.0, %v817
        %v819 = vpop.f32.mrb[0].mxu0
        %820 = vmatprep.mubr.bf16.mxu0 0
        %821 = vmatmul.mubr.bf16.gmra.mrb[0].mxu0 %v696
        %v822 = vpop.f32.mrb[0].mxu0
        %v823 = vadd.f32 0.0, %v822
        %v824 = vpop.f32.mrb[0].mxu0
        %v825 = vpop.f32.mrb[0].mxu0
        %v826 = vadd.f32 0.0, %v825
        %v827 = vpop.f32.mrb[0].mxu0
        %828 = vmatprep.mubr.bf16.mxu0 0
        %829 = vmatmul.mubr.bf16.gmra.mrb[0].mxu0 %v699
        %v830 = vpop.f32.mrb[0].mxu0
        %v831 = vadd.f32 0.0, %v830
        %v832 = vpop.f32.mrb[0].mxu0
        %v833 = vpop.f32.mrb[0].mxu0
        %v834 = vadd.f32 0.0, %v833
        %v835 = vpop.f32.mrb[0].mxu0
        %836 = vdwg.mxu0
        %v861 = vunpack.c.l.b16 %v298
        %v862 = vunpack.c.l.b16 %v299
        %v863 = vunpack.c.l.b16 %v300
        %v864 = vunpack.c.l.b16 %v301
        %v865 = vunpack.c.l.b16 %v302
        %v866 = vunpack.c.l.b16 %v303
        %v867 = vunpack.c.l.b16 %v304
        %v868 = vunpack.c.l.b16 %v305
        %v869 = vunpack.c.l.b16 %v306
        %v870 = vunpack.c.l.b16 %v307
        %v871 = vunpack.c.l.b16 %v308
        %v872 = vunpack.c.l.b16 %v309
        %v873 = vunpack.c.l.b16 %v310
        %v874 = vunpack.c.l.b16 %v311
        %v875 = vunpack.c.l.b16 %v312
        %v876 = vunpack.c.l.b16 %v313
        %v877 = vunpack.c.l.b16 %v314
        %v878 = vunpack.c.l.b16 %v315
        %v879 = vunpack.c.l.b16 %v316
        %v880 = vunpack.c.l.b16 %v317
        %v881 = vunpack.c.l.b16 %v318
        %v882 = vunpack.c.l.b16 %v319
        %v883 = vunpack.c.l.b16 %v320
        %v884 = vunpack.c.l.b16 %v321
        %v885 = vpack.c.b16 %v862, %v861
        %v886 = vpack.c.b16 %v864, %v863
        %v887 = vpack.c.b16 %v866, %v865
        %v888 = vpack.c.b16 %v868, %v867
        %v889 = vpack.c.b16 %v870, %v869
        %v890 = vpack.c.b16 %v872, %v871
        %v891 = vpack.c.b16 %v874, %v873
        %v892 = vpack.c.b16 %v876, %v875
        %v893 = vpack.c.b16 %v878, %v877
        %v894 = vpack.c.b16 %v880, %v879
        %v895 = vpack.c.b16 %v882, %v881
        %v896 = vpack.c.b16 %v884, %v883
        %v898 = vsel %vm664, %v885, 0
        %v901 = vsel %vm664, %v886, 0
        %v904 = vsel %vm664, %v887, 0
        %v907 = vsel %vm664, %v888, 0
        %v910 = vsel %vm664, %v889, 0
        %v913 = vsel %vm664, %v890, 0
        %v916 = vsel %vm664, %v891, 0
        %v919 = vsel %vm664, %v892, 0
        %v922 = vsel %vm664, %v893, 0
        %v925 = vsel %vm664, %v894, 0
        %v928 = vsel %vm664, %v895, 0
        %v931 = vsel %vm664, %v896, 0
        %v934 = vand.u32 %v322, %v704
        %936 = vmatprep.subr.bf16.mxu0 0
        %937 = vmatpush1.bf16.msra.mxu0 %v934
        %938 = vmatprep.subr.bf16.mxu0 0
        %939 = vmatpush1.bf16.msra.mxu0 0
        %940 = vmatprep.subr.bf16.mxu0 0
        %941 = vmatpush1.bf16.msra.mxu0 0
        %942 = vmatprep.subr.bf16.mxu0 0
        %943 = vmatpush1.bf16.msra.mxu0 0
        %944 = vmatprep.subr.bf16.mxu0 0
        %945 = vmatpush1.bf16.msra.mxu0 0
        %946 = vmatprep.subr.bf16.mxu0 0
        %947 = vmatpush1.bf16.msra.mxu0 0
        %948 = vmatprep.subr.bf16.mxu0 0
        %949 = vmatpush1.bf16.msra.mxu0 0
        %950 = vmatprep.subr.bf16.mxu0 0
        %951 = vmatpush1.bf16.msra.mxu0 0
        %952 = vmatprep.subr.bf16.mxu0 0
        %953 = vmatpush1.bf16.msra.mxu0 0
        %954 = vmatprep.subr.bf16.mxu0 0
        %955 = vmatpush1.bf16.msra.mxu0 0
        %956 = vmatprep.subr.bf16.mxu0 0
        %957 = vmatpush1.bf16.msra.mxu0 0
        %958 = vmatprep.subr.bf16.mxu0 0
        %959 = vmatpush1.bf16.msra.mxu0 0
        %960 = vmatprep.subr.bf16.mxu0 0
        %961 = vmatpush1.bf16.msra.mxu0 0
        %962 = vmatprep.subr.bf16.mxu0 0
        %963 = vmatpush1.bf16.msra.mxu0 0
        %964 = vmatprep.subr.bf16.mxu0 0
        %965 = vmatpush1.bf16.msra.mxu0 0
        %966 = vmatprep.subr.bf16.mxu0 0
        %967 = vmatpush1.bf16.msra.mxu0 0
        %968 = vmatprep.mubr.bf16.mxu0 0
        %969 = vmatmul.mubr.bf16.gmra.mrb[0].mxu0 %v898
        %v970 = vpop.f32.mrb[0].mxu0
        %v971 = vadd.f32 %v743, %v970
        %v972 = vpop.f32.mrb[0].mxu0
        %v973 = vpop.f32.mrb[0].mxu0
        %v974 = vadd.f32 %v746, %v973
        %v975 = vpop.f32.mrb[0].mxu0
        %976 = vmatprep.mubr.bf16.mxu0 0
        %977 = vmatmul.mubr.bf16.gmra.mrb[0].mxu0 %v901
        %v978 = vpop.f32.mrb[0].mxu0
        %v979 = vadd.f32 %v751, %v978
        %v980 = vpop.f32.mrb[0].mxu0
        %v981 = vpop.f32.mrb[0].mxu0
        %v982 = vadd.f32 %v754, %v981
        %v983 = vpop.f32.mrb[0].mxu0
        %984 = vmatprep.mubr.bf16.mxu0 0
        %985 = vmatmul.mubr.bf16.gmra.mrb[0].mxu0 %v904
        %v986 = vpop.f32.mrb[0].mxu0
        %v987 = vadd.f32 %v759, %v986
        %v988 = vpop.f32.mrb[0].mxu0
        %v989 = vpop.f32.mrb[0].mxu0
        %v990 = vadd.f32 %v762, %v989
        %v991 = vpop.f32.mrb[0].mxu0
        %992 = vmatprep.mubr.bf16.mxu0 0
        %993 = vmatmul.mubr.bf16.gmra.mrb[0].mxu0 %v907
        %v994 = vpop.f32.mrb[0].mxu0
        %v995 = vadd.f32 %v767, %v994
        %v996 = vpop.f32.mrb[0].mxu0
        %v997 = vpop.f32.mrb[0].mxu0
        %v998 = vadd.f32 %v770, %v997
        %v999 = vpop.f32.mrb[0].mxu0
        %1000 = vmatprep.mubr.bf16.mxu0 0
        %1001 = vmatmul.mubr.bf16.gmra.mrb[0].mxu0 %v910
        %v1002 = vpop.f32.mrb[0].mxu0
        %v1003 = vadd.f32 %v775, %v1002
        %v1004 = vpop.f32.mrb[0].mxu0
        %v1005 = vpop.f32.mrb[0].mxu0
        %v1006 = vadd.f32 %v778, %v1005
        %v1007 = vpop.f32.mrb[0].mxu0
        %1008 = vmatprep.mubr.bf16.mxu0 0
        %1009 = vmatmul.mubr.bf16.gmra.mrb[0].mxu0 %v913
        %v1010 = vpop.f32.mrb[0].mxu0
        %v1011 = vadd.f32 %v783, %v1010
        %v1012 = vpop.f32.mrb[0].mxu0
        %v1013 = vpop.f32.mrb[0].mxu0
        %v1014 = vadd.f32 %v786, %v1013
        %v1015 = vpop.f32.mrb[0].mxu0
        %1016 = vmatprep.mubr.bf16.mxu0 0
        %1017 = vmatmul.mubr.bf16.gmra.mrb[0].mxu0 %v916
        %v1018 = vpop.f32.mrb[0].mxu0
        %v1019 = vadd.f32 %v791, %v1018
        %v1020 = vpop.f32.mrb[0].mxu0
        %v1021 = vpop.f32.mrb[0].mxu0
        %v1022 = vadd.f32 %v794, %v1021
        %v1023 = vpop.f32.mrb[0].mxu0
        %1024 = vmatprep.mubr.bf16.mxu0 0
        %1025 = vmatmul.mubr.bf16.gmra.mrb[0].mxu0 %v919
        %v1026 = vpop.f32.mrb[0].mxu0
        %v1027 = vadd.f32 %v799, %v1026
        %v1028 = vpop.f32.mrb[0].mxu0
        %v1029 = vpop.f32.mrb[0].mxu0
        %v1030 = vadd.f32 %v802, %v1029
        %v1031 = vpop.f32.mrb[0].mxu0
        %1032 = vmatprep.mubr.bf16.mxu0 0
        %1033 = vmatmul.mubr.bf16.gmra.mrb[0].mxu0 %v922
        %v1034 = vpop.f32.mrb[0].mxu0
        %v1035 = vadd.f32 %v807, %v1034
        %v1036 = vpop.f32.mrb[0].mxu0
        %v1037 = vpop.f32.mrb[0].mxu0
        %v1038 = vadd.f32 %v810, %v1037
        %v1039 = vpop.f32.mrb[0].mxu0
        %1040 = vmatprep.mubr.bf16.mxu0 0
        %1041 = vmatmul.mubr.bf16.gmra.mrb[0].mxu0 %v925
        %v1042 = vpop.f32.mrb[0].mxu0
        %v1043 = vadd.f32 %v815, %v1042
        %v1044 = vpop.f32.mrb[0].mxu0
        %v1045 = vpop.f32.mrb[0].mxu0
        %v1046 = vadd.f32 %v818, %v1045
        %v1047 = vpop.f32.mrb[0].mxu0
        %1048 = vmatprep.mubr.bf16.mxu0 0
        %1049 = vmatmul.mubr.bf16.gmra.mrb[0].mxu0 %v928
        %v1050 = vpop.f32.mrb[0].mxu0
        %v1051 = vadd.f32 %v823, %v1050
        %v1052 = vpop.f32.mrb[0].mxu0
        %v1053 = vpop.f32.mrb[0].mxu0
        %v1054 = vadd.f32 %v826, %v1053
        %v1055 = vpop.f32.mrb[0].mxu0
        %1056 = vmatprep.mubr.bf16.mxu0 0
        %1057 = vmatmul.mubr.bf16.gmra.mrb[0].mxu0 %v931
        %v1058 = vpop.f32.mrb[0].mxu0
        %v1059 = vadd.f32 %v831, %v1058
        %v1060 = vpop.f32.mrb[0].mxu0
        %v1061 = vpop.f32.mrb[0].mxu0
        %v1062 = vadd.f32 %v834, %v1061
        %v1063 = vpop.f32.mrb[0].mxu0
        %1064 = vdwg.mxu0
        %v1065 = vld [vmem:[%s297] sm:$0xe]
        %v1066 = vld [vmem:[%s297 + $0xc] sm:$0xe]
        %v1067 = vld [vmem:[%s297 + $0x18] sm:$0xe]
        %v1068 = vld [vmem:[%s297 + $0x24] sm:$0xe]
        %v1069 = vld [vmem:[%s297 + $0x30] sm:$0xe]
        %v1070 = vld [vmem:[%s297 + $0x3c] sm:$0xe]
        %v1071 = vld [vmem:[%s297 + $0x48] sm:$0xe]
        %v1072 = vld [vmem:[%s297 + $0x54] sm:$0xe]
        %v1073 = vld [vmem:[%s297 + $0x60] sm:$0xe]
        %v1074 = vld [vmem:[%s297 + $0x6c] sm:$0xe]
        %v1075 = vld [vmem:[%s297 + $0x78] sm:$0xe]
        %v1076 = vld [vmem:[%s297 + $0x84] sm:$0xe]
        %vm1101 = vcmask 1042432
        %vm1102 = vcmask 1046532
        %vm1103 = vmor %vm1101, %vm1102
        %v1104 = vrot.slane %v1065, 5
        %v1105 = vrot.slane %v1104, 4
        %v1106 = vrot.slane %v299, 5
        %v1107 = vsel %vm1103, %v1105, %v1106
        %v1108 = vrot.slane %v1106, 4
        %v1109 = vrot.slane %v323, 5
        %v1110 = vsel %vm1103, %v1108, %v1109
        %v1111 = vrot.slane %v1066, 5
        %v1112 = vrot.slane %v1111, 4
        %v1113 = vrot.slane %v301, 5
        %v1114 = vsel %vm1103, %v1112, %v1113
        %v1115 = vrot.slane %v1113, 4
        %v1116 = vrot.slane %v324, 5
        %v1117 = vsel %vm1103, %v1115, %v1116
        %v1118 = vrot.slane %v1067, 5
        %v1119 = vrot.slane %v1118, 4
        %v1120 = vrot.slane %v303, 5
        %v1121 = vsel %vm1103, %v1119, %v1120
        %v1122 = vrot.slane %v1120, 4
        %v1123 = vrot.slane %v325, 5
        %v1124 = vsel %vm1103, %v1122, %v1123
        %v1125 = vrot.slane %v1068, 5
        %v1126 = vrot.slane %v1125, 4
        %v1127 = vrot.slane %v305, 5
        %v1128 = vsel %vm1103, %v1126, %v1127
        %v1129 = vrot.slane %v1127, 4
        %v1130 = vrot.slane %v326, 5
        %v1131 = vsel %vm1103, %v1129, %v1130
        %v1132 = vrot.slane %v1069, 5
        %v1133 = vrot.slane %v1132, 4
        %v1134 = vrot.slane %v307, 5
        %v1135 = vsel %vm1103, %v1133, %v1134
        %v1136 = vrot.slane %v1134, 4
        %v1137 = vrot.slane %v327, 5
        %v1138 = vsel %vm1103, %v1136, %v1137
        %v1139 = vrot.slane %v1070, 5
        %v1140 = vrot.slane %v1139, 4
        %v1141 = vrot.slane %v309, 5
        %v1142 = vsel %vm1103, %v1140, %v1141
        %v1143 = vrot.slane %v1141, 4
        %v1144 = vrot.slane %v328, 5
        %v1145 = vsel %vm1103, %v1143, %v1144
        %v1146 = vrot.slane %v1071, 5
        %v1147 = vrot.slane %v1146, 4
        %v1148 = vrot.slane %v311, 5
        %v1149 = vsel %vm1103, %v1147, %v1148
        %v1150 = vrot.slane %v1148, 4
        %v1151 = vrot.slane %v329, 5
        %v1152 = vsel %vm1103, %v1150, %v1151
        %v1153 = vrot.slane %v1072, 5
        %v1154 = vrot.slane %v1153, 4
        %v1155 = vrot.slane %v313, 5
        %v1156 = vsel %vm1103, %v1154, %v1155
        %v1157 = vrot.slane %v1155, 4
        %v1158 = vrot.slane %v330, 5
        %v1159 = vsel %vm1103, %v1157, %v1158
        %v1160 = vrot.slane %v1073, 5
        %v1161 = vrot.slane %v1160, 4
        %v1162 = vrot.slane %v315, 5
        %v1163 = vsel %vm1103, %v1161, %v1162
        %v1164 = vrot.slane %v1162, 4
        %v1165 = vrot.slane %v331, 5
        %v1166 = vsel %vm1103, %v1164, %v1165
        %v1167 = vrot.slane %v1074, 5
        %v1168 = vrot.slane %v1167, 4
        %v1169 = vrot.slane %v317, 5
        %v1170 = vsel %vm1103, %v1168, %v1169
        %v1171 = vrot.slane %v1169, 4
        %v1172 = vrot.slane %v332, 5
        %v1173 = vsel %vm1103, %v1171, %v1172
        %v1174 = vrot.slane %v1075, 5
        %v1175 = vrot.slane %v1174, 4
        %v1176 = vrot.slane %v319, 5
        %v1177 = vsel %vm1103, %v1175, %v1176
        %v1178 = vrot.slane %v1176, 4
        %v1179 = vrot.slane %v333, 5
        %v1180 = vsel %vm1103, %v1178, %v1179
        %v1181 = vrot.slane %v1076, 5
        %v1182 = vrot.slane %v1181, 4
        %v1183 = vrot.slane %v321, 5
        %v1184 = vsel %vm1103, %v1182, %v1183
        %v1185 = vrot.slane %v1183, 4
        %v1186 = vrot.slane %v334, 5
        %v1187 = vsel %vm1103, %v1185, %v1186
        %s1188 = scalar_lea.vmem %s1, 4
        %v1189 = vld [vmem:[%s1188] sm:$0x3]
        %v1190 = vunpack.c.l.b16 %v1107
        %v1191 = vunpack.c.l.b16 %v1110
        %v1192 = vunpack.c.l.b16 %v1114
        %v1193 = vunpack.c.l.b16 %v1117
        %v1194 = vunpack.c.l.b16 %v1121
        %v1195 = vunpack.c.l.b16 %v1124
        %v1196 = vunpack.c.l.b16 %v1128
        %v1197 = vunpack.c.l.b16 %v1131
        %v1198 = vunpack.c.l.b16 %v1135
        %v1199 = vunpack.c.l.b16 %v1138
        %v1200 = vunpack.c.l.b16 %v1142
        %v1201 = vunpack.c.l.b16 %v1145
        %v1202 = vunpack.c.l.b16 %v1149
        %v1203 = vunpack.c.l.b16 %v1152
        %v1204 = vunpack.c.l.b16 %v1156
        %v1205 = vunpack.c.l.b16 %v1159
        %v1206 = vunpack.c.l.b16 %v1163
        %v1207 = vunpack.c.l.b16 %v1166
        %v1208 = vunpack.c.l.b16 %v1170
        %v1209 = vunpack.c.l.b16 %v1173
        %v1210 = vunpack.c.l.b16 %v1177
        %v1211 = vunpack.c.l.b16 %v1180
        %v1212 = vunpack.c.l.b16 %v1184
        %v1213 = vunpack.c.l.b16 %v1187
        %v1214 = vpack.c.b16 %v1191, %v1190
        %v1215 = vpack.c.b16 %v1193, %v1192
        %v1216 = vpack.c.b16 %v1195, %v1194
        %v1217 = vpack.c.b16 %v1197, %v1196
        %v1218 = vpack.c.b16 %v1199, %v1198
        %v1219 = vpack.c.b16 %v1201, %v1200
        %v1220 = vpack.c.b16 %v1203, %v1202
        %v1221 = vpack.c.b16 %v1205, %v1204
        %v1222 = vpack.c.b16 %v1207, %v1206
        %v1223 = vpack.c.b16 %v1209, %v1208
        %v1224 = vpack.c.b16 %v1211, %v1210
        %v1225 = vpack.c.b16 %v1213, %v1212
        %v1227 = vsel %vm664, %v1214, 0
        %v1230 = vsel %vm664, %v1215, 0
        %v1233 = vsel %vm664, %v1216, 0
        %v1236 = vsel %vm664, %v1217, 0
        %v1239 = vsel %vm664, %v1218, 0
        %v1242 = vsel %vm664, %v1219, 0
        %v1245 = vsel %vm664, %v1220, 0
        %v1248 = vsel %vm664, %v1221, 0
        %v1251 = vsel %vm664, %v1222, 0
        %v1254 = vsel %vm664, %v1223, 0
        %v1257 = vsel %vm664, %v1224, 0
        %v1260 = vsel %vm664, %v1225, 0
        %v1263 = vand.u32 %v1189, %v704
        %1265 = vmatprep.subr.bf16.mxu0 0
        %1266 = vmatpush1.bf16.msra.mxu0 %v1263
        %1267 = vmatprep.subr.bf16.mxu0 0
        %1268 = vmatpush1.bf16.msra.mxu0 0
        %1269 = vmatprep.subr.bf16.mxu0 0
        %1270 = vmatpush1.bf16.msra.mxu0 0
        %1271 = vmatprep.subr.bf16.mxu0 0
        %1272 = vmatpush1.bf16.msra.mxu0 0
        %1273 = vmatprep.subr.bf16.mxu0 0
        %1274 = vmatpush1.bf16.msra.mxu0 0
        %1275 = vmatprep.subr.bf16.mxu0 0
        %1276 = vmatpush1.bf16.msra.mxu0 0
        %1277 = vmatprep.subr.bf16.mxu0 0
        %1278 = vmatpush1.bf16.msra.mxu0 0
        %1279 = vmatprep.subr.bf16.mxu0 0
        %1280 = vmatpush1.bf16.msra.mxu0 0
        %1281 = vmatprep.subr.bf16.mxu0 0
        %1282 = vmatpush1.bf16.msra.mxu0 0
        %1283 = vmatprep.subr.bf16.mxu0 0
        %1284 = vmatpush1.bf16.msra.mxu0 0
        %1285 = vmatprep.subr.bf16.mxu0 0
        %1286 = vmatpush1.bf16.msra.mxu0 0
        %1287 = vmatprep.subr.bf16.mxu0 0
        %1288 = vmatpush1.bf16.msra.mxu0 0
        %1289 = vmatprep.subr.bf16.mxu0 0
        %1290 = vmatpush1.bf16.msra.mxu0 0
        %1291 = vmatprep.subr.bf16.mxu0 0
        %1292 = vmatpush1.bf16.msra.mxu0 0
        %1293 = vmatprep.subr.bf16.mxu0 0
        %1294 = vmatpush1.bf16.msra.mxu0 0
        %1295 = vmatprep.subr.bf16.mxu0 0
        %1296 = vmatpush1.bf16.msra.mxu0 0
        %1297 = vmatprep.mubr.bf16.mxu0 0
        %1298 = vmatmul.mubr.bf16.gmra.mrb[0].mxu0 %v1227
        %v1299 = vpop.f32.mrb[0].mxu0
        %v1300 = vadd.f32 0.0, %v1299
        %v1301 = vpop.f32.mrb[0].mxu0
        %v1302 = vpop.f32.mrb[0].mxu0
        %v1303 = vadd.f32 0.0, %v1302
        %v1304 = vpop.f32.mrb[0].mxu0
        %1305 = vmatprep.mubr.bf16.mxu0 0
        %1306 = vmatmul.mubr.bf16.gmra.mrb[0].mxu0 %v1230
        %v1307 = vpop.f32.mrb[0].mxu0
        %v1308 = vadd.f32 0.0, %v1307
        %v1309 = vpop.f32.mrb[0].mxu0
        %v1310 = vpop.f32.mrb[0].mxu0
        %v1311 = vadd.f32 0.0, %v1310
        %v1312 = vpop.f32.mrb[0].mxu0
        %1313 = vmatprep.mubr.bf16.mxu0 0
        %1314 = vmatmul.mubr.bf16.gmra.mrb[0].mxu0 %v1233
        %v1315 = vpop.f32.mrb[0].mxu0
        %v1316 = vadd.f32 0.0, %v1315
        %v1317 = vpop.f32.mrb[0].mxu0
        %v1318 = vpop.f32.mrb[0].mxu0
        %v1319 = vadd.f32 0.0, %v1318
        %v1320 = vpop.f32.mrb[0].mxu0
        %1321 = vmatprep.mubr.bf16.mxu0 0
        %1322 = vmatmul.mubr.bf16.gmra.mrb[0].mxu0 %v1236
        %v1323 = vpop.f32.mrb[0].mxu0
        %v1324 = vadd.f32 0.0, %v1323
        %v1325 = vpop.f32.mrb[0].mxu0
        %v1326 = vpop.f32.mrb[0].mxu0
        %v1327 = vadd.f32 0.0, %v1326
        %v1328 = vpop.f32.mrb[0].mxu0
        %1329 = vmatprep.mubr.bf16.mxu0 0
        %1330 = vmatmul.mubr.bf16.gmra.mrb[0].mxu0 %v1239
        %v1331 = vpop.f32.mrb[0].mxu0
        %v1332 = vadd.f32 0.0, %v1331
        %v1333 = vpop.f32.mrb[0].mxu0
        %v1334 = vpop.f32.mrb[0].mxu0
        %v1335 = vadd.f32 0.0, %v1334
        %v1336 = vpop.f32.mrb[0].mxu0
        %1337 = vmatprep.mubr.bf16.mxu0 0
        %1338 = vmatmul.mubr.bf16.gmra.mrb[0].mxu0 %v1242
        %v1339 = vpop.f32.mrb[0].mxu0
        %v1340 = vadd.f32 0.0, %v1339
        %v1341 = vpop.f32.mrb[0].mxu0
        %v1342 = vpop.f32.mrb[0].mxu0
        %v1343 = vadd.f32 0.0, %v1342
        %v1344 = vpop.f32.mrb[0].mxu0
        %1345 = vmatprep.mubr.bf16.mxu0 0
        %1346 = vmatmul.mubr.bf16.gmra.mrb[0].mxu0 %v1245
        %v1347 = vpop.f32.mrb[0].mxu0
        %v1348 = vadd.f32 0.0, %v1347
        %v1349 = vpop.f32.mrb[0].mxu0
        %v1350 = vpop.f32.mrb[0].mxu0
        %v1351 = vadd.f32 0.0, %v1350
        %v1352 = vpop.f32.mrb[0].mxu0
        %1353 = vmatprep.mubr.bf16.mxu0 0
        %1354 = vmatmul.mubr.bf16.gmra.mrb[0].mxu0 %v1248
        %v1355 = vpop.f32.mrb[0].mxu0
        %v1356 = vadd.f32 0.0, %v1355
        %v1357 = vpop.f32.mrb[0].mxu0
        %v1358 = vpop.f32.mrb[0].mxu0
        %v1359 = vadd.f32 0.0, %v1358
        %v1360 = vpop.f32.mrb[0].mxu0
        %1361 = vmatprep.mubr.bf16.mxu0 0
        %1362 = vmatmul.mubr.bf16.gmra.mrb[0].mxu0 %v1251
        %v1363 = vpop.f32.mrb[0].mxu0
        %v1364 = vadd.f32 0.0, %v1363
        %v1365 = vpop.f32.mrb[0].mxu0
        %v1366 = vpop.f32.mrb[0].mxu0
        %v1367 = vadd.f32 0.0, %v1366
        %v1368 = vpop.f32.mrb[0].mxu0
        %1369 = vmatprep.mubr.bf16.mxu0 0
        %1370 = vmatmul.mubr.bf16.gmra.mrb[0].mxu0 %v1254
        %v1371 = vpop.f32.mrb[0].mxu0
        %v1372 = vadd.f32 0.0, %v1371
        %v1373 = vpop.f32.mrb[0].mxu0
        %v1374 = vpop.f32.mrb[0].mxu0
        %v1375 = vadd.f32 0.0, %v1374
        %v1376 = vpop.f32.mrb[0].mxu0
        %1377 = vmatprep.mubr.bf16.mxu0 0
        %1378 = vmatmul.mubr.bf16.gmra.mrb[0].mxu0 %v1257
        %v1379 = vpop.f32.mrb[0].mxu0
        %v1380 = vadd.f32 0.0, %v1379
        %v1381 = vpop.f32.mrb[0].mxu0
        %v1382 = vpop.f32.mrb[0].mxu0
        %v1383 = vadd.f32 0.0, %v1382
        %v1384 = vpop.f32.mrb[0].mxu0
        %1385 = vmatprep.mubr.bf16.mxu0 0
        %1386 = vmatmul.mubr.bf16.gmra.mrb[0].mxu0 %v1260
        %v1387 = vpop.f32.mrb[0].mxu0
        %v1388 = vadd.f32 0.0, %v1387
        %v1389 = vpop.f32.mrb[0].mxu0
        %v1390 = vpop.f32.mrb[0].mxu0
        %v1391 = vadd.f32 0.0, %v1390
        %v1392 = vpop.f32.mrb[0].mxu0
        %1393 = vdwg.mxu0
        %v1394 = vadd.f32 %v971, %v1300
        %v1395 = vadd.f32 %v974, %v1303
        %v1396 = vadd.f32 %v979, %v1308
        %v1397 = vadd.f32 %v982, %v1311
        %v1398 = vadd.f32 %v987, %v1316
        %v1399 = vadd.f32 %v990, %v1319
        %v1400 = vadd.f32 %v995, %v1324
        %v1401 = vadd.f32 %v998, %v1327
        %v1402 = vadd.f32 %v1003, %v1332
        %v1403 = vadd.f32 %v1006, %v1335
        %v1404 = vadd.f32 %v1011, %v1340
        %v1405 = vadd.f32 %v1014, %v1343
        %v1406 = vadd.f32 %v1019, %v1348
        %v1407 = vadd.f32 %v1022, %v1351
        %v1408 = vadd.f32 %v1027, %v1356
        %v1409 = vadd.f32 %v1030, %v1359
        %v1410 = vadd.f32 %v1035, %v1364
        %v1411 = vadd.f32 %v1038, %v1367
        %v1412 = vadd.f32 %v1043, %v1372
        %v1413 = vadd.f32 %v1046, %v1375
        %v1414 = vadd.f32 %v1051, %v1380
        %v1415 = vadd.f32 %v1054, %v1383
        %v1416 = vadd.f32 %v1059, %v1388
        %v1417 = vadd.f32 %v1062, %v1391
        %s1418 = sadd.s32 %s294, 1
        %s1419 = smul.u32 %s1418, 3
        %s1420 = smul.addr %s1419, 4
        %s1421 = scalar_lea.vmem %s292, %s1420
        %v1422 = vld [vmem:[%s1421] sm:$0xf]
        %v1423 = vld [vmem:[%s1421 + $0x4] sm:$0xf]
        %v1424 = vld [vmem:[%s1421 + $0xc] sm:$0xf]
        %v1425 = vld [vmem:[%s1421 + $0x10] sm:$0xf]
        %v1426 = vld [vmem:[%s1421 + $0x18] sm:$0xf]
        %v1427 = vld [vmem:[%s1421 + $0x1c] sm:$0xf]
        %v1428 = vld [vmem:[%s1421 + $0x24] sm:$0xf]
        %v1429 = vld [vmem:[%s1421 + $0x28] sm:$0xf]
        %v1430 = vld [vmem:[%s1421 + $0x30] sm:$0xf]
        %v1431 = vld [vmem:[%s1421 + $0x34] sm:$0xf]
        %v1432 = vld [vmem:[%s1421 + $0x3c] sm:$0xf]
        %v1433 = vld [vmem:[%s1421 + $0x40] sm:$0xf]
        %v1434 = vld [vmem:[%s1421 + $0x48] sm:$0xf]
        %v1435 = vld [vmem:[%s1421 + $0x4c] sm:$0xf]
        %v1436 = vld [vmem:[%s1421 + $0x54] sm:$0xf]
        %v1437 = vld [vmem:[%s1421 + $0x58] sm:$0xf]
        %v1438 = vld [vmem:[%s1421 + $0x60] sm:$0xf]
        %v1439 = vld [vmem:[%s1421 + $0x64] sm:$0xf]
        %v1440 = vld [vmem:[%s1421 + $0x6c] sm:$0xf]
        %v1441 = vld [vmem:[%s1421 + $0x70] sm:$0xf]
        %v1442 = vld [vmem:[%s1421 + $0x78] sm:$0xf]
        %v1443 = vld [vmem:[%s1421 + $0x7c] sm:$0xf]
        %v1444 = vld [vmem:[%s1421 + $0x84] sm:$0xf]
        %v1445 = vld [vmem:[%s1421 + $0x88] sm:$0xf]
        %s1446 = scalar_lea.vmem %s1, 6
        %v1447 = vld [vmem:[%s1446] sm:$0x3]
        %v1472 = vunpack.c.l.b16 %v1422
        %v1473 = vunpack.c.l.b16 %v1423
        %v1474 = vunpack.c.l.b16 %v1424
        %v1475 = vunpack.c.l.b16 %v1425
        %v1476 = vunpack.c.l.b16 %v1426
        %v1477 = vunpack.c.l.b16 %v1427
        %v1478 = vunpack.c.l.b16 %v1428
        %v1479 = vunpack.c.l.b16 %v1429
        %v1480 = vunpack.c.l.b16 %v1430
        %v1481 = vunpack.c.l.b16 %v1431
        %v1482 = vunpack.c.l.b16 %v1432
        %v1483 = vunpack.c.l.b16 %v1433
        %v1484 = vunpack.c.l.b16 %v1434
        %v1485 = vunpack.c.l.b16 %v1435
        %v1486 = vunpack.c.l.b16 %v1436
        %v1487 = vunpack.c.l.b16 %v1437
        %v1488 = vunpack.c.l.b16 %v1438
        %v1489 = vunpack.c.l.b16 %v1439
        %v1490 = vunpack.c.l.b16 %v1440
        %v1491 = vunpack.c.l.b16 %v1441
        %v1492 = vunpack.c.l.b16 %v1442
        %v1493 = vunpack.c.l.b16 %v1443
        %v1494 = vunpack.c.l.b16 %v1444
        %v1495 = vunpack.c.l.b16 %v1445
        %v1496 = vpack.c.b16 %v1473, %v1472
        %v1497 = vpack.c.b16 %v1475, %v1474
        %v1498 = vpack.c.b16 %v1477, %v1476
        %v1499 = vpack.c.b16 %v1479, %v1478
        %v1500 = vpack.c.b16 %v1481, %v1480
        %v1501 = vpack.c.b16 %v1483, %v1482
        %v1502 = vpack.c.b16 %v1485, %v1484
        %v1503 = vpack.c.b16 %v1487, %v1486
        %v1504 = vpack.c.b16 %v1489, %v1488
        %v1505 = vpack.c.b16 %v1491, %v1490
        %v1506 = vpack.c.b16 %v1493, %v1492
        %v1507 = vpack.c.b16 %v1495, %v1494
        %v1509 = vsel %vm664, %v1496, 0
        %v1512 = vsel %vm664, %v1497, 0
        %v1515 = vsel %vm664, %v1498, 0
        %v1518 = vsel %vm664, %v1499, 0
        %v1521 = vsel %vm664, %v1500, 0
        %v1524 = vsel %vm664, %v1501, 0
        %v1527 = vsel %vm664, %v1502, 0
        %v1530 = vsel %vm664, %v1503, 0
        %v1533 = vsel %vm664, %v1504, 0
        %v1536 = vsel %vm664, %v1505, 0
        %v1539 = vsel %vm664, %v1506, 0
        %v1542 = vsel %vm664, %v1507, 0
        %v1545 = vand.u32 %v1447, %v704
        %1547 = vmatprep.subr.bf16.mxu0 0
        %1548 = vmatpush1.bf16.msra.mxu0 %v1545
        %1549 = vmatprep.subr.bf16.mxu0 0
        %1550 = vmatpush1.bf16.msra.mxu0 0
        %1551 = vmatprep.subr.bf16.mxu0 0
        %1552 = vmatpush1.bf16.msra.mxu0 0
        %1553 = vmatprep.subr.bf16.mxu0 0
        %1554 = vmatpush1.bf16.msra.mxu0 0
        %1555 = vmatprep.subr.bf16.mxu0 0
        %1556 = vmatpush1.bf16.msra.mxu0 0
        %1557 = vmatprep.subr.bf16.mxu0 0
        %1558 = vmatpush1.bf16.msra.mxu0 0
        %1559 = vmatprep.subr.bf16.mxu0 0
        %1560 = vmatpush1.bf16.msra.mxu0 0
        %1561 = vmatprep.subr.bf16.mxu0 0
        %1562 = vmatpush1.bf16.msra.mxu0 0
        %1563 = vmatprep.subr.bf16.mxu0 0
        %1564 = vmatpush1.bf16.msra.mxu0 0
        %1565 = vmatprep.subr.bf16.mxu0 0
        %1566 = vmatpush1.bf16.msra.mxu0 0
        %1567 = vmatprep.subr.bf16.mxu0 0
        %1568 = vmatpush1.bf16.msra.mxu0 0
        %1569 = vmatprep.subr.bf16.mxu0 0
        %1570 = vmatpush1.bf16.msra.mxu0 0
        %1571 = vmatprep.subr.bf16.mxu0 0
        %1572 = vmatpush1.bf16.msra.mxu0 0
        %1573 = vmatprep.subr.bf16.mxu0 0
        %1574 = vmatpush1.bf16.msra.mxu0 0
        %1575 = vmatprep.subr.bf16.mxu0 0
        %1576 = vmatpush1.bf16.msra.mxu0 0
        %1577 = vmatprep.subr.bf16.mxu0 0
        %1578 = vmatpush1.bf16.msra.mxu0 0
        %1579 = vmatprep.mubr.bf16.mxu0 0
        %1580 = vmatmul.mubr.bf16.gmra.mrb[0].mxu0 %v1509
        %v1581 = vpop.f32.mrb[0].mxu0
        %v1582 = vadd.f32 0.0, %v1581
        %v1583 = vpop.f32.mrb[0].mxu0
        %v1584 = vpop.f32.mrb[0].mxu0
        %v1585 = vadd.f32 0.0, %v1584
        %v1586 = vpop.f32.mrb[0].mxu0
        %1587 = vmatprep.mubr.bf16.mxu0 0
        %1588 = vmatmul.mubr.bf16.gmra.mrb[0].mxu0 %v1512
        %v1589 = vpop.f32.mrb[0].mxu0
        %v1590 = vadd.f32 0.0, %v1589
        %v1591 = vpop.f32.mrb[0].mxu0
        %v1592 = vpop.f32.mrb[0].mxu0
        %v1593 = vadd.f32 0.0, %v1592
        %v1594 = vpop.f32.mrb[0].mxu0
        %1595 = vmatprep.mubr.bf16.mxu0 0
        %1596 = vmatmul.mubr.bf16.gmra.mrb[0].mxu0 %v1515
        %v1597 = vpop.f32.mrb[0].mxu0
        %v1598 = vadd.f32 0.0, %v1597
        %v1599 = vpop.f32.mrb[0].mxu0
        %v1600 = vpop.f32.mrb[0].mxu0
        %v1601 = vadd.f32 0.0, %v1600
        %v1602 = vpop.f32.mrb[0].mxu0
        %1603 = vmatprep.mubr.bf16.mxu0 0
        %1604 = vmatmul.mubr.bf16.gmra.mrb[0].mxu0 %v1518
        %v1605 = vpop.f32.mrb[0].mxu0
        %v1606 = vadd.f32 0.0, %v1605
        %v1607 = vpop.f32.mrb[0].mxu0
        %v1608 = vpop.f32.mrb[0].mxu0
        %v1609 = vadd.f32 0.0, %v1608
        %v1610 = vpop.f32.mrb[0].mxu0
        %1611 = vmatprep.mubr.bf16.mxu0 0
        %1612 = vmatmul.mubr.bf16.gmra.mrb[0].mxu0 %v1521
        %v1613 = vpop.f32.mrb[0].mxu0
        %v1614 = vadd.f32 0.0, %v1613
        %v1615 = vpop.f32.mrb[0].mxu0
        %v1616 = vpop.f32.mrb[0].mxu0
        %v1617 = vadd.f32 0.0, %v1616
        %v1618 = vpop.f32.mrb[0].mxu0
        %1619 = vmatprep.mubr.bf16.mxu0 0
        %1620 = vmatmul.mubr.bf16.gmra.mrb[0].mxu0 %v1524
        %v1621 = vpop.f32.mrb[0].mxu0
        %v1622 = vadd.f32 0.0, %v1621
        %v1623 = vpop.f32.mrb[0].mxu0
        %v1624 = vpop.f32.mrb[0].mxu0
        %v1625 = vadd.f32 0.0, %v1624
        %v1626 = vpop.f32.mrb[0].mxu0
        %1627 = vmatprep.mubr.bf16.mxu0 0
        %1628 = vmatmul.mubr.bf16.gmra.mrb[0].mxu0 %v1527
        %v1629 = vpop.f32.mrb[0].mxu0
        %v1630 = vadd.f32 0.0, %v1629
        %v1631 = vpop.f32.mrb[0].mxu0
        %v1632 = vpop.f32.mrb[0].mxu0
        %v1633 = vadd.f32 0.0, %v1632
        %v1634 = vpop.f32.mrb[0].mxu0
        %1635 = vmatprep.mubr.bf16.mxu0 0
        %1636 = vmatmul.mubr.bf16.gmra.mrb[0].mxu0 %v1530
        %v1637 = vpop.f32.mrb[0].mxu0
        %v1638 = vadd.f32 0.0, %v1637
        %v1639 = vpop.f32.mrb[0].mxu0
        %v1640 = vpop.f32.mrb[0].mxu0
        %v1641 = vadd.f32 0.0, %v1640
        %v1642 = vpop.f32.mrb[0].mxu0
        %1643 = vmatprep.mubr.bf16.mxu0 0
        %1644 = vmatmul.mubr.bf16.gmra.mrb[0].mxu0 %v1533
        %v1645 = vpop.f32.mrb[0].mxu0
        %v1646 = vadd.f32 0.0, %v1645
        %v1647 = vpop.f32.mrb[0].mxu0
        %v1648 = vpop.f32.mrb[0].mxu0
        %v1649 = vadd.f32 0.0, %v1648
        %v1650 = vpop.f32.mrb[0].mxu0
        %1651 = vmatprep.mubr.bf16.mxu0 0
        %1652 = vmatmul.mubr.bf16.gmra.mrb[0].mxu0 %v1536
        %v1653 = vpop.f32.mrb[0].mxu0
        %v1654 = vadd.f32 0.0, %v1653
        %v1655 = vpop.f32.mrb[0].mxu0
        %v1656 = vpop.f32.mrb[0].mxu0
        %v1657 = vadd.f32 0.0, %v1656
        %v1658 = vpop.f32.mrb[0].mxu0
        %1659 = vmatprep.mubr.bf16.mxu0 0
        %1660 = vmatmul.mubr.bf16.gmra.mrb[0].mxu0 %v1539
        %v1661 = vpop.f32.mrb[0].mxu0
        %v1662 = vadd.f32 0.0, %v1661
        %v1663 = vpop.f32.mrb[0].mxu0
        %v1664 = vpop.f32.mrb[0].mxu0
        %v1665 = vadd.f32 0.0, %v1664
        %v1666 = vpop.f32.mrb[0].mxu0
        %1667 = vmatprep.mubr.bf16.mxu0 0
        %1668 = vmatmul.mubr.bf16.gmra.mrb[0].mxu0 %v1542
        %v1669 = vpop.f32.mrb[0].mxu0
        %v1670 = vadd.f32 0.0, %v1669
        %v1671 = vpop.f32.mrb[0].mxu0
        %v1672 = vpop.f32.mrb[0].mxu0
        %v1673 = vadd.f32 0.0, %v1672
        %v1674 = vpop.f32.mrb[0].mxu0
        %1675 = vdwg.mxu0
        %v1676 = vadd.f32 %v1394, %v1582
        %v1677 = vadd.f32 %v1395, %v1585
        %v1678 = vadd.f32 %v1396, %v1590
        %v1679 = vadd.f32 %v1397, %v1593
        %v1680 = vadd.f32 %v1398, %v1598
        %v1681 = vadd.f32 %v1399, %v1601
        %v1682 = vadd.f32 %v1400, %v1606
        %v1683 = vadd.f32 %v1401, %v1609
        %v1684 = vadd.f32 %v1402, %v1614
        %v1685 = vadd.f32 %v1403, %v1617
        %v1686 = vadd.f32 %v1404, %v1622
        %v1687 = vadd.f32 %v1405, %v1625
        %v1688 = vadd.f32 %v1406, %v1630
        %v1689 = vadd.f32 %v1407, %v1633
        %v1690 = vadd.f32 %v1408, %v1638
        %v1691 = vadd.f32 %v1409, %v1641
        %v1692 = vadd.f32 %v1410, %v1646
        %v1693 = vadd.f32 %v1411, %v1649
        %v1694 = vadd.f32 %v1412, %v1654
        %v1695 = vadd.f32 %v1413, %v1657
        %v1696 = vadd.f32 %v1414, %v1662
        %v1697 = vadd.f32 %v1415, %v1665
        %v1698 = vadd.f32 %v1416, %v1670
        %v1699 = vadd.f32 %v1417, %v1673
        %v1700 = vld [vmem:[%s1421] sm:$0xf]
        %v1701 = vld [vmem:[%s1421 + $0x4] sm:$0xf]
        %v1702 = vld [vmem:[%s1421 + $0x8] sm:$0x1]
        %v1703 = vld [vmem:[%s1421 + $0xc] sm:$0xf]
        %v1704 = vld [vmem:[%s1421 + $0x10] sm:$0xf]
        %v1705 = vld [vmem:[%s1421 + $0x14] sm:$0x1]
        %v1706 = vld [vmem:[%s1421 + $0x18] sm:$0xf]
        %v1707 = vld [vmem:[%s1421 + $0x1c] sm:$0xf]
        %v1708 = vld [vmem:[%s1421 + $0x20] sm:$0x1]
        %v1709 = vld [vmem:[%s1421 + $0x24] sm:$0xf]
        %v1710 = vld [vmem:[%s1421 + $0x28] sm:$0xf]
        %v1711 = vld [vmem:[%s1421 + $0x2c] sm:$0x1]
        %v1712 = vld [vmem:[%s1421 + $0x30] sm:$0xf]
        %v1713 = vld [vmem:[%s1421 + $0x34] sm:$0xf]
        %v1714 = vld [vmem:[%s1421 + $0x38] sm:$0x1]
        %v1715 = vld [vmem:[%s1421 + $0x3c] sm:$0xf]
        %v1716 = vld [vmem:[%s1421 + $0x40] sm:$0xf]
        %v1717 = vld [vmem:[%s1421 + $0x44] sm:$0x1]
        %v1718 = vld [vmem:[%s1421 + $0x48] sm:$0xf]
        %v1719 = vld [vmem:[%s1421 + $0x4c] sm:$0xf]
        %v1720 = vld [vmem:[%s1421 + $0x50] sm:$0x1]
        %v1721 = vld [vmem:[%s1421 + $0x54] sm:$0xf]
        %v1722 = vld [vmem:[%s1421 + $0x58] sm:$0xf]
        %v1723 = vld [vmem:[%s1421 + $0x5c] sm:$0x1]
        %v1724 = vld [vmem:[%s1421 + $0x60] sm:$0xf]
        %v1725 = vld [vmem:[%s1421 + $0x64] sm:$0xf]
        %v1726 = vld [vmem:[%s1421 + $0x68] sm:$0x1]
        %v1727 = vld [vmem:[%s1421 + $0x6c] sm:$0xf]
        %v1728 = vld [vmem:[%s1421 + $0x70] sm:$0xf]
        %v1729 = vld [vmem:[%s1421 + $0x74] sm:$0x1]
        %v1730 = vld [vmem:[%s1421 + $0x78] sm:$0xf]
        %v1731 = vld [vmem:[%s1421 + $0x7c] sm:$0xf]
        %v1732 = vld [vmem:[%s1421 + $0x80] sm:$0x1]
        %v1733 = vld [vmem:[%s1421 + $0x84] sm:$0xf]
        %v1734 = vld [vmem:[%s1421 + $0x88] sm:$0xf]
        %v1735 = vld [vmem:[%s1421 + $0x8c] sm:$0x1]
        %v1737 = vshrl.u32 %v1700, 16
        %v1739 = vrot.slane %v1737, 4
        %v1740 = vshll.u32 %v1700, 16
        %v1742 = vrot.slane %v1740, 5
        %v1743 = vor.u32 %v1739, %v1742
        %v1744 = vrot.slane %v1743, 4
        %v1746 = vshll.u32 %v1701, 16
        %v1748 = vrot.slane %v1746, 5
        %v1749 = vsel %vm337, %v1744, %v1748
        %v1750 = vshrl.u32 %v1701, 16
        %v1752 = vrot.slane %v1750, 4
        %v1753 = vor.u32 %v1752, %v1748
        %v1754 = vrot.slane %v1753, 4
        %v1756 = vshll.u32 %v1702, 16
        %v1758 = vrot.slane %v1756, 5
        %v1759 = vsel %vm337, %v1754, %v1758
        %v1761 = vshrl.u32 %v1703, 16
        %v1763 = vrot.slane %v1761, 4
        %v1764 = vshll.u32 %v1703, 16
        %v1766 = vrot.slane %v1764, 5
        %v1767 = vor.u32 %v1763, %v1766
        %v1768 = vrot.slane %v1767, 4
        %v1770 = vshll.u32 %v1704, 16
        %v1772 = vrot.slane %v1770, 5
        %v1773 = vsel %vm337, %v1768, %v1772
        %v1774 = vshrl.u32 %v1704, 16
        %v1776 = vrot.slane %v1774, 4
        %v1777 = vor.u32 %v1776, %v1772
        %v1778 = vrot.slane %v1777, 4
        %v1780 = vshll.u32 %v1705, 16
        %v1782 = vrot.slane %v1780, 5
        %v1783 = vsel %vm337, %v1778, %v1782
        %v1785 = vshrl.u32 %v1706, 16
        %v1787 = vrot.slane %v1785, 4
        %v1788 = vshll.u32 %v1706, 16
        %v1790 = vrot.slane %v1788, 5
        %v1791 = vor.u32 %v1787, %v1790
        %v1792 = vrot.slane %v1791, 4
        %v1794 = vshll.u32 %v1707, 16
        %v1796 = vrot.slane %v1794, 5
        %v1797 = vsel %vm337, %v1792, %v1796
        %v1798 = vshrl.u32 %v1707, 16
        %v1800 = vrot.slane %v1798, 4
        %v1801 = vor.u32 %v1800, %v1796
        %v1802 = vrot.slane %v1801, 4
        %v1804 = vshll.u32 %v1708, 16
        %v1806 = vrot.slane %v1804, 5
        %v1807 = vsel %vm337, %v1802, %v1806
        %v1809 = vshrl.u32 %v1709, 16
        %v1811 = vrot.slane %v1809, 4
        %v1812 = vshll.u32 %v1709, 16
        %v1814 = vrot.slane %v1812, 5
        %v1815 = vor.u32 %v1811, %v1814
        %v1816 = vrot.slane %v1815, 4
        %v1818 = vshll.u32 %v1710, 16
        %v1820 = vrot.slane %v1818, 5
        %v1821 = vsel %vm337, %v1816, %v1820
        %v1822 = vshrl.u32 %v1710, 16
        %v1824 = vrot.slane %v1822, 4
        %v1825 = vor.u32 %v1824, %v1820
        %v1826 = vrot.slane %v1825, 4
        %v1828 = vshll.u32 %v1711, 16
        %v1830 = vrot.slane %v1828, 5
        %v1831 = vsel %vm337, %v1826, %v1830
        %v1833 = vshrl.u32 %v1712, 16
        %v1835 = vrot.slane %v1833, 4
        %v1836 = vshll.u32 %v1712, 16
        %v1838 = vrot.slane %v1836, 5
        %v1839 = vor.u32 %v1835, %v1838
        %v1840 = vrot.slane %v1839, 4
        %v1842 = vshll.u32 %v1713, 16
        %v1844 = vrot.slane %v1842, 5
        %v1845 = vsel %vm337, %v1840, %v1844
        %v1846 = vshrl.u32 %v1713, 16
        %v1848 = vrot.slane %v1846, 4
        %v1849 = vor.u32 %v1848, %v1844
        %v1850 = vrot.slane %v1849, 4
        %v1852 = vshll.u32 %v1714, 16
        %v1854 = vrot.slane %v1852, 5
        %v1855 = vsel %vm337, %v1850, %v1854
        %v1857 = vshrl.u32 %v1715, 16
        %v1859 = vrot.slane %v1857, 4
        %v1860 = vshll.u32 %v1715, 16
        %v1862 = vrot.slane %v1860, 5
        %v1863 = vor.u32 %v1859, %v1862
        %v1864 = vrot.slane %v1863, 4
        %v1866 = vshll.u32 %v1716, 16
        %v1868 = vrot.slane %v1866, 5
        %v1869 = vsel %vm337, %v1864, %v1868
        %v1870 = vshrl.u32 %v1716, 16
        %v1872 = vrot.slane %v1870, 4
        %v1873 = vor.u32 %v1872, %v1868
        %v1874 = vrot.slane %v1873, 4
        %v1876 = vshll.u32 %v1717, 16
        %v1878 = vrot.slane %v1876, 5
        %v1879 = vsel %vm337, %v1874, %v1878
        %v1881 = vshrl.u32 %v1718, 16
        %v1883 = vrot.slane %v1881, 4
        %v1884 = vshll.u32 %v1718, 16
        %v1886 = vrot.slane %v1884, 5
        %v1887 = vor.u32 %v1883, %v1886
        %v1888 = vrot.slane %v1887, 4
        %v1890 = vshll.u32 %v1719, 16
        %v1892 = vrot.slane %v1890, 5
        %v1893 = vsel %vm337, %v1888, %v1892
        %v1894 = vshrl.u32 %v1719, 16
        %v1896 = vrot.slane %v1894, 4
        %v1897 = vor.u32 %v1896, %v1892
        %v1898 = vrot.slane %v1897, 4
        %v1900 = vshll.u32 %v1720, 16
        %v1902 = vrot.slane %v1900, 5
        %v1903 = vsel %vm337, %v1898, %v1902
        %v1905 = vshrl.u32 %v1721, 16
        %v1907 = vrot.slane %v1905, 4
        %v1908 = vshll.u32 %v1721, 16
        %v1910 = vrot.slane %v1908, 5
        %v1911 = vor.u32 %v1907, %v1910
        %v1912 = vrot.slane %v1911, 4
        %v1914 = vshll.u32 %v1722, 16
        %v1916 = vrot.slane %v1914, 5
        %v1917 = vsel %vm337, %v1912, %v1916
        %v1918 = vshrl.u32 %v1722, 16
        %v1920 = vrot.slane %v1918, 4
        %v1921 = vor.u32 %v1920, %v1916
        %v1922 = vrot.slane %v1921, 4
        %v1924 = vshll.u32 %v1723, 16
        %v1926 = vrot.slane %v1924, 5
        %v1927 = vsel %vm337, %v1922, %v1926
        %v1929 = vshrl.u32 %v1724, 16
        %v1931 = vrot.slane %v1929, 4
        %v1932 = vshll.u32 %v1724, 16
        %v1934 = vrot.slane %v1932, 5
        %v1935 = vor.u32 %v1931, %v1934
        %v1936 = vrot.slane %v1935, 4
        %v1938 = vshll.u32 %v1725, 16
        %v1940 = vrot.slane %v1938, 5
        %v1941 = vsel %vm337, %v1936, %v1940
        %v1942 = vshrl.u32 %v1725, 16
        %v1944 = vrot.slane %v1942, 4
        %v1945 = vor.u32 %v1944, %v1940
        %v1946 = vrot.slane %v1945, 4
        %v1948 = vshll.u32 %v1726, 16
        %v1950 = vrot.slane %v1948, 5
        %v1951 = vsel %vm337, %v1946, %v1950
        %v1953 = vshrl.u32 %v1727, 16
        %v1955 = vrot.slane %v1953, 4
        %v1956 = vshll.u32 %v1727, 16
        %v1958 = vrot.slane %v1956, 5
        %v1959 = vor.u32 %v1955, %v1958
        %v1960 = vrot.slane %v1959, 4
        %v1962 = vshll.u32 %v1728, 16
        %v1964 = vrot.slane %v1962, 5
        %v1965 = vsel %vm337, %v1960, %v1964
        %v1966 = vshrl.u32 %v1728, 16
        %v1968 = vrot.slane %v1966, 4
        %v1969 = vor.u32 %v1968, %v1964
        %v1970 = vrot.slane %v1969, 4
        %v1972 = vshll.u32 %v1729, 16
        %v1974 = vrot.slane %v1972, 5
        %v1975 = vsel %vm337, %v1970, %v1974
        %v1977 = vshrl.u32 %v1730, 16
        %v1979 = vrot.slane %v1977, 4
        %v1980 = vshll.u32 %v1730, 16
        %v1982 = vrot.slane %v1980, 5
        %v1983 = vor.u32 %v1979, %v1982
        %v1984 = vrot.slane %v1983, 4
        %v1986 = vshll.u32 %v1731, 16
        %v1988 = vrot.slane %v1986, 5
        %v1989 = vsel %vm337, %v1984, %v1988
        %v1990 = vshrl.u32 %v1731, 16
        %v1992 = vrot.slane %v1990, 4
        %v1993 = vor.u32 %v1992, %v1988
        %v1994 = vrot.slane %v1993, 4
        %v1996 = vshll.u32 %v1732, 16
        %v1998 = vrot.slane %v1996, 5
        %v1999 = vsel %vm337, %v1994, %v1998
        %v2001 = vshrl.u32 %v1733, 16
        %v2003 = vrot.slane %v2001, 4
        %v2004 = vshll.u32 %v1733, 16
        %v2006 = vrot.slane %v2004, 5
        %v2007 = vor.u32 %v2003, %v2006
        %v2008 = vrot.slane %v2007, 4
        %v2010 = vshll.u32 %v1734, 16
        %v2012 = vrot.slane %v2010, 5
        %v2013 = vsel %vm337, %v2008, %v2012
        %v2014 = vshrl.u32 %v1734, 16
        %v2016 = vrot.slane %v2014, 4
        %v2017 = vor.u32 %v2016, %v2012
        %v2018 = vrot.slane %v2017, 4
        %v2020 = vshll.u32 %v1735, 16
        %v2022 = vrot.slane %v2020, 5
        %v2023 = vsel %vm337, %v2018, %v2022
        %s2024 = scalar_lea.vmem %s1, 8
        %v2025 = vld [vmem:[%s2024] sm:$0x3]
        %v2026 = vunpack.c.l.b16 %v1749
        %v2027 = vunpack.c.l.b16 %v1759
        %v2028 = vunpack.c.l.b16 %v1773
        %v2029 = vunpack.c.l.b16 %v1783
        %v2030 = vunpack.c.l.b16 %v1797
        %v2031 = vunpack.c.l.b16 %v1807
        %v2032 = vunpack.c.l.b16 %v1821
        %v2033 = vunpack.c.l.b16 %v1831
        %v2034 = vunpack.c.l.b16 %v1845
        %v2035 = vunpack.c.l.b16 %v1855
        %v2036 = vunpack.c.l.b16 %v1869
        %v2037 = vunpack.c.l.b16 %v1879
        %v2038 = vunpack.c.l.b16 %v1893
        %v2039 = vunpack.c.l.b16 %v1903
        %v2040 = vunpack.c.l.b16 %v1917
        %v2041 = vunpack.c.l.b16 %v1927
        %v2042 = vunpack.c.l.b16 %v1941
        %v2043 = vunpack.c.l.b16 %v1951
        %v2044 = vunpack.c.l.b16 %v1965
        %v2045 = vunpack.c.l.b16 %v1975
        %v2046 = vunpack.c.l.b16 %v1989
        %v2047 = vunpack.c.l.b16 %v1999
        %v2048 = vunpack.c.l.b16 %v2013
        %v2049 = vunpack.c.l.b16 %v2023
        %v2050 = vpack.c.b16 %v2027, %v2026
        %v2051 = vpack.c.b16 %v2029, %v2028
        %v2052 = vpack.c.b16 %v2031, %v2030
        %v2053 = vpack.c.b16 %v2033, %v2032
        %v2054 = vpack.c.b16 %v2035, %v2034
        %v2055 = vpack.c.b16 %v2037, %v2036
        %v2056 = vpack.c.b16 %v2039, %v2038
        %v2057 = vpack.c.b16 %v2041, %v2040
        %v2058 = vpack.c.b16 %v2043, %v2042
        %v2059 = vpack.c.b16 %v2045, %v2044
        %v2060 = vpack.c.b16 %v2047, %v2046
        %v2061 = vpack.c.b16 %v2049, %v2048
        %v2063 = vsel %vm664, %v2050, 0
        %v2066 = vsel %vm664, %v2051, 0
        %v2069 = vsel %vm664, %v2052, 0
        %v2072 = vsel %vm664, %v2053, 0
        %v2075 = vsel %vm664, %v2054, 0
        %v2078 = vsel %vm664, %v2055, 0
        %v2081 = vsel %vm664, %v2056, 0
        %v2084 = vsel %vm664, %v2057, 0
        %v2087 = vsel %vm664, %v2058, 0
        %v2090 = vsel %vm664, %v2059, 0
        %v2093 = vsel %vm664, %v2060, 0
        %v2096 = vsel %vm664, %v2061, 0
        %v2099 = vand.u32 %v2025, %v704
        %2101 = vmatprep.subr.bf16.mxu0 0
        %2102 = vmatpush1.bf16.msra.mxu0 %v2099
        %2103 = vmatprep.subr.bf16.mxu0 0
        %2104 = vmatpush1.bf16.msra.mxu0 0
        %2105 = vmatprep.subr.bf16.mxu0 0
        %2106 = vmatpush1.bf16.msra.mxu0 0
        %2107 = vmatprep.subr.bf16.mxu0 0
        %2108 = vmatpush1.bf16.msra.mxu0 0
        %2109 = vmatprep.subr.bf16.mxu0 0
        %2110 = vmatpush1.bf16.msra.mxu0 0
        %2111 = vmatprep.subr.bf16.mxu0 0
        %2112 = vmatpush1.bf16.msra.mxu0 0
        %2113 = vmatprep.subr.bf16.mxu0 0
        %2114 = vmatpush1.bf16.msra.mxu0 0
        %2115 = vmatprep.subr.bf16.mxu0 0
        %2116 = vmatpush1.bf16.msra.mxu0 0
        %2117 = vmatprep.subr.bf16.mxu0 0
        %2118 = vmatpush1.bf16.msra.mxu0 0
        %2119 = vmatprep.subr.bf16.mxu0 0
        %2120 = vmatpush1.bf16.msra.mxu0 0
        %2121 = vmatprep.subr.bf16.mxu0 0
        %2122 = vmatpush1.bf16.msra.mxu0 0
        %2123 = vmatprep.subr.bf16.mxu0 0
        %2124 = vmatpush1.bf16.msra.mxu0 0
        %2125 = vmatprep.subr.bf16.mxu0 0
        %2126 = vmatpush1.bf16.msra.mxu0 0
        %2127 = vmatprep.subr.bf16.mxu0 0
        %2128 = vmatpush1.bf16.msra.mxu0 0
        %2129 = vmatprep.subr.bf16.mxu0 0
        %2130 = vmatpush1.bf16.msra.mxu0 0
        %2131 = vmatprep.subr.bf16.mxu0 0
        %2132 = vmatpush1.bf16.msra.mxu0 0
        %2133 = vmatprep.mubr.bf16.mxu0 0
        %2134 = vmatmul.mubr.bf16.gmra.mrb[0].mxu0 %v2063
        %v2135 = vpop.f32.mrb[0].mxu0
        %v2136 = vadd.f32 0.0, %v2135
        %v2137 = vpop.f32.mrb[0].mxu0
        %v2138 = vpop.f32.mrb[0].mxu0
        %v2139 = vadd.f32 0.0, %v2138
        %v2140 = vpop.f32.mrb[0].mxu0
        %2141 = vmatprep.mubr.bf16.mxu0 0
        %2142 = vmatmul.mubr.bf16.gmra.mrb[0].mxu0 %v2066
        %v2143 = vpop.f32.mrb[0].mxu0
        %v2144 = vadd.f32 0.0, %v2143
        %v2145 = vpop.f32.mrb[0].mxu0
        %v2146 = vpop.f32.mrb[0].mxu0
        %v2147 = vadd.f32 0.0, %v2146
        %v2148 = vpop.f32.mrb[0].mxu0
        %2149 = vmatprep.mubr.bf16.mxu0 0
        %2150 = vmatmul.mubr.bf16.gmra.mrb[0].mxu0 %v2069
        %v2151 = vpop.f32.mrb[0].mxu0
        %v2152 = vadd.f32 0.0, %v2151
        %v2153 = vpop.f32.mrb[0].mxu0
        %v2154 = vpop.f32.mrb[0].mxu0
        %v2155 = vadd.f32 0.0, %v2154
        %v2156 = vpop.f32.mrb[0].mxu0
        %2157 = vmatprep.mubr.bf16.mxu0 0
        %2158 = vmatmul.mubr.bf16.gmra.mrb[0].mxu0 %v2072
        %v2159 = vpop.f32.mrb[0].mxu0
        %v2160 = vadd.f32 0.0, %v2159
        %v2161 = vpop.f32.mrb[0].mxu0
        %v2162 = vpop.f32.mrb[0].mxu0
        %v2163 = vadd.f32 0.0, %v2162
        %v2164 = vpop.f32.mrb[0].mxu0
        %2165 = vmatprep.mubr.bf16.mxu0 0
        %2166 = vmatmul.mubr.bf16.gmra.mrb[0].mxu0 %v2075
        %v2167 = vpop.f32.mrb[0].mxu0
        %v2168 = vadd.f32 0.0, %v2167
        %v2169 = vpop.f32.mrb[0].mxu0
        %v2170 = vpop.f32.mrb[0].mxu0
        %v2171 = vadd.f32 0.0, %v2170
        %v2172 = vpop.f32.mrb[0].mxu0
        %2173 = vmatprep.mubr.bf16.mxu0 0
        %2174 = vmatmul.mubr.bf16.gmra.mrb[0].mxu0 %v2078
        %v2175 = vpop.f32.mrb[0].mxu0
        %v2176 = vadd.f32 0.0, %v2175
        %v2177 = vpop.f32.mrb[0].mxu0
        %v2178 = vpop.f32.mrb[0].mxu0
        %v2179 = vadd.f32 0.0, %v2178
        %v2180 = vpop.f32.mrb[0].mxu0
        %2181 = vmatprep.mubr.bf16.mxu0 0
        %2182 = vmatmul.mubr.bf16.gmra.mrb[0].mxu0 %v2081
        %v2183 = vpop.f32.mrb[0].mxu0
        %v2184 = vadd.f32 0.0, %v2183
        %v2185 = vpop.f32.mrb[0].mxu0
        %v2186 = vpop.f32.mrb[0].mxu0
        %v2187 = vadd.f32 0.0, %v2186
        %v2188 = vpop.f32.mrb[0].mxu0
        %2189 = vmatprep.mubr.bf16.mxu0 0
        %2190 = vmatmul.mubr.bf16.gmra.mrb[0].mxu0 %v2084
        %v2191 = vpop.f32.mrb[0].mxu0
        %v2192 = vadd.f32 0.0, %v2191
        %v2193 = vpop.f32.mrb[0].mxu0
        %v2194 = vpop.f32.mrb[0].mxu0
        %v2195 = vadd.f32 0.0, %v2194
        %v2196 = vpop.f32.mrb[0].mxu0
        %2197 = vmatprep.mubr.bf16.mxu0 0
        %2198 = vmatmul.mubr.bf16.gmra.mrb[0].mxu0 %v2087
        %v2199 = vpop.f32.mrb[0].mxu0
        %v2200 = vadd.f32 0.0, %v2199
        %v2201 = vpop.f32.mrb[0].mxu0
        %v2202 = vpop.f32.mrb[0].mxu0
        %v2203 = vadd.f32 0.0, %v2202
        %v2204 = vpop.f32.mrb[0].mxu0
        %2205 = vmatprep.mubr.bf16.mxu0 0
        %2206 = vmatmul.mubr.bf16.gmra.mrb[0].mxu0 %v2090
        %v2207 = vpop.f32.mrb[0].mxu0
        %v2208 = vadd.f32 0.0, %v2207
        %v2209 = vpop.f32.mrb[0].mxu0
        %v2210 = vpop.f32.mrb[0].mxu0
        %v2211 = vadd.f32 0.0, %v2210
        %v2212 = vpop.f32.mrb[0].mxu0
        %2213 = vmatprep.mubr.bf16.mxu0 0
        %2214 = vmatmul.mubr.bf16.gmra.mrb[0].mxu0 %v2093
        %v2215 = vpop.f32.mrb[0].mxu0
        %v2216 = vadd.f32 0.0, %v2215
        %v2217 = vpop.f32.mrb[0].mxu0
        %v2218 = vpop.f32.mrb[0].mxu0
        %v2219 = vadd.f32 0.0, %v2218
        %v2220 = vpop.f32.mrb[0].mxu0
        %2221 = vmatprep.mubr.bf16.mxu0 0
        %2222 = vmatmul.mubr.bf16.gmra.mrb[0].mxu0 %v2096
        %v2223 = vpop.f32.mrb[0].mxu0
        %v2224 = vadd.f32 0.0, %v2223
        %v2225 = vpop.f32.mrb[0].mxu0
        %v2226 = vpop.f32.mrb[0].mxu0
        %v2227 = vadd.f32 0.0, %v2226
        %v2228 = vpop.f32.mrb[0].mxu0
        %2229 = vdwg.mxu0
        %v2230 = vadd.f32 %v1676, %v2136
        %v2231 = vadd.f32 %v1677, %v2139
        %v2232 = vadd.f32 %v1678, %v2144
        %v2233 = vadd.f32 %v1679, %v2147
        %v2234 = vadd.f32 %v1680, %v2152
        %v2235 = vadd.f32 %v1681, %v2155
        %v2236 = vadd.f32 %v1682, %v2160
        %v2237 = vadd.f32 %v1683, %v2163
        %v2238 = vadd.f32 %v1684, %v2168
        %v2239 = vadd.f32 %v1685, %v2171
        %v2240 = vadd.f32 %v1686, %v2176
        %v2241 = vadd.f32 %v1687, %v2179
        %v2242 = vadd.f32 %v1688, %v2184
        %v2243 = vadd.f32 %v1689, %v2187
        %v2244 = vadd.f32 %v1690, %v2192
        %v2245 = vadd.f32 %v1691, %v2195
        %v2246 = vadd.f32 %v1692, %v2200
        %v2247 = vadd.f32 %v1693, %v2203
        %v2248 = vadd.f32 %v1694, %v2208
        %v2249 = vadd.f32 %v1695, %v2211
        %v2250 = vadd.f32 %v1696, %v2216
        %v2251 = vadd.f32 %v1697, %v2219
        %v2252 = vadd.f32 %v1698, %v2224
        %v2253 = vadd.f32 %v1699, %v2227
        %v2254 = vld [vmem:[%s1421] sm:$0xe]
        %v2255 = vld [vmem:[%s1421 + $0xc] sm:$0xe]
        %v2256 = vld [vmem:[%s1421 + $0x18] sm:$0xe]
        %v2257 = vld [vmem:[%s1421 + $0x24] sm:$0xe]
        %v2258 = vld [vmem:[%s1421 + $0x30] sm:$0xe]
        %v2259 = vld [vmem:[%s1421 + $0x3c] sm:$0xe]
        %v2260 = vld [vmem:[%s1421 + $0x48] sm:$0xe]
        %v2261 = vld [vmem:[%s1421 + $0x54] sm:$0xe]
        %v2262 = vld [vmem:[%s1421 + $0x60] sm:$0xe]
        %v2263 = vld [vmem:[%s1421 + $0x6c] sm:$0xe]
        %v2264 = vld [vmem:[%s1421 + $0x78] sm:$0xe]
        %v2265 = vld [vmem:[%s1421 + $0x84] sm:$0xe]
        %v2302 = vrot.slane %v2254, 5
        %v2303 = vrot.slane %v2302, 4
        %v2304 = vrot.slane %v1701, 5
        %v2305 = vsel %vm1103, %v2303, %v2304
        %v2306 = vrot.slane %v2304, 4
        %v2307 = vrot.slane %v1702, 5
        %v2308 = vsel %vm1103, %v2306, %v2307
        %v2309 = vrot.slane %v2255, 5
        %v2310 = vrot.slane %v2309, 4
        %v2311 = vrot.slane %v1704, 5
        %v2312 = vsel %vm1103, %v2310, %v2311
        %v2313 = vrot.slane %v2311, 4
        %v2314 = vrot.slane %v1705, 5
        %v2315 = vsel %vm1103, %v2313, %v2314
        %v2316 = vrot.slane %v2256, 5
        %v2317 = vrot.slane %v2316, 4
        %v2318 = vrot.slane %v1707, 5
        %v2319 = vsel %vm1103, %v2317, %v2318
        %v2320 = vrot.slane %v2318, 4
        %v2321 = vrot.slane %v1708, 5
        %v2322 = vsel %vm1103, %v2320, %v2321
        %v2323 = vrot.slane %v2257, 5
        %v2324 = vrot.slane %v2323, 4
        %v2325 = vrot.slane %v1710, 5
        %v2326 = vsel %vm1103, %v2324, %v2325
        %v2327 = vrot.slane %v2325, 4
        %v2328 = vrot.slane %v1711, 5
        %v2329 = vsel %vm1103, %v2327, %v2328
        %v2330 = vrot.slane %v2258, 5
        %v2331 = vrot.slane %v2330, 4
        %v2332 = vrot.slane %v1713, 5
        %v2333 = vsel %vm1103, %v2331, %v2332
        %v2334 = vrot.slane %v2332, 4
        %v2335 = vrot.slane %v1714, 5
        %v2336 = vsel %vm1103, %v2334, %v2335
        %v2337 = vrot.slane %v2259, 5
        %v2338 = vrot.slane %v2337, 4
        %v2339 = vrot.slane %v1716, 5
        %v2340 = vsel %vm1103, %v2338, %v2339
        %v2341 = vrot.slane %v2339, 4
        %v2342 = vrot.slane %v1717, 5
        %v2343 = vsel %vm1103, %v2341, %v2342
        %v2344 = vrot.slane %v2260, 5
        %v2345 = vrot.slane %v2344, 4
        %v2346 = vrot.slane %v1719, 5
        %v2347 = vsel %vm1103, %v2345, %v2346
        %v2348 = vrot.slane %v2346, 4
        %v2349 = vrot.slane %v1720, 5
        %v2350 = vsel %vm1103, %v2348, %v2349
        %v2351 = vrot.slane %v2261, 5
        %v2352 = vrot.slane %v2351, 4
        %v2353 = vrot.slane %v1722, 5
        %v2354 = vsel %vm1103, %v2352, %v2353
        %v2355 = vrot.slane %v2353, 4
        %v2356 = vrot.slane %v1723, 5
        %v2357 = vsel %vm1103, %v2355, %v2356
        %v2358 = vrot.slane %v2262, 5
        %v2359 = vrot.slane %v2358, 4
        %v2360 = vrot.slane %v1725, 5
        %v2361 = vsel %vm1103, %v2359, %v2360
        %v2362 = vrot.slane %v2360, 4
        %v2363 = vrot.slane %v1726, 5
        %v2364 = vsel %vm1103, %v2362, %v2363
        %v2365 = vrot.slane %v2263, 5
        %v2366 = vrot.slane %v2365, 4
        %v2367 = vrot.slane %v1728, 5
        %v2368 = vsel %vm1103, %v2366, %v2367
        %v2369 = vrot.slane %v2367, 4
        %v2370 = vrot.slane %v1729, 5
        %v2371 = vsel %vm1103, %v2369, %v2370
        %v2372 = vrot.slane %v2264, 5
        %v2373 = vrot.slane %v2372, 4
        %v2374 = vrot.slane %v1731, 5
        %v2375 = vsel %vm1103, %v2373, %v2374
        %v2376 = vrot.slane %v2374, 4
        %v2377 = vrot.slane %v1732, 5
        %v2378 = vsel %vm1103, %v2376, %v2377
        %v2379 = vrot.slane %v2265, 5
        %v2380 = vrot.slane %v2379, 4
        %v2381 = vrot.slane %v1734, 5
        %v2382 = vsel %vm1103, %v2380, %v2381
        %v2383 = vrot.slane %v2381, 4
        %v2384 = vrot.slane %v1735, 5
        %v2385 = vsel %vm1103, %v2383, %v2384
        %s2386 = scalar_lea.vmem %s1, 10
        %v2387 = vld [vmem:[%s2386] sm:$0x3]
        %v2388 = vunpack.c.l.b16 %v2305
        %v2389 = vunpack.c.l.b16 %v2308
        %v2390 = vunpack.c.l.b16 %v2312
        %v2391 = vunpack.c.l.b16 %v2315
        %v2392 = vunpack.c.l.b16 %v2319
        %v2393 = vunpack.c.l.b16 %v2322
        %v2394 = vunpack.c.l.b16 %v2326
        %v2395 = vunpack.c.l.b16 %v2329
        %v2396 = vunpack.c.l.b16 %v2333
        %v2397 = vunpack.c.l.b16 %v2336
        %v2398 = vunpack.c.l.b16 %v2340
        %v2399 = vunpack.c.l.b16 %v2343
        %v2400 = vunpack.c.l.b16 %v2347
        %v2401 = vunpack.c.l.b16 %v2350
        %v2402 = vunpack.c.l.b16 %v2354
        %v2403 = vunpack.c.l.b16 %v2357
        %v2404 = vunpack.c.l.b16 %v2361
        %v2405 = vunpack.c.l.b16 %v2364
        %v2406 = vunpack.c.l.b16 %v2368
        %v2407 = vunpack.c.l.b16 %v2371
        %v2408 = vunpack.c.l.b16 %v2375
        %v2409 = vunpack.c.l.b16 %v2378
        %v2410 = vunpack.c.l.b16 %v2382
        %v2411 = vunpack.c.l.b16 %v2385
        %v2412 = vpack.c.b16 %v2389, %v2388
        %v2413 = vpack.c.b16 %v2391, %v2390
        %v2414 = vpack.c.b16 %v2393, %v2392
        %v2415 = vpack.c.b16 %v2395, %v2394
        %v2416 = vpack.c.b16 %v2397, %v2396
        %v2417 = vpack.c.b16 %v2399, %v2398
        %v2418 = vpack.c.b16 %v2401, %v2400
        %v2419 = vpack.c.b16 %v2403, %v2402
        %v2420 = vpack.c.b16 %v2405, %v2404
        %v2421 = vpack.c.b16 %v2407, %v2406
        %v2422 = vpack.c.b16 %v2409, %v2408
        %v2423 = vpack.c.b16 %v2411, %v2410
        %v2425 = vsel %vm664, %v2412, 0
        %v2428 = vsel %vm664, %v2413, 0
        %v2431 = vsel %vm664, %v2414, 0
        %v2434 = vsel %vm664, %v2415, 0
        %v2437 = vsel %vm664, %v2416, 0
        %v2440 = vsel %vm664, %v2417, 0
        %v2443 = vsel %vm664, %v2418, 0
        %v2446 = vsel %vm664, %v2419, 0
        %v2449 = vsel %vm664, %v2420, 0
        %v2452 = vsel %vm664, %v2421, 0
        %v2455 = vsel %vm664, %v2422, 0
        %v2458 = vsel %vm664, %v2423, 0
        %v2461 = vand.u32 %v2387, %v704
        %2463 = vmatprep.subr.bf16.mxu0 0
        %2464 = vmatpush1.bf16.msra.mxu0 %v2461
        %2465 = vmatprep.subr.bf16.mxu0 0
        %2466 = vmatpush1.bf16.msra.mxu0 0
        %2467 = vmatprep.subr.bf16.mxu0 0
        %2468 = vmatpush1.bf16.msra.mxu0 0
        %2469 = vmatprep.subr.bf16.mxu0 0
        %2470 = vmatpush1.bf16.msra.mxu0 0
        %2471 = vmatprep.subr.bf16.mxu0 0
        %2472 = vmatpush1.bf16.msra.mxu0 0
        %2473 = vmatprep.subr.bf16.mxu0 0
        %2474 = vmatpush1.bf16.msra.mxu0 0
        %2475 = vmatprep.subr.bf16.mxu0 0
        %2476 = vmatpush1.bf16.msra.mxu0 0
        %2477 = vmatprep.subr.bf16.mxu0 0
        %2478 = vmatpush1.bf16.msra.mxu0 0
        %2479 = vmatprep.subr.bf16.mxu0 0
        %2480 = vmatpush1.bf16.msra.mxu0 0
        %2481 = vmatprep.subr.bf16.mxu0 0
        %2482 = vmatpush1.bf16.msra.mxu0 0
        %2483 = vmatprep.subr.bf16.mxu0 0
        %2484 = vmatpush1.bf16.msra.mxu0 0
        %2485 = vmatprep.subr.bf16.mxu0 0
        %2486 = vmatpush1.bf16.msra.mxu0 0
        %2487 = vmatprep.subr.bf16.mxu0 0
        %2488 = vmatpush1.bf16.msra.mxu0 0
        %2489 = vmatprep.subr.bf16.mxu0 0
        %2490 = vmatpush1.bf16.msra.mxu0 0
        %2491 = vmatprep.subr.bf16.mxu0 0
        %2492 = vmatpush1.bf16.msra.mxu0 0
        %2493 = vmatprep.subr.bf16.mxu0 0
        %2494 = vmatpush1.bf16.msra.mxu0 0
        %2495 = vmatprep.mubr.bf16.mxu0 0
        %2496 = vmatmul.mubr.bf16.gmra.mrb[0].mxu0 %v2425
        %v2497 = vpop.f32.mrb[0].mxu0
        %v2498 = vadd.f32 0.0, %v2497
        %v2499 = vpop.f32.mrb[0].mxu0
        %v2500 = vpop.f32.mrb[0].mxu0
        %v2501 = vadd.f32 0.0, %v2500
        %v2502 = vpop.f32.mrb[0].mxu0
        %2503 = vmatprep.mubr.bf16.mxu0 0
        %2504 = vmatmul.mubr.bf16.gmra.mrb[0].mxu0 %v2428
        %v2505 = vpop.f32.mrb[0].mxu0
        %v2506 = vadd.f32 0.0, %v2505
        %v2507 = vpop.f32.mrb[0].mxu0
        %v2508 = vpop.f32.mrb[0].mxu0
        %v2509 = vadd.f32 0.0, %v2508
        %v2510 = vpop.f32.mrb[0].mxu0
        %2511 = vmatprep.mubr.bf16.mxu0 0
        %2512 = vmatmul.mubr.bf16.gmra.mrb[0].mxu0 %v2431
        %v2513 = vpop.f32.mrb[0].mxu0
        %v2514 = vadd.f32 0.0, %v2513
        %v2515 = vpop.f32.mrb[0].mxu0
        %v2516 = vpop.f32.mrb[0].mxu0
        %v2517 = vadd.f32 0.0, %v2516
        %v2518 = vpop.f32.mrb[0].mxu0
        %2519 = vmatprep.mubr.bf16.mxu0 0
        %2520 = vmatmul.mubr.bf16.gmra.mrb[0].mxu0 %v2434
        %v2521 = vpop.f32.mrb[0].mxu0
        %v2522 = vadd.f32 0.0, %v2521
        %v2523 = vpop.f32.mrb[0].mxu0
        %v2524 = vpop.f32.mrb[0].mxu0
        %v2525 = vadd.f32 0.0, %v2524
        %v2526 = vpop.f32.mrb[0].mxu0
        %2527 = vmatprep.mubr.bf16.mxu0 0
        %2528 = vmatmul.mubr.bf16.gmra.mrb[0].mxu0 %v2437
        %v2529 = vpop.f32.mrb[0].mxu0
        %v2530 = vadd.f32 0.0, %v2529
        %v2531 = vpop.f32.mrb[0].mxu0
        %v2532 = vpop.f32.mrb[0].mxu0
        %v2533 = vadd.f32 0.0, %v2532
        %v2534 = vpop.f32.mrb[0].mxu0
        %2535 = vmatprep.mubr.bf16.mxu0 0
        %2536 = vmatmul.mubr.bf16.gmra.mrb[0].mxu0 %v2440
        %v2537 = vpop.f32.mrb[0].mxu0
        %v2538 = vadd.f32 0.0, %v2537
        %v2539 = vpop.f32.mrb[0].mxu0
        %v2540 = vpop.f32.mrb[0].mxu0
        %v2541 = vadd.f32 0.0, %v2540
        %v2542 = vpop.f32.mrb[0].mxu0
        %2543 = vmatprep.mubr.bf16.mxu0 0
        %2544 = vmatmul.mubr.bf16.gmra.mrb[0].mxu0 %v2443
        %v2545 = vpop.f32.mrb[0].mxu0
        %v2546 = vadd.f32 0.0, %v2545
        %v2547 = vpop.f32.mrb[0].mxu0
        %v2548 = vpop.f32.mrb[0].mxu0
        %v2549 = vadd.f32 0.0, %v2548
        %v2550 = vpop.f32.mrb[0].mxu0
        %2551 = vmatprep.mubr.bf16.mxu0 0
        %2552 = vmatmul.mubr.bf16.gmra.mrb[0].mxu0 %v2446
        %v2553 = vpop.f32.mrb[0].mxu0
        %v2554 = vadd.f32 0.0, %v2553
        %v2555 = vpop.f32.mrb[0].mxu0
        %v2556 = vpop.f32.mrb[0].mxu0
        %v2557 = vadd.f32 0.0, %v2556
        %v2558 = vpop.f32.mrb[0].mxu0
        %2559 = vmatprep.mubr.bf16.mxu0 0
        %2560 = vmatmul.mubr.bf16.gmra.mrb[0].mxu0 %v2449
        %v2561 = vpop.f32.mrb[0].mxu0
        %v2562 = vadd.f32 0.0, %v2561
        %v2563 = vpop.f32.mrb[0].mxu0
        %v2564 = vpop.f32.mrb[0].mxu0
        %v2565 = vadd.f32 0.0, %v2564
        %v2566 = vpop.f32.mrb[0].mxu0
        %2567 = vmatprep.mubr.bf16.mxu0 0
        %2568 = vmatmul.mubr.bf16.gmra.mrb[0].mxu0 %v2452
        %v2569 = vpop.f32.mrb[0].mxu0
        %v2570 = vadd.f32 0.0, %v2569
        %v2571 = vpop.f32.mrb[0].mxu0
        %v2572 = vpop.f32.mrb[0].mxu0
        %v2573 = vadd.f32 0.0, %v2572
        %v2574 = vpop.f32.mrb[0].mxu0
        %2575 = vmatprep.mubr.bf16.mxu0 0
        %2576 = vmatmul.mubr.bf16.gmra.mrb[0].mxu0 %v2455
        %v2577 = vpop.f32.mrb[0].mxu0
        %v2578 = vadd.f32 0.0, %v2577
        %v2579 = vpop.f32.mrb[0].mxu0
        %v2580 = vpop.f32.mrb[0].mxu0
        %v2581 = vadd.f32 0.0, %v2580
        %v2582 = vpop.f32.mrb[0].mxu0
        %2583 = vmatprep.mubr.bf16.mxu0 0
        %2584 = vmatmul.mubr.bf16.gmra.mrb[0].mxu0 %v2458
        %v2585 = vpop.f32.mrb[0].mxu0
        %v2586 = vadd.f32 0.0, %v2585
        %v2587 = vpop.f32.mrb[0].mxu0
        %v2588 = vpop.f32.mrb[0].mxu0
        %v2589 = vadd.f32 0.0, %v2588
        %v2590 = vpop.f32.mrb[0].mxu0
        %2591 = vdwg.mxu0
        %v2592 = vadd.f32 %v2230, %v2498
        %v2593 = vadd.f32 %v2231, %v2501
        %v2594 = vadd.f32 %v2232, %v2506
        %v2595 = vadd.f32 %v2233, %v2509
        %v2596 = vadd.f32 %v2234, %v2514
        %v2597 = vadd.f32 %v2235, %v2517
        %v2598 = vadd.f32 %v2236, %v2522
        %v2599 = vadd.f32 %v2237, %v2525
        %v2600 = vadd.f32 %v2238, %v2530
        %v2601 = vadd.f32 %v2239, %v2533
        %v2602 = vadd.f32 %v2240, %v2538
        %v2603 = vadd.f32 %v2241, %v2541
        %v2604 = vadd.f32 %v2242, %v2546
        %v2605 = vadd.f32 %v2243, %v2549
        %v2606 = vadd.f32 %v2244, %v2554
        %v2607 = vadd.f32 %v2245, %v2557
        %v2608 = vadd.f32 %v2246, %v2562
        %v2609 = vadd.f32 %v2247, %v2565
        %v2610 = vadd.f32 %v2248, %v2570
        %v2611 = vadd.f32 %v2249, %v2573
        %v2612 = vadd.f32 %v2250, %v2578
        %v2613 = vadd.f32 %v2251, %v2581
        %v2614 = vadd.f32 %v2252, %v2586
        %v2615 = vadd.f32 %v2253, %v2589
        %s2616 = sadd.s32 %s294, 2
        %s2617 = smul.u32 %s2616, 3
        %s2618 = smul.addr %s2617, 4
        %s2619 = scalar_lea.vmem %s292, %s2618
        %v2620 = vld [vmem:[%s2619] sm:$0xf]
        %v2621 = vld [vmem:[%s2619 + $0x4] sm:$0xf]
        %v2622 = vld [vmem:[%s2619 + $0xc] sm:$0xf]
        %v2623 = vld [vmem:[%s2619 + $0x10] sm:$0xf]
        %v2624 = vld [vmem:[%s2619 + $0x18] sm:$0xf]
        %v2625 = vld [vmem:[%s2619 + $0x1c] sm:$0xf]
        %v2626 = vld [vmem:[%s2619 + $0x24] sm:$0xf]
        %v2627 = vld [vmem:[%s2619 + $0x28] sm:$0xf]
        %v2628 = vld [vmem:[%s2619 + $0x30] sm:$0xf]
        %v2629 = vld [vmem:[%s2619 + $0x34] sm:$0xf]
        %v2630 = vld [vmem:[%s2619 + $0x3c] sm:$0xf]
        %v2631 = vld [vmem:[%s2619 + $0x40] sm:$0xf]
        %v2632 = vld [vmem:[%s2619 + $0x48] sm:$0xf]
        %v2633 = vld [vmem:[%s2619 + $0x4c] sm:$0xf]
        %v2634 = vld [vmem:[%s2619 + $0x54] sm:$0xf]
        %v2635 = vld [vmem:[%s2619 + $0x58] sm:$0xf]
        %v2636 = vld [vmem:[%s2619 + $0x60] sm:$0xf]
        %v2637 = vld [vmem:[%s2619 + $0x64] sm:$0xf]
        %v2638 = vld [vmem:[%s2619 + $0x6c] sm:$0xf]
        %v2639 = vld [vmem:[%s2619 + $0x70] sm:$0xf]
        %v2640 = vld [vmem:[%s2619 + $0x78] sm:$0xf]
        %v2641 = vld [vmem:[%s2619 + $0x7c] sm:$0xf]
        %v2642 = vld [vmem:[%s2619 + $0x84] sm:$0xf]
        %v2643 = vld [vmem:[%s2619 + $0x88] sm:$0xf]
        %s2644 = scalar_lea.vmem %s1, 12
        %v2645 = vld [vmem:[%s2644] sm:$0x3]
        %v2670 = vunpack.c.l.b16 %v2620
        %v2671 = vunpack.c.l.b16 %v2621
        %v2672 = vunpack.c.l.b16 %v2622
        %v2673 = vunpack.c.l.b16 %v2623
        %v2674 = vunpack.c.l.b16 %v2624
        %v2675 = vunpack.c.l.b16 %v2625
        %v2676 = vunpack.c.l.b16 %v2626
        %v2677 = vunpack.c.l.b16 %v2627
        %v2678 = vunpack.c.l.b16 %v2628
        %v2679 = vunpack.c.l.b16 %v2629
        %v2680 = vunpack.c.l.b16 %v2630
        %v2681 = vunpack.c.l.b16 %v2631
        %v2682 = vunpack.c.l.b16 %v2632
        %v2683 = vunpack.c.l.b16 %v2633
        %v2684 = vunpack.c.l.b16 %v2634
        %v2685 = vunpack.c.l.b16 %v2635
        %v2686 = vunpack.c.l.b16 %v2636
        %v2687 = vunpack.c.l.b16 %v2637
        %v2688 = vunpack.c.l.b16 %v2638
        %v2689 = vunpack.c.l.b16 %v2639
        %v2690 = vunpack.c.l.b16 %v2640
        %v2691 = vunpack.c.l.b16 %v2641
        %v2692 = vunpack.c.l.b16 %v2642
        %v2693 = vunpack.c.l.b16 %v2643
        %v2694 = vpack.c.b16 %v2671, %v2670
        %v2695 = vpack.c.b16 %v2673, %v2672
        %v2696 = vpack.c.b16 %v2675, %v2674
        %v2697 = vpack.c.b16 %v2677, %v2676
        %v2698 = vpack.c.b16 %v2679, %v2678
        %v2699 = vpack.c.b16 %v2681, %v2680
        %v2700 = vpack.c.b16 %v2683, %v2682
        %v2701 = vpack.c.b16 %v2685, %v2684
        %v2702 = vpack.c.b16 %v2687, %v2686
        %v2703 = vpack.c.b16 %v2689, %v2688
        %v2704 = vpack.c.b16 %v2691, %v2690
        %v2705 = vpack.c.b16 %v2693, %v2692
        %v2707 = vsel %vm664, %v2694, 0
        %v2710 = vsel %vm664, %v2695, 0
        %v2713 = vsel %vm664, %v2696, 0
        %v2716 = vsel %vm664, %v2697, 0
        %v2719 = vsel %vm664, %v2698, 0
        %v2722 = vsel %vm664, %v2699, 0
        %v2725 = vsel %vm664, %v2700, 0
        %v2728 = vsel %vm664, %v2701, 0
        %v2731 = vsel %vm664, %v2702, 0
        %v2734 = vsel %vm664, %v2703, 0
        %v2737 = vsel %vm664, %v2704, 0
        %v2740 = vsel %vm664, %v2705, 0
        %v2743 = vand.u32 %v2645, %v704
        %2745 = vmatprep.subr.bf16.mxu0 0
        %2746 = vmatpush1.bf16.msra.mxu0 %v2743
        %2747 = vmatprep.subr.bf16.mxu0 0
        %2748 = vmatpush1.bf16.msra.mxu0 0
        %2749 = vmatprep.subr.bf16.mxu0 0
        %2750 = vmatpush1.bf16.msra.mxu0 0
        %2751 = vmatprep.subr.bf16.mxu0 0
        %2752 = vmatpush1.bf16.msra.mxu0 0
        %2753 = vmatprep.subr.bf16.mxu0 0
        %2754 = vmatpush1.bf16.msra.mxu0 0
        %2755 = vmatprep.subr.bf16.mxu0 0
        %2756 = vmatpush1.bf16.msra.mxu0 0
        %2757 = vmatprep.subr.bf16.mxu0 0
        %2758 = vmatpush1.bf16.msra.mxu0 0
        %2759 = vmatprep.subr.bf16.mxu0 0
        %2760 = vmatpush1.bf16.msra.mxu0 0
        %2761 = vmatprep.subr.bf16.mxu0 0
        %2762 = vmatpush1.bf16.msra.mxu0 0
        %2763 = vmatprep.subr.bf16.mxu0 0
        %2764 = vmatpush1.bf16.msra.mxu0 0
        %2765 = vmatprep.subr.bf16.mxu0 0
        %2766 = vmatpush1.bf16.msra.mxu0 0
        %2767 = vmatprep.subr.bf16.mxu0 0
        %2768 = vmatpush1.bf16.msra.mxu0 0
        %2769 = vmatprep.subr.bf16.mxu0 0
        %2770 = vmatpush1.bf16.msra.mxu0 0
        %2771 = vmatprep.subr.bf16.mxu0 0
        %2772 = vmatpush1.bf16.msra.mxu0 0
        %2773 = vmatprep.subr.bf16.mxu0 0
        %2774 = vmatpush1.bf16.msra.mxu0 0
        %2775 = vmatprep.subr.bf16.mxu0 0
        %2776 = vmatpush1.bf16.msra.mxu0 0
        %2777 = vmatprep.mubr.bf16.mxu0 0
        %2778 = vmatmul.mubr.bf16.gmra.mrb[0].mxu0 %v2707
        %v2779 = vpop.f32.mrb[0].mxu0
        %v2780 = vadd.f32 0.0, %v2779
        %v2781 = vpop.f32.mrb[0].mxu0
        %v2782 = vpop.f32.mrb[0].mxu0
        %v2783 = vadd.f32 0.0, %v2782
        %v2784 = vpop.f32.mrb[0].mxu0
        %2785 = vmatprep.mubr.bf16.mxu0 0
        %2786 = vmatmul.mubr.bf16.gmra.mrb[0].mxu0 %v2710
        %v2787 = vpop.f32.mrb[0].mxu0
        %v2788 = vadd.f32 0.0, %v2787
        %v2789 = vpop.f32.mrb[0].mxu0
        %v2790 = vpop.f32.mrb[0].mxu0
        %v2791 = vadd.f32 0.0, %v2790
        %v2792 = vpop.f32.mrb[0].mxu0
        %2793 = vmatprep.mubr.bf16.mxu0 0
        %2794 = vmatmul.mubr.bf16.gmra.mrb[0].mxu0 %v2713
        %v2795 = vpop.f32.mrb[0].mxu0
        %v2796 = vadd.f32 0.0, %v2795
        %v2797 = vpop.f32.mrb[0].mxu0
        %v2798 = vpop.f32.mrb[0].mxu0
        %v2799 = vadd.f32 0.0, %v2798
        %v2800 = vpop.f32.mrb[0].mxu0
        %2801 = vmatprep.mubr.bf16.mxu0 0
        %2802 = vmatmul.mubr.bf16.gmra.mrb[0].mxu0 %v2716
        %v2803 = vpop.f32.mrb[0].mxu0
        %v2804 = vadd.f32 0.0, %v2803
        %v2805 = vpop.f32.mrb[0].mxu0
        %v2806 = vpop.f32.mrb[0].mxu0
        %v2807 = vadd.f32 0.0, %v2806
        %v2808 = vpop.f32.mrb[0].mxu0
        %2809 = vmatprep.mubr.bf16.mxu0 0
        %2810 = vmatmul.mubr.bf16.gmra.mrb[0].mxu0 %v2719
        %v2811 = vpop.f32.mrb[0].mxu0
        %v2812 = vadd.f32 0.0, %v2811
        %v2813 = vpop.f32.mrb[0].mxu0
        %v2814 = vpop.f32.mrb[0].mxu0
        %v2815 = vadd.f32 0.0, %v2814
        %v2816 = vpop.f32.mrb[0].mxu0
        %2817 = vmatprep.mubr.bf16.mxu0 0
        %2818 = vmatmul.mubr.bf16.gmra.mrb[0].mxu0 %v2722
        %v2819 = vpop.f32.mrb[0].mxu0
        %v2820 = vadd.f32 0.0, %v2819
        %v2821 = vpop.f32.mrb[0].mxu0
        %v2822 = vpop.f32.mrb[0].mxu0
        %v2823 = vadd.f32 0.0, %v2822
        %v2824 = vpop.f32.mrb[0].mxu0
        %2825 = vmatprep.mubr.bf16.mxu0 0
        %2826 = vmatmul.mubr.bf16.gmra.mrb[0].mxu0 %v2725
        %v2827 = vpop.f32.mrb[0].mxu0
        %v2828 = vadd.f32 0.0, %v2827
        %v2829 = vpop.f32.mrb[0].mxu0
        %v2830 = vpop.f32.mrb[0].mxu0
        %v2831 = vadd.f32 0.0, %v2830
        %v2832 = vpop.f32.mrb[0].mxu0
        %2833 = vmatprep.mubr.bf16.mxu0 0
        %2834 = vmatmul.mubr.bf16.gmra.mrb[0].mxu0 %v2728
        %v2835 = vpop.f32.mrb[0].mxu0
        %v2836 = vadd.f32 0.0, %v2835
        %v2837 = vpop.f32.mrb[0].mxu0
        %v2838 = vpop.f32.mrb[0].mxu0
        %v2839 = vadd.f32 0.0, %v2838
        %v2840 = vpop.f32.mrb[0].mxu0
        %2841 = vmatprep.mubr.bf16.mxu0 0
        %2842 = vmatmul.mubr.bf16.gmra.mrb[0].mxu0 %v2731
        %v2843 = vpop.f32.mrb[0].mxu0
        %v2844 = vadd.f32 0.0, %v2843
        %v2845 = vpop.f32.mrb[0].mxu0
        %v2846 = vpop.f32.mrb[0].mxu0
        %v2847 = vadd.f32 0.0, %v2846
        %v2848 = vpop.f32.mrb[0].mxu0
        %2849 = vmatprep.mubr.bf16.mxu0 0
        %2850 = vmatmul.mubr.bf16.gmra.mrb[0].mxu0 %v2734
        %v2851 = vpop.f32.mrb[0].mxu0
        %v2852 = vadd.f32 0.0, %v2851
        %v2853 = vpop.f32.mrb[0].mxu0
        %v2854 = vpop.f32.mrb[0].mxu0
        %v2855 = vadd.f32 0.0, %v2854
        %v2856 = vpop.f32.mrb[0].mxu0
        %2857 = vmatprep.mubr.bf16.mxu0 0
        %2858 = vmatmul.mubr.bf16.gmra.mrb[0].mxu0 %v2737
        %v2859 = vpop.f32.mrb[0].mxu0
        %v2860 = vadd.f32 0.0, %v2859
        %v2861 = vpop.f32.mrb[0].mxu0
        %v2862 = vpop.f32.mrb[0].mxu0
        %v2863 = vadd.f32 0.0, %v2862
        %v2864 = vpop.f32.mrb[0].mxu0
        %2865 = vmatprep.mubr.bf16.mxu0 0
        %2866 = vmatmul.mubr.bf16.gmra.mrb[0].mxu0 %v2740
        %v2867 = vpop.f32.mrb[0].mxu0
        %v2868 = vadd.f32 0.0, %v2867
        %v2869 = vpop.f32.mrb[0].mxu0
        %v2870 = vpop.f32.mrb[0].mxu0
        %v2871 = vadd.f32 0.0, %v2870
        %v2872 = vpop.f32.mrb[0].mxu0
        %2873 = vdwg.mxu0
        %v2874 = vadd.f32 %v2592, %v2780
        %v2875 = vadd.f32 %v2593, %v2783
        %v2876 = vadd.f32 %v2594, %v2788
        %v2877 = vadd.f32 %v2595, %v2791
        %v2878 = vadd.f32 %v2596, %v2796
        %v2879 = vadd.f32 %v2597, %v2799
        %v2880 = vadd.f32 %v2598, %v2804
        %v2881 = vadd.f32 %v2599, %v2807
        %v2882 = vadd.f32 %v2600, %v2812
        %v2883 = vadd.f32 %v2601, %v2815
        %v2884 = vadd.f32 %v2602, %v2820
        %v2885 = vadd.f32 %v2603, %v2823
        %v2886 = vadd.f32 %v2604, %v2828
        %v2887 = vadd.f32 %v2605, %v2831
        %v2888 = vadd.f32 %v2606, %v2836
        %v2889 = vadd.f32 %v2607, %v2839
        %v2890 = vadd.f32 %v2608, %v2844
        %v2891 = vadd.f32 %v2609, %v2847
        %v2892 = vadd.f32 %v2610, %v2852
        %v2893 = vadd.f32 %v2611, %v2855
        %v2894 = vadd.f32 %v2612, %v2860
        %v2895 = vadd.f32 %v2613, %v2863
        %v2896 = vadd.f32 %v2614, %v2868
        %v2897 = vadd.f32 %v2615, %v2871
        %v2898 = vld [vmem:[%s2619] sm:$0xf]
        %v2899 = vld [vmem:[%s2619 + $0x4] sm:$0xf]
        %v2900 = vld [vmem:[%s2619 + $0x8] sm:$0x1]
        %v2901 = vld [vmem:[%s2619 + $0xc] sm:$0xf]
        %v2902 = vld [vmem:[%s2619 + $0x10] sm:$0xf]
        %v2903 = vld [vmem:[%s2619 + $0x14] sm:$0x1]
        %v2904 = vld [vmem:[%s2619 + $0x18] sm:$0xf]
        %v2905 = vld [vmem:[%s2619 + $0x1c] sm:$0xf]
        %v2906 = vld [vmem:[%s2619 + $0x20] sm:$0x1]
        %v2907 = vld [vmem:[%s2619 + $0x24] sm:$0xf]
        %v2908 = vld [vmem:[%s2619 + $0x28] sm:$0xf]
        %v2909 = vld [vmem:[%s2619 + $0x2c] sm:$0x1]
        %v2910 = vld [vmem:[%s2619 + $0x30] sm:$0xf]
        %v2911 = vld [vmem:[%s2619 + $0x34] sm:$0xf]
        %v2912 = vld [vmem:[%s2619 + $0x38] sm:$0x1]
        %v2913 = vld [vmem:[%s2619 + $0x3c] sm:$0xf]
        %v2914 = vld [vmem:[%s2619 + $0x40] sm:$0xf]
        %v2915 = vld [vmem:[%s2619 + $0x44] sm:$0x1]
        %v2916 = vld [vmem:[%s2619 + $0x48] sm:$0xf]
        %v2917 = vld [vmem:[%s2619 + $0x4c] sm:$0xf]
        %v2918 = vld [vmem:[%s2619 + $0x50] sm:$0x1]
        %v2919 = vld [vmem:[%s2619 + $0x54] sm:$0xf]
        %v2920 = vld [vmem:[%s2619 + $0x58] sm:$0xf]
        %v2921 = vld [vmem:[%s2619 + $0x5c] sm:$0x1]
        %v2922 = vld [vmem:[%s2619 + $0x60] sm:$0xf]
        %v2923 = vld [vmem:[%s2619 + $0x64] sm:$0xf]
        %v2924 = vld [vmem:[%s2619 + $0x68] sm:$0x1]
        %v2925 = vld [vmem:[%s2619 + $0x6c] sm:$0xf]
        %v2926 = vld [vmem:[%s2619 + $0x70] sm:$0xf]
        %v2927 = vld [vmem:[%s2619 + $0x74] sm:$0x1]
        %v2928 = vld [vmem:[%s2619 + $0x78] sm:$0xf]
        %v2929 = vld [vmem:[%s2619 + $0x7c] sm:$0xf]
        %v2930 = vld [vmem:[%s2619 + $0x80] sm:$0x1]
        %v2931 = vld [vmem:[%s2619 + $0x84] sm:$0xf]
        %v2932 = vld [vmem:[%s2619 + $0x88] sm:$0xf]
        %v2933 = vld [vmem:[%s2619 + $0x8c] sm:$0x1]
        %v2935 = vshrl.u32 %v2898, 16
        %v2937 = vrot.slane %v2935, 4
        %v2938 = vshll.u32 %v2898, 16
        %v2940 = vrot.slane %v2938, 5
        %v2941 = vor.u32 %v2937, %v2940
        %v2942 = vrot.slane %v2941, 4
        %v2944 = vshll.u32 %v2899, 16
        %v2946 = vrot.slane %v2944, 5
        %v2947 = vsel %vm337, %v2942, %v2946
        %v2948 = vshrl.u32 %v2899, 16
        %v2950 = vrot.slane %v2948, 4
        %v2951 = vor.u32 %v2950, %v2946
        %v2952 = vrot.slane %v2951, 4
        %v2954 = vshll.u32 %v2900, 16
        %v2956 = vrot.slane %v2954, 5
        %v2957 = vsel %vm337, %v2952, %v2956
        %v2959 = vshrl.u32 %v2901, 16
        %v2961 = vrot.slane %v2959, 4
        %v2962 = vshll.u32 %v2901, 16
        %v2964 = vrot.slane %v2962, 5
        %v2965 = vor.u32 %v2961, %v2964
        %v2966 = vrot.slane %v2965, 4
        %v2968 = vshll.u32 %v2902, 16
        %v2970 = vrot.slane %v2968, 5
        %v2971 = vsel %vm337, %v2966, %v2970
        %v2972 = vshrl.u32 %v2902, 16
        %v2974 = vrot.slane %v2972, 4
        %v2975 = vor.u32 %v2974, %v2970
        %v2976 = vrot.slane %v2975, 4
        %v2978 = vshll.u32 %v2903, 16
        %v2980 = vrot.slane %v2978, 5
        %v2981 = vsel %vm337, %v2976, %v2980
        %v2983 = vshrl.u32 %v2904, 16
        %v2985 = vrot.slane %v2983, 4
        %v2986 = vshll.u32 %v2904, 16
        %v2988 = vrot.slane %v2986, 5
        %v2989 = vor.u32 %v2985, %v2988
        %v2990 = vrot.slane %v2989, 4
        %v2992 = vshll.u32 %v2905, 16
        %v2994 = vrot.slane %v2992, 5
        %v2995 = vsel %vm337, %v2990, %v2994
        %v2996 = vshrl.u32 %v2905, 16
        %v2998 = vrot.slane %v2996, 4
        %v2999 = vor.u32 %v2998, %v2994
        %v3000 = vrot.slane %v2999, 4
        %v3002 = vshll.u32 %v2906, 16
        %v3004 = vrot.slane %v3002, 5
        %v3005 = vsel %vm337, %v3000, %v3004
        %v3007 = vshrl.u32 %v2907, 16
        %v3009 = vrot.slane %v3007, 4
        %v3010 = vshll.u32 %v2907, 16
        %v3012 = vrot.slane %v3010, 5
        %v3013 = vor.u32 %v3009, %v3012
        %v3014 = vrot.slane %v3013, 4
        %v3016 = vshll.u32 %v2908, 16
        %v3018 = vrot.slane %v3016, 5
        %v3019 = vsel %vm337, %v3014, %v3018
        %v3020 = vshrl.u32 %v2908, 16
        %v3022 = vrot.slane %v3020, 4
        %v3023 = vor.u32 %v3022, %v3018
        %v3024 = vrot.slane %v3023, 4
        %v3026 = vshll.u32 %v2909, 16
        %v3028 = vrot.slane %v3026, 5
        %v3029 = vsel %vm337, %v3024, %v3028
        %v3031 = vshrl.u32 %v2910, 16
        %v3033 = vrot.slane %v3031, 4
        %v3034 = vshll.u32 %v2910, 16
        %v3036 = vrot.slane %v3034, 5
        %v3037 = vor.u32 %v3033, %v3036
        %v3038 = vrot.slane %v3037, 4
        %v3040 = vshll.u32 %v2911, 16
        %v3042 = vrot.slane %v3040, 5
        %v3043 = vsel %vm337, %v3038, %v3042
        %v3044 = vshrl.u32 %v2911, 16
        %v3046 = vrot.slane %v3044, 4
        %v3047 = vor.u32 %v3046, %v3042
        %v3048 = vrot.slane %v3047, 4
        %v3050 = vshll.u32 %v2912, 16
        %v3052 = vrot.slane %v3050, 5
        %v3053 = vsel %vm337, %v3048, %v3052
        %v3055 = vshrl.u32 %v2913, 16
        %v3057 = vrot.slane %v3055, 4
        %v3058 = vshll.u32 %v2913, 16
        %v3060 = vrot.slane %v3058, 5
        %v3061 = vor.u32 %v3057, %v3060
        %v3062 = vrot.slane %v3061, 4
        %v3064 = vshll.u32 %v2914, 16
        %v3066 = vrot.slane %v3064, 5
        %v3067 = vsel %vm337, %v3062, %v3066
        %v3068 = vshrl.u32 %v2914, 16
        %v3070 = vrot.slane %v3068, 4
        %v3071 = vor.u32 %v3070, %v3066
        %v3072 = vrot.slane %v3071, 4
        %v3074 = vshll.u32 %v2915, 16
        %v3076 = vrot.slane %v3074, 5
        %v3077 = vsel %vm337, %v3072, %v3076
        %v3079 = vshrl.u32 %v2916, 16
        %v3081 = vrot.slane %v3079, 4
        %v3082 = vshll.u32 %v2916, 16
        %v3084 = vrot.slane %v3082, 5
        %v3085 = vor.u32 %v3081, %v3084
        %v3086 = vrot.slane %v3085, 4
        %v3088 = vshll.u32 %v2917, 16
        %v3090 = vrot.slane %v3088, 5
        %v3091 = vsel %vm337, %v3086, %v3090
        %v3092 = vshrl.u32 %v2917, 16
        %v3094 = vrot.slane %v3092, 4
        %v3095 = vor.u32 %v3094, %v3090
        %v3096 = vrot.slane %v3095, 4
        %v3098 = vshll.u32 %v2918, 16
        %v3100 = vrot.slane %v3098, 5
        %v3101 = vsel %vm337, %v3096, %v3100
        %v3103 = vshrl.u32 %v2919, 16
        %v3105 = vrot.slane %v3103, 4
        %v3106 = vshll.u32 %v2919, 16
        %v3108 = vrot.slane %v3106, 5
        %v3109 = vor.u32 %v3105, %v3108
        %v3110 = vrot.slane %v3109, 4
        %v3112 = vshll.u32 %v2920, 16
        %v3114 = vrot.slane %v3112, 5
        %v3115 = vsel %vm337, %v3110, %v3114
        %v3116 = vshrl.u32 %v2920, 16
        %v3118 = vrot.slane %v3116, 4
        %v3119 = vor.u32 %v3118, %v3114
        %v3120 = vrot.slane %v3119, 4
        %v3122 = vshll.u32 %v2921, 16
        %v3124 = vrot.slane %v3122, 5
        %v3125 = vsel %vm337, %v3120, %v3124
        %v3127 = vshrl.u32 %v2922, 16
        %v3129 = vrot.slane %v3127, 4
        %v3130 = vshll.u32 %v2922, 16
        %v3132 = vrot.slane %v3130, 5
        %v3133 = vor.u32 %v3129, %v3132
        %v3134 = vrot.slane %v3133, 4
        %v3136 = vshll.u32 %v2923, 16
        %v3138 = vrot.slane %v3136, 5
        %v3139 = vsel %vm337, %v3134, %v3138
        %v3140 = vshrl.u32 %v2923, 16
        %v3142 = vrot.slane %v3140, 4
        %v3143 = vor.u32 %v3142, %v3138
        %v3144 = vrot.slane %v3143, 4
        %v3146 = vshll.u32 %v2924, 16
        %v3148 = vrot.slane %v3146, 5
        %v3149 = vsel %vm337, %v3144, %v3148
        %v3151 = vshrl.u32 %v2925, 16
        %v3153 = vrot.slane %v3151, 4
        %v3154 = vshll.u32 %v2925, 16
        %v3156 = vrot.slane %v3154, 5
        %v3157 = vor.u32 %v3153, %v3156
        %v3158 = vrot.slane %v3157, 4
        %v3160 = vshll.u32 %v2926, 16
        %v3162 = vrot.slane %v3160, 5
        %v3163 = vsel %vm337, %v3158, %v3162
        %v3164 = vshrl.u32 %v2926, 16
        %v3166 = vrot.slane %v3164, 4
        %v3167 = vor.u32 %v3166, %v3162
        %v3168 = vrot.slane %v3167, 4
        %v3170 = vshll.u32 %v2927, 16
        %v3172 = vrot.slane %v3170, 5
        %v3173 = vsel %vm337, %v3168, %v3172
        %v3175 = vshrl.u32 %v2928, 16
        %v3177 = vrot.slane %v3175, 4
        %v3178 = vshll.u32 %v2928, 16
        %v3180 = vrot.slane %v3178, 5
        %v3181 = vor.u32 %v3177, %v3180
        %v3182 = vrot.slane %v3181, 4
        %v3184 = vshll.u32 %v2929, 16
        %v3186 = vrot.slane %v3184, 5
        %v3187 = vsel %vm337, %v3182, %v3186
        %v3188 = vshrl.u32 %v2929, 16
        %v3190 = vrot.slane %v3188, 4
        %v3191 = vor.u32 %v3190, %v3186
        %v3192 = vrot.slane %v3191, 4
        %v3194 = vshll.u32 %v2930, 16
        %v3196 = vrot.slane %v3194, 5
        %v3197 = vsel %vm337, %v3192, %v3196
        %v3199 = vshrl.u32 %v2931, 16
        %v3201 = vrot.slane %v3199, 4
        %v3202 = vshll.u32 %v2931, 16
        %v3204 = vrot.slane %v3202, 5
        %v3205 = vor.u32 %v3201, %v3204
        %v3206 = vrot.slane %v3205, 4
        %v3208 = vshll.u32 %v2932, 16
        %v3210 = vrot.slane %v3208, 5
        %v3211 = vsel %vm337, %v3206, %v3210
        %v3212 = vshrl.u32 %v2932, 16
        %v3214 = vrot.slane %v3212, 4
        %v3215 = vor.u32 %v3214, %v3210
        %v3216 = vrot.slane %v3215, 4
        %v3218 = vshll.u32 %v2933, 16
        %v3220 = vrot.slane %v3218, 5
        %v3221 = vsel %vm337, %v3216, %v3220
        %s3222 = scalar_lea.vmem %s1, 14
        %v3223 = vld [vmem:[%s3222] sm:$0x3]
        %v3224 = vunpack.c.l.b16 %v2947
        %v3225 = vunpack.c.l.b16 %v2957
        %v3226 = vunpack.c.l.b16 %v2971
        %v3227 = vunpack.c.l.b16 %v2981
        %v3228 = vunpack.c.l.b16 %v2995
        %v3229 = vunpack.c.l.b16 %v3005
        %v3230 = vunpack.c.l.b16 %v3019
        %v3231 = vunpack.c.l.b16 %v3029
        %v3232 = vunpack.c.l.b16 %v3043
        %v3233 = vunpack.c.l.b16 %v3053
        %v3234 = vunpack.c.l.b16 %v3067
        %v3235 = vunpack.c.l.b16 %v3077
        %v3236 = vunpack.c.l.b16 %v3091
        %v3237 = vunpack.c.l.b16 %v3101
        %v3238 = vunpack.c.l.b16 %v3115
        %v3239 = vunpack.c.l.b16 %v3125
        %v3240 = vunpack.c.l.b16 %v3139
        %v3241 = vunpack.c.l.b16 %v3149
        %v3242 = vunpack.c.l.b16 %v3163
        %v3243 = vunpack.c.l.b16 %v3173
        %v3244 = vunpack.c.l.b16 %v3187
        %v3245 = vunpack.c.l.b16 %v3197
        %v3246 = vunpack.c.l.b16 %v3211
        %v3247 = vunpack.c.l.b16 %v3221
        %v3248 = vpack.c.b16 %v3225, %v3224
        %v3249 = vpack.c.b16 %v3227, %v3226
        %v3250 = vpack.c.b16 %v3229, %v3228
        %v3251 = vpack.c.b16 %v3231, %v3230
        %v3252 = vpack.c.b16 %v3233, %v3232
        %v3253 = vpack.c.b16 %v3235, %v3234
        %v3254 = vpack.c.b16 %v3237, %v3236
        %v3255 = vpack.c.b16 %v3239, %v3238
        %v3256 = vpack.c.b16 %v3241, %v3240
        %v3257 = vpack.c.b16 %v3243, %v3242
        %v3258 = vpack.c.b16 %v3245, %v3244
        %v3259 = vpack.c.b16 %v3247, %v3246
        %v3261 = vsel %vm664, %v3248, 0
        %v3264 = vsel %vm664, %v3249, 0
        %v3267 = vsel %vm664, %v3250, 0
        %v3270 = vsel %vm664, %v3251, 0
        %v3273 = vsel %vm664, %v3252, 0
        %v3276 = vsel %vm664, %v3253, 0
        %v3279 = vsel %vm664, %v3254, 0
        %v3282 = vsel %vm664, %v3255, 0
        %v3285 = vsel %vm664, %v3256, 0
        %v3288 = vsel %vm664, %v3257, 0
        %v3291 = vsel %vm664, %v3258, 0
        %v3294 = vsel %vm664, %v3259, 0
        %v3297 = vand.u32 %v3223, %v704
        %3299 = vmatprep.subr.bf16.mxu0 0
        %3300 = vmatpush1.bf16.msra.mxu0 %v3297
        %3301 = vmatprep.subr.bf16.mxu0 0
        %3302 = vmatpush1.bf16.msra.mxu0 0
        %3303 = vmatprep.subr.bf16.mxu0 0
        %3304 = vmatpush1.bf16.msra.mxu0 0
        %3305 = vmatprep.subr.bf16.mxu0 0
        %3306 = vmatpush1.bf16.msra.mxu0 0
        %3307 = vmatprep.subr.bf16.mxu0 0
        %3308 = vmatpush1.bf16.msra.mxu0 0
        %3309 = vmatprep.subr.bf16.mxu0 0
        %3310 = vmatpush1.bf16.msra.mxu0 0
        %3311 = vmatprep.subr.bf16.mxu0 0
        %3312 = vmatpush1.bf16.msra.mxu0 0
        %3313 = vmatprep.subr.bf16.mxu0 0
        %3314 = vmatpush1.bf16.msra.mxu0 0
        %3315 = vmatprep.subr.bf16.mxu0 0
        %3316 = vmatpush1.bf16.msra.mxu0 0
        %3317 = vmatprep.subr.bf16.mxu0 0
        %3318 = vmatpush1.bf16.msra.mxu0 0
        %3319 = vmatprep.subr.bf16.mxu0 0
        %3320 = vmatpush1.bf16.msra.mxu0 0
        %3321 = vmatprep.subr.bf16.mxu0 0
        %3322 = vmatpush1.bf16.msra.mxu0 0
        %3323 = vmatprep.subr.bf16.mxu0 0
        %3324 = vmatpush1.bf16.msra.mxu0 0
        %3325 = vmatprep.subr.bf16.mxu0 0
        %3326 = vmatpush1.bf16.msra.mxu0 0
        %3327 = vmatprep.subr.bf16.mxu0 0
        %3328 = vmatpush1.bf16.msra.mxu0 0
        %3329 = vmatprep.subr.bf16.mxu0 0
        %3330 = vmatpush1.bf16.msra.mxu0 0
        %3331 = vmatprep.mubr.bf16.mxu0 0
        %3332 = vmatmul.mubr.bf16.gmra.mrb[0].mxu0 %v3261
        %v3333 = vpop.f32.mrb[0].mxu0
        %v3334 = vadd.f32 0.0, %v3333
        %v3335 = vpop.f32.mrb[0].mxu0
        %v3336 = vpop.f32.mrb[0].mxu0
        %v3337 = vadd.f32 0.0, %v3336
        %v3338 = vpop.f32.mrb[0].mxu0
        %3339 = vmatprep.mubr.bf16.mxu0 0
        %3340 = vmatmul.mubr.bf16.gmra.mrb[0].mxu0 %v3264
        %v3341 = vpop.f32.mrb[0].mxu0
        %v3342 = vadd.f32 0.0, %v3341
        %v3343 = vpop.f32.mrb[0].mxu0
        %v3344 = vpop.f32.mrb[0].mxu0
        %v3345 = vadd.f32 0.0, %v3344
        %v3346 = vpop.f32.mrb[0].mxu0
        %3347 = vmatprep.mubr.bf16.mxu0 0
        %3348 = vmatmul.mubr.bf16.gmra.mrb[0].mxu0 %v3267
        %v3349 = vpop.f32.mrb[0].mxu0
        %v3350 = vadd.f32 0.0, %v3349
        %v3351 = vpop.f32.mrb[0].mxu0
        %v3352 = vpop.f32.mrb[0].mxu0
        %v3353 = vadd.f32 0.0, %v3352
        %v3354 = vpop.f32.mrb[0].mxu0
        %3355 = vmatprep.mubr.bf16.mxu0 0
        %3356 = vmatmul.mubr.bf16.gmra.mrb[0].mxu0 %v3270
        %v3357 = vpop.f32.mrb[0].mxu0
        %v3358 = vadd.f32 0.0, %v3357
        %v3359 = vpop.f32.mrb[0].mxu0
        %v3360 = vpop.f32.mrb[0].mxu0
        %v3361 = vadd.f32 0.0, %v3360
        %v3362 = vpop.f32.mrb[0].mxu0
        %3363 = vmatprep.mubr.bf16.mxu0 0
        %3364 = vmatmul.mubr.bf16.gmra.mrb[0].mxu0 %v3273
        %v3365 = vpop.f32.mrb[0].mxu0
        %v3366 = vadd.f32 0.0, %v3365
        %v3367 = vpop.f32.mrb[0].mxu0
        %v3368 = vpop.f32.mrb[0].mxu0
        %v3369 = vadd.f32 0.0, %v3368
        %v3370 = vpop.f32.mrb[0].mxu0
        %3371 = vmatprep.mubr.bf16.mxu0 0
        %3372 = vmatmul.mubr.bf16.gmra.mrb[0].mxu0 %v3276
        %v3373 = vpop.f32.mrb[0].mxu0
        %v3374 = vadd.f32 0.0, %v3373
        %v3375 = vpop.f32.mrb[0].mxu0
        %v3376 = vpop.f32.mrb[0].mxu0
        %v3377 = vadd.f32 0.0, %v3376
        %v3378 = vpop.f32.mrb[0].mxu0
        %3379 = vmatprep.mubr.bf16.mxu0 0
        %3380 = vmatmul.mubr.bf16.gmra.mrb[0].mxu0 %v3279
        %v3381 = vpop.f32.mrb[0].mxu0
        %v3382 = vadd.f32 0.0, %v3381
        %v3383 = vpop.f32.mrb[0].mxu0
        %v3384 = vpop.f32.mrb[0].mxu0
        %v3385 = vadd.f32 0.0, %v3384
        %v3386 = vpop.f32.mrb[0].mxu0
        %3387 = vmatprep.mubr.bf16.mxu0 0
        %3388 = vmatmul.mubr.bf16.gmra.mrb[0].mxu0 %v3282
        %v3389 = vpop.f32.mrb[0].mxu0
        %v3390 = vadd.f32 0.0, %v3389
        %v3391 = vpop.f32.mrb[0].mxu0
        %v3392 = vpop.f32.mrb[0].mxu0
        %v3393 = vadd.f32 0.0, %v3392
        %v3394 = vpop.f32.mrb[0].mxu0
        %3395 = vmatprep.mubr.bf16.mxu0 0
        %3396 = vmatmul.mubr.bf16.gmra.mrb[0].mxu0 %v3285
        %v3397 = vpop.f32.mrb[0].mxu0
        %v3398 = vadd.f32 0.0, %v3397
        %v3399 = vpop.f32.mrb[0].mxu0
        %v3400 = vpop.f32.mrb[0].mxu0
        %v3401 = vadd.f32 0.0, %v3400
        %v3402 = vpop.f32.mrb[0].mxu0
        %3403 = vmatprep.mubr.bf16.mxu0 0
        %3404 = vmatmul.mubr.bf16.gmra.mrb[0].mxu0 %v3288
        %v3405 = vpop.f32.mrb[0].mxu0
        %v3406 = vadd.f32 0.0, %v3405
        %v3407 = vpop.f32.mrb[0].mxu0
        %v3408 = vpop.f32.mrb[0].mxu0
        %v3409 = vadd.f32 0.0, %v3408
        %v3410 = vpop.f32.mrb[0].mxu0
        %3411 = vmatprep.mubr.bf16.mxu0 0
        %3412 = vmatmul.mubr.bf16.gmra.mrb[0].mxu0 %v3291
        %v3413 = vpop.f32.mrb[0].mxu0
        %v3414 = vadd.f32 0.0, %v3413
        %v3415 = vpop.f32.mrb[0].mxu0
        %v3416 = vpop.f32.mrb[0].mxu0
        %v3417 = vadd.f32 0.0, %v3416
        %v3418 = vpop.f32.mrb[0].mxu0
        %3419 = vmatprep.mubr.bf16.mxu0 0
        %3420 = vmatmul.mubr.bf16.gmra.mrb[0].mxu0 %v3294
        %v3421 = vpop.f32.mrb[0].mxu0
        %v3422 = vadd.f32 0.0, %v3421
        %v3423 = vpop.f32.mrb[0].mxu0
        %v3424 = vpop.f32.mrb[0].mxu0
        %v3425 = vadd.f32 0.0, %v3424
        %v3426 = vpop.f32.mrb[0].mxu0
        %3427 = vdwg.mxu0
        %v3428 = vadd.f32 %v2874, %v3334
        %v3429 = vadd.f32 %v2875, %v3337
        %v3430 = vadd.f32 %v2876, %v3342
        %v3431 = vadd.f32 %v2877, %v3345
        %v3432 = vadd.f32 %v2878, %v3350
        %v3433 = vadd.f32 %v2879, %v3353
        %v3434 = vadd.f32 %v2880, %v3358
        %v3435 = vadd.f32 %v2881, %v3361
        %v3436 = vadd.f32 %v2882, %v3366
        %v3437 = vadd.f32 %v2883, %v3369
        %v3438 = vadd.f32 %v2884, %v3374
        %v3439 = vadd.f32 %v2885, %v3377
        %v3440 = vadd.f32 %v2886, %v3382
        %v3441 = vadd.f32 %v2887, %v3385
        %v3442 = vadd.f32 %v2888, %v3390
        %v3443 = vadd.f32 %v2889, %v3393
        %v3444 = vadd.f32 %v2890, %v3398
        %v3445 = vadd.f32 %v2891, %v3401
        %v3446 = vadd.f32 %v2892, %v3406
        %v3447 = vadd.f32 %v2893, %v3409
        %v3448 = vadd.f32 %v2894, %v3414
        %v3449 = vadd.f32 %v2895, %v3417
        %v3450 = vadd.f32 %v2896, %v3422
        %v3451 = vadd.f32 %v2897, %v3425
        %v3452 = vld [vmem:[%s2619] sm:$0xe]
        %v3453 = vld [vmem:[%s2619 + $0xc] sm:$0xe]
        %v3454 = vld [vmem:[%s2619 + $0x18] sm:$0xe]
        %v3455 = vld [vmem:[%s2619 + $0x24] sm:$0xe]
        %v3456 = vld [vmem:[%s2619 + $0x30] sm:$0xe]
        %v3457 = vld [vmem:[%s2619 + $0x3c] sm:$0xe]
        %v3458 = vld [vmem:[%s2619 + $0x48] sm:$0xe]
        %v3459 = vld [vmem:[%s2619 + $0x54] sm:$0xe]
        %v3460 = vld [vmem:[%s2619 + $0x60] sm:$0xe]
        %v3461 = vld [vmem:[%s2619 + $0x6c] sm:$0xe]
        %v3462 = vld [vmem:[%s2619 + $0x78] sm:$0xe]
        %v3463 = vld [vmem:[%s2619 + $0x84] sm:$0xe]
        %v3500 = vrot.slane %v3452, 5
        %v3501 = vrot.slane %v3500, 4
        %v3502 = vrot.slane %v2899, 5
        %v3503 = vsel %vm1103, %v3501, %v3502
        %v3504 = vrot.slane %v3502, 4
        %v3505 = vrot.slane %v2900, 5
        %v3506 = vsel %vm1103, %v3504, %v3505
        %v3507 = vrot.slane %v3453, 5
        %v3508 = vrot.slane %v3507, 4
        %v3509 = vrot.slane %v2902, 5
        %v3510 = vsel %vm1103, %v3508, %v3509
        %v3511 = vrot.slane %v3509, 4
        %v3512 = vrot.slane %v2903, 5
        %v3513 = vsel %vm1103, %v3511, %v3512
        %v3514 = vrot.slane %v3454, 5
        %v3515 = vrot.slane %v3514, 4
        %v3516 = vrot.slane %v2905, 5
        %v3517 = vsel %vm1103, %v3515, %v3516
        %v3518 = vrot.slane %v3516, 4
        %v3519 = vrot.slane %v2906, 5
        %v3520 = vsel %vm1103, %v3518, %v3519
        %v3521 = vrot.slane %v3455, 5
        %v3522 = vrot.slane %v3521, 4
        %v3523 = vrot.slane %v2908, 5
        %v3524 = vsel %vm1103, %v3522, %v3523
        %v3525 = vrot.slane %v3523, 4
        %v3526 = vrot.slane %v2909, 5
        %v3527 = vsel %vm1103, %v3525, %v3526
        %v3528 = vrot.slane %v3456, 5
        %v3529 = vrot.slane %v3528, 4
        %v3530 = vrot.slane %v2911, 5
        %v3531 = vsel %vm1103, %v3529, %v3530
        %v3532 = vrot.slane %v3530, 4
        %v3533 = vrot.slane %v2912, 5
        %v3534 = vsel %vm1103, %v3532, %v3533
        %v3535 = vrot.slane %v3457, 5
        %v3536 = vrot.slane %v3535, 4
        %v3537 = vrot.slane %v2914, 5
        %v3538 = vsel %vm1103, %v3536, %v3537
        %v3539 = vrot.slane %v3537, 4
        %v3540 = vrot.slane %v2915, 5
        %v3541 = vsel %vm1103, %v3539, %v3540
        %v3542 = vrot.slane %v3458, 5
        %v3543 = vrot.slane %v3542, 4
        %v3544 = vrot.slane %v2917, 5
        %v3545 = vsel %vm1103, %v3543, %v3544
        %v3546 = vrot.slane %v3544, 4
        %v3547 = vrot.slane %v2918, 5
        %v3548 = vsel %vm1103, %v3546, %v3547
        %v3549 = vrot.slane %v3459, 5
        %v3550 = vrot.slane %v3549, 4
        %v3551 = vrot.slane %v2920, 5
        %v3552 = vsel %vm1103, %v3550, %v3551
        %v3553 = vrot.slane %v3551, 4
        %v3554 = vrot.slane %v2921, 5
        %v3555 = vsel %vm1103, %v3553, %v3554
        %v3556 = vrot.slane %v3460, 5
        %v3557 = vrot.slane %v3556, 4
        %v3558 = vrot.slane %v2923, 5
        %v3559 = vsel %vm1103, %v3557, %v3558
        %v3560 = vrot.slane %v3558, 4
        %v3561 = vrot.slane %v2924, 5
        %v3562 = vsel %vm1103, %v3560, %v3561
        %v3563 = vrot.slane %v3461, 5
        %v3564 = vrot.slane %v3563, 4
        %v3565 = vrot.slane %v2926, 5
        %v3566 = vsel %vm1103, %v3564, %v3565
        %v3567 = vrot.slane %v3565, 4
        %v3568 = vrot.slane %v2927, 5
        %v3569 = vsel %vm1103, %v3567, %v3568
        %v3570 = vrot.slane %v3462, 5
        %v3571 = vrot.slane %v3570, 4
        %v3572 = vrot.slane %v2929, 5
        %v3573 = vsel %vm1103, %v3571, %v3572
        %v3574 = vrot.slane %v3572, 4
        %v3575 = vrot.slane %v2930, 5
        %v3576 = vsel %vm1103, %v3574, %v3575
        %v3577 = vrot.slane %v3463, 5
        %v3578 = vrot.slane %v3577, 4
        %v3579 = vrot.slane %v2932, 5
        %v3580 = vsel %vm1103, %v3578, %v3579
        %v3581 = vrot.slane %v3579, 4
        %v3582 = vrot.slane %v2933, 5
        %v3583 = vsel %vm1103, %v3581, %v3582
        %s3584 = scalar_lea.vmem %s1, 16
        %v3585 = vld [vmem:[%s3584] sm:$0x3]
        %v3586 = vunpack.c.l.b16 %v3503
        %v3587 = vunpack.c.l.b16 %v3506
        %v3588 = vunpack.c.l.b16 %v3510
        %v3589 = vunpack.c.l.b16 %v3513
        %v3590 = vunpack.c.l.b16 %v3517
        %v3591 = vunpack.c.l.b16 %v3520
        %v3592 = vunpack.c.l.b16 %v3524
        %v3593 = vunpack.c.l.b16 %v3527
        %v3594 = vunpack.c.l.b16 %v3531
        %v3595 = vunpack.c.l.b16 %v3534
        %v3596 = vunpack.c.l.b16 %v3538
        %v3597 = vunpack.c.l.b16 %v3541
        %v3598 = vunpack.c.l.b16 %v3545
        %v3599 = vunpack.c.l.b16 %v3548
        %v3600 = vunpack.c.l.b16 %v3552
        %v3601 = vunpack.c.l.b16 %v3555
        %v3602 = vunpack.c.l.b16 %v3559
        %v3603 = vunpack.c.l.b16 %v3562
        %v3604 = vunpack.c.l.b16 %v3566
        %v3605 = vunpack.c.l.b16 %v3569
        %v3606 = vunpack.c.l.b16 %v3573
        %v3607 = vunpack.c.l.b16 %v3576
        %v3608 = vunpack.c.l.b16 %v3580
        %v3609 = vunpack.c.l.b16 %v3583
        %v3610 = vpack.c.b16 %v3587, %v3586
        %v3611 = vpack.c.b16 %v3589, %v3588
        %v3612 = vpack.c.b16 %v3591, %v3590
        %v3613 = vpack.c.b16 %v3593, %v3592
        %v3614 = vpack.c.b16 %v3595, %v3594
        %v3615 = vpack.c.b16 %v3597, %v3596
        %v3616 = vpack.c.b16 %v3599, %v3598
        %v3617 = vpack.c.b16 %v3601, %v3600
        %v3618 = vpack.c.b16 %v3603, %v3602
        %v3619 = vpack.c.b16 %v3605, %v3604
        %v3620 = vpack.c.b16 %v3607, %v3606
        %v3621 = vpack.c.b16 %v3609, %v3608
        %v3623 = vsel %vm664, %v3610, 0
        %v3626 = vsel %vm664, %v3611, 0
        %v3629 = vsel %vm664, %v3612, 0
        %v3632 = vsel %vm664, %v3613, 0
        %v3635 = vsel %vm664, %v3614, 0
        %v3638 = vsel %vm664, %v3615, 0
        %v3641 = vsel %vm664, %v3616, 0
        %v3644 = vsel %vm664, %v3617, 0
        %v3647 = vsel %vm664, %v3618, 0
        %v3650 = vsel %vm664, %v3619, 0
        %v3653 = vsel %vm664, %v3620, 0
        %v3656 = vsel %vm664, %v3621, 0
        %v3659 = vand.u32 %v3585, %v704
        %3661 = vmatprep.subr.bf16.mxu0 0
        %3662 = vmatpush1.bf16.msra.mxu0 %v3659
        %3663 = vmatprep.subr.bf16.mxu0 0
        %3664 = vmatpush1.bf16.msra.mxu0 0
        %3665 = vmatprep.subr.bf16.mxu0 0
        %3666 = vmatpush1.bf16.msra.mxu0 0
        %3667 = vmatprep.subr.bf16.mxu0 0
        %3668 = vmatpush1.bf16.msra.mxu0 0
        %3669 = vmatprep.subr.bf16.mxu0 0
        %3670 = vmatpush1.bf16.msra.mxu0 0
        %3671 = vmatprep.subr.bf16.mxu0 0
        %3672 = vmatpush1.bf16.msra.mxu0 0
        %3673 = vmatprep.subr.bf16.mxu0 0
        %3674 = vmatpush1.bf16.msra.mxu0 0
        %3675 = vmatprep.subr.bf16.mxu0 0
        %3676 = vmatpush1.bf16.msra.mxu0 0
        %3677 = vmatprep.subr.bf16.mxu0 0
        %3678 = vmatpush1.bf16.msra.mxu0 0
        %3679 = vmatprep.subr.bf16.mxu0 0
        %3680 = vmatpush1.bf16.msra.mxu0 0
        %3681 = vmatprep.subr.bf16.mxu0 0
        %3682 = vmatpush1.bf16.msra.mxu0 0
        %3683 = vmatprep.subr.bf16.mxu0 0
        %3684 = vmatpush1.bf16.msra.mxu0 0
        %3685 = vmatprep.subr.bf16.mxu0 0
        %3686 = vmatpush1.bf16.msra.mxu0 0
        %3687 = vmatprep.subr.bf16.mxu0 0
        %3688 = vmatpush1.bf16.msra.mxu0 0
        %3689 = vmatprep.subr.bf16.mxu0 0
        %3690 = vmatpush1.bf16.msra.mxu0 0
        %3691 = vmatprep.subr.bf16.mxu0 0
        %3692 = vmatpush1.bf16.msra.mxu0 0
        %3693 = vmatprep.mubr.bf16.mxu0 0
        %3694 = vmatmul.mubr.bf16.gmra.mrb[0].mxu0 %v3623
        %v3695 = vpop.f32.mrb[0].mxu0
        %v3696 = vadd.f32 0.0, %v3695
        %v3697 = vpop.f32.mrb[0].mxu0
        %v3698 = vpop.f32.mrb[0].mxu0
        %v3699 = vadd.f32 0.0, %v3698
        %v3700 = vpop.f32.mrb[0].mxu0
        %3701 = vmatprep.mubr.bf16.mxu0 0
        %3702 = vmatmul.mubr.bf16.gmra.mrb[0].mxu0 %v3626
        %v3703 = vpop.f32.mrb[0].mxu0
        %v3704 = vadd.f32 0.0, %v3703
        %v3705 = vpop.f32.mrb[0].mxu0
        %v3706 = vpop.f32.mrb[0].mxu0
        %v3707 = vadd.f32 0.0, %v3706
        %v3708 = vpop.f32.mrb[0].mxu0
        %3709 = vmatprep.mubr.bf16.mxu0 0
        %3710 = vmatmul.mubr.bf16.gmra.mrb[0].mxu0 %v3629
        %v3711 = vpop.f32.mrb[0].mxu0
        %v3712 = vadd.f32 0.0, %v3711
        %v3713 = vpop.f32.mrb[0].mxu0
        %v3714 = vpop.f32.mrb[0].mxu0
        %v3715 = vadd.f32 0.0, %v3714
        %v3716 = vpop.f32.mrb[0].mxu0
        %3717 = vmatprep.mubr.bf16.mxu0 0
        %3718 = vmatmul.mubr.bf16.gmra.mrb[0].mxu0 %v3632
        %v3719 = vpop.f32.mrb[0].mxu0
        %v3720 = vadd.f32 0.0, %v3719
        %v3721 = vpop.f32.mrb[0].mxu0
        %v3722 = vpop.f32.mrb[0].mxu0
        %v3723 = vadd.f32 0.0, %v3722
        %v3724 = vpop.f32.mrb[0].mxu0
        %3725 = vmatprep.mubr.bf16.mxu0 0
        %3726 = vmatmul.mubr.bf16.gmra.mrb[0].mxu0 %v3635
        %v3727 = vpop.f32.mrb[0].mxu0
        %v3728 = vadd.f32 0.0, %v3727
        %v3729 = vpop.f32.mrb[0].mxu0
        %v3730 = vpop.f32.mrb[0].mxu0
        %v3731 = vadd.f32 0.0, %v3730
        %v3732 = vpop.f32.mrb[0].mxu0
        %3733 = vmatprep.mubr.bf16.mxu0 0
        %3734 = vmatmul.mubr.bf16.gmra.mrb[0].mxu0 %v3638
        %v3735 = vpop.f32.mrb[0].mxu0
        %v3736 = vadd.f32 0.0, %v3735
        %v3737 = vpop.f32.mrb[0].mxu0
        %v3738 = vpop.f32.mrb[0].mxu0
        %v3739 = vadd.f32 0.0, %v3738
        %v3740 = vpop.f32.mrb[0].mxu0
        %3741 = vmatprep.mubr.bf16.mxu0 0
        %3742 = vmatmul.mubr.bf16.gmra.mrb[0].mxu0 %v3641
        %v3743 = vpop.f32.mrb[0].mxu0
        %v3744 = vadd.f32 0.0, %v3743
        %v3745 = vpop.f32.mrb[0].mxu0
        %v3746 = vpop.f32.mrb[0].mxu0
        %v3747 = vadd.f32 0.0, %v3746
        %v3748 = vpop.f32.mrb[0].mxu0
        %3749 = vmatprep.mubr.bf16.mxu0 0
        %3750 = vmatmul.mubr.bf16.gmra.mrb[0].mxu0 %v3644
        %v3751 = vpop.f32.mrb[0].mxu0
        %v3752 = vadd.f32 0.0, %v3751
        %v3753 = vpop.f32.mrb[0].mxu0
        %v3754 = vpop.f32.mrb[0].mxu0
        %v3755 = vadd.f32 0.0, %v3754
        %v3756 = vpop.f32.mrb[0].mxu0
        %3757 = vmatprep.mubr.bf16.mxu0 0
        %3758 = vmatmul.mubr.bf16.gmra.mrb[0].mxu0 %v3647
        %v3759 = vpop.f32.mrb[0].mxu0
        %v3760 = vadd.f32 0.0, %v3759
        %v3761 = vpop.f32.mrb[0].mxu0
        %v3762 = vpop.f32.mrb[0].mxu0
        %v3763 = vadd.f32 0.0, %v3762
        %v3764 = vpop.f32.mrb[0].mxu0
        %3765 = vmatprep.mubr.bf16.mxu0 0
        %3766 = vmatmul.mubr.bf16.gmra.mrb[0].mxu0 %v3650
        %v3767 = vpop.f32.mrb[0].mxu0
        %v3768 = vadd.f32 0.0, %v3767
        %v3769 = vpop.f32.mrb[0].mxu0
        %v3770 = vpop.f32.mrb[0].mxu0
        %v3771 = vadd.f32 0.0, %v3770
        %v3772 = vpop.f32.mrb[0].mxu0
        %3773 = vmatprep.mubr.bf16.mxu0 0
        %3774 = vmatmul.mubr.bf16.gmra.mrb[0].mxu0 %v3653
        %v3775 = vpop.f32.mrb[0].mxu0
        %v3776 = vadd.f32 0.0, %v3775
        %v3777 = vpop.f32.mrb[0].mxu0
        %v3778 = vpop.f32.mrb[0].mxu0
        %v3779 = vadd.f32 0.0, %v3778
        %v3780 = vpop.f32.mrb[0].mxu0
        %3781 = vmatprep.mubr.bf16.mxu0 0
        %3782 = vmatmul.mubr.bf16.gmra.mrb[0].mxu0 %v3656
        %v3783 = vpop.f32.mrb[0].mxu0
        %v3784 = vadd.f32 0.0, %v3783
        %v3785 = vpop.f32.mrb[0].mxu0
        %v3786 = vpop.f32.mrb[0].mxu0
        %v3787 = vadd.f32 0.0, %v3786
        %v3788 = vpop.f32.mrb[0].mxu0
        %3789 = vdwg.mxu0
        %v3790 = vadd.f32 %v3428, %v3696
        %v3791 = vadd.f32 %v3429, %v3699
        %v3792 = vadd.f32 %v3430, %v3704
        %v3793 = vadd.f32 %v3431, %v3707
        %v3794 = vadd.f32 %v3432, %v3712
        %v3795 = vadd.f32 %v3433, %v3715
        %v3796 = vadd.f32 %v3434, %v3720
        %v3797 = vadd.f32 %v3435, %v3723
        %v3798 = vadd.f32 %v3436, %v3728
        %v3799 = vadd.f32 %v3437, %v3731
        %v3800 = vadd.f32 %v3438, %v3736
        %v3801 = vadd.f32 %v3439, %v3739
        %v3802 = vadd.f32 %v3440, %v3744
        %v3803 = vadd.f32 %v3441, %v3747
        %v3804 = vadd.f32 %v3442, %v3752
        %v3805 = vadd.f32 %v3443, %v3755
        %v3806 = vadd.f32 %v3444, %v3760
        %v3807 = vadd.f32 %v3445, %v3763
        %v3808 = vadd.f32 %v3446, %v3768
        %v3809 = vadd.f32 %v3447, %v3771
        %v3810 = vadd.f32 %v3448, %v3776
        %v3811 = vadd.f32 %v3449, %v3779
        %v3812 = vadd.f32 %v3450, %v3784
        %v3813 = vadd.f32 %v3451, %v3787
        %v3814 = vld [vmem:[%s2] sm:$0x1]
        %v3816 = vlaneseq
        %v3817 = vshrl.u32 %v3816, 7
        %v3818 = vsub.s32 0, %v3817
        %v3819 = vrot.slane %v3814, %v3818
        %v3821 = vadd.f32 %v3790, %v3819
        %v3822 = vadd.f32 %v3791, %v3819
        %v3823 = vadd.f32 %v3792, %v3819
        %v3824 = vadd.f32 %v3793, %v3819
        %v3825 = vadd.f32 %v3794, %v3819
        %v3826 = vadd.f32 %v3795, %v3819
        %v3827 = vadd.f32 %v3796, %v3819
        %v3828 = vadd.f32 %v3797, %v3819
        %v3829 = vadd.f32 %v3798, %v3819
        %v3830 = vadd.f32 %v3799, %v3819
        %v3831 = vadd.f32 %v3800, %v3819
        %v3832 = vadd.f32 %v3801, %v3819
        %v3833 = vadd.f32 %v3802, %v3819
        %v3834 = vadd.f32 %v3803, %v3819
        %v3835 = vadd.f32 %v3804, %v3819
        %v3836 = vadd.f32 %v3805, %v3819
        %v3837 = vadd.f32 %v3806, %v3819
        %v3838 = vadd.f32 %v3807, %v3819
        %v3839 = vadd.f32 %v3808, %v3819
        %v3840 = vadd.f32 %v3809, %v3819
        %v3841 = vadd.f32 %v3810, %v3819
        %v3842 = vadd.f32 %v3811, %v3819
        %v3843 = vadd.f32 %v3812, %v3819
        %v3844 = vadd.f32 %v3813, %v3819
        %v3845 = vmax.f32 %v3821, 0.0
        %v3846 = vmax.f32 %v3822, 0.0
        %v3847 = vmax.f32 %v3823, 0.0
        %v3848 = vmax.f32 %v3824, 0.0
        %v3849 = vmax.f32 %v3825, 0.0
        %v3850 = vmax.f32 %v3826, 0.0
        %v3851 = vmax.f32 %v3827, 0.0
        %v3852 = vmax.f32 %v3828, 0.0
        %v3853 = vmax.f32 %v3829, 0.0
        %v3854 = vmax.f32 %v3830, 0.0
        %v3855 = vmax.f32 %v3831, 0.0
        %v3856 = vmax.f32 %v3832, 0.0
        %v3857 = vmax.f32 %v3833, 0.0
        %v3858 = vmax.f32 %v3834, 0.0
        %v3859 = vmax.f32 %v3835, 0.0
        %v3860 = vmax.f32 %v3836, 0.0
        %v3861 = vmax.f32 %v3837, 0.0
        %v3862 = vmax.f32 %v3838, 0.0
        %v3863 = vmax.f32 %v3839, 0.0
        %v3864 = vmax.f32 %v3840, 0.0
        %v3865 = vmax.f32 %v3841, 0.0
        %v3866 = vmax.f32 %v3842, 0.0
        %v3867 = vmax.f32 %v3843, 0.0
        %v3868 = vmax.f32 %v3844, 0.0
        %s3869 = ssub.s32 %s294, 2
        %v3870 = vstv %s3869
        %v3871 = vadd.s32 %v3870, 1
        %v3872 = vadd.s32 %v3870, 2
        %v3873 = vadd.s32 %v3870, 3
        %v3874 = vadd.s32 %v3870, 4
        %v3875 = vadd.s32 %v3870, 5
        %v3876 = vadd.s32 %v3870, 6
        %v3877 = vadd.s32 %v3870, 7
        %v3878 = vadd.s32 %v3870, 8
        %v3879 = vadd.s32 %v3870, 9
        %v3880 = vadd.s32 %v3870, 10
        %v3881 = vadd.s32 %v3870, 11
        %vm3882 = vcmp.ge.s32.totalorder %v3870, 0
        %vm3883 = vcmp.ge.s32.totalorder %v3871, 0
        %vm3884 = vcmp.ge.s32.totalorder %v3872, 0
        %vm3885 = vcmp.ge.s32.totalorder %v3873, 0
        %vm3886 = vcmp.ge.s32.totalorder %v3874, 0
        %vm3887 = vcmp.ge.s32.totalorder %v3875, 0
        %vm3888 = vcmp.ge.s32.totalorder %v3876, 0
        %vm3889 = vcmp.ge.s32.totalorder %v3877, 0
        %vm3890 = vcmp.ge.s32.totalorder %v3878, 0
        %vm3891 = vcmp.ge.s32.totalorder %v3879, 0
        %vm3892 = vcmp.ge.s32.totalorder %v3880, 0
        %vm3893 = vcmp.ge.s32.totalorder %v3881, 0
        %vm3894 = vcmp.lt.s32.totalorder %v3870, 16
        %vm3895 = vcmp.lt.s32.totalorder %v3871, 16
        %vm3896 = vcmp.lt.s32.totalorder %v3872, 16
        %vm3897 = vcmp.lt.s32.totalorder %v3873, 16
        %vm3898 = vcmp.lt.s32.totalorder %v3874, 16
        %vm3899 = vcmp.lt.s32.totalorder %v3875, 16
        %vm3900 = vcmp.lt.s32.totalorder %v3876, 16
        %vm3901 = vcmp.lt.s32.totalorder %v3877, 16
        %vm3902 = vcmp.lt.s32.totalorder %v3878, 16
        %vm3903 = vcmp.lt.s32.totalorder %v3879, 16
        %vm3904 = vcmp.lt.s32.totalorder %v3880, 16
        %vm3905 = vcmp.lt.s32.totalorder %v3881, 16
        %vm3906 = vmand %vm3882, %vm3894
        %vm3907 = vmand %vm3883, %vm3895
        %vm3908 = vmand %vm3884, %vm3896
        %vm3909 = vmand %vm3885, %vm3897
        %vm3910 = vmand %vm3886, %vm3898
        %vm3911 = vmand %vm3887, %vm3899
        %vm3912 = vmand %vm3888, %vm3900
        %vm3913 = vmand %vm3889, %vm3901
        %vm3914 = vmand %vm3890, %vm3902
        %vm3915 = vmand %vm3891, %vm3903
        %vm3916 = vmand %vm3892, %vm3904
        %vm3917 = vmand %vm3893, %vm3905
        %v3918 = vsel %vm3906, 1, 0
        %v3919 = vsel %vm3907, 1, 0
        %v3920 = vsel %vm3908, 1, 0
        %v3921 = vsel %vm3909, 1, 0
        %v3922 = vsel %vm3910, 1, 0
        %v3923 = vsel %vm3911, 1, 0
        %v3924 = vsel %vm3912, 1, 0
        %v3925 = vsel %vm3913, 1, 0
        %v3926 = vsel %vm3914, 1, 0
        %v3927 = vsel %vm3915, 1, 0
        %v3928 = vsel %vm3916, 1, 0
        %v3929 = vsel %vm3917, 1, 0
        %vm3930 = vcmp.eq.s32.totalorder %v3918, 1
        %vm3931 = vcmp.eq.s32.totalorder %v3919, 1
        %vm3932 = vcmp.eq.s32.totalorder %v3920, 1
        %vm3933 = vcmp.eq.s32.totalorder %v3921, 1
        %vm3934 = vcmp.eq.s32.totalorder %v3922, 1
        %vm3935 = vcmp.eq.s32.totalorder %v3923, 1
        %vm3936 = vcmp.eq.s32.totalorder %v3924, 1
        %vm3937 = vcmp.eq.s32.totalorder %v3925, 1
        %vm3938 = vcmp.eq.s32.totalorder %v3926, 1
        %vm3939 = vcmp.eq.s32.totalorder %v3927, 1
        %vm3940 = vcmp.eq.s32.totalorder %v3928, 1
        %vm3941 = vcmp.eq.s32.totalorder %v3929, 1
        %v3942 = vsel %vm3930, %v3845, 0.0
        %v3943 = vsel %vm3930, %v3846, 0.0
        %v3944 = vsel %vm3931, %v3847, 0.0
        %v3945 = vsel %vm3931, %v3848, 0.0
        %v3946 = vsel %vm3932, %v3849, 0.0
        %v3947 = vsel %vm3932, %v3850, 0.0
        %v3948 = vsel %vm3933, %v3851, 0.0
        %v3949 = vsel %vm3933, %v3852, 0.0
        %v3950 = vsel %vm3934, %v3853, 0.0
        %v3951 = vsel %vm3934, %v3854, 0.0
        %v3952 = vsel %vm3935, %v3855, 0.0
        %v3953 = vsel %vm3935, %v3856, 0.0
        %v3954 = vsel %vm3936, %v3857, 0.0
        %v3955 = vsel %vm3936, %v3858, 0.0
        %v3956 = vsel %vm3937, %v3859, 0.0
        %v3957 = vsel %vm3937, %v3860, 0.0
        %v3958 = vsel %vm3938, %v3861, 0.0
        %v3959 = vsel %vm3938, %v3862, 0.0
        %v3960 = vsel %vm3939, %v3863, 0.0
        %v3961 = vsel %vm3939, %v3864, 0.0
        %v3962 = vsel %vm3940, %v3865, 0.0
        %v3963 = vsel %vm3940, %v3866, 0.0
        %v3964 = vsel %vm3941, %v3867, 0.0
        %v3965 = vsel %vm3941, %v3868, 0.0
        %vm3966 = vcmask 253952
        %3967 = vst.msk [vmem:[#allocation2] sm:$0x1] %vm3966, 0.0
        %3968 = vst.msk [vmem:[#allocation2 + $0x18] sm:$0x1] %vm3966, 0.0
        %3969 = vst.msk [vmem:[#allocation2 + $0x30] sm:$0x1] %vm3966, 0.0
        %3970 = vst.msk [vmem:[#allocation2 + $0x48] sm:$0x1] %vm3966, 0.0
        %3971 = vst.msk [vmem:[#allocation2 + $0x60] sm:$0x1] %vm3966, 0.0
        %3972 = vst.msk [vmem:[#allocation2 + $0x78] sm:$0x1] %vm3966, 0.0
        %3973 = vst.msk [vmem:[#allocation2 + $0x90] sm:$0x1] %vm3966, 0.0
        %3974 = vst.msk [vmem:[#allocation2 + $0xa8] sm:$0x1] %vm3966, 0.0
        %3975 = vst.msk [vmem:[#allocation2 + $0xc0] sm:$0x1] %vm3966, 0.0
        %3976 = vst.msk [vmem:[#allocation2 + $0xd8] sm:$0x1] %vm3966, 0.0
        %3977 = vst.msk [vmem:[#allocation2 + $0xf0] sm:$0x1] %vm3966, 0.0
        %3978 = vst.msk [vmem:[#allocation2 + $0x108] sm:$0x1] %vm3966, 0.0
        %3979 = vst.msk [vmem:[#allocation2 + $0x11] sm:$0x1] %vm3966, 0.0
        %3980 = vst.msk [vmem:[#allocation2 + $0x29] sm:$0x1] %vm3966, 0.0
        %3981 = vst.msk [vmem:[#allocation2 + $0x41] sm:$0x1] %vm3966, 0.0
        %3982 = vst.msk [vmem:[#allocation2 + $0x59] sm:$0x1] %vm3966, 0.0
        %3983 = vst.msk [vmem:[#allocation2 + $0x71] sm:$0x1] %vm3966, 0.0
        %3984 = vst.msk [vmem:[#allocation2 + $0x89] sm:$0x1] %vm3966, 0.0
        %3985 = vst.msk [vmem:[#allocation2 + $0xa1] sm:$0x1] %vm3966, 0.0
        %3986 = vst.msk [vmem:[#allocation2 + $0xb9] sm:$0x1] %vm3966, 0.0
        %3987 = vst.msk [vmem:[#allocation2 + $0xd1] sm:$0x1] %vm3966, 0.0
        %3988 = vst.msk [vmem:[#allocation2 + $0xe9] sm:$0x1] %vm3966, 0.0
        %3989 = vst.msk [vmem:[#allocation2 + $0x101] sm:$0x1] %vm3966, 0.0
        %3990 = vst.msk [vmem:[#allocation2 + $0x119] sm:$0x1] %vm3966, 0.0
        %vm3991 = vcmask 261120
        %3992 = vst.msk [vmem:[#allocation2 + $0x1] sm:$0xff] %vm3991, %v3942
        %3993 = vst.msk [vmem:[#allocation2 + $0x9] sm:$0xff] %vm3991, %v3943
        %3994 = vst.msk [vmem:[#allocation2 + $0x19] sm:$0xff] %vm3991, %v3944
        %3995 = vst.msk [vmem:[#allocation2 + $0x21] sm:$0xff] %vm3991, %v3945
        %3996 = vst.msk [vmem:[#allocation2 + $0x31] sm:$0xff] %vm3991, %v3946
        %3997 = vst.msk [vmem:[#allocation2 + $0x39] sm:$0xff] %vm3991, %v3947
        %3998 = vst.msk [vmem:[#allocation2 + $0x49] sm:$0xff] %vm3991, %v3948
        %3999 = vst.msk [vmem:[#allocation2 + $0x51] sm:$0xff] %vm3991, %v3949
        %4000 = vst.msk [vmem:[#allocation2 + $0x61] sm:$0xff] %vm3991, %v3950
        %4001 = vst.msk [vmem:[#allocation2 + $0x69] sm:$0xff] %vm3991, %v3951
        %4002 = vst.msk [vmem:[#allocation2 + $0x79] sm:$0xff] %vm3991, %v3952
        %4003 = vst.msk [vmem:[#allocation2 + $0x81] sm:$0xff] %vm3991, %v3953
        %4004 = vst.msk [vmem:[#allocation2 + $0x91] sm:$0xff] %vm3991, %v3954
        %4005 = vst.msk [vmem:[#allocation2 + $0x99] sm:$0xff] %vm3991, %v3955
        %4006 = vst.msk [vmem:[#allocation2 + $0xa9] sm:$0xff] %vm3991, %v3956
        %4007 = vst.msk [vmem:[#allocation2 + $0xb1] sm:$0xff] %vm3991, %v3957
        %4008 = vst.msk [vmem:[#allocation2 + $0xc1] sm:$0xff] %vm3991, %v3958
        %4009 = vst.msk [vmem:[#allocation2 + $0xc9] sm:$0xff] %vm3991, %v3959
        %4010 = vst.msk [vmem:[#allocation2 + $0xd9] sm:$0xff] %vm3991, %v3960
        %4011 = vst.msk [vmem:[#allocation2 + $0xe1] sm:$0xff] %vm3991, %v3961
        %4012 = vst.msk [vmem:[#allocation2 + $0xf1] sm:$0xff] %vm3991, %v3962
        %4013 = vst.msk [vmem:[#allocation2 + $0xf9] sm:$0xff] %vm3991, %v3963
        %4014 = vst.msk [vmem:[#allocation2 + $0x109] sm:$0xff] %vm3991, %v3964
        %4015 = vst.msk [vmem:[#allocation2 + $0x111] sm:$0xff] %vm3991, %v3965
        %v4016 = vld [vmem:[#allocation2] sm:$0xff]
        %v4017 = vld [vmem:[#allocation2 + $0x8] sm:$0xff]
        %v4018 = vld [vmem:[#allocation2 + $0x18] sm:$0xff]
        %v4019 = vld [vmem:[#allocation2 + $0x20] sm:$0xff]
        %v4020 = vld [vmem:[#allocation2 + $0x30] sm:$0xff]
        %v4021 = vld [vmem:[#allocation2 + $0x38] sm:$0xff]
        %v4022 = vld [vmem:[#allocation2 + $0x48] sm:$0xff]
        %v4023 = vld [vmem:[#allocation2 + $0x50] sm:$0xff]
        %v4024 = vld [vmem:[#allocation2 + $0x60] sm:$0xff]
        %v4025 = vld [vmem:[#allocation2 + $0x68] sm:$0xff]
        %v4026 = vld [vmem:[#allocation2 + $0x78] sm:$0xff]
        %v4027 = vld [vmem:[#allocation2 + $0x80] sm:$0xff]
        %v4028 = vld [vmem:[#allocation2 + $0x90] sm:$0xff]
        %v4029 = vld [vmem:[#allocation2 + $0x98] sm:$0xff]
        %v4030 = vld [vmem:[#allocation2 + $0xa8] sm:$0xff]
        %v4031 = vld [vmem:[#allocation2 + $0xb0] sm:$0xff]
        %v4032 = vld [vmem:[#allocation2 + $0xc0] sm:$0xff]
        %v4033 = vld [vmem:[#allocation2 + $0xc8] sm:$0xff]
        %v4034 = vld [vmem:[#allocation2 + $0xd8] sm:$0xff]
        %v4035 = vld [vmem:[#allocation2 + $0xe0] sm:$0xff]
        %v4036 = vpack.c.bf16 %v4017, %v4016
        %v4037 = vpack.c.bf16 %v4019, %v4018
        %v4038 = vpack.c.bf16 %v4021, %v4020
        %v4039 = vpack.c.bf16 %v4023, %v4022
        %v4040 = vpack.c.bf16 %v4025, %v4024
        %v4041 = vpack.c.bf16 %v4027, %v4026
        %v4042 = vpack.c.bf16 %v4029, %v4028
        %v4043 = vpack.c.bf16 %v4031, %v4030
        %v4044 = vpack.c.bf16 %v4033, %v4032
        %v4045 = vpack.c.bf16 %v4035, %v4034
        %v4046 = vld [vmem:[%s3] sm:$0xf]
        %v4047 = vld [vmem:[%s3 + $0x4] sm:$0xf]
        %v4048 = vld [vmem:[%s3 + $0x8] sm:$0xf]
        %v4049 = vld [vmem:[%s3 + $0xc] sm:$0xf]
        %v4050 = vld [vmem:[#allocation2 + $0x1] sm:$0xff]
        %v4051 = vld [vmem:[#allocation2 + $0x9] sm:$0xff]
        %v4052 = vld [vmem:[#allocation2 + $0x19] sm:$0xff]
        %v4053 = vld [vmem:[#allocation2 + $0x21] sm:$0xff]
        %v4054 = vld [vmem:[#allocation2 + $0x31] sm:$0xff]
        %v4055 = vld [vmem:[#allocation2 + $0x39] sm:$0xff]
        %v4056 = vld [vmem:[#allocation2 + $0x49] sm:$0xff]
        %v4057 = vld [vmem:[#allocation2 + $0x51] sm:$0xff]
        %v4058 = vld [vmem:[#allocation2 + $0x61] sm:$0xff]
        %v4059 = vld [vmem:[#allocation2 + $0x69] sm:$0xff]
        %v4060 = vld [vmem:[#allocation2 + $0x79] sm:$0xff]
        %v4061 = vld [vmem:[#allocation2 + $0x81] sm:$0xff]
        %v4062 = vld [vmem:[#allocation2 + $0x91] sm:$0xff]
        %v4063 = vld [vmem:[#allocation2 + $0x99] sm:$0xff]
        %v4064 = vld [vmem:[#allocation2 + $0xa9] sm:$0xff]
        %v4065 = vld [vmem:[#allocation2 + $0xb1] sm:$0xff]
        %v4066 = vld [vmem:[#allocation2 + $0xc1] sm:$0xff]
        %v4067 = vld [vmem:[#allocation2 + $0xc9] sm:$0xff]
        %v4068 = vld [vmem:[#allocation2 + $0xd9] sm:$0xff]
        %v4069 = vld [vmem:[#allocation2 + $0xe1] sm:$0xff]
        %v4070 = vpack.c.bf16 %v4051, %v4050
        %v4071 = vpack.c.bf16 %v4053, %v4052
        %v4072 = vpack.c.bf16 %v4055, %v4054
        %v4073 = vpack.c.bf16 %v4057, %v4056
        %v4074 = vpack.c.bf16 %v4059, %v4058
        %v4075 = vpack.c.bf16 %v4061, %v4060
        %v4076 = vpack.c.bf16 %v4063, %v4062
        %v4077 = vpack.c.bf16 %v4065, %v4064
        %v4078 = vpack.c.bf16 %v4067, %v4066
        %v4079 = vpack.c.bf16 %v4069, %v4068
        %s4080 = scalar_lea.vmem %s3, 16
        %v4081 = vld [vmem:[%s4080] sm:$0xf]
        %v4082 = vld [vmem:[%s4080 + $0x4] sm:$0xf]
        %v4083 = vld [vmem:[%s4080 + $0x8] sm:$0xf]
        %v4084 = vld [vmem:[%s4080 + $0xc] sm:$0xf]
        %v4089 = vunpack.c.l.b16 %v4081
        %v4090 = vunpack.c.l.b16 %v4082
        %v4091 = vunpack.c.l.b16 %v4083
        %v4092 = vunpack.c.l.b16 %v4084
        %v4093 = vpack.c.b16 %v4090, %v4089
        %v4094 = vpack.c.b16 %v4092, %v4091
        %v4098 = vsel %vm3991, %v4070, 0
        %v4101 = vsel %vm3991, %v4071, 0
        %v4104 = vsel %vm3991, %v4072, 0
        %v4107 = vsel %vm3991, %v4073, 0
        %v4110 = vsel %vm3991, %v4074, 0
        %v4113 = vsel %vm3991, %v4075, 0
        %v4116 = vsel %vm3991, %v4076, 0
        %v4119 = vsel %vm3991, %v4077, 0
        %v4122 = vsel %vm3991, %v4078, 0
        %v4125 = vsel %vm3991, %v4079, 0
        %4127 = vmatprep.subr.bf16.mxu0 0
        %4128 = vmatpush1.bf16.msra.mxu0 %v4093
        %4129 = vmatprep.subr.bf16.mxu0 0
        %4130 = vmatpush1.bf16.msra.mxu0 %v4094
        %4131 = vmatprep.subr.bf16.mxu0 0
        %4132 = vmatpush1.bf16.msra.mxu0 0
        %4133 = vmatprep.subr.bf16.mxu0 0
        %4134 = vmatpush1.bf16.msra.mxu0 0
        %4135 = vmatprep.subr.bf16.mxu0 0
        %4136 = vmatpush1.bf16.msra.mxu0 0
        %4137 = vmatprep.subr.bf16.mxu0 0
        %4138 = vmatpush1.bf16.msra.mxu0 0
        %4139 = vmatprep.subr.bf16.mxu0 0
        %4140 = vmatpush1.bf16.msra.mxu0 0
        %4141 = vmatprep.subr.bf16.mxu0 0
        %4142 = vmatpush1.bf16.msra.mxu0 0
        %4143 = vmatprep.subr.bf16.mxu0 0
        %4144 = vmatpush1.bf16.msra.mxu0 0
        %4145 = vmatprep.subr.bf16.mxu0 0
        %4146 = vmatpush1.bf16.msra.mxu0 0
        %4147 = vmatprep.subr.bf16.mxu0 0
        %4148 = vmatpush1.bf16.msra.mxu0 0
        %4149 = vmatprep.subr.bf16.mxu0 0
        %4150 = vmatpush1.bf16.msra.mxu0 0
        %4151 = vmatprep.subr.bf16.mxu0 0
        %4152 = vmatpush1.bf16.msra.mxu0 0
        %4153 = vmatprep.subr.bf16.mxu0 0
        %4154 = vmatpush1.bf16.msra.mxu0 0
        %4155 = vmatprep.subr.bf16.mxu0 0
        %4156 = vmatpush1.bf16.msra.mxu0 0
        %4157 = vmatprep.subr.bf16.mxu0 0
        %4158 = vmatpush1.bf16.msra.mxu0 0
        %4159 = vmatprep.mubr.bf16.mxu0 0
        %4160 = vmatmul.mubr.bf16.gmra.mrb[0].mxu0 %v4098
        %v4161 = vpop.f32.mrb[0].mxu0
        %v4162 = vadd.f32 0.0, %v4161
        %v4163 = vpop.f32.mrb[0].mxu0
        %v4164 = vpop.f32.mrb[0].mxu0
        %v4165 = vadd.f32 0.0, %v4164
        %v4166 = vpop.f32.mrb[0].mxu0
        %4167 = vmatprep.mubr.bf16.mxu0 0
        %4168 = vmatmul.mubr.bf16.gmra.mrb[0].mxu0 %v4101
        %v4169 = vpop.f32.mrb[0].mxu0
        %v4170 = vadd.f32 0.0, %v4169
        %v4171 = vpop.f32.mrb[0].mxu0
        %v4172 = vpop.f32.mrb[0].mxu0
        %v4173 = vadd.f32 0.0, %v4172
        %v4174 = vpop.f32.mrb[0].mxu0
        %4175 = vmatprep.mubr.bf16.mxu0 0
        %4176 = vmatmul.mubr.bf16.gmra.mrb[0].mxu0 %v4104
        %v4177 = vpop.f32.mrb[0].mxu0
        %v4178 = vadd.f32 0.0, %v4177
        %v4179 = vpop.f32.mrb[0].mxu0
        %v4180 = vpop.f32.mrb[0].mxu0
        %v4181 = vadd.f32 0.0, %v4180
        %v4182 = vpop.f32.mrb[0].mxu0
        %4183 = vmatprep.mubr.bf16.mxu0 0
        %4184 = vmatmul.mubr.bf16.gmra.mrb[0].mxu0 %v4107
        %v4185 = vpop.f32.mrb[0].mxu0
        %v4186 = vadd.f32 0.0, %v4185
        %v4187 = vpop.f32.mrb[0].mxu0
        %v4188 = vpop.f32.mrb[0].mxu0
        %v4189 = vadd.f32 0.0, %v4188
        %v4190 = vpop.f32.mrb[0].mxu0
        %4191 = vmatprep.mubr.bf16.mxu0 0
        %4192 = vmatmul.mubr.bf16.gmra.mrb[0].mxu0 %v4110
        %v4193 = vpop.f32.mrb[0].mxu0
        %v4194 = vadd.f32 0.0, %v4193
        %v4195 = vpop.f32.mrb[0].mxu0
        %v4196 = vpop.f32.mrb[0].mxu0
        %v4197 = vadd.f32 0.0, %v4196
        %v4198 = vpop.f32.mrb[0].mxu0
        %4199 = vmatprep.mubr.bf16.mxu0 0
        %4200 = vmatmul.mubr.bf16.gmra.mrb[0].mxu0 %v4113
        %v4201 = vpop.f32.mrb[0].mxu0
        %v4202 = vadd.f32 0.0, %v4201
        %v4203 = vpop.f32.mrb[0].mxu0
        %v4204 = vpop.f32.mrb[0].mxu0
        %v4205 = vadd.f32 0.0, %v4204
        %v4206 = vpop.f32.mrb[0].mxu0
        %4207 = vmatprep.mubr.bf16.mxu0 0
        %4208 = vmatmul.mubr.bf16.gmra.mrb[0].mxu0 %v4116
        %v4209 = vpop.f32.mrb[0].mxu0
        %v4210 = vadd.f32 0.0, %v4209
        %v4211 = vpop.f32.mrb[0].mxu0
        %v4212 = vpop.f32.mrb[0].mxu0
        %v4213 = vadd.f32 0.0, %v4212
        %v4214 = vpop.f32.mrb[0].mxu0
        %4215 = vmatprep.mubr.bf16.mxu0 0
        %4216 = vmatmul.mubr.bf16.gmra.mrb[0].mxu0 %v4119
        %v4217 = vpop.f32.mrb[0].mxu0
        %v4218 = vadd.f32 0.0, %v4217
        %v4219 = vpop.f32.mrb[0].mxu0
        %v4220 = vpop.f32.mrb[0].mxu0
        %v4221 = vadd.f32 0.0, %v4220
        %v4222 = vpop.f32.mrb[0].mxu0
        %4223 = vmatprep.mubr.bf16.mxu0 0
        %4224 = vmatmul.mubr.bf16.gmra.mrb[0].mxu0 %v4122
        %v4225 = vpop.f32.mrb[0].mxu0
        %v4226 = vadd.f32 0.0, %v4225
        %v4227 = vpop.f32.mrb[0].mxu0
        %v4228 = vpop.f32.mrb[0].mxu0
        %v4229 = vadd.f32 0.0, %v4228
        %v4230 = vpop.f32.mrb[0].mxu0
        %4231 = vmatprep.mubr.bf16.mxu0 0
        %4232 = vmatmul.mubr.bf16.gmra.mrb[0].mxu0 %v4125
        %v4233 = vpop.f32.mrb[0].mxu0
        %v4234 = vadd.f32 0.0, %v4233
        %v4235 = vpop.f32.mrb[0].mxu0
        %v4236 = vpop.f32.mrb[0].mxu0
        %v4237 = vadd.f32 0.0, %v4236
        %v4238 = vpop.f32.mrb[0].mxu0
        %4239 = vdwg.mxu0
        %v4244 = vunpack.c.l.b16 %v4046
        %v4245 = vunpack.c.l.b16 %v4047
        %v4246 = vunpack.c.l.b16 %v4048
        %v4247 = vunpack.c.l.b16 %v4049
        %v4248 = vpack.c.b16 %v4245, %v4244
        %v4249 = vpack.c.b16 %v4247, %v4246
        %v4253 = vsel %vm3991, %v4036, 0
        %v4256 = vsel %vm3991, %v4037, 0
        %v4259 = vsel %vm3991, %v4038, 0
        %v4262 = vsel %vm3991, %v4039, 0
        %v4265 = vsel %vm3991, %v4040, 0
        %v4268 = vsel %vm3991, %v4041, 0
        %v4271 = vsel %vm3991, %v4042, 0
        %v4274 = vsel %vm3991, %v4043, 0
        %v4277 = vsel %vm3991, %v4044, 0
        %v4280 = vsel %vm3991, %v4045, 0
        %4282 = vmatprep.subr.bf16.mxu0 0
        %4283 = vmatpush1.bf16.msra.mxu0 %v4248
        %4284 = vmatprep.subr.bf16.mxu0 0
        %4285 = vmatpush1.bf16.msra.mxu0 %v4249
        %4286 = vmatprep.subr.bf16.mxu0 0
        %4287 = vmatpush1.bf16.msra.mxu0 0
        %4288 = vmatprep.subr.bf16.mxu0 0
        %4289 = vmatpush1.bf16.msra.mxu0 0
        %4290 = vmatprep.subr.bf16.mxu0 0
        %4291 = vmatpush1.bf16.msra.mxu0 0
        %4292 = vmatprep.subr.bf16.mxu0 0
        %4293 = vmatpush1.bf16.msra.mxu0 0
        %4294 = vmatprep.subr.bf16.mxu0 0
        %4295 = vmatpush1.bf16.msra.mxu0 0
        %4296 = vmatprep.subr.bf16.mxu0 0
        %4297 = vmatpush1.bf16.msra.mxu0 0
        %4298 = vmatprep.subr.bf16.mxu0 0
        %4299 = vmatpush1.bf16.msra.mxu0 0
        %4300 = vmatprep.subr.bf16.mxu0 0
        %4301 = vmatpush1.bf16.msra.mxu0 0
        %4302 = vmatprep.subr.bf16.mxu0 0
        %4303 = vmatpush1.bf16.msra.mxu0 0
        %4304 = vmatprep.subr.bf16.mxu0 0
        %4305 = vmatpush1.bf16.msra.mxu0 0
        %4306 = vmatprep.subr.bf16.mxu0 0
        %4307 = vmatpush1.bf16.msra.mxu0 0
        %4308 = vmatprep.subr.bf16.mxu0 0
        %4309 = vmatpush1.bf16.msra.mxu0 0
        %4310 = vmatprep.subr.bf16.mxu0 0
        %4311 = vmatpush1.bf16.msra.mxu0 0
        %4312 = vmatprep.subr.bf16.mxu0 0
        %4313 = vmatpush1.bf16.msra.mxu0 0
        %4314 = vmatprep.mubr.bf16.mxu0 0
        %4315 = vmatmul.mubr.bf16.gmra.mrb[0].mxu0 %v4253
        %v4316 = vpop.f32.mrb[0].mxu0
        %v4317 = vadd.f32 %v4162, %v4316
        %v4318 = vpop.f32.mrb[0].mxu0
        %v4319 = vpop.f32.mrb[0].mxu0
        %v4320 = vadd.f32 %v4165, %v4319
        %v4321 = vpop.f32.mrb[0].mxu0
        %4322 = vmatprep.mubr.bf16.mxu0 0
        %4323 = vmatmul.mubr.bf16.gmra.mrb[0].mxu0 %v4256
        %v4324 = vpop.f32.mrb[0].mxu0
        %v4325 = vadd.f32 %v4170, %v4324
        %v4326 = vpop.f32.mrb[0].mxu0
        %v4327 = vpop.f32.mrb[0].mxu0
        %v4328 = vadd.f32 %v4173, %v4327
        %v4329 = vpop.f32.mrb[0].mxu0
        %4330 = vmatprep.mubr.bf16.mxu0 0
        %4331 = vmatmul.mubr.bf16.gmra.mrb[0].mxu0 %v4259
        %v4332 = vpop.f32.mrb[0].mxu0
        %v4333 = vadd.f32 %v4178, %v4332
        %v4334 = vpop.f32.mrb[0].mxu0
        %v4335 = vpop.f32.mrb[0].mxu0
        %v4336 = vadd.f32 %v4181, %v4335
        %v4337 = vpop.f32.mrb[0].mxu0
        %4338 = vmatprep.mubr.bf16.mxu0 0
        %4339 = vmatmul.mubr.bf16.gmra.mrb[0].mxu0 %v4262
        %v4340 = vpop.f32.mrb[0].mxu0
        %v4341 = vadd.f32 %v4186, %v4340
        %v4342 = vpop.f32.mrb[0].mxu0
        %v4343 = vpop.f32.mrb[0].mxu0
        %v4344 = vadd.f32 %v4189, %v4343
        %v4345 = vpop.f32.mrb[0].mxu0
        %4346 = vmatprep.mubr.bf16.mxu0 0
        %4347 = vmatmul.mubr.bf16.gmra.mrb[0].mxu0 %v4265
        %v4348 = vpop.f32.mrb[0].mxu0
        %v4349 = vadd.f32 %v4194, %v4348
        %v4350 = vpop.f32.mrb[0].mxu0
        %v4351 = vpop.f32.mrb[0].mxu0
        %v4352 = vadd.f32 %v4197, %v4351
        %v4353 = vpop.f32.mrb[0].mxu0
        %4354 = vmatprep.mubr.bf16.mxu0 0
        %4355 = vmatmul.mubr.bf16.gmra.mrb[0].mxu0 %v4268
        %v4356 = vpop.f32.mrb[0].mxu0
        %v4357 = vadd.f32 %v4202, %v4356
        %v4358 = vpop.f32.mrb[0].mxu0
        %v4359 = vpop.f32.mrb[0].mxu0
        %v4360 = vadd.f32 %v4205, %v4359
        %v4361 = vpop.f32.mrb[0].mxu0
        %4362 = vmatprep.mubr.bf16.mxu0 0
        %4363 = vmatmul.mubr.bf16.gmra.mrb[0].mxu0 %v4271
        %v4364 = vpop.f32.mrb[0].mxu0
        %v4365 = vadd.f32 %v4210, %v4364
        %v4366 = vpop.f32.mrb[0].mxu0
        %v4367 = vpop.f32.mrb[0].mxu0
        %v4368 = vadd.f32 %v4213, %v4367
        %v4369 = vpop.f32.mrb[0].mxu0
        %4370 = vmatprep.mubr.bf16.mxu0 0
        %4371 = vmatmul.mubr.bf16.gmra.mrb[0].mxu0 %v4274
        %v4372 = vpop.f32.mrb[0].mxu0
        %v4373 = vadd.f32 %v4218, %v4372
        %v4374 = vpop.f32.mrb[0].mxu0
        %v4375 = vpop.f32.mrb[0].mxu0
        %v4376 = vadd.f32 %v4221, %v4375
        %v4377 = vpop.f32.mrb[0].mxu0
        %4378 = vmatprep.mubr.bf16.mxu0 0
        %4379 = vmatmul.mubr.bf16.gmra.mrb[0].mxu0 %v4277
        %v4380 = vpop.f32.mrb[0].mxu0
        %v4381 = vadd.f32 %v4226, %v4380
        %v4382 = vpop.f32.mrb[0].mxu0
        %v4383 = vpop.f32.mrb[0].mxu0
        %v4384 = vadd.f32 %v4229, %v4383
        %v4385 = vpop.f32.mrb[0].mxu0
        %4386 = vmatprep.mubr.bf16.mxu0 0
        %4387 = vmatmul.mubr.bf16.gmra.mrb[0].mxu0 %v4280
        %v4388 = vpop.f32.mrb[0].mxu0
        %v4389 = vadd.f32 %v4234, %v4388
        %v4390 = vpop.f32.mrb[0].mxu0
        %v4391 = vpop.f32.mrb[0].mxu0
        %v4392 = vadd.f32 %v4237, %v4391
        %v4393 = vpop.f32.mrb[0].mxu0
        %4394 = vdwg.mxu0
        %v4395 = vld [vmem:[#allocation2 + $0x2] sm:$0xff]
        %v4396 = vld [vmem:[#allocation2 + $0xa] sm:$0xff]
        %v4397 = vld [vmem:[#allocation2 + $0x1a] sm:$0xff]
        %v4398 = vld [vmem:[#allocation2 + $0x22] sm:$0xff]
        %v4399 = vld [vmem:[#allocation2 + $0x32] sm:$0xff]
        %v4400 = vld [vmem:[#allocation2 + $0x3a] sm:$0xff]
        %v4401 = vld [vmem:[#allocation2 + $0x4a] sm:$0xff]
        %v4402 = vld [vmem:[#allocation2 + $0x52] sm:$0xff]
        %v4403 = vld [vmem:[#allocation2 + $0x62] sm:$0xff]
        %v4404 = vld [vmem:[#allocation2 + $0x6a] sm:$0xff]
        %v4405 = vld [vmem:[#allocation2 + $0x7a] sm:$0xff]
        %v4406 = vld [vmem:[#allocation2 + $0x82] sm:$0xff]
        %v4407 = vld [vmem:[#allocation2 + $0x92] sm:$0xff]
        %v4408 = vld [vmem:[#allocation2 + $0x9a] sm:$0xff]
        %v4409 = vld [vmem:[#allocation2 + $0xaa] sm:$0xff]
        %v4410 = vld [vmem:[#allocation2 + $0xb2] sm:$0xff]
        %v4411 = vld [vmem:[#allocation2 + $0xc2] sm:$0xff]
        %v4412 = vld [vmem:[#allocation2 + $0xca] sm:$0xff]
        %v4413 = vld [vmem:[#allocation2 + $0xda] sm:$0xff]
        %v4414 = vld [vmem:[#allocation2 + $0xe2] sm:$0xff]
        %v4415 = vpack.c.bf16 %v4396, %v4395
        %v4416 = vpack.c.bf16 %v4398, %v4397
        %v4417 = vpack.c.bf16 %v4400, %v4399
        %v4418 = vpack.c.bf16 %v4402, %v4401
        %v4419 = vpack.c.bf16 %v4404, %v4403
        %v4420 = vpack.c.bf16 %v4406, %v4405
        %v4421 = vpack.c.bf16 %v4408, %v4407
        %v4422 = vpack.c.bf16 %v4410, %v4409
        %v4423 = vpack.c.bf16 %v4412, %v4411
        %v4424 = vpack.c.bf16 %v4414, %v4413
        %s4425 = scalar_lea.vmem %s3, 32
        %v4426 = vld [vmem:[%s4425] sm:$0xf]
        %v4427 = vld [vmem:[%s4425 + $0x4] sm:$0xf]
        %v4428 = vld [vmem:[%s4425 + $0x8] sm:$0xf]
        %v4429 = vld [vmem:[%s4425 + $0xc] sm:$0xf]
        %v4434 = vunpack.c.l.b16 %v4426
        %v4435 = vunpack.c.l.b16 %v4427
        %v4436 = vunpack.c.l.b16 %v4428
        %v4437 = vunpack.c.l.b16 %v4429
        %v4438 = vpack.c.b16 %v4435, %v4434
        %v4439 = vpack.c.b16 %v4437, %v4436
        %v4443 = vsel %vm3991, %v4415, 0
        %v4446 = vsel %vm3991, %v4416, 0
        %v4449 = vsel %vm3991, %v4417, 0
        %v4452 = vsel %vm3991, %v4418, 0
        %v4455 = vsel %vm3991, %v4419, 0
        %v4458 = vsel %vm3991, %v4420, 0
        %v4461 = vsel %vm3991, %v4421, 0
        %v4464 = vsel %vm3991, %v4422, 0
        %v4467 = vsel %vm3991, %v4423, 0
        %v4470 = vsel %vm3991, %v4424, 0
        %4472 = vmatprep.subr.bf16.mxu0 0
        %4473 = vmatpush1.bf16.msra.mxu0 %v4438
        %4474 = vmatprep.subr.bf16.mxu0 0
        %4475 = vmatpush1.bf16.msra.mxu0 %v4439
        %4476 = vmatprep.subr.bf16.mxu0 0
        %4477 = vmatpush1.bf16.msra.mxu0 0
        %4478 = vmatprep.subr.bf16.mxu0 0
        %4479 = vmatpush1.bf16.msra.mxu0 0
        %4480 = vmatprep.subr.bf16.mxu0 0
        %4481 = vmatpush1.bf16.msra.mxu0 0
        %4482 = vmatprep.subr.bf16.mxu0 0
        %4483 = vmatpush1.bf16.msra.mxu0 0
        %4484 = vmatprep.subr.bf16.mxu0 0
        %4485 = vmatpush1.bf16.msra.mxu0 0
        %4486 = vmatprep.subr.bf16.mxu0 0
        %4487 = vmatpush1.bf16.msra.mxu0 0
        %4488 = vmatprep.subr.bf16.mxu0 0
        %4489 = vmatpush1.bf16.msra.mxu0 0
        %4490 = vmatprep.subr.bf16.mxu0 0
        %4491 = vmatpush1.bf16.msra.mxu0 0
        %4492 = vmatprep.subr.bf16.mxu0 0
        %4493 = vmatpush1.bf16.msra.mxu0 0
        %4494 = vmatprep.subr.bf16.mxu0 0
        %4495 = vmatpush1.bf16.msra.mxu0 0
        %4496 = vmatprep.subr.bf16.mxu0 0
        %4497 = vmatpush1.bf16.msra.mxu0 0
        %4498 = vmatprep.subr.bf16.mxu0 0
        %4499 = vmatpush1.bf16.msra.mxu0 0
        %4500 = vmatprep.subr.bf16.mxu0 0
        %4501 = vmatpush1.bf16.msra.mxu0 0
        %4502 = vmatprep.subr.bf16.mxu0 0
        %4503 = vmatpush1.bf16.msra.mxu0 0
        %4504 = vmatprep.mubr.bf16.mxu0 0
        %4505 = vmatmul.mubr.bf16.gmra.mrb[0].mxu0 %v4443
        %v4506 = vpop.f32.mrb[0].mxu0
        %v4507 = vadd.f32 0.0, %v4506
        %v4508 = vpop.f32.mrb[0].mxu0
        %v4509 = vpop.f32.mrb[0].mxu0
        %v4510 = vadd.f32 0.0, %v4509
        %v4511 = vpop.f32.mrb[0].mxu0
        %4512 = vmatprep.mubr.bf16.mxu0 0
        %4513 = vmatmul.mubr.bf16.gmra.mrb[0].mxu0 %v4446
        %v4514 = vpop.f32.mrb[0].mxu0
        %v4515 = vadd.f32 0.0, %v4514
        %v4516 = vpop.f32.mrb[0].mxu0
        %v4517 = vpop.f32.mrb[0].mxu0
        %v4518 = vadd.f32 0.0, %v4517
        %v4519 = vpop.f32.mrb[0].mxu0
        %4520 = vmatprep.mubr.bf16.mxu0 0
        %4521 = vmatmul.mubr.bf16.gmra.mrb[0].mxu0 %v4449
        %v4522 = vpop.f32.mrb[0].mxu0
        %v4523 = vadd.f32 0.0, %v4522
        %v4524 = vpop.f32.mrb[0].mxu0
        %v4525 = vpop.f32.mrb[0].mxu0
        %v4526 = vadd.f32 0.0, %v4525
        %v4527 = vpop.f32.mrb[0].mxu0
        %4528 = vmatprep.mubr.bf16.mxu0 0
        %4529 = vmatmul.mubr.bf16.gmra.mrb[0].mxu0 %v4452
        %v4530 = vpop.f32.mrb[0].mxu0
        %v4531 = vadd.f32 0.0, %v4530
        %v4532 = vpop.f32.mrb[0].mxu0
        %v4533 = vpop.f32.mrb[0].mxu0
        %v4534 = vadd.f32 0.0, %v4533
        %v4535 = vpop.f32.mrb[0].mxu0
        %4536 = vmatprep.mubr.bf16.mxu0 0
        %4537 = vmatmul.mubr.bf16.gmra.mrb[0].mxu0 %v4455
        %v4538 = vpop.f32.mrb[0].mxu0
        %v4539 = vadd.f32 0.0, %v4538
        %v4540 = vpop.f32.mrb[0].mxu0
        %v4541 = vpop.f32.mrb[0].mxu0
        %v4542 = vadd.f32 0.0, %v4541
        %v4543 = vpop.f32.mrb[0].mxu0
        %4544 = vmatprep.mubr.bf16.mxu0 0
        %4545 = vmatmul.mubr.bf16.gmra.mrb[0].mxu0 %v4458
        %v4546 = vpop.f32.mrb[0].mxu0
        %v4547 = vadd.f32 0.0, %v4546
        %v4548 = vpop.f32.mrb[0].mxu0
        %v4549 = vpop.f32.mrb[0].mxu0
        %v4550 = vadd.f32 0.0, %v4549
        %v4551 = vpop.f32.mrb[0].mxu0
        %4552 = vmatprep.mubr.bf16.mxu0 0
        %4553 = vmatmul.mubr.bf16.gmra.mrb[0].mxu0 %v4461
        %v4554 = vpop.f32.mrb[0].mxu0
        %v4555 = vadd.f32 0.0, %v4554
        %v4556 = vpop.f32.mrb[0].mxu0
        %v4557 = vpop.f32.mrb[0].mxu0
        %v4558 = vadd.f32 0.0, %v4557
        %v4559 = vpop.f32.mrb[0].mxu0
        %4560 = vmatprep.mubr.bf16.mxu0 0
        %4561 = vmatmul.mubr.bf16.gmra.mrb[0].mxu0 %v4464
        %v4562 = vpop.f32.mrb[0].mxu0
        %v4563 = vadd.f32 0.0, %v4562
        %v4564 = vpop.f32.mrb[0].mxu0
        %v4565 = vpop.f32.mrb[0].mxu0
        %v4566 = vadd.f32 0.0, %v4565
        %v4567 = vpop.f32.mrb[0].mxu0
        %4568 = vmatprep.mubr.bf16.mxu0 0
        %4569 = vmatmul.mubr.bf16.gmra.mrb[0].mxu0 %v4467
        %v4570 = vpop.f32.mrb[0].mxu0
        %v4571 = vadd.f32 0.0, %v4570
        %v4572 = vpop.f32.mrb[0].mxu0
        %v4573 = vpop.f32.mrb[0].mxu0
        %v4574 = vadd.f32 0.0, %v4573
        %v4575 = vpop.f32.mrb[0].mxu0
        %4576 = vmatprep.mubr.bf16.mxu0 0
        %4577 = vmatmul.mubr.bf16.gmra.mrb[0].mxu0 %v4470
        %v4578 = vpop.f32.mrb[0].mxu0
        %v4579 = vadd.f32 0.0, %v4578
        %v4580 = vpop.f32.mrb[0].mxu0
        %v4581 = vpop.f32.mrb[0].mxu0
        %v4582 = vadd.f32 0.0, %v4581
        %v4583 = vpop.f32.mrb[0].mxu0
        %4584 = vdwg.mxu0
        %v4585 = vadd.f32 %v4317, %v4507
        %v4586 = vadd.f32 %v4320, %v4510
        %v4587 = vadd.f32 %v4325, %v4515
        %v4588 = vadd.f32 %v4328, %v4518
        %v4589 = vadd.f32 %v4333, %v4523
        %v4590 = vadd.f32 %v4336, %v4526
        %v4591 = vadd.f32 %v4341, %v4531
        %v4592 = vadd.f32 %v4344, %v4534
        %v4593 = vadd.f32 %v4349, %v4539
        %v4594 = vadd.f32 %v4352, %v4542
        %v4595 = vadd.f32 %v4357, %v4547
        %v4596 = vadd.f32 %v4360, %v4550
        %v4597 = vadd.f32 %v4365, %v4555
        %v4598 = vadd.f32 %v4368, %v4558
        %v4599 = vadd.f32 %v4373, %v4563
        %v4600 = vadd.f32 %v4376, %v4566
        %v4601 = vadd.f32 %v4381, %v4571
        %v4602 = vadd.f32 %v4384, %v4574
        %v4603 = vadd.f32 %v4389, %v4579
        %v4604 = vadd.f32 %v4392, %v4582
        %s4605 = scalar_lea.vmem [#allocation2], 24
        %v4606 = vld [vmem:[%s4605] sm:$0xff]
        %v4607 = vld [vmem:[%s4605 + $0x8] sm:$0xff]
        %v4608 = vld [vmem:[%s4605 + $0x18] sm:$0xff]
        %v4609 = vld [vmem:[%s4605 + $0x20] sm:$0xff]
        %v4610 = vld [vmem:[%s4605 + $0x30] sm:$0xff]
        %v4611 = vld [vmem:[%s4605 + $0x38] sm:$0xff]
        %v4612 = vld [vmem:[%s4605 + $0x48] sm:$0xff]
        %v4613 = vld [vmem:[%s4605 + $0x50] sm:$0xff]
        %v4614 = vld [vmem:[%s4605 + $0x60] sm:$0xff]
        %v4615 = vld [vmem:[%s4605 + $0x68] sm:$0xff]
        %v4616 = vld [vmem:[%s4605 + $0x78] sm:$0xff]
        %v4617 = vld [vmem:[%s4605 + $0x80] sm:$0xff]
        %v4618 = vld [vmem:[%s4605 + $0x90] sm:$0xff]
        %v4619 = vld [vmem:[%s4605 + $0x98] sm:$0xff]
        %v4620 = vld [vmem:[%s4605 + $0xa8] sm:$0xff]
        %v4621 = vld [vmem:[%s4605 + $0xb0] sm:$0xff]
        %v4622 = vld [vmem:[%s4605 + $0xc0] sm:$0xff]
        %v4623 = vld [vmem:[%s4605 + $0xc8] sm:$0xff]
        %v4624 = vld [vmem:[%s4605 + $0xd8] sm:$0xff]
        %v4625 = vld [vmem:[%s4605 + $0xe0] sm:$0xff]
        %v4626 = vpack.c.bf16 %v4607, %v4606
        %v4627 = vpack.c.bf16 %v4609, %v4608
        %v4628 = vpack.c.bf16 %v4611, %v4610
        %v4629 = vpack.c.bf16 %v4613, %v4612
        %v4630 = vpack.c.bf16 %v4615, %v4614
        %v4631 = vpack.c.bf16 %v4617, %v4616
        %v4632 = vpack.c.bf16 %v4619, %v4618
        %v4633 = vpack.c.bf16 %v4621, %v4620
        %v4634 = vpack.c.bf16 %v4623, %v4622
        %v4635 = vpack.c.bf16 %v4625, %v4624
        %s4636 = scalar_lea.vmem %s3, 48
        %v4637 = vld [vmem:[%s4636] sm:$0xf]
        %v4638 = vld [vmem:[%s4636 + $0x4] sm:$0xf]
        %v4639 = vld [vmem:[%s4636 + $0x8] sm:$0xf]
        %v4640 = vld [vmem:[%s4636 + $0xc] sm:$0xf]
        %v4645 = vunpack.c.l.b16 %v4637
        %v4646 = vunpack.c.l.b16 %v4638
        %v4647 = vunpack.c.l.b16 %v4639
        %v4648 = vunpack.c.l.b16 %v4640
        %v4649 = vpack.c.b16 %v4646, %v4645
        %v4650 = vpack.c.b16 %v4648, %v4647
        %v4654 = vsel %vm3991, %v4626, 0
        %v4657 = vsel %vm3991, %v4627, 0
        %v4660 = vsel %vm3991, %v4628, 0
        %v4663 = vsel %vm3991, %v4629, 0
        %v4666 = vsel %vm3991, %v4630, 0
        %v4669 = vsel %vm3991, %v4631, 0
        %v4672 = vsel %vm3991, %v4632, 0
        %v4675 = vsel %vm3991, %v4633, 0
        %v4678 = vsel %vm3991, %v4634, 0
        %v4681 = vsel %vm3991, %v4635, 0
        %4683 = vmatprep.subr.bf16.mxu0 0
        %4684 = vmatpush1.bf16.msra.mxu0 %v4649
        %4685 = vmatprep.subr.bf16.mxu0 0
        %4686 = vmatpush1.bf16.msra.mxu0 %v4650
        %4687 = vmatprep.subr.bf16.mxu0 0
        %4688 = vmatpush1.bf16.msra.mxu0 0
        %4689 = vmatprep.subr.bf16.mxu0 0
        %4690 = vmatpush1.bf16.msra.mxu0 0
        %4691 = vmatprep.subr.bf16.mxu0 0
        %4692 = vmatpush1.bf16.msra.mxu0 0
        %4693 = vmatprep.subr.bf16.mxu0 0
        %4694 = vmatpush1.bf16.msra.mxu0 0
        %4695 = vmatprep.subr.bf16.mxu0 0
        %4696 = vmatpush1.bf16.msra.mxu0 0
        %4697 = vmatprep.subr.bf16.mxu0 0
        %4698 = vmatpush1.bf16.msra.mxu0 0
        %4699 = vmatprep.subr.bf16.mxu0 0
        %4700 = vmatpush1.bf16.msra.mxu0 0
        %4701 = vmatprep.subr.bf16.mxu0 0
        %4702 = vmatpush1.bf16.msra.mxu0 0
        %4703 = vmatprep.subr.bf16.mxu0 0
        %4704 = vmatpush1.bf16.msra.mxu0 0
        %4705 = vmatprep.subr.bf16.mxu0 0
        %4706 = vmatpush1.bf16.msra.mxu0 0
        %4707 = vmatprep.subr.bf16.mxu0 0
        %4708 = vmatpush1.bf16.msra.mxu0 0
        %4709 = vmatprep.subr.bf16.mxu0 0
        %4710 = vmatpush1.bf16.msra.mxu0 0
        %4711 = vmatprep.subr.bf16.mxu0 0
        %4712 = vmatpush1.bf16.msra.mxu0 0
        %4713 = vmatprep.subr.bf16.mxu0 0
        %4714 = vmatpush1.bf16.msra.mxu0 0
        %4715 = vmatprep.mubr.bf16.mxu0 0
        %4716 = vmatmul.mubr.bf16.gmra.mrb[0].mxu0 %v4654
        %v4717 = vpop.f32.mrb[0].mxu0
        %v4718 = vadd.f32 0.0, %v4717
        %v4719 = vpop.f32.mrb[0].mxu0
        %v4720 = vpop.f32.mrb[0].mxu0
        %v4721 = vadd.f32 0.0, %v4720
        %v4722 = vpop.f32.mrb[0].mxu0
        %4723 = vmatprep.mubr.bf16.mxu0 0
        %4724 = vmatmul.mubr.bf16.gmra.mrb[0].mxu0 %v4657
        %v4725 = vpop.f32.mrb[0].mxu0
        %v4726 = vadd.f32 0.0, %v4725
        %v4727 = vpop.f32.mrb[0].mxu0
        %v4728 = vpop.f32.mrb[0].mxu0
        %v4729 = vadd.f32 0.0, %v4728
        %v4730 = vpop.f32.mrb[0].mxu0
        %4731 = vmatprep.mubr.bf16.mxu0 0
        %4732 = vmatmul.mubr.bf16.gmra.mrb[0].mxu0 %v4660
        %v4733 = vpop.f32.mrb[0].mxu0
        %v4734 = vadd.f32 0.0, %v4733
        %v4735 = vpop.f32.mrb[0].mxu0
        %v4736 = vpop.f32.mrb[0].mxu0
        %v4737 = vadd.f32 0.0, %v4736
        %v4738 = vpop.f32.mrb[0].mxu0
        %4739 = vmatprep.mubr.bf16.mxu0 0
        %4740 = vmatmul.mubr.bf16.gmra.mrb[0].mxu0 %v4663
        %v4741 = vpop.f32.mrb[0].mxu0
        %v4742 = vadd.f32 0.0, %v4741
        %v4743 = vpop.f32.mrb[0].mxu0
        %v4744 = vpop.f32.mrb[0].mxu0
        %v4745 = vadd.f32 0.0, %v4744
        %v4746 = vpop.f32.mrb[0].mxu0
        %4747 = vmatprep.mubr.bf16.mxu0 0
        %4748 = vmatmul.mubr.bf16.gmra.mrb[0].mxu0 %v4666
        %v4749 = vpop.f32.mrb[0].mxu0
        %v4750 = vadd.f32 0.0, %v4749
        %v4751 = vpop.f32.mrb[0].mxu0
        %v4752 = vpop.f32.mrb[0].mxu0
        %v4753 = vadd.f32 0.0, %v4752
        %v4754 = vpop.f32.mrb[0].mxu0
        %4755 = vmatprep.mubr.bf16.mxu0 0
        %4756 = vmatmul.mubr.bf16.gmra.mrb[0].mxu0 %v4669
        %v4757 = vpop.f32.mrb[0].mxu0
        %v4758 = vadd.f32 0.0, %v4757
        %v4759 = vpop.f32.mrb[0].mxu0
        %v4760 = vpop.f32.mrb[0].mxu0
        %v4761 = vadd.f32 0.0, %v4760
        %v4762 = vpop.f32.mrb[0].mxu0
        %4763 = vmatprep.mubr.bf16.mxu0 0
        %4764 = vmatmul.mubr.bf16.gmra.mrb[0].mxu0 %v4672
        %v4765 = vpop.f32.mrb[0].mxu0
        %v4766 = vadd.f32 0.0, %v4765
        %v4767 = vpop.f32.mrb[0].mxu0
        %v4768 = vpop.f32.mrb[0].mxu0
        %v4769 = vadd.f32 0.0, %v4768
        %v4770 = vpop.f32.mrb[0].mxu0
        %4771 = vmatprep.mubr.bf16.mxu0 0
        %4772 = vmatmul.mubr.bf16.gmra.mrb[0].mxu0 %v4675
        %v4773 = vpop.f32.mrb[0].mxu0
        %v4774 = vadd.f32 0.0, %v4773
        %v4775 = vpop.f32.mrb[0].mxu0
        %v4776 = vpop.f32.mrb[0].mxu0
        %v4777 = vadd.f32 0.0, %v4776
        %v4778 = vpop.f32.mrb[0].mxu0
        %4779 = vmatprep.mubr.bf16.mxu0 0
        %4780 = vmatmul.mubr.bf16.gmra.mrb[0].mxu0 %v4678
        %v4781 = vpop.f32.mrb[0].mxu0
        %v4782 = vadd.f32 0.0, %v4781
        %v4783 = vpop.f32.mrb[0].mxu0
        %v4784 = vpop.f32.mrb[0].mxu0
        %v4785 = vadd.f32 0.0, %v4784
        %v4786 = vpop.f32.mrb[0].mxu0
        %4787 = vmatprep.mubr.bf16.mxu0 0
        %4788 = vmatmul.mubr.bf16.gmra.mrb[0].mxu0 %v4681
        %v4789 = vpop.f32.mrb[0].mxu0
        %v4790 = vadd.f32 0.0, %v4789
        %v4791 = vpop.f32.mrb[0].mxu0
        %v4792 = vpop.f32.mrb[0].mxu0
        %v4793 = vadd.f32 0.0, %v4792
        %v4794 = vpop.f32.mrb[0].mxu0
        %4795 = vdwg.mxu0
        %v4796 = vadd.f32 %v4585, %v4718
        %v4797 = vadd.f32 %v4586, %v4721
        %v4798 = vadd.f32 %v4587, %v4726
        %v4799 = vadd.f32 %v4588, %v4729
        %v4800 = vadd.f32 %v4589, %v4734
        %v4801 = vadd.f32 %v4590, %v4737
        %v4802 = vadd.f32 %v4591, %v4742
        %v4803 = vadd.f32 %v4592, %v4745
        %v4804 = vadd.f32 %v4593, %v4750
        %v4805 = vadd.f32 %v4594, %v4753
        %v4806 = vadd.f32 %v4595, %v4758
        %v4807 = vadd.f32 %v4596, %v4761
        %v4808 = vadd.f32 %v4597, %v4766
        %v4809 = vadd.f32 %v4598, %v4769
        %v4810 = vadd.f32 %v4599, %v4774
        %v4811 = vadd.f32 %v4600, %v4777
        %v4812 = vadd.f32 %v4601, %v4782
        %v4813 = vadd.f32 %v4602, %v4785
        %v4814 = vadd.f32 %v4603, %v4790
        %v4815 = vadd.f32 %v4604, %v4793
        %v4816 = vld [vmem:[%s4605 + $0x1] sm:$0xff]
        %v4817 = vld [vmem:[%s4605 + $0x9] sm:$0xff]
        %v4818 = vld [vmem:[%s4605 + $0x19] sm:$0xff]
        %v4819 = vld [vmem:[%s4605 + $0x21] sm:$0xff]
        %v4820 = vld [vmem:[%s4605 + $0x31] sm:$0xff]
        %v4821 = vld [vmem:[%s4605 + $0x39] sm:$0xff]
        %v4822 = vld [vmem:[%s4605 + $0x49] sm:$0xff]
        %v4823 = vld [vmem:[%s4605 + $0x51] sm:$0xff]
        %v4824 = vld [vmem:[%s4605 + $0x61] sm:$0xff]
        %v4825 = vld [vmem:[%s4605 + $0x69] sm:$0xff]
        %v4826 = vld [vmem:[%s4605 + $0x79] sm:$0xff]
        %v4827 = vld [vmem:[%s4605 + $0x81] sm:$0xff]
        %v4828 = vld [vmem:[%s4605 + $0x91] sm:$0xff]
        %v4829 = vld [vmem:[%s4605 + $0x99] sm:$0xff]
        %v4830 = vld [vmem:[%s4605 + $0xa9] sm:$0xff]
        %v4831 = vld [vmem:[%s4605 + $0xb1] sm:$0xff]
        %v4832 = vld [vmem:[%s4605 + $0xc1] sm:$0xff]
        %v4833 = vld [vmem:[%s4605 + $0xc9] sm:$0xff]
        %v4834 = vld [vmem:[%s4605 + $0xd9] sm:$0xff]
        %v4835 = vld [vmem:[%s4605 + $0xe1] sm:$0xff]
        %v4836 = vpack.c.bf16 %v4817, %v4816
        %v4837 = vpack.c.bf16 %v4819, %v4818
        %v4838 = vpack.c.bf16 %v4821, %v4820
        %v4839 = vpack.c.bf16 %v4823, %v4822
        %v4840 = vpack.c.bf16 %v4825, %v4824
        %v4841 = vpack.c.bf16 %v4827, %v4826
        %v4842 = vpack.c.bf16 %v4829, %v4828
        %v4843 = vpack.c.bf16 %v4831, %v4830
        %v4844 = vpack.c.bf16 %v4833, %v4832
        %v4845 = vpack.c.bf16 %v4835, %v4834
        %s4846 = scalar_lea.vmem %s3, 64
        %v4847 = vld [vmem:[%s4846] sm:$0xf]
        %v4848 = vld [vmem:[%s4846 + $0x4] sm:$0xf]
        %v4849 = vld [vmem:[%s4846 + $0x8] sm:$0xf]
        %v4850 = vld [vmem:[%s4846 + $0xc] sm:$0xf]
        %v4855 = vunpack.c.l.b16 %v4847
        %v4856 = vunpack.c.l.b16 %v4848
        %v4857 = vunpack.c.l.b16 %v4849
        %v4858 = vunpack.c.l.b16 %v4850
        %v4859 = vpack.c.b16 %v4856, %v4855
        %v4860 = vpack.c.b16 %v4858, %v4857
        %v4864 = vsel %vm3991, %v4836, 0
        %v4867 = vsel %vm3991, %v4837, 0
        %v4870 = vsel %vm3991, %v4838, 0
        %v4873 = vsel %vm3991, %v4839, 0
        %v4876 = vsel %vm3991, %v4840, 0
        %v4879 = vsel %vm3991, %v4841, 0
        %v4882 = vsel %vm3991, %v4842, 0
        %v4885 = vsel %vm3991, %v4843, 0
        %v4888 = vsel %vm3991, %v4844, 0
        %v4891 = vsel %vm3991, %v4845, 0
        %4893 = vmatprep.subr.bf16.mxu0 0
        %4894 = vmatpush1.bf16.msra.mxu0 %v4859
        %4895 = vmatprep.subr.bf16.mxu0 0
        %4896 = vmatpush1.bf16.msra.mxu0 %v4860
        %4897 = vmatprep.subr.bf16.mxu0 0
        %4898 = vmatpush1.bf16.msra.mxu0 0
        %4899 = vmatprep.subr.bf16.mxu0 0
        %4900 = vmatpush1.bf16.msra.mxu0 0
        %4901 = vmatprep.subr.bf16.mxu0 0
        %4902 = vmatpush1.bf16.msra.mxu0 0
        %4903 = vmatprep.subr.bf16.mxu0 0
        %4904 = vmatpush1.bf16.msra.mxu0 0
        %4905 = vmatprep.subr.bf16.mxu0 0
        %4906 = vmatpush1.bf16.msra.mxu0 0
        %4907 = vmatprep.subr.bf16.mxu0 0
        %4908 = vmatpush1.bf16.msra.mxu0 0
        %4909 = vmatprep.subr.bf16.mxu0 0
        %4910 = vmatpush1.bf16.msra.mxu0 0
        %4911 = vmatprep.subr.bf16.mxu0 0
        %4912 = vmatpush1.bf16.msra.mxu0 0
        %4913 = vmatprep.subr.bf16.mxu0 0
        %4914 = vmatpush1.bf16.msra.mxu0 0
        %4915 = vmatprep.subr.bf16.mxu0 0
        %4916 = vmatpush1.bf16.msra.mxu0 0
        %4917 = vmatprep.subr.bf16.mxu0 0
        %4918 = vmatpush1.bf16.msra.mxu0 0
        %4919 = vmatprep.subr.bf16.mxu0 0
        %4920 = vmatpush1.bf16.msra.mxu0 0
        %4921 = vmatprep.subr.bf16.mxu0 0
        %4922 = vmatpush1.bf16.msra.mxu0 0
        %4923 = vmatprep.subr.bf16.mxu0 0
        %4924 = vmatpush1.bf16.msra.mxu0 0
        %4925 = vmatprep.mubr.bf16.mxu0 0
        %4926 = vmatmul.mubr.bf16.gmra.mrb[0].mxu0 %v4864
        %v4927 = vpop.f32.mrb[0].mxu0
        %v4928 = vadd.f32 0.0, %v4927
        %v4929 = vpop.f32.mrb[0].mxu0
        %v4930 = vpop.f32.mrb[0].mxu0
        %v4931 = vadd.f32 0.0, %v4930
        %v4932 = vpop.f32.mrb[0].mxu0
        %4933 = vmatprep.mubr.bf16.mxu0 0
        %4934 = vmatmul.mubr.bf16.gmra.mrb[0].mxu0 %v4867
        %v4935 = vpop.f32.mrb[0].mxu0
        %v4936 = vadd.f32 0.0, %v4935
        %v4937 = vpop.f32.mrb[0].mxu0
        %v4938 = vpop.f32.mrb[0].mxu0
        %v4939 = vadd.f32 0.0, %v4938
        %v4940 = vpop.f32.mrb[0].mxu0
        %4941 = vmatprep.mubr.bf16.mxu0 0
        %4942 = vmatmul.mubr.bf16.gmra.mrb[0].mxu0 %v4870
        %v4943 = vpop.f32.mrb[0].mxu0
        %v4944 = vadd.f32 0.0, %v4943
        %v4945 = vpop.f32.mrb[0].mxu0
        %v4946 = vpop.f32.mrb[0].mxu0
        %v4947 = vadd.f32 0.0, %v4946
        %v4948 = vpop.f32.mrb[0].mxu0
        %4949 = vmatprep.mubr.bf16.mxu0 0
        %4950 = vmatmul.mubr.bf16.gmra.mrb[0].mxu0 %v4873
        %v4951 = vpop.f32.mrb[0].mxu0
        %v4952 = vadd.f32 0.0, %v4951
        %v4953 = vpop.f32.mrb[0].mxu0
        %v4954 = vpop.f32.mrb[0].mxu0
        %v4955 = vadd.f32 0.0, %v4954
        %v4956 = vpop.f32.mrb[0].mxu0
        %4957 = vmatprep.mubr.bf16.mxu0 0
        %4958 = vmatmul.mubr.bf16.gmra.mrb[0].mxu0 %v4876
        %v4959 = vpop.f32.mrb[0].mxu0
        %v4960 = vadd.f32 0.0, %v4959
        %v4961 = vpop.f32.mrb[0].mxu0
        %v4962 = vpop.f32.mrb[0].mxu0
        %v4963 = vadd.f32 0.0, %v4962
        %v4964 = vpop.f32.mrb[0].mxu0
        %4965 = vmatprep.mubr.bf16.mxu0 0
        %4966 = vmatmul.mubr.bf16.gmra.mrb[0].mxu0 %v4879
        %v4967 = vpop.f32.mrb[0].mxu0
        %v4968 = vadd.f32 0.0, %v4967
        %v4969 = vpop.f32.mrb[0].mxu0
        %v4970 = vpop.f32.mrb[0].mxu0
        %v4971 = vadd.f32 0.0, %v4970
        %v4972 = vpop.f32.mrb[0].mxu0
        %4973 = vmatprep.mubr.bf16.mxu0 0
        %4974 = vmatmul.mubr.bf16.gmra.mrb[0].mxu0 %v4882
        %v4975 = vpop.f32.mrb[0].mxu0
        %v4976 = vadd.f32 0.0, %v4975
        %v4977 = vpop.f32.mrb[0].mxu0
        %v4978 = vpop.f32.mrb[0].mxu0
        %v4979 = vadd.f32 0.0, %v4978
        %v4980 = vpop.f32.mrb[0].mxu0
        %4981 = vmatprep.mubr.bf16.mxu0 0
        %4982 = vmatmul.mubr.bf16.gmra.mrb[0].mxu0 %v4885
        %v4983 = vpop.f32.mrb[0].mxu0
        %v4984 = vadd.f32 0.0, %v4983
        %v4985 = vpop.f32.mrb[0].mxu0
        %v4986 = vpop.f32.mrb[0].mxu0
        %v4987 = vadd.f32 0.0, %v4986
        %v4988 = vpop.f32.mrb[0].mxu0
        %4989 = vmatprep.mubr.bf16.mxu0 0
        %4990 = vmatmul.mubr.bf16.gmra.mrb[0].mxu0 %v4888
        %v4991 = vpop.f32.mrb[0].mxu0
        %v4992 = vadd.f32 0.0, %v4991
        %v4993 = vpop.f32.mrb[0].mxu0
        %v4994 = vpop.f32.mrb[0].mxu0
        %v4995 = vadd.f32 0.0, %v4994
        %v4996 = vpop.f32.mrb[0].mxu0
        %4997 = vmatprep.mubr.bf16.mxu0 0
        %4998 = vmatmul.mubr.bf16.gmra.mrb[0].mxu0 %v4891
        %v4999 = vpop.f32.mrb[0].mxu0
        %v5000 = vadd.f32 0.0, %v4999
        %v5001 = vpop.f32.mrb[0].mxu0
        %v5002 = vpop.f32.mrb[0].mxu0
        %v5003 = vadd.f32 0.0, %v5002
        %v5004 = vpop.f32.mrb[0].mxu0
        %5005 = vdwg.mxu0
        %v5006 = vadd.f32 %v4796, %v4928
        %v5007 = vadd.f32 %v4797, %v4931
        %v5008 = vadd.f32 %v4798, %v4936
        %v5009 = vadd.f32 %v4799, %v4939
        %v5010 = vadd.f32 %v4800, %v4944
        %v5011 = vadd.f32 %v4801, %v4947
        %v5012 = vadd.f32 %v4802, %v4952
        %v5013 = vadd.f32 %v4803, %v4955
        %v5014 = vadd.f32 %v4804, %v4960
        %v5015 = vadd.f32 %v4805, %v4963
        %v5016 = vadd.f32 %v4806, %v4968
        %v5017 = vadd.f32 %v4807, %v4971
        %v5018 = vadd.f32 %v4808, %v4976
        %v5019 = vadd.f32 %v4809, %v4979
        %v5020 = vadd.f32 %v4810, %v4984
        %v5021 = vadd.f32 %v4811, %v4987
        %v5022 = vadd.f32 %v4812, %v4992
        %v5023 = vadd.f32 %v4813, %v4995
        %v5024 = vadd.f32 %v4814, %v5000
        %v5025 = vadd.f32 %v4815, %v5003
        %v5026 = vld [vmem:[%s4605 + $0x2] sm:$0xff]
        %v5027 = vld [vmem:[%s4605 + $0xa] sm:$0xff]
        %v5028 = vld [vmem:[%s4605 + $0x1a] sm:$0xff]
        %v5029 = vld [vmem:[%s4605 + $0x22] sm:$0xff]
        %v5030 = vld [vmem:[%s4605 + $0x32] sm:$0xff]
        %v5031 = vld [vmem:[%s4605 + $0x3a] sm:$0xff]
        %v5032 = vld [vmem:[%s4605 + $0x4a] sm:$0xff]
        %v5033 = vld [vmem:[%s4605 + $0x52] sm:$0xff]
        %v5034 = vld [vmem:[%s4605 + $0x62] sm:$0xff]
        %v5035 = vld [vmem:[%s4605 + $0x6a] sm:$0xff]
        %v5036 = vld [vmem:[%s4605 + $0x7a] sm:$0xff]
        %v5037 = vld [vmem:[%s4605 + $0x82] sm:$0xff]
        %v5038 = vld [vmem:[%s4605 + $0x92] sm:$0xff]
        %v5039 = vld [vmem:[%s4605 + $0x9a] sm:$0xff]
        %v5040 = vld [vmem:[%s4605 + $0xaa] sm:$0xff]
        %v5041 = vld [vmem:[%s4605 + $0xb2] sm:$0xff]
        %v5042 = vld [vmem:[%s4605 + $0xc2] sm:$0xff]
        %v5043 = vld [vmem:[%s4605 + $0xca] sm:$0xff]
        %v5044 = vld [vmem:[%s4605 + $0xda] sm:$0xff]
        %v5045 = vld [vmem:[%s4605 + $0xe2] sm:$0xff]
        %v5046 = vpack.c.bf16 %v5027, %v5026
        %v5047 = vpack.c.bf16 %v5029, %v5028
        %v5048 = vpack.c.bf16 %v5031, %v5030
        %v5049 = vpack.c.bf16 %v5033, %v5032
        %v5050 = vpack.c.bf16 %v5035, %v5034
        %v5051 = vpack.c.bf16 %v5037, %v5036
        %v5052 = vpack.c.bf16 %v5039, %v5038
        %v5053 = vpack.c.bf16 %v5041, %v5040
        %v5054 = vpack.c.bf16 %v5043, %v5042
        %v5055 = vpack.c.bf16 %v5045, %v5044
        %s5056 = scalar_lea.vmem %s3, 80
        %v5057 = vld [vmem:[%s5056] sm:$0xf]
        %v5058 = vld [vmem:[%s5056 + $0x4] sm:$0xf]
        %v5059 = vld [vmem:[%s5056 + $0x8] sm:$0xf]
        %v5060 = vld [vmem:[%s5056 + $0xc] sm:$0xf]
        %v5065 = vunpack.c.l.b16 %v5057
        %v5066 = vunpack.c.l.b16 %v5058
        %v5067 = vunpack.c.l.b16 %v5059
        %v5068 = vunpack.c.l.b16 %v5060
        %v5069 = vpack.c.b16 %v5066, %v5065
        %v5070 = vpack.c.b16 %v5068, %v5067
        %v5074 = vsel %vm3991, %v5046, 0
        %v5077 = vsel %vm3991, %v5047, 0
        %v5080 = vsel %vm3991, %v5048, 0
        %v5083 = vsel %vm3991, %v5049, 0
        %v5086 = vsel %vm3991, %v5050, 0
        %v5089 = vsel %vm3991, %v5051, 0
        %v5092 = vsel %vm3991, %v5052, 0
        %v5095 = vsel %vm3991, %v5053, 0
        %v5098 = vsel %vm3991, %v5054, 0
        %v5101 = vsel %vm3991, %v5055, 0
        %5103 = vmatprep.subr.bf16.mxu0 0
        %5104 = vmatpush1.bf16.msra.mxu0 %v5069
        %5105 = vmatprep.subr.bf16.mxu0 0
        %5106 = vmatpush1.bf16.msra.mxu0 %v5070
        %5107 = vmatprep.subr.bf16.mxu0 0
        %5108 = vmatpush1.bf16.msra.mxu0 0
        %5109 = vmatprep.subr.bf16.mxu0 0
        %5110 = vmatpush1.bf16.msra.mxu0 0
        %5111 = vmatprep.subr.bf16.mxu0 0
        %5112 = vmatpush1.bf16.msra.mxu0 0
        %5113 = vmatprep.subr.bf16.mxu0 0
        %5114 = vmatpush1.bf16.msra.mxu0 0
        %5115 = vmatprep.subr.bf16.mxu0 0
        %5116 = vmatpush1.bf16.msra.mxu0 0
        %5117 = vmatprep.subr.bf16.mxu0 0
        %5118 = vmatpush1.bf16.msra.mxu0 0
        %5119 = vmatprep.subr.bf16.mxu0 0
        %5120 = vmatpush1.bf16.msra.mxu0 0
        %5121 = vmatprep.subr.bf16.mxu0 0
        %5122 = vmatpush1.bf16.msra.mxu0 0
        %5123 = vmatprep.subr.bf16.mxu0 0
        %5124 = vmatpush1.bf16.msra.mxu0 0
        %5125 = vmatprep.subr.bf16.mxu0 0
        %5126 = vmatpush1.bf16.msra.mxu0 0
        %5127 = vmatprep.subr.bf16.mxu0 0
        %5128 = vmatpush1.bf16.msra.mxu0 0
        %5129 = vmatprep.subr.bf16.mxu0 0
        %5130 = vmatpush1.bf16.msra.mxu0 0
        %5131 = vmatprep.subr.bf16.mxu0 0
        %5132 = vmatpush1.bf16.msra.mxu0 0
        %5133 = vmatprep.subr.bf16.mxu0 0
        %5134 = vmatpush1.bf16.msra.mxu0 0
        %5135 = vmatprep.mubr.bf16.mxu0 0
        %5136 = vmatmul.mubr.bf16.gmra.mrb[0].mxu0 %v5074
        %v5137 = vpop.f32.mrb[0].mxu0
        %v5138 = vadd.f32 0.0, %v5137
        %v5139 = vpop.f32.mrb[0].mxu0
        %v5140 = vpop.f32.mrb[0].mxu0
        %v5141 = vadd.f32 0.0, %v5140
        %v5142 = vpop.f32.mrb[0].mxu0
        %5143 = vmatprep.mubr.bf16.mxu0 0
        %5144 = vmatmul.mubr.bf16.gmra.mrb[0].mxu0 %v5077
        %v5145 = vpop.f32.mrb[0].mxu0
        %v5146 = vadd.f32 0.0, %v5145
        %v5147 = vpop.f32.mrb[0].mxu0
        %v5148 = vpop.f32.mrb[0].mxu0
        %v5149 = vadd.f32 0.0, %v5148
        %v5150 = vpop.f32.mrb[0].mxu0
        %5151 = vmatprep.mubr.bf16.mxu0 0
        %5152 = vmatmul.mubr.bf16.gmra.mrb[0].mxu0 %v5080
        %v5153 = vpop.f32.mrb[0].mxu0
        %v5154 = vadd.f32 0.0, %v5153
        %v5155 = vpop.f32.mrb[0].mxu0
        %v5156 = vpop.f32.mrb[0].mxu0
        %v5157 = vadd.f32 0.0, %v5156
        %v5158 = vpop.f32.mrb[0].mxu0
        %5159 = vmatprep.mubr.bf16.mxu0 0
        %5160 = vmatmul.mubr.bf16.gmra.mrb[0].mxu0 %v5083
        %v5161 = vpop.f32.mrb[0].mxu0
        %v5162 = vadd.f32 0.0, %v5161
        %v5163 = vpop.f32.mrb[0].mxu0
        %v5164 = vpop.f32.mrb[0].mxu0
        %v5165 = vadd.f32 0.0, %v5164
        %v5166 = vpop.f32.mrb[0].mxu0
        %5167 = vmatprep.mubr.bf16.mxu0 0
        %5168 = vmatmul.mubr.bf16.gmra.mrb[0].mxu0 %v5086
        %v5169 = vpop.f32.mrb[0].mxu0
        %v5170 = vadd.f32 0.0, %v5169
        %v5171 = vpop.f32.mrb[0].mxu0
        %v5172 = vpop.f32.mrb[0].mxu0
        %v5173 = vadd.f32 0.0, %v5172
        %v5174 = vpop.f32.mrb[0].mxu0
        %5175 = vmatprep.mubr.bf16.mxu0 0
        %5176 = vmatmul.mubr.bf16.gmra.mrb[0].mxu0 %v5089
        %v5177 = vpop.f32.mrb[0].mxu0
        %v5178 = vadd.f32 0.0, %v5177
        %v5179 = vpop.f32.mrb[0].mxu0
        %v5180 = vpop.f32.mrb[0].mxu0
        %v5181 = vadd.f32 0.0, %v5180
        %v5182 = vpop.f32.mrb[0].mxu0
        %5183 = vmatprep.mubr.bf16.mxu0 0
        %5184 = vmatmul.mubr.bf16.gmra.mrb[0].mxu0 %v5092
        %v5185 = vpop.f32.mrb[0].mxu0
        %v5186 = vadd.f32 0.0, %v5185
        %v5187 = vpop.f32.mrb[0].mxu0
        %v5188 = vpop.f32.mrb[0].mxu0
        %v5189 = vadd.f32 0.0, %v5188
        %v5190 = vpop.f32.mrb[0].mxu0
        %5191 = vmatprep.mubr.bf16.mxu0 0
        %5192 = vmatmul.mubr.bf16.gmra.mrb[0].mxu0 %v5095
        %v5193 = vpop.f32.mrb[0].mxu0
        %v5194 = vadd.f32 0.0, %v5193
        %v5195 = vpop.f32.mrb[0].mxu0
        %v5196 = vpop.f32.mrb[0].mxu0
        %v5197 = vadd.f32 0.0, %v5196
        %v5198 = vpop.f32.mrb[0].mxu0
        %5199 = vmatprep.mubr.bf16.mxu0 0
        %5200 = vmatmul.mubr.bf16.gmra.mrb[0].mxu0 %v5098
        %v5201 = vpop.f32.mrb[0].mxu0
        %v5202 = vadd.f32 0.0, %v5201
        %v5203 = vpop.f32.mrb[0].mxu0
        %v5204 = vpop.f32.mrb[0].mxu0
        %v5205 = vadd.f32 0.0, %v5204
        %v5206 = vpop.f32.mrb[0].mxu0
        %5207 = vmatprep.mubr.bf16.mxu0 0
        %5208 = vmatmul.mubr.bf16.gmra.mrb[0].mxu0 %v5101
        %v5209 = vpop.f32.mrb[0].mxu0
        %v5210 = vadd.f32 0.0, %v5209
        %v5211 = vpop.f32.mrb[0].mxu0
        %v5212 = vpop.f32.mrb[0].mxu0
        %v5213 = vadd.f32 0.0, %v5212
        %v5214 = vpop.f32.mrb[0].mxu0
        %5215 = vdwg.mxu0
        %v5216 = vadd.f32 %v5006, %v5138
        %v5217 = vadd.f32 %v5007, %v5141
        %v5218 = vadd.f32 %v5008, %v5146
        %v5219 = vadd.f32 %v5009, %v5149
        %v5220 = vadd.f32 %v5010, %v5154
        %v5221 = vadd.f32 %v5011, %v5157
        %v5222 = vadd.f32 %v5012, %v5162
        %v5223 = vadd.f32 %v5013, %v5165
        %v5224 = vadd.f32 %v5014, %v5170
        %v5225 = vadd.f32 %v5015, %v5173
        %v5226 = vadd.f32 %v5016, %v5178
        %v5227 = vadd.f32 %v5017, %v5181
        %v5228 = vadd.f32 %v5018, %v5186
        %v5229 = vadd.f32 %v5019, %v5189
        %v5230 = vadd.f32 %v5020, %v5194
        %v5231 = vadd.f32 %v5021, %v5197
        %v5232 = vadd.f32 %v5022, %v5202
        %v5233 = vadd.f32 %v5023, %v5205
        %v5234 = vadd.f32 %v5024, %v5210
        %v5235 = vadd.f32 %v5025, %v5213
        %s5236 = scalar_lea.vmem [#allocation2], 48
        %v5237 = vld [vmem:[%s5236] sm:$0xff]
        %v5238 = vld [vmem:[%s5236 + $0x8] sm:$0xff]
        %v5239 = vld [vmem:[%s5236 + $0x18] sm:$0xff]
        %v5240 = vld [vmem:[%s5236 + $0x20] sm:$0xff]
        %v5241 = vld [vmem:[%s5236 + $0x30] sm:$0xff]
        %v5242 = vld [vmem:[%s5236 + $0x38] sm:$0xff]
        %v5243 = vld [vmem:[%s5236 + $0x48] sm:$0xff]
        %v5244 = vld [vmem:[%s5236 + $0x50] sm:$0xff]
        %v5245 = vld [vmem:[%s5236 + $0x60] sm:$0xff]
        %v5246 = vld [vmem:[%s5236 + $0x68] sm:$0xff]
        %v5247 = vld [vmem:[%s5236 + $0x78] sm:$0xff]
        %v5248 = vld [vmem:[%s5236 + $0x80] sm:$0xff]
        %v5249 = vld [vmem:[%s5236 + $0x90] sm:$0xff]
        %v5250 = vld [vmem:[%s5236 + $0x98] sm:$0xff]
        %v5251 = vld [vmem:[%s5236 + $0xa8] sm:$0xff]
        %v5252 = vld [vmem:[%s5236 + $0xb0] sm:$0xff]
        %v5253 = vld [vmem:[%s5236 + $0xc0] sm:$0xff]
        %v5254 = vld [vmem:[%s5236 + $0xc8] sm:$0xff]
        %v5255 = vld [vmem:[%s5236 + $0xd8] sm:$0xff]
        %v5256 = vld [vmem:[%s5236 + $0xe0] sm:$0xff]
        %v5257 = vpack.c.bf16 %v5238, %v5237
        %v5258 = vpack.c.bf16 %v5240, %v5239
        %v5259 = vpack.c.bf16 %v5242, %v5241
        %v5260 = vpack.c.bf16 %v5244, %v5243
        %v5261 = vpack.c.bf16 %v5246, %v5245
        %v5262 = vpack.c.bf16 %v5248, %v5247
        %v5263 = vpack.c.bf16 %v5250, %v5249
        %v5264 = vpack.c.bf16 %v5252, %v5251
        %v5265 = vpack.c.bf16 %v5254, %v5253
        %v5266 = vpack.c.bf16 %v5256, %v5255
        %s5267 = scalar_lea.vmem %s3, 96
        %v5268 = vld [vmem:[%s5267] sm:$0xf]
        %v5269 = vld [vmem:[%s5267 + $0x4] sm:$0xf]
        %v5270 = vld [vmem:[%s5267 + $0x8] sm:$0xf]
        %v5271 = vld [vmem:[%s5267 + $0xc] sm:$0xf]
        %v5276 = vunpack.c.l.b16 %v5268
        %v5277 = vunpack.c.l.b16 %v5269
        %v5278 = vunpack.c.l.b16 %v5270
        %v5279 = vunpack.c.l.b16 %v5271
        %v5280 = vpack.c.b16 %v5277, %v5276
        %v5281 = vpack.c.b16 %v5279, %v5278
        %v5285 = vsel %vm3991, %v5257, 0
        %v5288 = vsel %vm3991, %v5258, 0
        %v5291 = vsel %vm3991, %v5259, 0
        %v5294 = vsel %vm3991, %v5260, 0
        %v5297 = vsel %vm3991, %v5261, 0
        %v5300 = vsel %vm3991, %v5262, 0
        %v5303 = vsel %vm3991, %v5263, 0
        %v5306 = vsel %vm3991, %v5264, 0
        %v5309 = vsel %vm3991, %v5265, 0
        %v5312 = vsel %vm3991, %v5266, 0
        %5314 = vmatprep.subr.bf16.mxu0 0
        %5315 = vmatpush1.bf16.msra.mxu0 %v5280
        %5316 = vmatprep.subr.bf16.mxu0 0
        %5317 = vmatpush1.bf16.msra.mxu0 %v5281
        %5318 = vmatprep.subr.bf16.mxu0 0
        %5319 = vmatpush1.bf16.msra.mxu0 0
        %5320 = vmatprep.subr.bf16.mxu0 0
        %5321 = vmatpush1.bf16.msra.mxu0 0
        %5322 = vmatprep.subr.bf16.mxu0 0
        %5323 = vmatpush1.bf16.msra.mxu0 0
        %5324 = vmatprep.subr.bf16.mxu0 0
        %5325 = vmatpush1.bf16.msra.mxu0 0
        %5326 = vmatprep.subr.bf16.mxu0 0
        %5327 = vmatpush1.bf16.msra.mxu0 0
        %5328 = vmatprep.subr.bf16.mxu0 0
        %5329 = vmatpush1.bf16.msra.mxu0 0
        %5330 = vmatprep.subr.bf16.mxu0 0
        %5331 = vmatpush1.bf16.msra.mxu0 0
        %5332 = vmatprep.subr.bf16.mxu0 0
        %5333 = vmatpush1.bf16.msra.mxu0 0
        %5334 = vmatprep.subr.bf16.mxu0 0
        %5335 = vmatpush1.bf16.msra.mxu0 0
        %5336 = vmatprep.subr.bf16.mxu0 0
        %5337 = vmatpush1.bf16.msra.mxu0 0
        %5338 = vmatprep.subr.bf16.mxu0 0
        %5339 = vmatpush1.bf16.msra.mxu0 0
        %5340 = vmatprep.subr.bf16.mxu0 0
        %5341 = vmatpush1.bf16.msra.mxu0 0
        %5342 = vmatprep.subr.bf16.mxu0 0
        %5343 = vmatpush1.bf16.msra.mxu0 0
        %5344 = vmatprep.subr.bf16.mxu0 0
        %5345 = vmatpush1.bf16.msra.mxu0 0
        %5346 = vmatprep.mubr.bf16.mxu0 0
        %5347 = vmatmul.mubr.bf16.gmra.mrb[0].mxu0 %v5285
        %v5348 = vpop.f32.mrb[0].mxu0
        %v5349 = vadd.f32 0.0, %v5348
        %v5350 = vpop.f32.mrb[0].mxu0
        %v5351 = vpop.f32.mrb[0].mxu0
        %v5352 = vadd.f32 0.0, %v5351
        %v5353 = vpop.f32.mrb[0].mxu0
        %5354 = vmatprep.mubr.bf16.mxu0 0
        %5355 = vmatmul.mubr.bf16.gmra.mrb[0].mxu0 %v5288
        %v5356 = vpop.f32.mrb[0].mxu0
        %v5357 = vadd.f32 0.0, %v5356
        %v5358 = vpop.f32.mrb[0].mxu0
        %v5359 = vpop.f32.mrb[0].mxu0
        %v5360 = vadd.f32 0.0, %v5359
        %v5361 = vpop.f32.mrb[0].mxu0
        %5362 = vmatprep.mubr.bf16.mxu0 0
        %5363 = vmatmul.mubr.bf16.gmra.mrb[0].mxu0 %v5291
        %v5364 = vpop.f32.mrb[0].mxu0
        %v5365 = vadd.f32 0.0, %v5364
        %v5366 = vpop.f32.mrb[0].mxu0
        %v5367 = vpop.f32.mrb[0].mxu0
        %v5368 = vadd.f32 0.0, %v5367
        %v5369 = vpop.f32.mrb[0].mxu0
        %5370 = vmatprep.mubr.bf16.mxu0 0
        %5371 = vmatmul.mubr.bf16.gmra.mrb[0].mxu0 %v5294
        %v5372 = vpop.f32.mrb[0].mxu0
        %v5373 = vadd.f32 0.0, %v5372
        %v5374 = vpop.f32.mrb[0].mxu0
        %v5375 = vpop.f32.mrb[0].mxu0
        %v5376 = vadd.f32 0.0, %v5375
        %v5377 = vpop.f32.mrb[0].mxu0
        %5378 = vmatprep.mubr.bf16.mxu0 0
        %5379 = vmatmul.mubr.bf16.gmra.mrb[0].mxu0 %v5297
        %v5380 = vpop.f32.mrb[0].mxu0
        %v5381 = vadd.f32 0.0, %v5380
        %v5382 = vpop.f32.mrb[0].mxu0
        %v5383 = vpop.f32.mrb[0].mxu0
        %v5384 = vadd.f32 0.0, %v5383
        %v5385 = vpop.f32.mrb[0].mxu0
        %5386 = vmatprep.mubr.bf16.mxu0 0
        %5387 = vmatmul.mubr.bf16.gmra.mrb[0].mxu0 %v5300
        %v5388 = vpop.f32.mrb[0].mxu0
        %v5389 = vadd.f32 0.0, %v5388
        %v5390 = vpop.f32.mrb[0].mxu0
        %v5391 = vpop.f32.mrb[0].mxu0
        %v5392 = vadd.f32 0.0, %v5391
        %v5393 = vpop.f32.mrb[0].mxu0
        %5394 = vmatprep.mubr.bf16.mxu0 0
        %5395 = vmatmul.mubr.bf16.gmra.mrb[0].mxu0 %v5303
        %v5396 = vpop.f32.mrb[0].mxu0
        %v5397 = vadd.f32 0.0, %v5396
        %v5398 = vpop.f32.mrb[0].mxu0
        %v5399 = vpop.f32.mrb[0].mxu0
        %v5400 = vadd.f32 0.0, %v5399
        %v5401 = vpop.f32.mrb[0].mxu0
        %5402 = vmatprep.mubr.bf16.mxu0 0
        %5403 = vmatmul.mubr.bf16.gmra.mrb[0].mxu0 %v5306
        %v5404 = vpop.f32.mrb[0].mxu0
        %v5405 = vadd.f32 0.0, %v5404
        %v5406 = vpop.f32.mrb[0].mxu0
        %v5407 = vpop.f32.mrb[0].mxu0
        %v5408 = vadd.f32 0.0, %v5407
        %v5409 = vpop.f32.mrb[0].mxu0
        %5410 = vmatprep.mubr.bf16.mxu0 0
        %5411 = vmatmul.mubr.bf16.gmra.mrb[0].mxu0 %v5309
        %v5412 = vpop.f32.mrb[0].mxu0
        %v5413 = vadd.f32 0.0, %v5412
        %v5414 = vpop.f32.mrb[0].mxu0
        %v5415 = vpop.f32.mrb[0].mxu0
        %v5416 = vadd.f32 0.0, %v5415
        %v5417 = vpop.f32.mrb[0].mxu0
        %5418 = vmatprep.mubr.bf16.mxu0 0
        %5419 = vmatmul.mubr.bf16.gmra.mrb[0].mxu0 %v5312
        %v5420 = vpop.f32.mrb[0].mxu0
        %v5421 = vadd.f32 0.0, %v5420
        %v5422 = vpop.f32.mrb[0].mxu0
        %v5423 = vpop.f32.mrb[0].mxu0
        %v5424 = vadd.f32 0.0, %v5423
        %v5425 = vpop.f32.mrb[0].mxu0
        %5426 = vdwg.mxu0
        %v5427 = vadd.f32 %v5216, %v5349
        %v5428 = vadd.f32 %v5217, %v5352
        %v5429 = vadd.f32 %v5218, %v5357
        %v5430 = vadd.f32 %v5219, %v5360
        %v5431 = vadd.f32 %v5220, %v5365
        %v5432 = vadd.f32 %v5221, %v5368
        %v5433 = vadd.f32 %v5222, %v5373
        %v5434 = vadd.f32 %v5223, %v5376
        %v5435 = vadd.f32 %v5224, %v5381
        %v5436 = vadd.f32 %v5225, %v5384
        %v5437 = vadd.f32 %v5226, %v5389
        %v5438 = vadd.f32 %v5227, %v5392
        %v5439 = vadd.f32 %v5228, %v5397
        %v5440 = vadd.f32 %v5229, %v5400
        %v5441 = vadd.f32 %v5230, %v5405
        %v5442 = vadd.f32 %v5231, %v5408
        %v5443 = vadd.f32 %v5232, %v5413
        %v5444 = vadd.f32 %v5233, %v5416
        %v5445 = vadd.f32 %v5234, %v5421
        %v5446 = vadd.f32 %v5235, %v5424
        %v5447 = vld [vmem:[%s5236 + $0x1] sm:$0xff]
        %v5448 = vld [vmem:[%s5236 + $0x9] sm:$0xff]
        %v5449 = vld [vmem:[%s5236 + $0x19] sm:$0xff]
        %v5450 = vld [vmem:[%s5236 + $0x21] sm:$0xff]
        %v5451 = vld [vmem:[%s5236 + $0x31] sm:$0xff]
        %v5452 = vld [vmem:[%s5236 + $0x39] sm:$0xff]
        %v5453 = vld [vmem:[%s5236 + $0x49] sm:$0xff]
        %v5454 = vld [vmem:[%s5236 + $0x51] sm:$0xff]
        %v5455 = vld [vmem:[%s5236 + $0x61] sm:$0xff]
        %v5456 = vld [vmem:[%s5236 + $0x69] sm:$0xff]
        %v5457 = vld [vmem:[%s5236 + $0x79] sm:$0xff]
        %v5458 = vld [vmem:[%s5236 + $0x81] sm:$0xff]
        %v5459 = vld [vmem:[%s5236 + $0x91] sm:$0xff]
        %v5460 = vld [vmem:[%s5236 + $0x99] sm:$0xff]
        %v5461 = vld [vmem:[%s5236 + $0xa9] sm:$0xff]
        %v5462 = vld [vmem:[%s5236 + $0xb1] sm:$0xff]
        %v5463 = vld [vmem:[%s5236 + $0xc1] sm:$0xff]
        %v5464 = vld [vmem:[%s5236 + $0xc9] sm:$0xff]
        %v5465 = vld [vmem:[%s5236 + $0xd9] sm:$0xff]
        %v5466 = vld [vmem:[%s5236 + $0xe1] sm:$0xff]
        %v5467 = vpack.c.bf16 %v5448, %v5447
        %v5468 = vpack.c.bf16 %v5450, %v5449
        %v5469 = vpack.c.bf16 %v5452, %v5451
        %v5470 = vpack.c.bf16 %v5454, %v5453
        %v5471 = vpack.c.bf16 %v5456, %v5455
        %v5472 = vpack.c.bf16 %v5458, %v5457
        %v5473 = vpack.c.bf16 %v5460, %v5459
        %v5474 = vpack.c.bf16 %v5462, %v5461
        %v5475 = vpack.c.bf16 %v5464, %v5463
        %v5476 = vpack.c.bf16 %v5466, %v5465
        %s5477 = scalar_lea.vmem %s3, 112
        %v5478 = vld [vmem:[%s5477] sm:$0xf]
        %v5479 = vld [vmem:[%s5477 + $0x4] sm:$0xf]
        %v5480 = vld [vmem:[%s5477 + $0x8] sm:$0xf]
        %v5481 = vld [vmem:[%s5477 + $0xc] sm:$0xf]
        %v5486 = vunpack.c.l.b16 %v5478
        %v5487 = vunpack.c.l.b16 %v5479
        %v5488 = vunpack.c.l.b16 %v5480
        %v5489 = vunpack.c.l.b16 %v5481
        %v5490 = vpack.c.b16 %v5487, %v5486
        %v5491 = vpack.c.b16 %v5489, %v5488
        %v5495 = vsel %vm3991, %v5467, 0
        %v5498 = vsel %vm3991, %v5468, 0
        %v5501 = vsel %vm3991, %v5469, 0
        %v5504 = vsel %vm3991, %v5470, 0
        %v5507 = vsel %vm3991, %v5471, 0
        %v5510 = vsel %vm3991, %v5472, 0
        %v5513 = vsel %vm3991, %v5473, 0
        %v5516 = vsel %vm3991, %v5474, 0
        %v5519 = vsel %vm3991, %v5475, 0
        %v5522 = vsel %vm3991, %v5476, 0
        %5524 = vmatprep.subr.bf16.mxu0 0
        %5525 = vmatpush1.bf16.msra.mxu0 %v5490
        %5526 = vmatprep.subr.bf16.mxu0 0
        %5527 = vmatpush1.bf16.msra.mxu0 %v5491
        %5528 = vmatprep.subr.bf16.mxu0 0
        %5529 = vmatpush1.bf16.msra.mxu0 0
        %5530 = vmatprep.subr.bf16.mxu0 0
        %5531 = vmatpush1.bf16.msra.mxu0 0
        %5532 = vmatprep.subr.bf16.mxu0 0
        %5533 = vmatpush1.bf16.msra.mxu0 0
        %5534 = vmatprep.subr.bf16.mxu0 0
        %5535 = vmatpush1.bf16.msra.mxu0 0
        %5536 = vmatprep.subr.bf16.mxu0 0
        %5537 = vmatpush1.bf16.msra.mxu0 0
        %5538 = vmatprep.subr.bf16.mxu0 0
        %5539 = vmatpush1.bf16.msra.mxu0 0
        %5540 = vmatprep.subr.bf16.mxu0 0
        %5541 = vmatpush1.bf16.msra.mxu0 0
        %5542 = vmatprep.subr.bf16.mxu0 0
        %5543 = vmatpush1.bf16.msra.mxu0 0
        %5544 = vmatprep.subr.bf16.mxu0 0
        %5545 = vmatpush1.bf16.msra.mxu0 0
        %5546 = vmatprep.subr.bf16.mxu0 0
        %5547 = vmatpush1.bf16.msra.mxu0 0
        %5548 = vmatprep.subr.bf16.mxu0 0
        %5549 = vmatpush1.bf16.msra.mxu0 0
        %5550 = vmatprep.subr.bf16.mxu0 0
        %5551 = vmatpush1.bf16.msra.mxu0 0
        %5552 = vmatprep.subr.bf16.mxu0 0
        %5553 = vmatpush1.bf16.msra.mxu0 0
        %5554 = vmatprep.subr.bf16.mxu0 0
        %5555 = vmatpush1.bf16.msra.mxu0 0
        %5556 = vmatprep.mubr.bf16.mxu0 0
        %5557 = vmatmul.mubr.bf16.gmra.mrb[0].mxu0 %v5495
        %v5558 = vpop.f32.mrb[0].mxu0
        %v5559 = vadd.f32 0.0, %v5558
        %v5560 = vpop.f32.mrb[0].mxu0
        %v5561 = vpop.f32.mrb[0].mxu0
        %v5562 = vadd.f32 0.0, %v5561
        %v5563 = vpop.f32.mrb[0].mxu0
        %5564 = vmatprep.mubr.bf16.mxu0 0
        %5565 = vmatmul.mubr.bf16.gmra.mrb[0].mxu0 %v5498
        %v5566 = vpop.f32.mrb[0].mxu0
        %v5567 = vadd.f32 0.0, %v5566
        %v5568 = vpop.f32.mrb[0].mxu0
        %v5569 = vpop.f32.mrb[0].mxu0
        %v5570 = vadd.f32 0.0, %v5569
        %v5571 = vpop.f32.mrb[0].mxu0
        %5572 = vmatprep.mubr.bf16.mxu0 0
        %5573 = vmatmul.mubr.bf16.gmra.mrb[0].mxu0 %v5501
        %v5574 = vpop.f32.mrb[0].mxu0
        %v5575 = vadd.f32 0.0, %v5574
        %v5576 = vpop.f32.mrb[0].mxu0
        %v5577 = vpop.f32.mrb[0].mxu0
        %v5578 = vadd.f32 0.0, %v5577
        %v5579 = vpop.f32.mrb[0].mxu0
        %5580 = vmatprep.mubr.bf16.mxu0 0
        %5581 = vmatmul.mubr.bf16.gmra.mrb[0].mxu0 %v5504
        %v5582 = vpop.f32.mrb[0].mxu0
        %v5583 = vadd.f32 0.0, %v5582
        %v5584 = vpop.f32.mrb[0].mxu0
        %v5585 = vpop.f32.mrb[0].mxu0
        %v5586 = vadd.f32 0.0, %v5585
        %v5587 = vpop.f32.mrb[0].mxu0
        %5588 = vmatprep.mubr.bf16.mxu0 0
        %5589 = vmatmul.mubr.bf16.gmra.mrb[0].mxu0 %v5507
        %v5590 = vpop.f32.mrb[0].mxu0
        %v5591 = vadd.f32 0.0, %v5590
        %v5592 = vpop.f32.mrb[0].mxu0
        %v5593 = vpop.f32.mrb[0].mxu0
        %v5594 = vadd.f32 0.0, %v5593
        %v5595 = vpop.f32.mrb[0].mxu0
        %5596 = vmatprep.mubr.bf16.mxu0 0
        %5597 = vmatmul.mubr.bf16.gmra.mrb[0].mxu0 %v5510
        %v5598 = vpop.f32.mrb[0].mxu0
        %v5599 = vadd.f32 0.0, %v5598
        %v5600 = vpop.f32.mrb[0].mxu0
        %v5601 = vpop.f32.mrb[0].mxu0
        %v5602 = vadd.f32 0.0, %v5601
        %v5603 = vpop.f32.mrb[0].mxu0
        %5604 = vmatprep.mubr.bf16.mxu0 0
        %5605 = vmatmul.mubr.bf16.gmra.mrb[0].mxu0 %v5513
        %v5606 = vpop.f32.mrb[0].mxu0
        %v5607 = vadd.f32 0.0, %v5606
        %v5608 = vpop.f32.mrb[0].mxu0
        %v5609 = vpop.f32.mrb[0].mxu0
        %v5610 = vadd.f32 0.0, %v5609
        %v5611 = vpop.f32.mrb[0].mxu0
        %5612 = vmatprep.mubr.bf16.mxu0 0
        %5613 = vmatmul.mubr.bf16.gmra.mrb[0].mxu0 %v5516
        %v5614 = vpop.f32.mrb[0].mxu0
        %v5615 = vadd.f32 0.0, %v5614
        %v5616 = vpop.f32.mrb[0].mxu0
        %v5617 = vpop.f32.mrb[0].mxu0
        %v5618 = vadd.f32 0.0, %v5617
        %v5619 = vpop.f32.mrb[0].mxu0
        %5620 = vmatprep.mubr.bf16.mxu0 0
        %5621 = vmatmul.mubr.bf16.gmra.mrb[0].mxu0 %v5519
        %v5622 = vpop.f32.mrb[0].mxu0
        %v5623 = vadd.f32 0.0, %v5622
        %v5624 = vpop.f32.mrb[0].mxu0
        %v5625 = vpop.f32.mrb[0].mxu0
        %v5626 = vadd.f32 0.0, %v5625
        %v5627 = vpop.f32.mrb[0].mxu0
        %5628 = vmatprep.mubr.bf16.mxu0 0
        %5629 = vmatmul.mubr.bf16.gmra.mrb[0].mxu0 %v5522
        %v5630 = vpop.f32.mrb[0].mxu0
        %v5631 = vadd.f32 0.0, %v5630
        %v5632 = vpop.f32.mrb[0].mxu0
        %v5633 = vpop.f32.mrb[0].mxu0
        %v5634 = vadd.f32 0.0, %v5633
        %v5635 = vpop.f32.mrb[0].mxu0
        %5636 = vdwg.mxu0
        %v5637 = vadd.f32 %v5427, %v5559
        %v5638 = vadd.f32 %v5428, %v5562
        %v5639 = vadd.f32 %v5429, %v5567
        %v5640 = vadd.f32 %v5430, %v5570
        %v5641 = vadd.f32 %v5431, %v5575
        %v5642 = vadd.f32 %v5432, %v5578
        %v5643 = vadd.f32 %v5433, %v5583
        %v5644 = vadd.f32 %v5434, %v5586
        %v5645 = vadd.f32 %v5435, %v5591
        %v5646 = vadd.f32 %v5436, %v5594
        %v5647 = vadd.f32 %v5437, %v5599
        %v5648 = vadd.f32 %v5438, %v5602
        %v5649 = vadd.f32 %v5439, %v5607
        %v5650 = vadd.f32 %v5440, %v5610
        %v5651 = vadd.f32 %v5441, %v5615
        %v5652 = vadd.f32 %v5442, %v5618
        %v5653 = vadd.f32 %v5443, %v5623
        %v5654 = vadd.f32 %v5444, %v5626
        %v5655 = vadd.f32 %v5445, %v5631
        %v5656 = vadd.f32 %v5446, %v5634
        %v5657 = vld [vmem:[%s5236 + $0x2] sm:$0xff]
        %v5658 = vld [vmem:[%s5236 + $0xa] sm:$0xff]
        %v5659 = vld [vmem:[%s5236 + $0x1a] sm:$0xff]
        %v5660 = vld [vmem:[%s5236 + $0x22] sm:$0xff]
        %v5661 = vld [vmem:[%s5236 + $0x32] sm:$0xff]
        %v5662 = vld [vmem:[%s5236 + $0x3a] sm:$0xff]
        %v5663 = vld [vmem:[%s5236 + $0x4a] sm:$0xff]
        %v5664 = vld [vmem:[%s5236 + $0x52] sm:$0xff]
        %v5665 = vld [vmem:[%s5236 + $0x62] sm:$0xff]
        %v5666 = vld [vmem:[%s5236 + $0x6a] sm:$0xff]
        %v5667 = vld [vmem:[%s5236 + $0x7a] sm:$0xff]
        %v5668 = vld [vmem:[%s5236 + $0x82] sm:$0xff]
        %v5669 = vld [vmem:[%s5236 + $0x92] sm:$0xff]
        %v5670 = vld [vmem:[%s5236 + $0x9a] sm:$0xff]
        %v5671 = vld [vmem:[%s5236 + $0xaa] sm:$0xff]
        %v5672 = vld [vmem:[%s5236 + $0xb2] sm:$0xff]
        %v5673 = vld [vmem:[%s5236 + $0xc2] sm:$0xff]
        %v5674 = vld [vmem:[%s5236 + $0xca] sm:$0xff]
        %v5675 = vld [vmem:[%s5236 + $0xda] sm:$0xff]
        %v5676 = vld [vmem:[%s5236 + $0xe2] sm:$0xff]
        %v5677 = vpack.c.bf16 %v5658, %v5657
        %v5678 = vpack.c.bf16 %v5660, %v5659
        %v5679 = vpack.c.bf16 %v5662, %v5661
        %v5680 = vpack.c.bf16 %v5664, %v5663
        %v5681 = vpack.c.bf16 %v5666, %v5665
        %v5682 = vpack.c.bf16 %v5668, %v5667
        %v5683 = vpack.c.bf16 %v5670, %v5669
        %v5684 = vpack.c.bf16 %v5672, %v5671
        %v5685 = vpack.c.bf16 %v5674, %v5673
        %v5686 = vpack.c.bf16 %v5676, %v5675
        %s5687 = scalar_lea.vmem %s3, 128
        %v5688 = vld [vmem:[%s5687] sm:$0xf]
        %v5689 = vld [vmem:[%s5687 + $0x4] sm:$0xf]
        %v5690 = vld [vmem:[%s5687 + $0x8] sm:$0xf]
        %v5691 = vld [vmem:[%s5687 + $0xc] sm:$0xf]
        %v5696 = vunpack.c.l.b16 %v5688
        %v5697 = vunpack.c.l.b16 %v5689
        %v5698 = vunpack.c.l.b16 %v5690
        %v5699 = vunpack.c.l.b16 %v5691
        %v5700 = vpack.c.b16 %v5697, %v5696
        %v5701 = vpack.c.b16 %v5699, %v5698
        %v5705 = vsel %vm3991, %v5677, 0
        %v5708 = vsel %vm3991, %v5678, 0
        %v5711 = vsel %vm3991, %v5679, 0
        %v5714 = vsel %vm3991, %v5680, 0
        %v5717 = vsel %vm3991, %v5681, 0
        %v5720 = vsel %vm3991, %v5682, 0
        %v5723 = vsel %vm3991, %v5683, 0
        %v5726 = vsel %vm3991, %v5684, 0
        %v5729 = vsel %vm3991, %v5685, 0
        %v5732 = vsel %vm3991, %v5686, 0
        %5734 = vmatprep.subr.bf16.mxu0 0
        %5735 = vmatpush1.bf16.msra.mxu0 %v5700
        %5736 = vmatprep.subr.bf16.mxu0 0
        %5737 = vmatpush1.bf16.msra.mxu0 %v5701
        %5738 = vmatprep.subr.bf16.mxu0 0
        %5739 = vmatpush1.bf16.msra.mxu0 0
        %5740 = vmatprep.subr.bf16.mxu0 0
        %5741 = vmatpush1.bf16.msra.mxu0 0
        %5742 = vmatprep.subr.bf16.mxu0 0
        %5743 = vmatpush1.bf16.msra.mxu0 0
        %5744 = vmatprep.subr.bf16.mxu0 0
        %5745 = vmatpush1.bf16.msra.mxu0 0
        %5746 = vmatprep.subr.bf16.mxu0 0
        %5747 = vmatpush1.bf16.msra.mxu0 0
        %5748 = vmatprep.subr.bf16.mxu0 0
        %5749 = vmatpush1.bf16.msra.mxu0 0
        %5750 = vmatprep.subr.bf16.mxu0 0
        %5751 = vmatpush1.bf16.msra.mxu0 0
        %5752 = vmatprep.subr.bf16.mxu0 0
        %5753 = vmatpush1.bf16.msra.mxu0 0
        %5754 = vmatprep.subr.bf16.mxu0 0
        %5755 = vmatpush1.bf16.msra.mxu0 0
        %5756 = vmatprep.subr.bf16.mxu0 0
        %5757 = vmatpush1.bf16.msra.mxu0 0
        %5758 = vmatprep.subr.bf16.mxu0 0
        %5759 = vmatpush1.bf16.msra.mxu0 0
        %5760 = vmatprep.subr.bf16.mxu0 0
        %5761 = vmatpush1.bf16.msra.mxu0 0
        %5762 = vmatprep.subr.bf16.mxu0 0
        %5763 = vmatpush1.bf16.msra.mxu0 0
        %5764 = vmatprep.subr.bf16.mxu0 0
        %5765 = vmatpush1.bf16.msra.mxu0 0
        %5766 = vmatprep.mubr.bf16.mxu0 0
        %5767 = vmatmul.mubr.bf16.gmra.mrb[0].mxu0 %v5705
        %v5768 = vpop.f32.mrb[0].mxu0
        %v5769 = vadd.f32 0.0, %v5768
        %v5770 = vpop.f32.mrb[0].mxu0
        %v5771 = vpop.f32.mrb[0].mxu0
        %v5772 = vadd.f32 0.0, %v5771
        %v5773 = vpop.f32.mrb[0].mxu0
        %5774 = vmatprep.mubr.bf16.mxu0 0
        %5775 = vmatmul.mubr.bf16.gmra.mrb[0].mxu0 %v5708
        %v5776 = vpop.f32.mrb[0].mxu0
        %v5777 = vadd.f32 0.0, %v5776
        %v5778 = vpop.f32.mrb[0].mxu0
        %v5779 = vpop.f32.mrb[0].mxu0
        %v5780 = vadd.f32 0.0, %v5779
        %v5781 = vpop.f32.mrb[0].mxu0
        %5782 = vmatprep.mubr.bf16.mxu0 0
        %5783 = vmatmul.mubr.bf16.gmra.mrb[0].mxu0 %v5711
        %v5784 = vpop.f32.mrb[0].mxu0
        %v5785 = vadd.f32 0.0, %v5784
        %v5786 = vpop.f32.mrb[0].mxu0
        %v5787 = vpop.f32.mrb[0].mxu0
        %v5788 = vadd.f32 0.0, %v5787
        %v5789 = vpop.f32.mrb[0].mxu0
        %5790 = vmatprep.mubr.bf16.mxu0 0
        %5791 = vmatmul.mubr.bf16.gmra.mrb[0].mxu0 %v5714
        %v5792 = vpop.f32.mrb[0].mxu0
        %v5793 = vadd.f32 0.0, %v5792
        %v5794 = vpop.f32.mrb[0].mxu0
        %v5795 = vpop.f32.mrb[0].mxu0
        %v5796 = vadd.f32 0.0, %v5795
        %v5797 = vpop.f32.mrb[0].mxu0
        %5798 = vmatprep.mubr.bf16.mxu0 0
        %5799 = vmatmul.mubr.bf16.gmra.mrb[0].mxu0 %v5717
        %v5800 = vpop.f32.mrb[0].mxu0
        %v5801 = vadd.f32 0.0, %v5800
        %v5802 = vpop.f32.mrb[0].mxu0
        %v5803 = vpop.f32.mrb[0].mxu0
        %v5804 = vadd.f32 0.0, %v5803
        %v5805 = vpop.f32.mrb[0].mxu0
        %5806 = vmatprep.mubr.bf16.mxu0 0
        %5807 = vmatmul.mubr.bf16.gmra.mrb[0].mxu0 %v5720
        %v5808 = vpop.f32.mrb[0].mxu0
        %v5809 = vadd.f32 0.0, %v5808
        %v5810 = vpop.f32.mrb[0].mxu0
        %v5811 = vpop.f32.mrb[0].mxu0
        %v5812 = vadd.f32 0.0, %v5811
        %v5813 = vpop.f32.mrb[0].mxu0
        %5814 = vmatprep.mubr.bf16.mxu0 0
        %5815 = vmatmul.mubr.bf16.gmra.mrb[0].mxu0 %v5723
        %v5816 = vpop.f32.mrb[0].mxu0
        %v5817 = vadd.f32 0.0, %v5816
        %v5818 = vpop.f32.mrb[0].mxu0
        %v5819 = vpop.f32.mrb[0].mxu0
        %v5820 = vadd.f32 0.0, %v5819
        %v5821 = vpop.f32.mrb[0].mxu0
        %5822 = vmatprep.mubr.bf16.mxu0 0
        %5823 = vmatmul.mubr.bf16.gmra.mrb[0].mxu0 %v5726
        %v5824 = vpop.f32.mrb[0].mxu0
        %v5825 = vadd.f32 0.0, %v5824
        %v5826 = vpop.f32.mrb[0].mxu0
        %v5827 = vpop.f32.mrb[0].mxu0
        %v5828 = vadd.f32 0.0, %v5827
        %v5829 = vpop.f32.mrb[0].mxu0
        %5830 = vmatprep.mubr.bf16.mxu0 0
        %5831 = vmatmul.mubr.bf16.gmra.mrb[0].mxu0 %v5729
        %v5832 = vpop.f32.mrb[0].mxu0
        %v5833 = vadd.f32 0.0, %v5832
        %v5834 = vpop.f32.mrb[0].mxu0
        %v5835 = vpop.f32.mrb[0].mxu0
        %v5836 = vadd.f32 0.0, %v5835
        %v5837 = vpop.f32.mrb[0].mxu0
        %5838 = vmatprep.mubr.bf16.mxu0 0
        %5839 = vmatmul.mubr.bf16.gmra.mrb[0].mxu0 %v5732
        %v5840 = vpop.f32.mrb[0].mxu0
        %v5841 = vadd.f32 0.0, %v5840
        %v5842 = vpop.f32.mrb[0].mxu0
        %v5843 = vpop.f32.mrb[0].mxu0
        %v5844 = vadd.f32 0.0, %v5843
        %v5845 = vpop.f32.mrb[0].mxu0
        %5846 = vdwg.mxu0
        %v5847 = vadd.f32 %v5637, %v5769
        %v5848 = vadd.f32 %v5638, %v5772
        %v5849 = vadd.f32 %v5639, %v5777
        %v5850 = vadd.f32 %v5640, %v5780
        %v5851 = vadd.f32 %v5641, %v5785
        %v5852 = vadd.f32 %v5642, %v5788
        %v5853 = vadd.f32 %v5643, %v5793
        %v5854 = vadd.f32 %v5644, %v5796
        %v5855 = vadd.f32 %v5645, %v5801
        %v5856 = vadd.f32 %v5646, %v5804
        %v5857 = vadd.f32 %v5647, %v5809
        %v5858 = vadd.f32 %v5648, %v5812
        %v5859 = vadd.f32 %v5649, %v5817
        %v5860 = vadd.f32 %v5650, %v5820
        %v5861 = vadd.f32 %v5651, %v5825
        %v5862 = vadd.f32 %v5652, %v5828
        %v5863 = vadd.f32 %v5653, %v5833
        %v5864 = vadd.f32 %v5654, %v5836
        %v5865 = vadd.f32 %v5655, %v5841
        %v5866 = vadd.f32 %v5656, %v5844
        %v5867 = vld [vmem:[%s4] sm:$0x1]
        %v5869 = vlaneseq
        %v5870 = vshrl.u32 %v5869, 7
        %v5871 = vsub.s32 0, %v5870
        %v5872 = vrot.slane %v5867, %v5871
        %v5874 = vadd.f32 %v5847, %v5872
        %v5875 = vadd.f32 %v5848, %v5872
        %v5876 = vadd.f32 %v5849, %v5872
        %v5877 = vadd.f32 %v5850, %v5872
        %v5878 = vadd.f32 %v5851, %v5872
        %v5879 = vadd.f32 %v5852, %v5872
        %v5880 = vadd.f32 %v5853, %v5872
        %v5881 = vadd.f32 %v5854, %v5872
        %v5882 = vadd.f32 %v5855, %v5872
        %v5883 = vadd.f32 %v5856, %v5872
        %v5884 = vadd.f32 %v5857, %v5872
        %v5885 = vadd.f32 %v5858, %v5872
        %v5886 = vadd.f32 %v5859, %v5872
        %v5887 = vadd.f32 %v5860, %v5872
        %v5888 = vadd.f32 %v5861, %v5872
        %v5889 = vadd.f32 %v5862, %v5872
        %v5890 = vadd.f32 %v5863, %v5872
        %v5891 = vadd.f32 %v5864, %v5872
        %v5892 = vadd.f32 %v5865, %v5872
        %v5893 = vadd.f32 %v5866, %v5872
        %v5894 = vmax.f32 %v5874, 0.0
        %v5895 = vmax.f32 %v5875, 0.0
        %v5896 = vmax.f32 %v5876, 0.0
        %v5897 = vmax.f32 %v5877, 0.0
        %v5898 = vmax.f32 %v5878, 0.0
        %v5899 = vmax.f32 %v5879, 0.0
        %v5900 = vmax.f32 %v5880, 0.0
        %v5901 = vmax.f32 %v5881, 0.0
        %v5902 = vmax.f32 %v5882, 0.0
        %v5903 = vmax.f32 %v5883, 0.0
        %v5904 = vmax.f32 %v5884, 0.0
        %v5905 = vmax.f32 %v5885, 0.0
        %v5906 = vmax.f32 %v5886, 0.0
        %v5907 = vmax.f32 %v5887, 0.0
        %v5908 = vmax.f32 %v5888, 0.0
        %v5909 = vmax.f32 %v5889, 0.0
        %v5910 = vmax.f32 %v5890, 0.0
        %v5911 = vmax.f32 %v5891, 0.0
        %v5912 = vmax.f32 %v5892, 0.0
        %v5913 = vmax.f32 %v5893, 0.0
        %s5914 = ssub.s32 %s294, 1
        %v5915 = vstv %s5914
        %v5916 = vadd.s32 %v5915, 1
        %v5917 = vadd.s32 %v5915, 2
        %v5918 = vadd.s32 %v5915, 3
        %v5919 = vadd.s32 %v5915, 4
        %v5920 = vadd.s32 %v5915, 5
        %v5921 = vadd.s32 %v5915, 6
        %v5922 = vadd.s32 %v5915, 7
        %v5923 = vadd.s32 %v5915, 8
        %v5924 = vadd.s32 %v5915, 9
        %vm5925 = vcmp.ge.s32.totalorder %v5915, 0
        %vm5926 = vcmp.ge.s32.totalorder %v5916, 0
        %vm5927 = vcmp.ge.s32.totalorder %v5917, 0
        %vm5928 = vcmp.ge.s32.totalorder %v5918, 0
        %vm5929 = vcmp.ge.s32.totalorder %v5919, 0
        %vm5930 = vcmp.ge.s32.totalorder %v5920, 0
        %vm5931 = vcmp.ge.s32.totalorder %v5921, 0
        %vm5932 = vcmp.ge.s32.totalorder %v5922, 0
        %vm5933 = vcmp.ge.s32.totalorder %v5923, 0
        %vm5934 = vcmp.ge.s32.totalorder %v5924, 0
        %vm5935 = vcmp.lt.s32.totalorder %v5915, 16
        %vm5936 = vcmp.lt.s32.totalorder %v5916, 16
        %vm5937 = vcmp.lt.s32.totalorder %v5917, 16
        %vm5938 = vcmp.lt.s32.totalorder %v5918, 16
        %vm5939 = vcmp.lt.s32.totalorder %v5919, 16
        %vm5940 = vcmp.lt.s32.totalorder %v5920, 16
        %vm5941 = vcmp.lt.s32.totalorder %v5921, 16
        %vm5942 = vcmp.lt.s32.totalorder %v5922, 16
        %vm5943 = vcmp.lt.s32.totalorder %v5923, 16
        %vm5944 = vcmp.lt.s32.totalorder %v5924, 16
        %vm5945 = vmand %vm5925, %vm5935
        %vm5946 = vmand %vm5926, %vm5936
        %vm5947 = vmand %vm5927, %vm5937
        %vm5948 = vmand %vm5928, %vm5938
        %vm5949 = vmand %vm5929, %vm5939
        %vm5950 = vmand %vm5930, %vm5940
        %vm5951 = vmand %vm5931, %vm5941
        %vm5952 = vmand %vm5932, %vm5942
        %vm5953 = vmand %vm5933, %vm5943
        %vm5954 = vmand %vm5934, %vm5944
        %v5955 = vsel %vm5945, 1, 0
        %v5956 = vsel %vm5946, 1, 0
        %v5957 = vsel %vm5947, 1, 0
        %v5958 = vsel %vm5948, 1, 0
        %v5959 = vsel %vm5949, 1, 0
        %v5960 = vsel %vm5950, 1, 0
        %v5961 = vsel %vm5951, 1, 0
        %v5962 = vsel %vm5952, 1, 0
        %v5963 = vsel %vm5953, 1, 0
        %v5964 = vsel %vm5954, 1, 0
        %vm5965 = vcmp.eq.s32.totalorder %v5955, 1
        %vm5966 = vcmp.eq.s32.totalorder %v5956, 1
        %vm5967 = vcmp.eq.s32.totalorder %v5957, 1
        %vm5968 = vcmp.eq.s32.totalorder %v5958, 1
        %vm5969 = vcmp.eq.s32.totalorder %v5959, 1
        %vm5970 = vcmp.eq.s32.totalorder %v5960, 1
        %vm5971 = vcmp.eq.s32.totalorder %v5961, 1
        %vm5972 = vcmp.eq.s32.totalorder %v5962, 1
        %vm5973 = vcmp.eq.s32.totalorder %v5963, 1
        %vm5974 = vcmp.eq.s32.totalorder %v5964, 1
        %v5975 = vsel %vm5965, %v5894, 0.0
        %v5976 = vsel %vm5965, %v5895, 0.0
        %v5977 = vsel %vm5966, %v5896, 0.0
        %v5978 = vsel %vm5966, %v5897, 0.0
        %v5979 = vsel %vm5967, %v5898, 0.0
        %v5980 = vsel %vm5967, %v5899, 0.0
        %v5981 = vsel %vm5968, %v5900, 0.0
        %v5982 = vsel %vm5968, %v5901, 0.0
        %v5983 = vsel %vm5969, %v5902, 0.0
        %v5984 = vsel %vm5969, %v5903, 0.0
        %v5985 = vsel %vm5970, %v5904, 0.0
        %v5986 = vsel %vm5970, %v5905, 0.0
        %v5987 = vsel %vm5971, %v5906, 0.0
        %v5988 = vsel %vm5971, %v5907, 0.0
        %v5989 = vsel %vm5972, %v5908, 0.0
        %v5990 = vsel %vm5972, %v5909, 0.0
        %v5991 = vsel %vm5973, %v5910, 0.0
        %v5992 = vsel %vm5973, %v5911, 0.0
        %v5993 = vsel %vm5974, %v5912, 0.0
        %v5994 = vsel %vm5974, %v5913, 0.0
        %vm5995 = vcmask 516096
        %5996 = vst.msk [vmem:[#allocation3] sm:$0x1] %vm5995, 0.0
        %5997 = vst.msk [vmem:[#allocation3 + $0x18] sm:$0x1] %vm5995, 0.0
        %5998 = vst.msk [vmem:[#allocation3 + $0x30] sm:$0x1] %vm5995, 0.0
        %5999 = vst.msk [vmem:[#allocation3 + $0x48] sm:$0x1] %vm5995, 0.0
        %6000 = vst.msk [vmem:[#allocation3 + $0x60] sm:$0x1] %vm5995, 0.0
        %6001 = vst.msk [vmem:[#allocation3 + $0x78] sm:$0x1] %vm5995, 0.0
        %6002 = vst.msk [vmem:[#allocation3 + $0x90] sm:$0x1] %vm5995, 0.0
        %6003 = vst.msk [vmem:[#allocation3 + $0xa8] sm:$0x1] %vm5995, 0.0
        %6004 = vst.msk [vmem:[#allocation3 + $0xc0] sm:$0x1] %vm5995, 0.0
        %6005 = vst.msk [vmem:[#allocation3 + $0xd8] sm:$0x1] %vm5995, 0.0
        %6006 = vst.msk [vmem:[#allocation3 + $0x11] sm:$0x1] %vm5995, 0.0
        %6007 = vst.msk [vmem:[#allocation3 + $0x29] sm:$0x1] %vm5995, 0.0
        %6008 = vst.msk [vmem:[#allocation3 + $0x41] sm:$0x1] %vm5995, 0.0
        %6009 = vst.msk [vmem:[#allocation3 + $0x59] sm:$0x1] %vm5995, 0.0
        %6010 = vst.msk [vmem:[#allocation3 + $0x71] sm:$0x1] %vm5995, 0.0
        %6011 = vst.msk [vmem:[#allocation3 + $0x89] sm:$0x1] %vm5995, 0.0
        %6012 = vst.msk [vmem:[#allocation3 + $0xa1] sm:$0x1] %vm5995, 0.0
        %6013 = vst.msk [vmem:[#allocation3 + $0xb9] sm:$0x1] %vm5995, 0.0
        %6014 = vst.msk [vmem:[#allocation3 + $0xd1] sm:$0x1] %vm5995, 0.0
        %6015 = vst.msk [vmem:[#allocation3 + $0xe9] sm:$0x1] %vm5995, 0.0
        %vm6016 = vcmask 523264
        %6017 = vst.msk [vmem:[#allocation3 + $0x1] sm:$0xff] %vm6016, %v5975
        %6018 = vst.msk [vmem:[#allocation3 + $0x9] sm:$0xff] %vm6016, %v5976
        %6019 = vst.msk [vmem:[#allocation3 + $0x19] sm:$0xff] %vm6016, %v5977
        %6020 = vst.msk [vmem:[#allocation3 + $0x21] sm:$0xff] %vm6016, %v5978
        %6021 = vst.msk [vmem:[#allocation3 + $0x31] sm:$0xff] %vm6016, %v5979
        %6022 = vst.msk [vmem:[#allocation3 + $0x39] sm:$0xff] %vm6016, %v5980
        %6023 = vst.msk [vmem:[#allocation3 + $0x49] sm:$0xff] %vm6016, %v5981
        %6024 = vst.msk [vmem:[#allocation3 + $0x51] sm:$0xff] %vm6016, %v5982
        %6025 = vst.msk [vmem:[#allocation3 + $0x61] sm:$0xff] %vm6016, %v5983
        %6026 = vst.msk [vmem:[#allocation3 + $0x69] sm:$0xff] %vm6016, %v5984
        %6027 = vst.msk [vmem:[#allocation3 + $0x79] sm:$0xff] %vm6016, %v5985
        %6028 = vst.msk [vmem:[#allocation3 + $0x81] sm:$0xff] %vm6016, %v5986
        %6029 = vst.msk [vmem:[#allocation3 + $0x91] sm:$0xff] %vm6016, %v5987
        %6030 = vst.msk [vmem:[#allocation3 + $0x99] sm:$0xff] %vm6016, %v5988
        %6031 = vst.msk [vmem:[#allocation3 + $0xa9] sm:$0xff] %vm6016, %v5989
        %6032 = vst.msk [vmem:[#allocation3 + $0xb1] sm:$0xff] %vm6016, %v5990
        %6033 = vst.msk [vmem:[#allocation3 + $0xc1] sm:$0xff] %vm6016, %v5991
        %6034 = vst.msk [vmem:[#allocation3 + $0xc9] sm:$0xff] %vm6016, %v5992
        %6035 = vst.msk [vmem:[#allocation3 + $0xd9] sm:$0xff] %vm6016, %v5993
        %6036 = vst.msk [vmem:[#allocation3 + $0xe1] sm:$0xff] %vm6016, %v5994
        %v6037 = vld [vmem:[#allocation3] sm:$0xff]
        %v6038 = vld [vmem:[#allocation3 + $0x8] sm:$0xff]
        %v6039 = vld [vmem:[#allocation3 + $0x18] sm:$0xff]
        %v6040 = vld [vmem:[#allocation3 + $0x20] sm:$0xff]
        %v6041 = vld [vmem:[#allocation3 + $0x30] sm:$0xff]
        %v6042 = vld [vmem:[#allocation3 + $0x38] sm:$0xff]
        %v6043 = vld [vmem:[#allocation3 + $0x48] sm:$0xff]
        %v6044 = vld [vmem:[#allocation3 + $0x50] sm:$0xff]
        %v6045 = vld [vmem:[#allocation3 + $0x60] sm:$0xff]
        %v6046 = vld [vmem:[#allocation3 + $0x68] sm:$0xff]
        %v6047 = vld [vmem:[#allocation3 + $0x78] sm:$0xff]
        %v6048 = vld [vmem:[#allocation3 + $0x80] sm:$0xff]
        %v6049 = vld [vmem:[#allocation3 + $0x90] sm:$0xff]
        %v6050 = vld [vmem:[#allocation3 + $0x98] sm:$0xff]
        %v6051 = vld [vmem:[#allocation3 + $0xa8] sm:$0xff]
        %v6052 = vld [vmem:[#allocation3 + $0xb0] sm:$0xff]
        %v6053 = vld [vmem:[%s5] sm:$0x1]
        %v6054 = vunpack.c.l.bf16 %v6053
        %v6055 = vlaneseq
        %v6056 = vshrl.u32 %v6055, 7
        %v6057 = vsub.s32 0, %v6056
        %v6058 = vrot.slane %v6054, %v6057
        %v6059 = vmul.f32 %v6037, %v6058
        %v6060 = vmul.f32 %v6038, %v6058
        %v6061 = vmul.f32 %v6039, %v6058
        %v6062 = vmul.f32 %v6040, %v6058
        %v6063 = vmul.f32 %v6041, %v6058
        %v6064 = vmul.f32 %v6042, %v6058
        %v6065 = vmul.f32 %v6043, %v6058
        %v6066 = vmul.f32 %v6044, %v6058
        %v6067 = vmul.f32 %v6045, %v6058
        %v6068 = vmul.f32 %v6046, %v6058
        %v6069 = vmul.f32 %v6047, %v6058
        %v6070 = vmul.f32 %v6048, %v6058
        %v6071 = vmul.f32 %v6049, %v6058
        %v6072 = vmul.f32 %v6050, %v6058
        %v6073 = vmul.f32 %v6051, %v6058
        %v6074 = vmul.f32 %v6052, %v6058
        %v6075 = vsel %vm6016, %v6059, 0.0
        %6076 = vadd.xlane.f32.xlu0 %v6075
        %v6077 = vpop.xlane.xlu0 %6076
        %v6078 = vsel %vm6016, %v6060, 0.0
        %6079 = vadd.xlane.f32.xlu0 %v6078
        %v6080 = vpop.xlane.xlu0 %6079
        %v6081 = vsel %vm6016, %v6061, 0.0
        %6082 = vadd.xlane.f32.xlu0 %v6081
        %v6083 = vpop.xlane.xlu0 %6082
        %v6084 = vsel %vm6016, %v6062, 0.0
        %6085 = vadd.xlane.f32.xlu0 %v6084
        %v6086 = vpop.xlane.xlu0 %6085
        %v6087 = vsel %vm6016, %v6063, 0.0
        %6088 = vadd.xlane.f32.xlu0 %v6087
        %v6089 = vpop.xlane.xlu0 %6088
        %v6090 = vsel %vm6016, %v6064, 0.0
        %6091 = vadd.xlane.f32.xlu0 %v6090
        %v6092 = vpop.xlane.xlu0 %6091
        %v6093 = vsel %vm6016, %v6065, 0.0
        %6094 = vadd.xlane.f32.xlu0 %v6093
        %v6095 = vpop.xlane.xlu0 %6094
        %v6096 = vsel %vm6016, %v6066, 0.0
        %6097 = vadd.xlane.f32.xlu0 %v6096
        %v6098 = vpop.xlane.xlu0 %6097
        %v6099 = vsel %vm6016, %v6067, 0.0
        %6100 = vadd.xlane.f32.xlu0 %v6099
        %v6101 = vpop.xlane.xlu0 %6100
        %v6102 = vsel %vm6016, %v6068, 0.0
        %6103 = vadd.xlane.f32.xlu0 %v6102
        %v6104 = vpop.xlane.xlu0 %6103
        %v6105 = vsel %vm6016, %v6069, 0.0
        %6106 = vadd.xlane.f32.xlu0 %v6105
        %v6107 = vpop.xlane.xlu0 %6106
        %v6108 = vsel %vm6016, %v6070, 0.0
        %6109 = vadd.xlane.f32.xlu0 %v6108
        %v6110 = vpop.xlane.xlu0 %6109
        %v6111 = vsel %vm6016, %v6071, 0.0
        %6112 = vadd.xlane.f32.xlu0 %v6111
        %v6113 = vpop.xlane.xlu0 %6112
        %v6114 = vsel %vm6016, %v6072, 0.0
        %6115 = vadd.xlane.f32.xlu0 %v6114
        %v6116 = vpop.xlane.xlu0 %6115
        %v6117 = vsel %vm6016, %v6073, 0.0
        %6118 = vadd.xlane.f32.xlu0 %v6117
        %v6119 = vpop.xlane.xlu0 %6118
        %v6120 = vsel %vm6016, %v6074, 0.0
        %6121 = vadd.xlane.f32.xlu0 %v6120
        %v6122 = vpop.xlane.xlu0 %6121
        %v6123 = vadd.f32 %v6077, 0.0
        %v6124 = vadd.f32 %v6080, 0.0
        %v6125 = vadd.f32 %v6083, 0.0
        %v6126 = vadd.f32 %v6086, 0.0
        %v6127 = vadd.f32 %v6089, 0.0
        %v6128 = vadd.f32 %v6092, 0.0
        %v6129 = vadd.f32 %v6095, 0.0
        %v6130 = vadd.f32 %v6098, 0.0
        %v6131 = vadd.f32 %v6101, 0.0
        %v6132 = vadd.f32 %v6104, 0.0
        %v6133 = vadd.f32 %v6107, 0.0
        %v6134 = vadd.f32 %v6110, 0.0
        %v6135 = vadd.f32 %v6113, 0.0
        %v6136 = vadd.f32 %v6116, 0.0
        %v6137 = vadd.f32 %v6119, 0.0
        %v6138 = vadd.f32 %v6122, 0.0
        %v6139 = vld [vmem:[#allocation3 + $0x1] sm:$0xff]
        %v6140 = vld [vmem:[#allocation3 + $0x9] sm:$0xff]
        %v6141 = vld [vmem:[#allocation3 + $0x19] sm:$0xff]
        %v6142 = vld [vmem:[#allocation3 + $0x21] sm:$0xff]
        %v6143 = vld [vmem:[#allocation3 + $0x31] sm:$0xff]
        %v6144 = vld [vmem:[#allocation3 + $0x39] sm:$0xff]
        %v6145 = vld [vmem:[#allocation3 + $0x49] sm:$0xff]
        %v6146 = vld [vmem:[#allocation3 + $0x51] sm:$0xff]
        %v6147 = vld [vmem:[#allocation3 + $0x61] sm:$0xff]
        %v6148 = vld [vmem:[#allocation3 + $0x69] sm:$0xff]
        %v6149 = vld [vmem:[#allocation3 + $0x79] sm:$0xff]
        %v6150 = vld [vmem:[#allocation3 + $0x81] sm:$0xff]
        %v6151 = vld [vmem:[#allocation3 + $0x91] sm:$0xff]
        %v6152 = vld [vmem:[#allocation3 + $0x99] sm:$0xff]
        %v6153 = vld [vmem:[#allocation3 + $0xa9] sm:$0xff]
        %v6154 = vld [vmem:[#allocation3 + $0xb1] sm:$0xff]
        %v6155 = vlaneseq
        %v6156 = vshrl.u32 %v6155, 7
        %v6157 = vsub.s32 1, %v6156
        %v6158 = vrot.slane %v6054, %v6157
        %v6159 = vmul.f32 %v6139, %v6158
        %v6160 = vmul.f32 %v6140, %v6158
        %v6161 = vmul.f32 %v6141, %v6158
        %v6162 = vmul.f32 %v6142, %v6158
        %v6163 = vmul.f32 %v6143, %v6158
        %v6164 = vmul.f32 %v6144, %v6158
        %v6165 = vmul.f32 %v6145, %v6158
        %v6166 = vmul.f32 %v6146, %v6158
        %v6167 = vmul.f32 %v6147, %v6158
        %v6168 = vmul.f32 %v6148, %v6158
        %v6169 = vmul.f32 %v6149, %v6158
        %v6170 = vmul.f32 %v6150, %v6158
        %v6171 = vmul.f32 %v6151, %v6158
        %v6172 = vmul.f32 %v6152, %v6158
        %v6173 = vmul.f32 %v6153, %v6158
        %v6174 = vmul.f32 %v6154, %v6158
        %v6175 = vsel %vm6016, %v6159, 0.0
        %6176 = vadd.xlane.f32.xlu0 %v6175
        %v6177 = vpop.xlane.xlu0 %6176
        %v6178 = vsel %vm6016, %v6160, 0.0
        %6179 = vadd.xlane.f32.xlu0 %v6178
        %v6180 = vpop.xlane.xlu0 %6179
        %v6181 = vsel %vm6016, %v6161, 0.0
        %6182 = vadd.xlane.f32.xlu0 %v6181
        %v6183 = vpop.xlane.xlu0 %6182
        %v6184 = vsel %vm6016, %v6162, 0.0
        %6185 = vadd.xlane.f32.xlu0 %v6184
        %v6186 = vpop.xlane.xlu0 %6185
        %v6187 = vsel %vm6016, %v6163, 0.0
        %6188 = vadd.xlane.f32.xlu0 %v6187
        %v6189 = vpop.xlane.xlu0 %6188
        %v6190 = vsel %vm6016, %v6164, 0.0
        %6191 = vadd.xlane.f32.xlu0 %v6190
        %v6192 = vpop.xlane.xlu0 %6191
        %v6193 = vsel %vm6016, %v6165, 0.0
        %6194 = vadd.xlane.f32.xlu0 %v6193
        %v6195 = vpop.xlane.xlu0 %6194
        %v6196 = vsel %vm6016, %v6166, 0.0
        %6197 = vadd.xlane.f32.xlu0 %v6196
        %v6198 = vpop.xlane.xlu0 %6197
        %v6199 = vsel %vm6016, %v6167, 0.0
        %6200 = vadd.xlane.f32.xlu0 %v6199
        %v6201 = vpop.xlane.xlu0 %6200
        %v6202 = vsel %vm6016, %v6168, 0.0
        %6203 = vadd.xlane.f32.xlu0 %v6202
        %v6204 = vpop.xlane.xlu0 %6203
        %v6205 = vsel %vm6016, %v6169, 0.0
        %6206 = vadd.xlane.f32.xlu0 %v6205
        %v6207 = vpop.xlane.xlu0 %6206
        %v6208 = vsel %vm6016, %v6170, 0.0
        %6209 = vadd.xlane.f32.xlu0 %v6208
        %v6210 = vpop.xlane.xlu0 %6209
        %v6211 = vsel %vm6016, %v6171, 0.0
        %6212 = vadd.xlane.f32.xlu0 %v6211
        %v6213 = vpop.xlane.xlu0 %6212
        %v6214 = vsel %vm6016, %v6172, 0.0
        %6215 = vadd.xlane.f32.xlu0 %v6214
        %v6216 = vpop.xlane.xlu0 %6215
        %v6217 = vsel %vm6016, %v6173, 0.0
        %6218 = vadd.xlane.f32.xlu0 %v6217
        %v6219 = vpop.xlane.xlu0 %6218
        %v6220 = vsel %vm6016, %v6174, 0.0
        %6221 = vadd.xlane.f32.xlu0 %v6220
        %v6222 = vpop.xlane.xlu0 %6221
        %v6223 = vadd.f32 %v6123, %v6177
        %v6224 = vadd.f32 %v6124, %v6180
        %v6225 = vadd.f32 %v6125, %v6183
        %v6226 = vadd.f32 %v6126, %v6186
        %v6227 = vadd.f32 %v6127, %v6189
        %v6228 = vadd.f32 %v6128, %v6192
        %v6229 = vadd.f32 %v6129, %v6195
        %v6230 = vadd.f32 %v6130, %v6198
        %v6231 = vadd.f32 %v6131, %v6201
        %v6232 = vadd.f32 %v6132, %v6204
        %v6233 = vadd.f32 %v6133, %v6207
        %v6234 = vadd.f32 %v6134, %v6210
        %v6235 = vadd.f32 %v6135, %v6213
        %v6236 = vadd.f32 %v6136, %v6216
        %v6237 = vadd.f32 %v6137, %v6219
        %v6238 = vadd.f32 %v6138, %v6222
        %v6239 = vld [vmem:[#allocation3 + $0x2] sm:$0xff]
        %v6240 = vld [vmem:[#allocation3 + $0xa] sm:$0xff]
        %v6241 = vld [vmem:[#allocation3 + $0x1a] sm:$0xff]
        %v6242 = vld [vmem:[#allocation3 + $0x22] sm:$0xff]
        %v6243 = vld [vmem:[#allocation3 + $0x32] sm:$0xff]
        %v6244 = vld [vmem:[#allocation3 + $0x3a] sm:$0xff]
        %v6245 = vld [vmem:[#allocation3 + $0x4a] sm:$0xff]
        %v6246 = vld [vmem:[#allocation3 + $0x52] sm:$0xff]
        %v6247 = vld [vmem:[#allocation3 + $0x62] sm:$0xff]
        %v6248 = vld [vmem:[#allocation3 + $0x6a] sm:$0xff]
        %v6249 = vld [vmem:[#allocation3 + $0x7a] sm:$0xff]
        %v6250 = vld [vmem:[#allocation3 + $0x82] sm:$0xff]
        %v6251 = vld [vmem:[#allocation3 + $0x92] sm:$0xff]
        %v6252 = vld [vmem:[#allocation3 + $0x9a] sm:$0xff]
        %v6253 = vld [vmem:[#allocation3 + $0xaa] sm:$0xff]
        %v6254 = vld [vmem:[#allocation3 + $0xb2] sm:$0xff]
        %v6255 = vld [vmem:[%s5] sm:$0x2]
        %v6256 = vunpack.c.l.bf16 %v6255
        %v6257 = vlaneseq
        %v6258 = vshrl.u32 %v6257, 7
        %v6259 = vsub.s32 2, %v6258
        %v6260 = vrot.slane %v6256, %v6259
        %v6261 = vmul.f32 %v6239, %v6260
        %v6262 = vmul.f32 %v6240, %v6260
        %v6263 = vmul.f32 %v6241, %v6260
        %v6264 = vmul.f32 %v6242, %v6260
        %v6265 = vmul.f32 %v6243, %v6260
        %v6266 = vmul.f32 %v6244, %v6260
        %v6267 = vmul.f32 %v6245, %v6260
        %v6268 = vmul.f32 %v6246, %v6260
        %v6269 = vmul.f32 %v6247, %v6260
        %v6270 = vmul.f32 %v6248, %v6260
        %v6271 = vmul.f32 %v6249, %v6260
        %v6272 = vmul.f32 %v6250, %v6260
        %v6273 = vmul.f32 %v6251, %v6260
        %v6274 = vmul.f32 %v6252, %v6260
        %v6275 = vmul.f32 %v6253, %v6260
        %v6276 = vmul.f32 %v6254, %v6260
        %v6277 = vsel %vm6016, %v6261, 0.0
        %6278 = vadd.xlane.f32.xlu0 %v6277
        %v6279 = vpop.xlane.xlu0 %6278
        %v6280 = vsel %vm6016, %v6262, 0.0
        %6281 = vadd.xlane.f32.xlu0 %v6280
        %v6282 = vpop.xlane.xlu0 %6281
        %v6283 = vsel %vm6016, %v6263, 0.0
        %6284 = vadd.xlane.f32.xlu0 %v6283
        %v6285 = vpop.xlane.xlu0 %6284
        %v6286 = vsel %vm6016, %v6264, 0.0
        %6287 = vadd.xlane.f32.xlu0 %v6286
        %v6288 = vpop.xlane.xlu0 %6287
        %v6289 = vsel %vm6016, %v6265, 0.0
        %6290 = vadd.xlane.f32.xlu0 %v6289
        %v6291 = vpop.xlane.xlu0 %6290
        %v6292 = vsel %vm6016, %v6266, 0.0
        %6293 = vadd.xlane.f32.xlu0 %v6292
        %v6294 = vpop.xlane.xlu0 %6293
        %v6295 = vsel %vm6016, %v6267, 0.0
        %6296 = vadd.xlane.f32.xlu0 %v6295
        %v6297 = vpop.xlane.xlu0 %6296
        %v6298 = vsel %vm6016, %v6268, 0.0
        %6299 = vadd.xlane.f32.xlu0 %v6298
        %v6300 = vpop.xlane.xlu0 %6299
        %v6301 = vsel %vm6016, %v6269, 0.0
        %6302 = vadd.xlane.f32.xlu0 %v6301
        %v6303 = vpop.xlane.xlu0 %6302
        %v6304 = vsel %vm6016, %v6270, 0.0
        %6305 = vadd.xlane.f32.xlu0 %v6304
        %v6306 = vpop.xlane.xlu0 %6305
        %v6307 = vsel %vm6016, %v6271, 0.0
        %6308 = vadd.xlane.f32.xlu0 %v6307
        %v6309 = vpop.xlane.xlu0 %6308
        %v6310 = vsel %vm6016, %v6272, 0.0
        %6311 = vadd.xlane.f32.xlu0 %v6310
        %v6312 = vpop.xlane.xlu0 %6311
        %v6313 = vsel %vm6016, %v6273, 0.0
        %6314 = vadd.xlane.f32.xlu0 %v6313
        %v6315 = vpop.xlane.xlu0 %6314
        %v6316 = vsel %vm6016, %v6274, 0.0
        %6317 = vadd.xlane.f32.xlu0 %v6316
        %v6318 = vpop.xlane.xlu0 %6317
        %v6319 = vsel %vm6016, %v6275, 0.0
        %6320 = vadd.xlane.f32.xlu0 %v6319
        %v6321 = vpop.xlane.xlu0 %6320
        %v6322 = vsel %vm6016, %v6276, 0.0
        %6323 = vadd.xlane.f32.xlu0 %v6322
        %v6324 = vpop.xlane.xlu0 %6323
        %v6325 = vadd.f32 %v6223, %v6279
        %v6326 = vadd.f32 %v6224, %v6282
        %v6327 = vadd.f32 %v6225, %v6285
        %v6328 = vadd.f32 %v6226, %v6288
        %v6329 = vadd.f32 %v6227, %v6291
        %v6330 = vadd.f32 %v6228, %v6294
        %v6331 = vadd.f32 %v6229, %v6297
        %v6332 = vadd.f32 %v6230, %v6300
        %v6333 = vadd.f32 %v6231, %v6303
        %v6334 = vadd.f32 %v6232, %v6306
        %v6335 = vadd.f32 %v6233, %v6309
        %v6336 = vadd.f32 %v6234, %v6312
        %v6337 = vadd.f32 %v6235, %v6315
        %v6338 = vadd.f32 %v6236, %v6318
        %v6339 = vadd.f32 %v6237, %v6321
        %v6340 = vadd.f32 %v6238, %v6324
        %s6341 = scalar_lea.vmem [#allocation3], 24
        %v6342 = vld [vmem:[%s6341] sm:$0xff]
        %v6343 = vld [vmem:[%s6341 + $0x8] sm:$0xff]
        %v6344 = vld [vmem:[%s6341 + $0x18] sm:$0xff]
        %v6345 = vld [vmem:[%s6341 + $0x20] sm:$0xff]
        %v6346 = vld [vmem:[%s6341 + $0x30] sm:$0xff]
        %v6347 = vld [vmem:[%s6341 + $0x38] sm:$0xff]
        %v6348 = vld [vmem:[%s6341 + $0x48] sm:$0xff]
        %v6349 = vld [vmem:[%s6341 + $0x50] sm:$0xff]
        %v6350 = vld [vmem:[%s6341 + $0x60] sm:$0xff]
        %v6351 = vld [vmem:[%s6341 + $0x68] sm:$0xff]
        %v6352 = vld [vmem:[%s6341 + $0x78] sm:$0xff]
        %v6353 = vld [vmem:[%s6341 + $0x80] sm:$0xff]
        %v6354 = vld [vmem:[%s6341 + $0x90] sm:$0xff]
        %v6355 = vld [vmem:[%s6341 + $0x98] sm:$0xff]
        %v6356 = vld [vmem:[%s6341 + $0xa8] sm:$0xff]
        %v6357 = vld [vmem:[%s6341 + $0xb0] sm:$0xff]
        %v6358 = vlaneseq
        %v6359 = vshrl.u32 %v6358, 7
        %v6360 = vsub.s32 3, %v6359
        %v6361 = vrot.slane %v6256, %v6360
        %v6362 = vmul.f32 %v6342, %v6361
        %v6363 = vmul.f32 %v6343, %v6361
        %v6364 = vmul.f32 %v6344, %v6361
        %v6365 = vmul.f32 %v6345, %v6361
        %v6366 = vmul.f32 %v6346, %v6361
        %v6367 = vmul.f32 %v6347, %v6361
        %v6368 = vmul.f32 %v6348, %v6361
        %v6369 = vmul.f32 %v6349, %v6361
        %v6370 = vmul.f32 %v6350, %v6361
        %v6371 = vmul.f32 %v6351, %v6361
        %v6372 = vmul.f32 %v6352, %v6361
        %v6373 = vmul.f32 %v6353, %v6361
        %v6374 = vmul.f32 %v6354, %v6361
        %v6375 = vmul.f32 %v6355, %v6361
        %v6376 = vmul.f32 %v6356, %v6361
        %v6377 = vmul.f32 %v6357, %v6361
        %v6378 = vsel %vm6016, %v6362, 0.0
        %6379 = vadd.xlane.f32.xlu0 %v6378
        %v6380 = vpop.xlane.xlu0 %6379
        %v6381 = vsel %vm6016, %v6363, 0.0
        %6382 = vadd.xlane.f32.xlu0 %v6381
        %v6383 = vpop.xlane.xlu0 %6382
        %v6384 = vsel %vm6016, %v6364, 0.0
        %6385 = vadd.xlane.f32.xlu0 %v6384
        %v6386 = vpop.xlane.xlu0 %6385
        %v6387 = vsel %vm6016, %v6365, 0.0
        %6388 = vadd.xlane.f32.xlu0 %v6387
        %v6389 = vpop.xlane.xlu0 %6388
        %v6390 = vsel %vm6016, %v6366, 0.0
        %6391 = vadd.xlane.f32.xlu0 %v6390
        %v6392 = vpop.xlane.xlu0 %6391
        %v6393 = vsel %vm6016, %v6367, 0.0
        %6394 = vadd.xlane.f32.xlu0 %v6393
        %v6395 = vpop.xlane.xlu0 %6394
        %v6396 = vsel %vm6016, %v6368, 0.0
        %6397 = vadd.xlane.f32.xlu0 %v6396
        %v6398 = vpop.xlane.xlu0 %6397
        %v6399 = vsel %vm6016, %v6369, 0.0
        %6400 = vadd.xlane.f32.xlu0 %v6399
        %v6401 = vpop.xlane.xlu0 %6400
        %v6402 = vsel %vm6016, %v6370, 0.0
        %6403 = vadd.xlane.f32.xlu0 %v6402
        %v6404 = vpop.xlane.xlu0 %6403
        %v6405 = vsel %vm6016, %v6371, 0.0
        %6406 = vadd.xlane.f32.xlu0 %v6405
        %v6407 = vpop.xlane.xlu0 %6406
        %v6408 = vsel %vm6016, %v6372, 0.0
        %6409 = vadd.xlane.f32.xlu0 %v6408
        %v6410 = vpop.xlane.xlu0 %6409
        %v6411 = vsel %vm6016, %v6373, 0.0
        %6412 = vadd.xlane.f32.xlu0 %v6411
        %v6413 = vpop.xlane.xlu0 %6412
        %v6414 = vsel %vm6016, %v6374, 0.0
        %6415 = vadd.xlane.f32.xlu0 %v6414
        %v6416 = vpop.xlane.xlu0 %6415
        %v6417 = vsel %vm6016, %v6375, 0.0
        %6418 = vadd.xlane.f32.xlu0 %v6417
        %v6419 = vpop.xlane.xlu0 %6418
        %v6420 = vsel %vm6016, %v6376, 0.0
        %6421 = vadd.xlane.f32.xlu0 %v6420
        %v6422 = vpop.xlane.xlu0 %6421
        %v6423 = vsel %vm6016, %v6377, 0.0
        %6424 = vadd.xlane.f32.xlu0 %v6423
        %v6425 = vpop.xlane.xlu0 %6424
        %v6426 = vadd.f32 %v6325, %v6380
        %v6427 = vadd.f32 %v6326, %v6383
        %v6428 = vadd.f32 %v6327, %v6386
        %v6429 = vadd.f32 %v6328, %v6389
        %v6430 = vadd.f32 %v6329, %v6392
        %v6431 = vadd.f32 %v6330, %v6395
        %v6432 = vadd.f32 %v6331, %v6398
        %v6433 = vadd.f32 %v6332, %v6401
        %v6434 = vadd.f32 %v6333, %v6404
        %v6435 = vadd.f32 %v6334, %v6407
        %v6436 = vadd.f32 %v6335, %v6410
        %v6437 = vadd.f32 %v6336, %v6413
        %v6438 = vadd.f32 %v6337, %v6416
        %v6439 = vadd.f32 %v6338, %v6419
        %v6440 = vadd.f32 %v6339, %v6422
        %v6441 = vadd.f32 %v6340, %v6425
        %v6442 = vld [vmem:[%s6341 + $0x1] sm:$0xff]
        %v6443 = vld [vmem:[%s6341 + $0x9] sm:$0xff]
        %v6444 = vld [vmem:[%s6341 + $0x19] sm:$0xff]
        %v6445 = vld [vmem:[%s6341 + $0x21] sm:$0xff]
        %v6446 = vld [vmem:[%s6341 + $0x31] sm:$0xff]
        %v6447 = vld [vmem:[%s6341 + $0x39] sm:$0xff]
        %v6448 = vld [vmem:[%s6341 + $0x49] sm:$0xff]
        %v6449 = vld [vmem:[%s6341 + $0x51] sm:$0xff]
        %v6450 = vld [vmem:[%s6341 + $0x61] sm:$0xff]
        %v6451 = vld [vmem:[%s6341 + $0x69] sm:$0xff]
        %v6452 = vld [vmem:[%s6341 + $0x79] sm:$0xff]
        %v6453 = vld [vmem:[%s6341 + $0x81] sm:$0xff]
        %v6454 = vld [vmem:[%s6341 + $0x91] sm:$0xff]
        %v6455 = vld [vmem:[%s6341 + $0x99] sm:$0xff]
        %v6456 = vld [vmem:[%s6341 + $0xa9] sm:$0xff]
        %v6457 = vld [vmem:[%s6341 + $0xb1] sm:$0xff]
        %v6458 = vld [vmem:[%s5] sm:$0x4]
        %v6459 = vunpack.c.l.bf16 %v6458
        %v6460 = vlaneseq
        %v6461 = vshrl.u32 %v6460, 7
        %v6462 = vsub.s32 4, %v6461
        %v6463 = vrot.slane %v6459, %v6462
        %v6464 = vmul.f32 %v6442, %v6463
        %v6465 = vmul.f32 %v6443, %v6463
        %v6466 = vmul.f32 %v6444, %v6463
        %v6467 = vmul.f32 %v6445, %v6463
        %v6468 = vmul.f32 %v6446, %v6463
        %v6469 = vmul.f32 %v6447, %v6463
        %v6470 = vmul.f32 %v6448, %v6463
        %v6471 = vmul.f32 %v6449, %v6463
        %v6472 = vmul.f32 %v6450, %v6463
        %v6473 = vmul.f32 %v6451, %v6463
        %v6474 = vmul.f32 %v6452, %v6463
        %v6475 = vmul.f32 %v6453, %v6463
        %v6476 = vmul.f32 %v6454, %v6463
        %v6477 = vmul.f32 %v6455, %v6463
        %v6478 = vmul.f32 %v6456, %v6463
        %v6479 = vmul.f32 %v6457, %v6463
        %v6480 = vsel %vm6016, %v6464, 0.0
        %6481 = vadd.xlane.f32.xlu0 %v6480
        %v6482 = vpop.xlane.xlu0 %6481
        %v6483 = vsel %vm6016, %v6465, 0.0
        %6484 = vadd.xlane.f32.xlu0 %v6483
        %v6485 = vpop.xlane.xlu0 %6484
        %v6486 = vsel %vm6016, %v6466, 0.0
        %6487 = vadd.xlane.f32.xlu0 %v6486
        %v6488 = vpop.xlane.xlu0 %6487
        %v6489 = vsel %vm6016, %v6467, 0.0
        %6490 = vadd.xlane.f32.xlu0 %v6489
        %v6491 = vpop.xlane.xlu0 %6490
        %v6492 = vsel %vm6016, %v6468, 0.0
        %6493 = vadd.xlane.f32.xlu0 %v6492
        %v6494 = vpop.xlane.xlu0 %6493
        %v6495 = vsel %vm6016, %v6469, 0.0
        %6496 = vadd.xlane.f32.xlu0 %v6495
        %v6497 = vpop.xlane.xlu0 %6496
        %v6498 = vsel %vm6016, %v6470, 0.0
        %6499 = vadd.xlane.f32.xlu0 %v6498
        %v6500 = vpop.xlane.xlu0 %6499
        %v6501 = vsel %vm6016, %v6471, 0.0
        %6502 = vadd.xlane.f32.xlu0 %v6501
        %v6503 = vpop.xlane.xlu0 %6502
        %v6504 = vsel %vm6016, %v6472, 0.0
        %6505 = vadd.xlane.f32.xlu0 %v6504
        %v6506 = vpop.xlane.xlu0 %6505
        %v6507 = vsel %vm6016, %v6473, 0.0
        %6508 = vadd.xlane.f32.xlu0 %v6507
        %v6509 = vpop.xlane.xlu0 %6508
        %v6510 = vsel %vm6016, %v6474, 0.0
        %6511 = vadd.xlane.f32.xlu0 %v6510
        %v6512 = vpop.xlane.xlu0 %6511
        %v6513 = vsel %vm6016, %v6475, 0.0
        %6514 = vadd.xlane.f32.xlu0 %v6513
        %v6515 = vpop.xlane.xlu0 %6514
        %v6516 = vsel %vm6016, %v6476, 0.0
        %6517 = vadd.xlane.f32.xlu0 %v6516
        %v6518 = vpop.xlane.xlu0 %6517
        %v6519 = vsel %vm6016, %v6477, 0.0
        %6520 = vadd.xlane.f32.xlu0 %v6519
        %v6521 = vpop.xlane.xlu0 %6520
        %v6522 = vsel %vm6016, %v6478, 0.0
        %6523 = vadd.xlane.f32.xlu0 %v6522
        %v6524 = vpop.xlane.xlu0 %6523
        %v6525 = vsel %vm6016, %v6479, 0.0
        %6526 = vadd.xlane.f32.xlu0 %v6525
        %v6527 = vpop.xlane.xlu0 %6526
        %v6528 = vadd.f32 %v6426, %v6482
        %v6529 = vadd.f32 %v6427, %v6485
        %v6530 = vadd.f32 %v6428, %v6488
        %v6531 = vadd.f32 %v6429, %v6491
        %v6532 = vadd.f32 %v6430, %v6494
        %v6533 = vadd.f32 %v6431, %v6497
        %v6534 = vadd.f32 %v6432, %v6500
        %v6535 = vadd.f32 %v6433, %v6503
        %v6536 = vadd.f32 %v6434, %v6506
        %v6537 = vadd.f32 %v6435, %v6509
        %v6538 = vadd.f32 %v6436, %v6512
        %v6539 = vadd.f32 %v6437, %v6515
        %v6540 = vadd.f32 %v6438, %v6518
        %v6541 = vadd.f32 %v6439, %v6521
        %v6542 = vadd.f32 %v6440, %v6524
        %v6543 = vadd.f32 %v6441, %v6527
        %v6544 = vld [vmem:[%s6341 + $0x2] sm:$0xff]
        %v6545 = vld [vmem:[%s6341 + $0xa] sm:$0xff]
        %v6546 = vld [vmem:[%s6341 + $0x1a] sm:$0xff]
        %v6547 = vld [vmem:[%s6341 + $0x22] sm:$0xff]
        %v6548 = vld [vmem:[%s6341 + $0x32] sm:$0xff]
        %v6549 = vld [vmem:[%s6341 + $0x3a] sm:$0xff]
        %v6550 = vld [vmem:[%s6341 + $0x4a] sm:$0xff]
        %v6551 = vld [vmem:[%s6341 + $0x52] sm:$0xff]
        %v6552 = vld [vmem:[%s6341 + $0x62] sm:$0xff]
        %v6553 = vld [vmem:[%s6341 + $0x6a] sm:$0xff]
        %v6554 = vld [vmem:[%s6341 + $0x7a] sm:$0xff]
        %v6555 = vld [vmem:[%s6341 + $0x82] sm:$0xff]
        %v6556 = vld [vmem:[%s6341 + $0x92] sm:$0xff]
        %v6557 = vld [vmem:[%s6341 + $0x9a] sm:$0xff]
        %v6558 = vld [vmem:[%s6341 + $0xaa] sm:$0xff]
        %v6559 = vld [vmem:[%s6341 + $0xb2] sm:$0xff]
        %v6560 = vlaneseq
        %v6561 = vshrl.u32 %v6560, 7
        %v6562 = vsub.s32 5, %v6561
        %v6563 = vrot.slane %v6459, %v6562
        %v6564 = vmul.f32 %v6544, %v6563
        %v6565 = vmul.f32 %v6545, %v6563
        %v6566 = vmul.f32 %v6546, %v6563
        %v6567 = vmul.f32 %v6547, %v6563
        %v6568 = vmul.f32 %v6548, %v6563
        %v6569 = vmul.f32 %v6549, %v6563
        %v6570 = vmul.f32 %v6550, %v6563
        %v6571 = vmul.f32 %v6551, %v6563
        %v6572 = vmul.f32 %v6552, %v6563
        %v6573 = vmul.f32 %v6553, %v6563
        %v6574 = vmul.f32 %v6554, %v6563
        %v6575 = vmul.f32 %v6555, %v6563
        %v6576 = vmul.f32 %v6556, %v6563
        %v6577 = vmul.f32 %v6557, %v6563
        %v6578 = vmul.f32 %v6558, %v6563
        %v6579 = vmul.f32 %v6559, %v6563
        %v6580 = vsel %vm6016, %v6564, 0.0
        %6581 = vadd.xlane.f32.xlu0 %v6580
        %v6582 = vpop.xlane.xlu0 %6581
        %v6583 = vsel %vm6016, %v6565, 0.0
        %6584 = vadd.xlane.f32.xlu0 %v6583
        %v6585 = vpop.xlane.xlu0 %6584
        %v6586 = vsel %vm6016, %v6566, 0.0
        %6587 = vadd.xlane.f32.xlu0 %v6586
        %v6588 = vpop.xlane.xlu0 %6587
        %v6589 = vsel %vm6016, %v6567, 0.0
        %6590 = vadd.xlane.f32.xlu0 %v6589
        %v6591 = vpop.xlane.xlu0 %6590
        %v6592 = vsel %vm6016, %v6568, 0.0
        %6593 = vadd.xlane.f32.xlu0 %v6592
        %v6594 = vpop.xlane.xlu0 %6593
        %v6595 = vsel %vm6016, %v6569, 0.0
        %6596 = vadd.xlane.f32.xlu0 %v6595
        %v6597 = vpop.xlane.xlu0 %6596
        %v6598 = vsel %vm6016, %v6570, 0.0
        %6599 = vadd.xlane.f32.xlu0 %v6598
        %v6600 = vpop.xlane.xlu0 %6599
        %v6601 = vsel %vm6016, %v6571, 0.0
        %6602 = vadd.xlane.f32.xlu0 %v6601
        %v6603 = vpop.xlane.xlu0 %6602
        %v6604 = vsel %vm6016, %v6572, 0.0
        %6605 = vadd.xlane.f32.xlu0 %v6604
        %v6606 = vpop.xlane.xlu0 %6605
        %v6607 = vsel %vm6016, %v6573, 0.0
        %6608 = vadd.xlane.f32.xlu0 %v6607
        %v6609 = vpop.xlane.xlu0 %6608
        %v6610 = vsel %vm6016, %v6574, 0.0
        %6611 = vadd.xlane.f32.xlu0 %v6610
        %v6612 = vpop.xlane.xlu0 %6611
        %v6613 = vsel %vm6016, %v6575, 0.0
        %6614 = vadd.xlane.f32.xlu0 %v6613
        %v6615 = vpop.xlane.xlu0 %6614
        %v6616 = vsel %vm6016, %v6576, 0.0
        %6617 = vadd.xlane.f32.xlu0 %v6616
        %v6618 = vpop.xlane.xlu0 %6617
        %v6619 = vsel %vm6016, %v6577, 0.0
        %6620 = vadd.xlane.f32.xlu0 %v6619
        %v6621 = vpop.xlane.xlu0 %6620
        %v6622 = vsel %vm6016, %v6578, 0.0
        %6623 = vadd.xlane.f32.xlu0 %v6622
        %v6624 = vpop.xlane.xlu0 %6623
        %v6625 = vsel %vm6016, %v6579, 0.0
        %6626 = vadd.xlane.f32.xlu0 %v6625
        %v6627 = vpop.xlane.xlu0 %6626
        %v6628 = vadd.f32 %v6528, %v6582
        %v6629 = vadd.f32 %v6529, %v6585
        %v6630 = vadd.f32 %v6530, %v6588
        %v6631 = vadd.f32 %v6531, %v6591
        %v6632 = vadd.f32 %v6532, %v6594
        %v6633 = vadd.f32 %v6533, %v6597
        %v6634 = vadd.f32 %v6534, %v6600
        %v6635 = vadd.f32 %v6535, %v6603
        %v6636 = vadd.f32 %v6536, %v6606
        %v6637 = vadd.f32 %v6537, %v6609
        %v6638 = vadd.f32 %v6538, %v6612
        %v6639 = vadd.f32 %v6539, %v6615
        %v6640 = vadd.f32 %v6540, %v6618
        %v6641 = vadd.f32 %v6541, %v6621
        %v6642 = vadd.f32 %v6542, %v6624
        %v6643 = vadd.f32 %v6543, %v6627
        %s6644 = scalar_lea.vmem [#allocation3], 48
        %v6645 = vld [vmem:[%s6644] sm:$0xff]
        %v6646 = vld [vmem:[%s6644 + $0x8] sm:$0xff]
        %v6647 = vld [vmem:[%s6644 + $0x18] sm:$0xff]
        %v6648 = vld [vmem:[%s6644 + $0x20] sm:$0xff]
        %v6649 = vld [vmem:[%s6644 + $0x30] sm:$0xff]
        %v6650 = vld [vmem:[%s6644 + $0x38] sm:$0xff]
        %v6651 = vld [vmem:[%s6644 + $0x48] sm:$0xff]
        %v6652 = vld [vmem:[%s6644 + $0x50] sm:$0xff]
        %v6653 = vld [vmem:[%s6644 + $0x60] sm:$0xff]
        %v6654 = vld [vmem:[%s6644 + $0x68] sm:$0xff]
        %v6655 = vld [vmem:[%s6644 + $0x78] sm:$0xff]
        %v6656 = vld [vmem:[%s6644 + $0x80] sm:$0xff]
        %v6657 = vld [vmem:[%s6644 + $0x90] sm:$0xff]
        %v6658 = vld [vmem:[%s6644 + $0x98] sm:$0xff]
        %v6659 = vld [vmem:[%s6644 + $0xa8] sm:$0xff]
        %v6660 = vld [vmem:[%s6644 + $0xb0] sm:$0xff]
        %v6661 = vld [vmem:[%s5] sm:$0x8]
        %v6662 = vunpack.c.l.bf16 %v6661
        %v6663 = vlaneseq
        %v6664 = vshrl.u32 %v6663, 7
        %v6665 = vsub.s32 6, %v6664
        %v6666 = vrot.slane %v6662, %v6665
        %v6667 = vmul.f32 %v6645, %v6666
        %v6668 = vmul.f32 %v6646, %v6666
        %v6669 = vmul.f32 %v6647, %v6666
        %v6670 = vmul.f32 %v6648, %v6666
        %v6671 = vmul.f32 %v6649, %v6666
        %v6672 = vmul.f32 %v6650, %v6666
        %v6673 = vmul.f32 %v6651, %v6666
        %v6674 = vmul.f32 %v6652, %v6666
        %v6675 = vmul.f32 %v6653, %v6666
        %v6676 = vmul.f32 %v6654, %v6666
        %v6677 = vmul.f32 %v6655, %v6666
        %v6678 = vmul.f32 %v6656, %v6666
        %v6679 = vmul.f32 %v6657, %v6666
        %v6680 = vmul.f32 %v6658, %v6666
        %v6681 = vmul.f32 %v6659, %v6666
        %v6682 = vmul.f32 %v6660, %v6666
        %v6683 = vsel %vm6016, %v6667, 0.0
        %6684 = vadd.xlane.f32.xlu0 %v6683
        %v6685 = vpop.xlane.xlu0 %6684
        %v6686 = vsel %vm6016, %v6668, 0.0
        %6687 = vadd.xlane.f32.xlu0 %v6686
        %v6688 = vpop.xlane.xlu0 %6687
        %v6689 = vsel %vm6016, %v6669, 0.0
        %6690 = vadd.xlane.f32.xlu0 %v6689
        %v6691 = vpop.xlane.xlu0 %6690
        %v6692 = vsel %vm6016, %v6670, 0.0
        %6693 = vadd.xlane.f32.xlu0 %v6692
        %v6694 = vpop.xlane.xlu0 %6693
        %v6695 = vsel %vm6016, %v6671, 0.0
        %6696 = vadd.xlane.f32.xlu0 %v6695
        %v6697 = vpop.xlane.xlu0 %6696
        %v6698 = vsel %vm6016, %v6672, 0.0
        %6699 = vadd.xlane.f32.xlu0 %v6698
        %v6700 = vpop.xlane.xlu0 %6699
        %v6701 = vsel %vm6016, %v6673, 0.0
        %6702 = vadd.xlane.f32.xlu0 %v6701
        %v6703 = vpop.xlane.xlu0 %6702
        %v6704 = vsel %vm6016, %v6674, 0.0
        %6705 = vadd.xlane.f32.xlu0 %v6704
        %v6706 = vpop.xlane.xlu0 %6705
        %v6707 = vsel %vm6016, %v6675, 0.0
        %6708 = vadd.xlane.f32.xlu0 %v6707
        %v6709 = vpop.xlane.xlu0 %6708
        %v6710 = vsel %vm6016, %v6676, 0.0
        %6711 = vadd.xlane.f32.xlu0 %v6710
        %v6712 = vpop.xlane.xlu0 %6711
        %v6713 = vsel %vm6016, %v6677, 0.0
        %6714 = vadd.xlane.f32.xlu0 %v6713
        %v6715 = vpop.xlane.xlu0 %6714
        %v6716 = vsel %vm6016, %v6678, 0.0
        %6717 = vadd.xlane.f32.xlu0 %v6716
        %v6718 = vpop.xlane.xlu0 %6717
        %v6719 = vsel %vm6016, %v6679, 0.0
        %6720 = vadd.xlane.f32.xlu0 %v6719
        %v6721 = vpop.xlane.xlu0 %6720
        %v6722 = vsel %vm6016, %v6680, 0.0
        %6723 = vadd.xlane.f32.xlu0 %v6722
        %v6724 = vpop.xlane.xlu0 %6723
        %v6725 = vsel %vm6016, %v6681, 0.0
        %6726 = vadd.xlane.f32.xlu0 %v6725
        %v6727 = vpop.xlane.xlu0 %6726
        %v6728 = vsel %vm6016, %v6682, 0.0
        %6729 = vadd.xlane.f32.xlu0 %v6728
        %v6730 = vpop.xlane.xlu0 %6729
        %v6731 = vadd.f32 %v6628, %v6685
        %v6732 = vadd.f32 %v6629, %v6688
        %v6733 = vadd.f32 %v6630, %v6691
        %v6734 = vadd.f32 %v6631, %v6694
        %v6735 = vadd.f32 %v6632, %v6697
        %v6736 = vadd.f32 %v6633, %v6700
        %v6737 = vadd.f32 %v6634, %v6703
        %v6738 = vadd.f32 %v6635, %v6706
        %v6739 = vadd.f32 %v6636, %v6709
        %v6740 = vadd.f32 %v6637, %v6712
        %v6741 = vadd.f32 %v6638, %v6715
        %v6742 = vadd.f32 %v6639, %v6718
        %v6743 = vadd.f32 %v6640, %v6721
        %v6744 = vadd.f32 %v6641, %v6724
        %v6745 = vadd.f32 %v6642, %v6727
        %v6746 = vadd.f32 %v6643, %v6730
        %v6747 = vld [vmem:[%s6644 + $0x1] sm:$0xff]
        %v6748 = vld [vmem:[%s6644 + $0x9] sm:$0xff]
        %v6749 = vld [vmem:[%s6644 + $0x19] sm:$0xff]
        %v6750 = vld [vmem:[%s6644 + $0x21] sm:$0xff]
        %v6751 = vld [vmem:[%s6644 + $0x31] sm:$0xff]
        %v6752 = vld [vmem:[%s6644 + $0x39] sm:$0xff]
        %v6753 = vld [vmem:[%s6644 + $0x49] sm:$0xff]
        %v6754 = vld [vmem:[%s6644 + $0x51] sm:$0xff]
        %v6755 = vld [vmem:[%s6644 + $0x61] sm:$0xff]
        %v6756 = vld [vmem:[%s6644 + $0x69] sm:$0xff]
        %v6757 = vld [vmem:[%s6644 + $0x79] sm:$0xff]
        %v6758 = vld [vmem:[%s6644 + $0x81] sm:$0xff]
        %v6759 = vld [vmem:[%s6644 + $0x91] sm:$0xff]
        %v6760 = vld [vmem:[%s6644 + $0x99] sm:$0xff]
        %v6761 = vld [vmem:[%s6644 + $0xa9] sm:$0xff]
        %v6762 = vld [vmem:[%s6644 + $0xb1] sm:$0xff]
        %v6763 = vlaneseq
        %v6764 = vshrl.u32 %v6763, 7
        %v6765 = vsub.s32 7, %v6764
        %v6766 = vrot.slane %v6662, %v6765
        %v6767 = vmul.f32 %v6747, %v6766
        %v6768 = vmul.f32 %v6748, %v6766
        %v6769 = vmul.f32 %v6749, %v6766
        %v6770 = vmul.f32 %v6750, %v6766
        %v6771 = vmul.f32 %v6751, %v6766
        %v6772 = vmul.f32 %v6752, %v6766
        %v6773 = vmul.f32 %v6753, %v6766
        %v6774 = vmul.f32 %v6754, %v6766
        %v6775 = vmul.f32 %v6755, %v6766
        %v6776 = vmul.f32 %v6756, %v6766
        %v6777 = vmul.f32 %v6757, %v6766
        %v6778 = vmul.f32 %v6758, %v6766
        %v6779 = vmul.f32 %v6759, %v6766
        %v6780 = vmul.f32 %v6760, %v6766
        %v6781 = vmul.f32 %v6761, %v6766
        %v6782 = vmul.f32 %v6762, %v6766
        %v6783 = vsel %vm6016, %v6767, 0.0
        %6784 = vadd.xlane.f32.xlu0 %v6783
        %v6785 = vpop.xlane.xlu0 %6784
        %v6786 = vsel %vm6016, %v6768, 0.0
        %6787 = vadd.xlane.f32.xlu0 %v6786
        %v6788 = vpop.xlane.xlu0 %6787
        %v6789 = vsel %vm6016, %v6769, 0.0
        %6790 = vadd.xlane.f32.xlu0 %v6789
        %v6791 = vpop.xlane.xlu0 %6790
        %v6792 = vsel %vm6016, %v6770, 0.0
        %6793 = vadd.xlane.f32.xlu0 %v6792
        %v6794 = vpop.xlane.xlu0 %6793
        %v6795 = vsel %vm6016, %v6771, 0.0
        %6796 = vadd.xlane.f32.xlu0 %v6795
        %v6797 = vpop.xlane.xlu0 %6796
        %v6798 = vsel %vm6016, %v6772, 0.0
        %6799 = vadd.xlane.f32.xlu0 %v6798
        %v6800 = vpop.xlane.xlu0 %6799
        %v6801 = vsel %vm6016, %v6773, 0.0
        %6802 = vadd.xlane.f32.xlu0 %v6801
        %v6803 = vpop.xlane.xlu0 %6802
        %v6804 = vsel %vm6016, %v6774, 0.0
        %6805 = vadd.xlane.f32.xlu0 %v6804
        %v6806 = vpop.xlane.xlu0 %6805
        %v6807 = vsel %vm6016, %v6775, 0.0
        %6808 = vadd.xlane.f32.xlu0 %v6807
        %v6809 = vpop.xlane.xlu0 %6808
        %v6810 = vsel %vm6016, %v6776, 0.0
        %6811 = vadd.xlane.f32.xlu0 %v6810
        %v6812 = vpop.xlane.xlu0 %6811
        %v6813 = vsel %vm6016, %v6777, 0.0
        %6814 = vadd.xlane.f32.xlu0 %v6813
        %v6815 = vpop.xlane.xlu0 %6814
        %v6816 = vsel %vm6016, %v6778, 0.0
        %6817 = vadd.xlane.f32.xlu0 %v6816
        %v6818 = vpop.xlane.xlu0 %6817
        %v6819 = vsel %vm6016, %v6779, 0.0
        %6820 = vadd.xlane.f32.xlu0 %v6819
        %v6821 = vpop.xlane.xlu0 %6820
        %v6822 = vsel %vm6016, %v6780, 0.0
        %6823 = vadd.xlane.f32.xlu0 %v6822
        %v6824 = vpop.xlane.xlu0 %6823
        %v6825 = vsel %vm6016, %v6781, 0.0
        %6826 = vadd.xlane.f32.xlu0 %v6825
        %v6827 = vpop.xlane.xlu0 %6826
        %v6828 = vsel %vm6016, %v6782, 0.0
        %6829 = vadd.xlane.f32.xlu0 %v6828
        %v6830 = vpop.xlane.xlu0 %6829
        %v6831 = vadd.f32 %v6731, %v6785
        %v6832 = vadd.f32 %v6732, %v6788
        %v6833 = vadd.f32 %v6733, %v6791
        %v6834 = vadd.f32 %v6734, %v6794
        %v6835 = vadd.f32 %v6735, %v6797
        %v6836 = vadd.f32 %v6736, %v6800
        %v6837 = vadd.f32 %v6737, %v6803
        %v6838 = vadd.f32 %v6738, %v6806
        %v6839 = vadd.f32 %v6739, %v6809
        %v6840 = vadd.f32 %v6740, %v6812
        %v6841 = vadd.f32 %v6741, %v6815
        %v6842 = vadd.f32 %v6742, %v6818
        %v6843 = vadd.f32 %v6743, %v6821
        %v6844 = vadd.f32 %v6744, %v6824
        %v6845 = vadd.f32 %v6745, %v6827
        %v6846 = vadd.f32 %v6746, %v6830
        %v6847 = vld [vmem:[%s6644 + $0x2] sm:$0xff]
        %v6848 = vld [vmem:[%s6644 + $0xa] sm:$0xff]
        %v6849 = vld [vmem:[%s6644 + $0x1a] sm:$0xff]
        %v6850 = vld [vmem:[%s6644 + $0x22] sm:$0xff]
        %v6851 = vld [vmem:[%s6644 + $0x32] sm:$0xff]
        %v6852 = vld [vmem:[%s6644 + $0x3a] sm:$0xff]
        %v6853 = vld [vmem:[%s6644 + $0x4a] sm:$0xff]
        %v6854 = vld [vmem:[%s6644 + $0x52] sm:$0xff]
        %v6855 = vld [vmem:[%s6644 + $0x62] sm:$0xff]
        %v6856 = vld [vmem:[%s6644 + $0x6a] sm:$0xff]
        %v6857 = vld [vmem:[%s6644 + $0x7a] sm:$0xff]
        %v6858 = vld [vmem:[%s6644 + $0x82] sm:$0xff]
        %v6859 = vld [vmem:[%s6644 + $0x92] sm:$0xff]
        %v6860 = vld [vmem:[%s6644 + $0x9a] sm:$0xff]
        %v6861 = vld [vmem:[%s6644 + $0xaa] sm:$0xff]
        %v6862 = vld [vmem:[%s6644 + $0xb2] sm:$0xff]
        %v6863 = vld [vmem:[%s5 + $0x4] sm:$0x1]
        %v6864 = vunpack.c.l.bf16 %v6863
        %v6865 = vlaneseq
        %v6866 = vshrl.u32 %v6865, 7
        %v6867 = vsub.s32 0, %v6866
        %v6868 = vrot.slane %v6864, %v6867
        %v6869 = vmul.f32 %v6847, %v6868
        %v6870 = vmul.f32 %v6848, %v6868
        %v6871 = vmul.f32 %v6849, %v6868
        %v6872 = vmul.f32 %v6850, %v6868
        %v6873 = vmul.f32 %v6851, %v6868
        %v6874 = vmul.f32 %v6852, %v6868
        %v6875 = vmul.f32 %v6853, %v6868
        %v6876 = vmul.f32 %v6854, %v6868
        %v6877 = vmul.f32 %v6855, %v6868
        %v6878 = vmul.f32 %v6856, %v6868
        %v6879 = vmul.f32 %v6857, %v6868
        %v6880 = vmul.f32 %v6858, %v6868
        %v6881 = vmul.f32 %v6859, %v6868
        %v6882 = vmul.f32 %v6860, %v6868
        %v6883 = vmul.f32 %v6861, %v6868
        %v6884 = vmul.f32 %v6862, %v6868
        %v6885 = vsel %vm6016, %v6869, 0.0
        %6886 = vadd.xlane.f32.xlu0 %v6885
        %v6887 = vpop.xlane.xlu0 %6886
        %v6888 = vsel %vm6016, %v6870, 0.0
        %6889 = vadd.xlane.f32.xlu0 %v6888
        %v6890 = vpop.xlane.xlu0 %6889
        %v6891 = vsel %vm6016, %v6871, 0.0
        %6892 = vadd.xlane.f32.xlu0 %v6891
        %v6893 = vpop.xlane.xlu0 %6892
        %v6894 = vsel %vm6016, %v6872, 0.0
        %6895 = vadd.xlane.f32.xlu0 %v6894
        %v6896 = vpop.xlane.xlu0 %6895
        %v6897 = vsel %vm6016, %v6873, 0.0
        %6898 = vadd.xlane.f32.xlu0 %v6897
        %v6899 = vpop.xlane.xlu0 %6898
        %v6900 = vsel %vm6016, %v6874, 0.0
        %6901 = vadd.xlane.f32.xlu0 %v6900
        %v6902 = vpop.xlane.xlu0 %6901
        %v6903 = vsel %vm6016, %v6875, 0.0
        %6904 = vadd.xlane.f32.xlu0 %v6903
        %v6905 = vpop.xlane.xlu0 %6904
        %v6906 = vsel %vm6016, %v6876, 0.0
        %6907 = vadd.xlane.f32.xlu0 %v6906
        %v6908 = vpop.xlane.xlu0 %6907
        %v6909 = vsel %vm6016, %v6877, 0.0
        %6910 = vadd.xlane.f32.xlu0 %v6909
        %v6911 = vpop.xlane.xlu0 %6910
        %v6912 = vsel %vm6016, %v6878, 0.0
        %6913 = vadd.xlane.f32.xlu0 %v6912
        %v6914 = vpop.xlane.xlu0 %6913
        %v6915 = vsel %vm6016, %v6879, 0.0
        %6916 = vadd.xlane.f32.xlu0 %v6915
        %v6917 = vpop.xlane.xlu0 %6916
        %v6918 = vsel %vm6016, %v6880, 0.0
        %6919 = vadd.xlane.f32.xlu0 %v6918
        %v6920 = vpop.xlane.xlu0 %6919
        %v6921 = vsel %vm6016, %v6881, 0.0
        %6922 = vadd.xlane.f32.xlu0 %v6921
        %v6923 = vpop.xlane.xlu0 %6922
        %v6924 = vsel %vm6016, %v6882, 0.0
        %6925 = vadd.xlane.f32.xlu0 %v6924
        %v6926 = vpop.xlane.xlu0 %6925
        %v6927 = vsel %vm6016, %v6883, 0.0
        %6928 = vadd.xlane.f32.xlu0 %v6927
        %v6929 = vpop.xlane.xlu0 %6928
        %v6930 = vsel %vm6016, %v6884, 0.0
        %6931 = vadd.xlane.f32.xlu0 %v6930
        %v6932 = vpop.xlane.xlu0 %6931
        %v6933 = vadd.f32 %v6831, %v6887
        %v6934 = vadd.f32 %v6832, %v6890
        %v6935 = vadd.f32 %v6833, %v6893
        %v6936 = vadd.f32 %v6834, %v6896
        %v6937 = vadd.f32 %v6835, %v6899
        %v6938 = vadd.f32 %v6836, %v6902
        %v6939 = vadd.f32 %v6837, %v6905
        %v6940 = vadd.f32 %v6838, %v6908
        %v6941 = vadd.f32 %v6839, %v6911
        %v6942 = vadd.f32 %v6840, %v6914
        %v6943 = vadd.f32 %v6841, %v6917
        %v6944 = vadd.f32 %v6842, %v6920
        %v6945 = vadd.f32 %v6843, %v6923
        %v6946 = vadd.f32 %v6844, %v6926
        %v6947 = vadd.f32 %v6845, %v6929
        %v6948 = vadd.f32 %v6846, %v6932
        %v6949 = vld [vmem:[#allocation4] sm:$0x1]
        %s6950 = vtos %v6949
        %v6951 = vstv %s6950
        %v6952 = vadd.f32 %v6933, %v6951
        %v6953 = vadd.f32 %v6934, %v6951
        %v6954 = vadd.f32 %v6935, %v6951
        %v6955 = vadd.f32 %v6936, %v6951
        %v6956 = vadd.f32 %v6937, %v6951
        %v6957 = vadd.f32 %v6938, %v6951
        %v6958 = vadd.f32 %v6939, %v6951
        %v6959 = vadd.f32 %v6940, %v6951
        %v6960 = vadd.f32 %v6941, %v6951
        %v6961 = vadd.f32 %v6942, %v6951
        %v6962 = vadd.f32 %v6943, %v6951
        %v6963 = vadd.f32 %v6944, %v6951
        %v6964 = vadd.f32 %v6945, %v6951
        %v6965 = vadd.f32 %v6946, %v6951
        %v6966 = vadd.f32 %v6947, %v6951
        %v6967 = vadd.f32 %v6948, %v6951
        %v6968 = vmax.f32 %v6952, 0.0
        %v6969 = vmax.f32 %v6953, 0.0
        %v6970 = vmax.f32 %v6954, 0.0
        %v6971 = vmax.f32 %v6955, 0.0
        %v6972 = vmax.f32 %v6956, 0.0
        %v6973 = vmax.f32 %v6957, 0.0
        %v6974 = vmax.f32 %v6958, 0.0
        %v6975 = vmax.f32 %v6959, 0.0
        %v6976 = vmax.f32 %v6960, 0.0
        %v6977 = vmax.f32 %v6961, 0.0
        %v6978 = vmax.f32 %v6962, 0.0
        %v6979 = vmax.f32 %v6963, 0.0
        %v6980 = vmax.f32 %v6964, 0.0
        %v6981 = vmax.f32 %v6965, 0.0
        %v6982 = vmax.f32 %v6966, 0.0
        %v6983 = vmax.f32 %v6967, 0.0
        %v7000 = vlaneseq
        %v7001 = vand.u32 %v7000, 127
        %v7002 = vlaneseq
        %v7003 = vshrl.u32 %v7002, 7
        %v7004 = vsub.s32 %v7001, %v7003
        %v7005 = vrot.slane %v6968, %v7004
        %v7006 = vadd.s32 %v7001, 4294967288
        %v7007 = vlaneseq
        %v7008 = vshrl.u32 %v7007, 7
        %v7009 = vsub.s32 %v7006, %v7008
        %v7010 = vrot.slane %v6969, %v7009
        %vm7011 = vcmask 130112
        %v7012 = vsel %vm7011, %v7010, %v7005
        %v7013 = vlaneseq
        %v7014 = vshrl.u32 %v7013, 7
        %v7015 = vsub.s32 %v7001, %v7014
        %v7016 = vrot.slane %v6970, %v7015
        %v7017 = vlaneseq
        %v7018 = vshrl.u32 %v7017, 7
        %v7019 = vsub.s32 %v7006, %v7018
        %v7020 = vrot.slane %v6971, %v7019
        %v7021 = vsel %vm7011, %v7020, %v7016
        %v7022 = vlaneseq
        %v7023 = vshrl.u32 %v7022, 7
        %v7024 = vsub.s32 %v7001, %v7023
        %v7025 = vrot.slane %v6972, %v7024
        %v7026 = vlaneseq
        %v7027 = vshrl.u32 %v7026, 7
        %v7028 = vsub.s32 %v7006, %v7027
        %v7029 = vrot.slane %v6973, %v7028
        %v7030 = vsel %vm7011, %v7029, %v7025
        %v7031 = vlaneseq
        %v7032 = vshrl.u32 %v7031, 7
        %v7033 = vsub.s32 %v7001, %v7032
        %v7034 = vrot.slane %v6974, %v7033
        %v7035 = vlaneseq
        %v7036 = vshrl.u32 %v7035, 7
        %v7037 = vsub.s32 %v7006, %v7036
        %v7038 = vrot.slane %v6975, %v7037
        %v7039 = vsel %vm7011, %v7038, %v7034
        %v7040 = vlaneseq
        %v7041 = vshrl.u32 %v7040, 7
        %v7042 = vsub.s32 %v7001, %v7041
        %v7043 = vrot.slane %v6976, %v7042
        %v7044 = vlaneseq
        %v7045 = vshrl.u32 %v7044, 7
        %v7046 = vsub.s32 %v7006, %v7045
        %v7047 = vrot.slane %v6977, %v7046
        %v7048 = vsel %vm7011, %v7047, %v7043
        %v7049 = vlaneseq
        %v7050 = vshrl.u32 %v7049, 7
        %v7051 = vsub.s32 %v7001, %v7050
        %v7052 = vrot.slane %v6978, %v7051
        %v7053 = vlaneseq
        %v7054 = vshrl.u32 %v7053, 7
        %v7055 = vsub.s32 %v7006, %v7054
        %v7056 = vrot.slane %v6979, %v7055
        %v7057 = vsel %vm7011, %v7056, %v7052
        %v7058 = vlaneseq
        %v7059 = vshrl.u32 %v7058, 7
        %v7060 = vsub.s32 %v7001, %v7059
        %v7061 = vrot.slane %v6980, %v7060
        %v7062 = vlaneseq
        %v7063 = vshrl.u32 %v7062, 7
        %v7064 = vsub.s32 %v7006, %v7063
        %v7065 = vrot.slane %v6981, %v7064
        %v7066 = vsel %vm7011, %v7065, %v7061
        %v7067 = vlaneseq
        %v7068 = vshrl.u32 %v7067, 7
        %v7069 = vsub.s32 %v7001, %v7068
        %v7070 = vrot.slane %v6982, %v7069
        %v7071 = vlaneseq
        %v7072 = vshrl.u32 %v7071, 7
        %v7073 = vsub.s32 %v7006, %v7072
        %v7074 = vrot.slane %v6983, %v7073
        %v7075 = vsel %vm7011, %v7074, %v7070
        %vm7076 = vcmask 1041409
        %v7077 = vsel %vm7076, %v7021, %v7012
        %vm7078 = vcmask 1042434
        %v7079 = vsel %vm7078, %v7030, %v7077
        %vm7080 = vcmask 1043459
        %v7081 = vsel %vm7080, %v7039, %v7079
        %vm7082 = vcmask 1044484
        %v7083 = vsel %vm7082, %v7048, %v7081
        %vm7084 = vcmask 1045509
        %v7085 = vsel %vm7084, %v7057, %v7083
        %vm7086 = vcmask 1046534
        %v7087 = vsel %vm7086, %v7066, %v7085
        %vm7088 = vcmask 1047559
        %v7089 = vsel %vm7088, %v7075, %v7087
        %vm7091 = vcmask 130048
        %7092 = vst.msk [vmem:[%s287] sm:$0xff] %vm7091, %v7089
        %s7093 = sand.u32 %s197, 1
        %s7094 = scalar_lea.sflag [#allocation6], %s7093
        %s7095 = sand.u32 %s197, 1
        %s7096 = smul.addr %s7095, 8
        %s7097 = scalar_lea.vmem [#allocation5], %s7096
        // Predicated region
        $region49: #{stereo_depth_net.1} parent=47 // pred_check
          %p7098 = pneg %p207
        $region50: #{stereo_depth_net.1} parent=47 // pred_check_branch
          %7100 = sbr.rel (%p7098) target = $region52
        $region51: #{stereo_depth_net.1} parent=47 // pred_region
          %s7102 = ssub.s32 128, 128
          %7103 = vsyncadd %s7094, %s7102
          %s7104 = smul.addr %s27, 2
          %s7105 = sadd.s32 %s28, %s7104
          %s7106 = smul.addr %s7105, 128
          %s7107 = scalar_lea.hbm %s7, %s7106
          %s7109 = sshll.u32 %s7097, 4
          %s7110 = int_to_ptr.vmem [resolvable:$true] %s7109
          %7112 = dma.vmem_to_hbm [thread:$0]  %s7110, 128, %s7107, %s7094
        $region52: #{stereo_depth_net.1} parent=47 // pred_fallthru
          _
      $region48: #{stereo_depth_net.1} parent=5 // pred_fallthru
        _
      %p7113 = scmp.le.s32.totalorder 2, %s18
      // Predicated region
      $region53: #{stereo_depth_net.1} parent=5 // pred_check
        %p7114 = pneg %p7113
      $region54: #{stereo_depth_net.1} parent=5 // pred_check_branch
        %7116 = sbr.rel (%p7114) target = $region56
      $region55: #{stereo_depth_net.1} parent=5 // pred_region
        %s7117 = ssub.s32 %s18, 2
        // Predicated region
        $region57: #{stereo_depth_net.1} parent=55 // pred_check
          %p7118 = pneg %p213
        $region58: #{stereo_depth_net.1} parent=55 // pred_check_branch
          %7120 = sbr.rel (%p7118) target = $region60
        $region59: #{stereo_depth_net.1} parent=55 // pred_region
          %s7121 = sand.u32 %s198, 1
          %s7122 = scalar_lea.sflag [#allocation6], %s7121
          %s7123 = sand.u32 %s198, 1
          %s7124 = smul.addr %s7123, 8
          %s7125 = scalar_lea.vmem [#allocation5], %s7124
          %7126 = dma.done %s7122, 128
        $region60: #{stereo_depth_net.1} parent=55 // pred_fallthru
          _
      $region56: #{stereo_depth_net.1} parent=5 // pred_fallthru
        _
    $region6: #{stereo_depth_net.1} parent=1 // loop_footer
      %s22 = sadd.s32 1, %s18
    $region7: #{stereo_depth_net.1} parent=1 // loop_footer_branch
      %17 = sbr.rel target = $region3
    $region8: #{stereo_depth_net.1} parent=1 // loop_exit
      _
    %7127 = vsyncpa [#allocation6], 1
    %s7128 = scalar_lea.sflag [#allocation6], 1
    %7129 = vsyncpa %s7128, 1

</llo_original>
